<compile_context>
chip_gen: v6e
topology: v6e:2x2x1
jax: 0.10.0
libtpu: 0.0.40
codegen_flags: <defaults>
</compile_context>

<pallas_src>
import jax
import jax.numpy as jnp
import numpy as np
from jax.experimental import pallas as pl
from jax.experimental.pallas import tpu as pltpu

GROUPS = 4                  # DehazeNet(input=16, groups=4)
NPG = 16 // GROUPS          # Maxout members per group

H_IN = 24                   # input spatial size
H_C1 = 20                   # after conv1 (5x5 valid)
H_PL = 14                   # after 7x7 stride-1 max pool
H_O = 9                     # after conv5 (6x6 valid)
C_Y = 48                    # channels after concat(conv2, conv3, conv4)

ROW0 = 8                    # zero rows above / below the images in out1 scratch
K1 = 5 * H_IN * 3           # 360 : conv1 folded K (5 row taps x 72 lanes)
K1P = 384                   # conv1 K padded; lane 360 is the bias/ones column
N1P = NPG * 128             # 512 : conv1 N (4 maxout slabs, each padded to 128)
Y_W = H_C1 * C_Y            # 960 : merged conv2/3/4 output lanes (w=20, c=48)
Y_WP = 1024
P_W = H_PL * C_Y            # 672 : pooled lanes (w=14, c=48)
P_WP = 768


# ---------------------------------------------------------------------------
# The fused kernel (one grid step == one chunk of `cb` images, M = cb*24 rows)
# ---------------------------------------------------------------------------
def _make_kernel(cb):
    mrows = cb * H_IN       # GEMM M rows per grid step

    def kernel(x1_ref, m1_ref, m2_ref, b2_ref, m5_ref, b5_ref, o_ref,
               out1_scr, a2_scr, y_scr, hp_scr, pool_scr, a5_scr):
        f32, bf16 = jnp.float32, jnp.bfloat16

        # ---- stage 1: conv1 (bias folded in via ones column) + Maxout(4) ---
        # Single GEMM, K = 5 row taps folded (pre-concatenated in the wrapper).
        acc1 = jnp.dot(x1_ref[...], m1_ref[...], preferred_element_type=f32)
        out1 = acc1[:, 0:128]
        for mm in range(1, NPG):                       # 128-aligned maxout slabs
            out1 = jnp.maximum(out1, acc1[:, mm * 128:(mm + 1) * 128])
        # Rows >= 20 of each image (and all pad rows) are exact zeros straight
        # out of the MXU: they are the vertical zero padding of the merged 7x7
        # "same" conv below.  Pad lanes 80..127 are exact zeros too.
        out1_scr[0:ROW0, :] = jnp.zeros((ROW0, 128), f32)
        out1_scr[ROW0:ROW0 + mrows, :] = out1
        out1_scr[ROW0 + mrows:ROW0 + mrows + ROW0, :] = jnp.zeros((ROW0, 128), f32)

        # ---- stage 2: conv2|conv3|conv4 merged into one 7x7 "same" conv -----
        # Fold the 7 row taps into K by staging 128-lane windows of out1_scr.
        base = ROW0 - 3
        for di in range(7):
            a2_scr[:, di * 128:(di + 1) * 128] = \
                out1_scr[base + di:base + di + mrows, :].astype(bf16)
        y = jnp.dot(a2_scr[...], m2_ref[...],
                    preferred_element_type=f32) + b2_ref[...]
        y_scr[0:mrows, :] = y
        y_scr[mrows:mrows + 8, :] = jnp.zeros((8, Y_WP), f32)

        # ---- stage 3: 7x7 stride-1 max pool, separable ----------------------
        hp = y_scr[0:mrows, :]
        for di in range(1, 7):                         # 7 row-shifted maxima
            hp = jnp.maximum(hp, y_scr[di:di + mrows, :])
        hp_scr[...] = hp
        pooled = hp_scr[:, 0:P_W]
        for dj in range(1, 7):                         # 7 lane-window maxima
            pooled = jnp.maximum(pooled, hp_scr[:, dj * C_Y:dj * C_Y + P_W])
        pool_scr[0:mrows, 0:P_W] = pooled
        # pad lanes / pad rows must be finite (zero) -- they feed the conv5 GEMM
        pool_scr[0:mrows, P_W:P_WP] = jnp.zeros((mrows, P_WP - P_W), f32)
        pool_scr[mrows:mrows + 8, :] = jnp.zeros((8, P_WP), f32)

        # ---- stage 4: conv5 (6x6 valid) + BRelu -----------------------------
        # Fold the 6 row taps into K by staging 768-lane windows of pool_scr.
        for di in range(6):
            a5_scr[:, di * P_WP:(di + 1) * P_WP] = \
                pool_scr[di:di + mrows, :].astype(bf16)
        acc5 = jnp.dot(a5_scr[...], m5_ref[...],
                       preferred_element_type=f32) + b5_ref[...]
        o_ref[...] = jnp.clip(acc5, 0.0, 1.0)          # lane-dense (M, 128) slab

    return kernel


# ---------------------------------------------------------------------------
# One-time weight preparation (banded horizontal-GEMM weights, merged, padded)
# ---------------------------------------------------------------------------
def _banded(w_hwio, w_in, w_out, pad):
    """(kh,kw,C,N) -> (kh, w_in*C, w_out*N) banded weights.

    band[di][w_i*C + c, w_o*N + n] = w[di, dj, c, n] where w_i = w_o + dj - pad;
    taps falling outside [0, w_in) are dropped (== horizontal zero padding).
    """
    kh, kw, c, n = w_hwio.shape
    dj = np.arange(kw)[:, None, None]
    wi = np.arange(w_in)[None, :, None]
    wo = np.arange(w_out)[None, None, :]
    ind = jnp.asarray((wi == wo + dj - pad).astype(np.float32))   # (kw, wi, wo)
    t = jnp.einsum("dkcn,kiw->dicwn", w_hwio, ind)
    return t.reshape(kh, w_in * c, w_out * n)


def build_kernel_weights(params):
    """Runs ONCE (outside the jitted forward): bf16 GEMM operands."""
    w1, b1 = params["conv1"]   # (5,5,3,16)
    w2, b2 = params["conv2"]   # (3,3,4,16)
    w3, b3 = params["conv3"]   # (5,5,4,16)
    w4, b4 = params["conv4"]   # (7,7,4,16)
    w5, b5 = params["conv5"]   # (6,6,48,1)

    # conv1: output lanes reordered (w, o=(g,m)) -> (m, w, g); each maxout slab
    # padded 80 -> 128; the 5 row taps folded into K; bias appended at K = 360
    # (matches the ones-column of x1 built in the wrapper).
    m1 = _banded(w1, H_IN, H_C1, 0)                                 # (5,72,320)
    m1 = m1.reshape(5, H_IN * 3, H_C1, GROUPS, NPG)
    m1 = jnp.transpose(m1, (0, 1, 4, 2, 3))                         # (di,K,m,w,g)
    m1 = m1.reshape(5, H_IN * 3, NPG, H_C1 * GROUPS)
    m1 = jnp.pad(m1, ((0, 0), (0, 0), (0, 0), (0, 128 - H_C1 * GROUPS)))
    m1 = m1.reshape(K1, N1P)                                        # (360, 512)
    b1mg = b1.reshape(GROUPS, NPG).T                                # [m, g]
    b1row = jnp.broadcast_to(b1mg[:, None, :], (NPG, H_C1, GROUPS))
    b1row = b1row.reshape(NPG, H_C1 * GROUPS)
    b1row = jnp.pad(b1row, ((0, 0), (0, 128 - H_C1 * GROUPS))).reshape(1, N1P)
    m1k = jnp.concatenate(
        [m1, b1row, jnp.zeros((K1P - K1 - 1, N1P), jnp.float32)], axis=0)
    m1k = m1k.astype(jnp.bfloat16)                                  # (384, 512)

    # conv2/conv3/conv4 zero-embedded into one 7x7x4x48 kernel, banded,
    # K per tap padded 80 -> 128, N padded 960 -> 1024, taps folded into K.
    wm = jnp.zeros((7, 7, 4, C_Y), jnp.float32)
    wm = wm.at[2:5, 2:5, :, 0:16].set(w2)
    wm = wm.at[1:6, 1:6, :, 16:32].set(w3)
    wm = wm.at[:, :, :, 32:48].set(w4)
    m2 = _banded(wm, H_C1, H_C1, 3)                                 # (7,80,960)
    m2 = jnp.pad(m2, ((0, 0), (0, 128 - H_C1 * GROUPS), (0, Y_WP - Y_W)))
    m2k = m2.reshape(7 * 128, Y_WP).astype(jnp.bfloat16)            # (896,1024)
    b2p = jnp.pad(jnp.tile(jnp.concatenate([b2, b3, b4]), (H_C1,)),
                  (0, Y_WP - Y_W)).reshape(1, Y_WP)                 # f32

    # conv5: banded, K per tap padded 672 -> 768, taps folded, N padded 9 -> 128.
    m5 = _banded(w5, H_PL, H_O, 0)                                  # (6,672,9)
    m5 = jnp.pad(m5, ((0, 0), (0, P_WP - P_W), (0, 128 - H_O)))
    m5k = m5.reshape(6 * P_WP, 128).astype(jnp.bfloat16)            # (4608,128)
    b5p = jnp.pad(jnp.tile(b5, (H_O,)), (0, 128 - H_O)).reshape(1, 128)  # f32

    return m1k, m2k, b2p, m5k, b5p


# ---------------------------------------------------------------------------
# Parameters (same tensor shapes as the PyTorch __init__).  The synthetic init
# uses a larger scale than torch's std=0.001 purely so the correctness check
# below is numerically meaningful; forward-pass semantics are unchanged.
# ---------------------------------------------------------------------------
def init_params(key):
    def conv(k, kh, kw, cin, cout):
        kw_, kb_ = jax.random.split(k)
        w = 0.03 * jax.random.normal(kw_, (kh, kw, cin, cout), jnp.float32)
        b = 0.02 * jax.random.normal(kb_, (cout,), jnp.float32)
        return w, b

    k1, k2, k3, k4, k5 = jax.random.split(key, 5)
    return {
        "conv1": conv(k1, 5, 5, 3, 16),
        "conv2": conv(k2, 3, 3, 4, 16),
        "conv3": conv(k3, 5, 5, 4, 16),
        "conv4": conv(k4, 7, 7, 4, 16),
        "conv5": conv(k5, 6, 6, 48, 1),
    }


# ---------------------------------------------------------------------------
# Forward pass (single fused Pallas kernel, batch folded into GEMM M)
# ---------------------------------------------------------------------------
def dehazenet_forward(x_nchw, kernel_weights, *, chunk_images=8):
    m1k, m2k, b2p, m5k, b5p = kernel_weights

    bsz = x_nchw.shape[0]
    cb = min(chunk_images, bsz)
    n_chunks = -(-bsz // cb)
    bsz_p = n_chunks * cb
    mrows = cb * H_IN

    # Build the stage-1 "im2row" slab: for image-local row j, the 5 conv1 row
    # taps x[j..j+4] are concatenated along lanes (K=360), followed by the
    # bias/ones column (lane 360) and zero padding to 384.  Rows j >= 20 are
    # zeroed so the conv1 GEMM emits exact zeros for them (vertical padding).
    x = jnp.transpose(x_nchw, (0, 2, 3, 1)).astype(jnp.float32)     # NHWC
    x2d = x.reshape(bsz, H_IN, H_IN * 3)                            # (B,24,72)
    xp = jnp.pad(x2d, ((0, 0), (0, 4), (0, 0)))                     # (B,28,72)
    x1 = jnp.concatenate([xp[:, di:di + H_IN, :] for di in range(5)],
                         axis=-1)                                   # (B,24,360)
    valid = (jnp.arange(H_IN) < H_C1).astype(jnp.float32)[None, :, None]
    x1 = x1 * valid
    ones_col = jnp.broadcast_to(valid, (bsz, H_IN, 1))
    tail = jnp.zeros((bsz, H_IN, K1P - K1 - 1), jnp.float32)
    x1 = jnp.concatenate([x1, ones_col, tail], axis=-1).astype(jnp.bfloat16)
    if bsz_p > bsz:
        x1 = jnp.pad(x1, ((0, bsz_p - bsz), (0, 0), (0, 0)))
    x1 = x1.reshape(bsz_p * H_IN, K1P)

    out = pl.pallas_call(
        _make_kernel(cb),
        out_shape=jax.ShapeDtypeStruct((bsz_p * H_IN, 128), jnp.float32),
        grid=(n_chunks,),
        in_specs=[
            pl.BlockSpec((mrows, K1P), lambda i: (i, 0)),
            pl.BlockSpec(m1k.shape, lambda i: (0, 0)),
            pl.BlockSpec(m2k.shape, lambda i: (0, 0)),
            pl.BlockSpec(b2p.shape, lambda i: (0, 0)),
            pl.BlockSpec(m5k.shape, lambda i: (0, 0)),
            pl.BlockSpec(b5p.shape, lambda i: (0, 0)),
        ],
        out_specs=pl.BlockSpec((mrows, 128), lambda i: (i, 0)),
        scratch_shapes=[
            pltpu.VMEM((mrows + 2 * ROW0, 128), jnp.float32),   # conv1+maxout
            pltpu.VMEM((mrows, 7 * 128), jnp.bfloat16),         # stage-2 K-folded LHS
            pltpu.VMEM((mrows + 8, Y_WP), jnp.float32),         # merged conv out
            pltpu.VMEM((mrows, Y_WP), jnp.float32),             # row-pooled
            pltpu.VMEM((mrows + 8, P_WP), jnp.float32),         # 7x7-pooled
            pltpu.VMEM((mrows, 6 * P_WP), jnp.bfloat16),        # stage-4 K-folded LHS
        ],
        compiler_params=pltpu.CompilerParams(
            dimension_semantics=("parallel",),   # v7x: chunks split across TCs
            vmem_limit_bytes=32 * 1024 * 1024,
        ),
    )(x1, m1k, m2k, b2p, m5k, b5p)

    # Strip the lane/row padding: valid output is rows 0..8, lanes 0..8 of each
    # image's 24-row band in the lane-dense (rows, 128) slab.
    out = out.reshape(bsz_p, H_IN, 128)[:bsz, :H_O, :H_O]
    return out.reshape(bsz, H_O * H_O)


# ---------------------------------------------------------------------------
# Pure-JAX/XLA reference (mirrors the PyTorch forward) for a correctness check
# ---------------------------------------------------------------------------
def dehazenet_reference(x_nchw, params):
    dn = ("NHWC", "HWIO", "NHWC")

    def conv(x, wb, pad):
        w, b = wb
        return jax.lax.conv_general_dilated(
            x, w, (1, 1), [(pad, pad), (pad, pad)], dimension_numbers=dn,
            precision=jax.lax.Precision.HIGHEST) + b

    x = jnp.transpose(x_nchw, (0, 2, 3, 1)).astype(jnp.float32)
    o = conv(x, params["conv1"], 0)
    bsz, h1, wd1, _ = o.shape
    o = o.reshape(bsz, h1, wd1, GROUPS, NPG).max(axis=-1)           # Maxout
    y = jnp.concatenate(
        [conv(o, params["conv2"], 1),
         conv(o, params["conv3"], 2),
         conv(o, params["conv4"], 3)], axis=-1)
    y = jax.lax.reduce_window(y, -jnp.inf, jax.lax.max,
                              (1, 7, 7, 1), (1, 1, 1, 1), "VALID")
    y = conv(y, params["conv5"], 0)
    y = jnp.clip(y, 0.0, 1.0)                                       # BRelu
    return y.reshape(y.shape[0], -1)


if __name__ == "__main__":
    key = jax.random.PRNGKey(0)
    kx, kp = jax.random.split(key)
    # NCHW input like the PyTorch module: batch=2, channels=3, 24x24 spatial.
    x = jax.random.normal(kx, (2, 3, 24, 24), jnp.float32)
    params = init_params(kp)

    # Weight prep runs once here (hoisted out of the jitted forward); the
    # jitted function only consumes the prepared bf16 GEMM operands.
    kernel_weights = build_kernel_weights(params)

    fwd = jax.jit(dehazenet_forward)
    out = jax.block_until_ready(fwd(x, kernel_weights))
    assert out.shape == (2, H_O * H_O), out.shape

    ref = jax.block_until_ready(dehazenet_reference(x, params))
    # bf16 MXU operands with f32 accumulation -> a few-percent tolerance on
    # O(0.1..1) outputs (the synthetic init is sized so this check is
    # meaningful, unlike an atol-only check on near-zero outputs).
    np.testing.assert_allclose(np.asarray(out), np.asarray(ref),
                               rtol=2e-2, atol=3e-2)
    print("KERNEL_OK")
</pallas_src>

<mosaic_0001>
module attributes {stable_mosaic.version = 11 : i64} {
  func.func @kernel(%arg0: i32, %arg1: memref<48x384xbf16, #tpu.memory_space<vmem>>, %arg2: memref<384x512xbf16, #tpu.memory_space<vmem>>, %arg3: memref<896x1024xbf16, #tpu.memory_space<vmem>>, %arg4: memref<1x1024xf32, #tpu.memory_space<vmem>>, %arg5: memref<4608x128xbf16, #tpu.memory_space<vmem>>, %arg6: memref<1x128xf32, #tpu.memory_space<vmem>>, %arg7: memref<48x128xf32, #tpu.memory_space<vmem>>, %arg8: memref<64x128xf32, #tpu.memory_space<vmem>>, %arg9: memref<48x896xbf16, #tpu.memory_space<vmem>>, %arg10: memref<56x1024xf32, #tpu.memory_space<vmem>>, %arg11: memref<48x1024xf32, #tpu.memory_space<vmem>>, %arg12: memref<56x768xf32, #tpu.memory_space<vmem>>, %arg13: memref<48x4608xbf16, #tpu.memory_space<vmem>>) attributes {dimension_semantics = [#tpu.dimension_semantics<parallel>], iteration_bounds = array<i64: 1>, scalar_prefetch = 0 : i64, scratch_operands = 6 : i64, tpu.core_type = #tpu.core_type<tc>, window_params = [{transform_indices = @transform_0, window_bounds = array<i64: 48, 384>}, {pipeline_mode = #tpu.pipeline_mode<synchronous>, transform_indices = @transform_1, window_bounds = array<i64: 384, 512>}, {pipeline_mode = #tpu.pipeline_mode<synchronous>, transform_indices = @transform_2, window_bounds = array<i64: 896, 1024>}, {pipeline_mode = #tpu.pipeline_mode<synchronous>, transform_indices = @transform_3, window_bounds = array<i64: 1, 1024>}, {pipeline_mode = #tpu.pipeline_mode<synchronous>, transform_indices = @transform_4, window_bounds = array<i64: 4608, 128>}, {pipeline_mode = #tpu.pipeline_mode<synchronous>, transform_indices = @transform_5, window_bounds = array<i64: 1, 128>}, {transform_indices = @transform_6, window_bounds = array<i64: 48, 128>}]} {
    %c0 = arith.constant 0 : index
    %c0_0 = arith.constant 0 : index
    %0 = vector.load %arg1[%c0, %c0_0] : memref<48x384xbf16, #tpu.memory_space<vmem>>, vector<48x384xbf16>
    %c0_1 = arith.constant 0 : index
    %c0_2 = arith.constant 0 : index
    %1 = vector.load %arg2[%c0_1, %c0_2] : memref<384x512xbf16, #tpu.memory_space<vmem>>, vector<384x512xbf16>
    %cst = arith.constant dense<0.000000e+00> : vector<48x512xf32>
    %2 = tpu.matmul %0, %1, %cst {dimension_numbers = #tpu.dot_dimension_numbers<[1], [0], [0], [1], [0, 0, 1, 1], [], []>} : vector<48x384xbf16>, vector<384x512xbf16>, vector<48x512xf32> -> vector<48x512xf32>
    %3 = vector.extract_strided_slice %2 {offsets = [0, 0], sizes = [48, 128], strides = [1, 1]} : vector<48x512xf32> to vector<48x128xf32>
    %4 = vector.extract_strided_slice %2 {offsets = [0, 128], sizes = [48, 128], strides = [1, 1]} : vector<48x512xf32> to vector<48x128xf32>
    %5 = arith.maximumf %3, %4 : vector<48x128xf32>
    %6 = vector.extract_strided_slice %2 {offsets = [0, 256], sizes = [48, 128], strides = [1, 1]} : vector<48x512xf32> to vector<48x128xf32>
    %7 = arith.maximumf %5, %6 : vector<48x128xf32>
    %8 = vector.extract_strided_slice %2 {offsets = [0, 384], sizes = [48, 128], strides = [1, 1]} : vector<48x512xf32> to vector<48x128xf32>
    %9 = arith.maximumf %7, %8 : vector<48x128xf32>
    %cst_3 = arith.constant 0.000000e+00 : f32
    %10 = vector.broadcast %cst_3 : f32 to vector<8x128xf32>
    %c0_4 = arith.constant 0 : index
    %c0_5 = arith.constant 0 : index
    %11 = vector.load %arg8[%c0_4, %c0_5] : memref<64x128xf32, #tpu.memory_space<vmem>>, vector<8x128xf32>
    tpu.vector_store %arg8[%c0_4, %c0_5], %10 {strides = array<i32>} : memref<64x128xf32, #tpu.memory_space<vmem>>, vector<8x128xf32>,
    %c8 = arith.constant 8 : index
    %c0_6 = arith.constant 0 : index
    %12 = vector.load %arg8[%c8, %c0_6] : memref<64x128xf32, #tpu.memory_space<vmem>>, vector<48x128xf32>
    tpu.vector_store %arg8[%c8, %c0_6], %9 {strides = array<i32>} : memref<64x128xf32, #tpu.memory_space<vmem>>, vector<48x128xf32>,
    %cst_7 = arith.constant 0.000000e+00 : f32
    %13 = vector.broadcast %cst_7 : f32 to vector<8x128xf32>
    %c56 = arith.constant 56 : index
    %c0_8 = arith.constant 0 : index
    %14 = vector.load %arg8[%c56, %c0_8] : memref<64x128xf32, #tpu.memory_space<vmem>>, vector<8x128xf32>
    tpu.vector_store %arg8[%c56, %c0_8], %13 {strides = array<i32>} : memref<64x128xf32, #tpu.memory_space<vmem>>, vector<8x128xf32>,
    %c5 = arith.constant 5 : index
    %c0_9 = arith.constant 0 : index
    %15 = vector.load %arg8[%c5, %c0_9] : memref<64x128xf32, #tpu.memory_space<vmem>>, vector<48x128xf32>
    %16 = arith.truncf %15 : vector<48x128xf32> to vector<48x128xbf16>
    %c0_10 = arith.constant 0 : index
    %c0_11 = arith.constant 0 : index
    %17 = vector.load %arg9[%c0_10, %c0_11] : memref<48x896xbf16, #tpu.memory_space<vmem>>, vector<48x128xbf16>
    tpu.vector_store %arg9[%c0_10, %c0_11], %16 {strides = array<i32>} : memref<48x896xbf16, #tpu.memory_space<vmem>>, vector<48x128xbf16>,
    %c6 = arith.constant 6 : index
    %c0_12 = arith.constant 0 : index
    %18 = vector.load %arg8[%c6, %c0_12] : memref<64x128xf32, #tpu.memory_space<vmem>>, vector<48x128xf32>
    %19 = arith.truncf %18 : vector<48x128xf32> to vector<48x128xbf16>
    %c0_13 = arith.constant 0 : index
    %c128 = arith.constant 128 : index
    %20 = vector.load %arg9[%c0_13, %c128] : memref<48x896xbf16, #tpu.memory_space<vmem>>, vector<48x128xbf16>
    tpu.vector_store %arg9[%c0_13, %c128], %19 {strides = array<i32>} : memref<48x896xbf16, #tpu.memory_space<vmem>>, vector<48x128xbf16>,
    %c7 = arith.constant 7 : index
    %c0_14 = arith.constant 0 : index
    %21 = vector.load %arg8[%c7, %c0_14] : memref<64x128xf32, #tpu.memory_space<vmem>>, vector<48x128xf32>
    %22 = arith.truncf %21 : vector<48x128xf32> to vector<48x128xbf16>
    %c0_15 = arith.constant 0 : index
    %c256 = arith.constant 256 : index
    %23 = vector.load %arg9[%c0_15, %c256] : memref<48x896xbf16, #tpu.memory_space<vmem>>, vector<48x128xbf16>
    tpu.vector_store %arg9[%c0_15, %c256], %22 {strides = array<i32>} : memref<48x896xbf16, #tpu.memory_space<vmem>>, vector<48x128xbf16>,
    %c8_16 = arith.constant 8 : index
    %c0_17 = arith.constant 0 : index
    %24 = vector.load %arg8[%c8_16, %c0_17] : memref<64x128xf32, #tpu.memory_space<vmem>>, vector<48x128xf32>
    %25 = arith.truncf %24 : vector<48x128xf32> to vector<48x128xbf16>
    %c0_18 = arith.constant 0 : index
    %c384 = arith.constant 384 : index
    %26 = vector.load %arg9[%c0_18, %c384] : memref<48x896xbf16, #tpu.memory_space<vmem>>, vector<48x128xbf16>
    tpu.vector_store %arg9[%c0_18, %c384], %25 {strides = array<i32>} : memref<48x896xbf16, #tpu.memory_space<vmem>>, vector<48x128xbf16>,
    %c9 = arith.constant 9 : index
    %c0_19 = arith.constant 0 : index
    %27 = vector.load %arg8[%c9, %c0_19] : memref<64x128xf32, #tpu.memory_space<vmem>>, vector<48x128xf32>
    %28 = arith.truncf %27 : vector<48x128xf32> to vector<48x128xbf16>
    %c0_20 = arith.constant 0 : index
    %c512 = arith.constant 512 : index
    %29 = vector.load %arg9[%c0_20, %c512] : memref<48x896xbf16, #tpu.memory_space<vmem>>, vector<48x128xbf16>
    tpu.vector_store %arg9[%c0_20, %c512], %28 {strides = array<i32>} : memref<48x896xbf16, #tpu.memory_space<vmem>>, vector<48x128xbf16>,
    %c10 = arith.constant 10 : index
    %c0_21 = arith.constant 0 : index
    %30 = vector.load %arg8[%c10, %c0_21] : memref<64x128xf32, #tpu.memory_space<vmem>>, vector<48x128xf32>
    %31 = arith.truncf %30 : vector<48x128xf32> to vector<48x128xbf16>
    %c0_22 = arith.constant 0 : index
    %c640 = arith.constant 640 : index
    %32 = vector.load %arg9[%c0_22, %c640] : memref<48x896xbf16, #tpu.memory_space<vmem>>, vector<48x128xbf16>
    tpu.vector_store %arg9[%c0_22, %c640], %31 {strides = array<i32>} : memref<48x896xbf16, #tpu.memory_space<vmem>>, vector<48x128xbf16>,
    %c11 = arith.constant 11 : index
    %c0_23 = arith.constant 0 : index
    %33 = vector.load %arg8[%c11, %c0_23] : memref<64x128xf32, #tpu.memory_space<vmem>>, vector<48x128xf32>
    %34 = arith.truncf %33 : vector<48x128xf32> to vector<48x128xbf16>
    %c0_24 = arith.constant 0 : index
    %c768 = arith.constant 768 : index
    %35 = vector.load %arg9[%c0_24, %c768] : memref<48x896xbf16, #tpu.memory_space<vmem>>, vector<48x128xbf16>
    tpu.vector_store %arg9[%c0_24, %c768], %34 {strides = array<i32>} : memref<48x896xbf16, #tpu.memory_space<vmem>>, vector<48x128xbf16>,
    %c0_25 = arith.constant 0 : index
    %c0_26 = arith.constant 0 : index
    %36 = vector.load %arg9[%c0_25, %c0_26] : memref<48x896xbf16, #tpu.memory_space<vmem>>, vector<48x896xbf16>
    %c0_27 = arith.constant 0 : index
    %c0_28 = arith.constant 0 : index
    %37 = vector.load %arg3[%c0_27, %c0_28] : memref<896x1024xbf16, #tpu.memory_space<vmem>>, vector<896x1024xbf16>
    %cst_29 = arith.constant dense<0.000000e+00> : vector<48x1024xf32>
    %38 = tpu.matmul %36, %37, %cst_29 {dimension_numbers = #tpu.dot_dimension_numbers<[1], [0], [0], [1], [0, 0, 1, 1], [], []>} : vector<48x896xbf16>, vector<896x1024xbf16>, vector<48x1024xf32> -> vector<48x1024xf32>
    %c0_30 = arith.constant 0 : index
    %c0_31 = arith.constant 0 : index
    %39 = vector.load %arg4[%c0_30, %c0_31] : memref<1x1024xf32, #tpu.memory_space<vmem>>, vector<1x1024xf32>
    %40 = vector.broadcast %39 : vector<1x1024xf32> to vector<48x1024xf32>
    %41 = arith.addf %38, %40 : vector<48x1024xf32>
    %c0_32 = arith.constant 0 : index
    %c0_33 = arith.constant 0 : index
    %42 = vector.load %arg10[%c0_32, %c0_33] : memref<56x1024xf32, #tpu.memory_space<vmem>>, vector<48x1024xf32>
    tpu.vector_store %arg10[%c0_32, %c0_33], %41 {strides = array<i32>} : memref<56x1024xf32, #tpu.memory_space<vmem>>, vector<48x1024xf32>,
    %cst_34 = arith.constant 0.000000e+00 : f32
    %43 = vector.broadcast %cst_34 : f32 to vector<8x1024xf32>
    %c48 = arith.constant 48 : index
    %c0_35 = arith.constant 0 : index
    %44 = vector.load %arg10[%c48, %c0_35] : memref<56x1024xf32, #tpu.memory_space<vmem>>, vector<8x1024xf32>
    tpu.vector_store %arg10[%c48, %c0_35], %43 {strides = array<i32>} : memref<56x1024xf32, #tpu.memory_space<vmem>>, vector<8x1024xf32>,
    %c0_36 = arith.constant 0 : index
    %c0_37 = arith.constant 0 : index
    %45 = vector.load %arg10[%c0_36, %c0_37] : memref<56x1024xf32, #tpu.memory_space<vmem>>, vector<48x1024xf32>
    %c1 = arith.constant 1 : index
    %c0_38 = arith.constant 0 : index
    %46 = vector.load %arg10[%c1, %c0_38] : memref<56x1024xf32, #tpu.memory_space<vmem>>, vector<48x1024xf32>
    %47 = arith.maximumf %45, %46 : vector<48x1024xf32>
    %c2 = arith.constant 2 : index
    %c0_39 = arith.constant 0 : index
    %48 = vector.load %arg10[%c2, %c0_39] : memref<56x1024xf32, #tpu.memory_space<vmem>>, vector<48x1024xf32>
    %49 = arith.maximumf %47, %48 : vector<48x1024xf32>
    %c3 = arith.constant 3 : index
    %c0_40 = arith.constant 0 : index
    %50 = vector.load %arg10[%c3, %c0_40] : memref<56x1024xf32, #tpu.memory_space<vmem>>, vector<48x1024xf32>
    %51 = arith.maximumf %49, %50 : vector<48x1024xf32>
    %c4 = arith.constant 4 : index
    %c0_41 = arith.constant 0 : index
    %52 = vector.load %arg10[%c4, %c0_41] : memref<56x1024xf32, #tpu.memory_space<vmem>>, vector<48x1024xf32>
    %53 = arith.maximumf %51, %52 : vector<48x1024xf32>
    %c5_42 = arith.constant 5 : index
    %c0_43 = arith.constant 0 : index
    %54 = vector.load %arg10[%c5_42, %c0_43] : memref<56x1024xf32, #tpu.memory_space<vmem>>, vector<48x1024xf32>
    %55 = arith.maximumf %53, %54 : vector<48x1024xf32>
    %c6_44 = arith.constant 6 : index
    %c0_45 = arith.constant 0 : index
    %56 = vector.load %arg10[%c6_44, %c0_45] : memref<56x1024xf32, #tpu.memory_space<vmem>>, vector<48x1024xf32>
    %57 = arith.maximumf %55, %56 : vector<48x1024xf32>
    %c0_46 = arith.constant 0 : index
    %c0_47 = arith.constant 0 : index
    %58 = vector.load %arg11[%c0_46, %c0_47] : memref<48x1024xf32, #tpu.memory_space<vmem>>, vector<48x1024xf32>
    tpu.vector_store %arg11[%c0_46, %c0_47], %57 {strides = array<i32>} : memref<48x1024xf32, #tpu.memory_space<vmem>>, vector<48x1024xf32>,
    %c0_48 = arith.constant 0 : index
    %c0_49 = arith.constant 0 : index
    %59 = vector.load %arg11[%c0_48, %c0_49] : memref<48x1024xf32, #tpu.memory_space<vmem>>, vector<48x672xf32>
    %c0_50 = arith.constant 0 : index
    %c48_51 = arith.constant 48 : index
    %60 = vector.load %arg11[%c0_50, %c48_51] : memref<48x1024xf32, #tpu.memory_space<vmem>>, vector<48x672xf32>
    %61 = arith.maximumf %59, %60 : vector<48x672xf32>
    %c0_52 = arith.constant 0 : index
    %c96 = arith.constant 96 : index
    %62 = vector.load %arg11[%c0_52, %c96] : memref<48x1024xf32, #tpu.memory_space<vmem>>, vector<48x672xf32>
    %63 = arith.maximumf %61, %62 : vector<48x672xf32>
    %c0_53 = arith.constant 0 : index
    %c144 = arith.constant 144 : index
    %64 = vector.load %arg11[%c0_53, %c144] : memref<48x1024xf32, #tpu.memory_space<vmem>>, vector<48x672xf32>
    %65 = arith.maximumf %63, %64 : vector<48x672xf32>
    %c0_54 = arith.constant 0 : index
    %c192 = arith.constant 192 : index
    %66 = vector.load %arg11[%c0_54, %c192] : memref<48x1024xf32, #tpu.memory_space<vmem>>, vector<48x672xf32>
    %67 = arith.maximumf %65, %66 : vector<48x672xf32>
    %c0_55 = arith.constant 0 : index
    %c240 = arith.constant 240 : index
    %68 = vector.load %arg11[%c0_55, %c240] : memref<48x1024xf32, #tpu.memory_space<vmem>>, vector<48x672xf32>
    %69 = arith.maximumf %67, %68 : vector<48x672xf32>
    %c0_56 = arith.constant 0 : index
    %c288 = arith.constant 288 : index
    %70 = vector.load %arg11[%c0_56, %c288] : memref<48x1024xf32, #tpu.memory_space<vmem>>, vector<48x672xf32>
    %71 = arith.maximumf %69, %70 : vector<48x672xf32>
    %c0_57 = arith.constant 0 : index
    %c0_58 = arith.constant 0 : index
    %72 = vector.load %arg12[%c0_57, %c0_58] : memref<56x768xf32, #tpu.memory_space<vmem>>, vector<48x672xf32>
    tpu.vector_store %arg12[%c0_57, %c0_58], %71 {strides = array<i32>} : memref<56x768xf32, #tpu.memory_space<vmem>>, vector<48x672xf32>,
    %cst_59 = arith.constant 0.000000e+00 : f32
    %73 = vector.broadcast %cst_59 : f32 to vector<48x96xf32>
    %c0_60 = arith.constant 0 : index
    %c672 = arith.constant 672 : index
    %74 = vector.load %arg12[%c0_60, %c672] : memref<56x768xf32, #tpu.memory_space<vmem>>, vector<48x96xf32>
    tpu.vector_store %arg12[%c0_60, %c672], %73 {strides = array<i32>} : memref<56x768xf32, #tpu.memory_space<vmem>>, vector<48x96xf32>,
    %cst_61 = arith.constant 0.000000e+00 : f32
    %75 = vector.broadcast %cst_61 : f32 to vector<8x768xf32>
    %c48_62 = arith.constant 48 : index
    %c0_63 = arith.constant 0 : index
    %76 = vector.load %arg12[%c48_62, %c0_63] : memref<56x768xf32, #tpu.memory_space<vmem>>, vector<8x768xf32>
    tpu.vector_store %arg12[%c48_62, %c0_63], %75 {strides = array<i32>} : memref<56x768xf32, #tpu.memory_space<vmem>>, vector<8x768xf32>,
    %c0_64 = arith.constant 0 : index
    %c0_65 = arith.constant 0 : index
    %77 = vector.load %arg12[%c0_64, %c0_65] : memref<56x768xf32, #tpu.memory_space<vmem>>, vector<48x768xf32>
    %78 = arith.truncf %77 : vector<48x768xf32> to vector<48x768xbf16>
    %c0_66 = arith.constant 0 : index
    %c0_67 = arith.constant 0 : index
    %79 = vector.load %arg13[%c0_66, %c0_67] : memref<48x4608xbf16, #tpu.memory_space<vmem>>, vector<48x768xbf16>
    tpu.vector_store %arg13[%c0_66, %c0_67], %78 {strides = array<i32>} : memref<48x4608xbf16, #tpu.memory_space<vmem>>, vector<48x768xbf16>,
    %c1_68 = arith.constant 1 : index
    %c0_69 = arith.constant 0 : index
    %80 = vector.load %arg12[%c1_68, %c0_69] : memref<56x768xf32, #tpu.memory_space<vmem>>, vector<48x768xf32>
    %81 = arith.truncf %80 : vector<48x768xf32> to vector<48x768xbf16>
    %c0_70 = arith.constant 0 : index
    %c768_71 = arith.constant 768 : index
    %82 = vector.load %arg13[%c0_70, %c768_71] : memref<48x4608xbf16, #tpu.memory_space<vmem>>, vector<48x768xbf16>
    tpu.vector_store %arg13[%c0_70, %c768_71], %81 {strides = array<i32>} : memref<48x4608xbf16, #tpu.memory_space<vmem>>, vector<48x768xbf16>,
    %c2_72 = arith.constant 2 : index
    %c0_73 = arith.constant 0 : index
    %83 = vector.load %arg12[%c2_72, %c0_73] : memref<56x768xf32, #tpu.memory_space<vmem>>, vector<48x768xf32>
    %84 = arith.truncf %83 : vector<48x768xf32> to vector<48x768xbf16>
    %c0_74 = arith.constant 0 : index
    %c1536 = arith.constant 1536 : index
    %85 = vector.load %arg13[%c0_74, %c1536] : memref<48x4608xbf16, #tpu.memory_space<vmem>>, vector<48x768xbf16>
    tpu.vector_store %arg13[%c0_74, %c1536], %84 {strides = array<i32>} : memref<48x4608xbf16, #tpu.memory_space<vmem>>, vector<48x768xbf16>,
    %c3_75 = arith.constant 3 : index
    %c0_76 = arith.constant 0 : index
    %86 = vector.load %arg12[%c3_75, %c0_76] : memref<56x768xf32, #tpu.memory_space<vmem>>, vector<48x768xf32>
    %87 = arith.truncf %86 : vector<48x768xf32> to vector<48x768xbf16>
    %c0_77 = arith.constant 0 : index
    %c2304 = arith.constant 2304 : index
    %88 = vector.load %arg13[%c0_77, %c2304] : memref<48x4608xbf16, #tpu.memory_space<vmem>>, vector<48x768xbf16>
    tpu.vector_store %arg13[%c0_77, %c2304], %87 {strides = array<i32>} : memref<48x4608xbf16, #tpu.memory_space<vmem>>, vector<48x768xbf16>,
    %c4_78 = arith.constant 4 : index
    %c0_79 = arith.constant 0 : index
    %89 = vector.load %arg12[%c4_78, %c0_79] : memref<56x768xf32, #tpu.memory_space<vmem>>, vector<48x768xf32>
    %90 = arith.truncf %89 : vector<48x768xf32> to vector<48x768xbf16>
    %c0_80 = arith.constant 0 : index
    %c3072 = arith.constant 3072 : index
    %91 = vector.load %arg13[%c0_80, %c3072] : memref<48x4608xbf16, #tpu.memory_space<vmem>>, vector<48x768xbf16>
    tpu.vector_store %arg13[%c0_80, %c3072], %90 {strides = array<i32>} : memref<48x4608xbf16, #tpu.memory_space<vmem>>, vector<48x768xbf16>,
    %c5_81 = arith.constant 5 : index
    %c0_82 = arith.constant 0 : index
    %92 = vector.load %arg12[%c5_81, %c0_82] : memref<56x768xf32, #tpu.memory_space<vmem>>, vector<48x768xf32>
    %93 = arith.truncf %92 : vector<48x768xf32> to vector<48x768xbf16>
    %c0_83 = arith.constant 0 : index
    %c3840 = arith.constant 3840 : index
    %94 = vector.load %arg13[%c0_83, %c3840] : memref<48x4608xbf16, #tpu.memory_space<vmem>>, vector<48x768xbf16>
    tpu.vector_store %arg13[%c0_83, %c3840], %93 {strides = array<i32>} : memref<48x4608xbf16, #tpu.memory_space<vmem>>, vector<48x768xbf16>,
    %c0_84 = arith.constant 0 : index
    %c0_85 = arith.constant 0 : index
    %95 = vector.load %arg13[%c0_84, %c0_85] : memref<48x4608xbf16, #tpu.memory_space<vmem>>, vector<48x4608xbf16>
    %c0_86 = arith.constant 0 : index
    %c0_87 = arith.constant 0 : index
    %96 = vector.load %arg5[%c0_86, %c0_87] : memref<4608x128xbf16, #tpu.memory_space<vmem>>, vector<4608x128xbf16>
    %cst_88 = arith.constant dense<0.000000e+00> : vector<48x128xf32>
    %97 = tpu.matmul %95, %96, %cst_88 {dimension_numbers = #tpu.dot_dimension_numbers<[1], [0], [0], [1], [0, 0, 1, 1], [], []>} : vector<48x4608xbf16>, vector<4608x128xbf16>, vector<48x128xf32> -> vector<48x128xf32>
    %c0_89 = arith.constant 0 : index
    %c0_90 = arith.constant 0 : index
    %98 = vector.load %arg6[%c0_89, %c0_90] : memref<1x128xf32, #tpu.memory_space<vmem>>, vector<1x128xf32>
    %99 = vector.broadcast %98 : vector<1x128xf32> to vector<48x128xf32>
    %100 = arith.addf %97, %99 : vector<48x128xf32>
    %cst_91 = arith.constant 0.000000e+00 : f32
    %cst_92 = arith.constant 1.000000e+00 : f32
    %101 = vector.broadcast %cst_91 : f32 to vector<48x128xf32>
    %102 = arith.maximumf %101, %100 : vector<48x128xf32>
    %103 = vector.broadcast %cst_92 : f32 to vector<48x128xf32>
    %104 = arith.minimumf %103, %102 : vector<48x128xf32>
    %c0_93 = arith.constant 0 : index
    %c0_94 = arith.constant 0 : index
    %105 = vector.load %arg7[%c0_93, %c0_94] : memref<48x128xf32, #tpu.memory_space<vmem>>, vector<48x128xf32>
    tpu.vector_store %arg7[%c0_93, %c0_94], %104 {strides = array<i32>} : memref<48x128xf32, #tpu.memory_space<vmem>>, vector<48x128xf32>,
    return
  }
  func.func @transform_0(%arg0: i32) -> (i32, i32) {
    %c0_i32 = arith.constant 0 : i32
    %c0_i32_0 = arith.constant 0 : i32
    return %arg0, %c0_i32 : i32, i32
  }
  func.func @transform_1(%arg0: i32) -> (i32, i32) {
    %c0_i32 = arith.constant 0 : i32
    %c0_i32_0 = arith.constant 0 : i32
    %c0_i32_1 = arith.constant 0 : i32
    return %c0_i32, %c0_i32_0 : i32, i32
  }
  func.func @transform_2(%arg0: i32) -> (i32, i32) {
    %c0_i32 = arith.constant 0 : i32
    %c0_i32_0 = arith.constant 0 : i32
    %c0_i32_1 = arith.constant 0 : i32
    return %c0_i32, %c0_i32_0 : i32, i32
  }
  func.func @transform_3(%arg0: i32) -> (i32, i32) {
    %c0_i32 = arith.constant 0 : i32
    %c0_i32_0 = arith.constant 0 : i32
    %c0_i32_1 = arith.constant 0 : i32
    return %c0_i32, %c0_i32_0 : i32, i32
  }
  func.func @transform_4(%arg0: i32) -> (i32, i32) {
    %c0_i32 = arith.constant 0 : i32
    %c0_i32_0 = arith.constant 0 : i32
    %c0_i32_1 = arith.constant 0 : i32
    return %c0_i32, %c0_i32_0 : i32, i32
  }
  func.func @transform_5(%arg0: i32) -> (i32, i32) {
    %c0_i32 = arith.constant 0 : i32
    %c0_i32_0 = arith.constant 0 : i32
    %c0_i32_1 = arith.constant 0 : i32
    return %c0_i32, %c0_i32_0 : i32, i32
  }
  func.func @transform_6(%arg0: i32) -> (i32, i32) {
    %c0_i32 = arith.constant 0 : i32
    %c0_i32_0 = arith.constant 0 : i32
    return %arg0, %c0_i32 : i32, i32
  }
}

</mosaic_0001>

<llo_original>
// kernel: dehazenet_forward.1
$region0: #{dehazenet_forward.1}
  #allocation0 [shape = 'u32[]', space=smem, size = 0x4, offset = 0x4, fixed_abs, tag = 'smem constant byte address 0x4 - core index']
  #allocation1 [shape = 'u32[144,128]{1,0:T(1,128)}', space=vmem, size = 0x12000, scoped, tag = 'internal scratch']
  #allocation2 [shape = 'f32[64,128]{1,0:T(8,128)}', space=vmem, size = 0x8000, scoped, tag = 'scratch operand']
  #allocation3 [shape = 'bf16[48,896]{1,0:T(8,128)(2,1)}', space=vmem, size = 0x15000, scoped, tag = 'scratch operand']
  #allocation4 [shape = 'f32[56,1024]{1,0:T(8,128)}', space=vmem, size = 0x38000, scoped, tag = 'scratch operand']
  #allocation5 [shape = 'f32[48,1024]{1,0:T(8,128)}', space=vmem, size = 0x30000, scoped, tag = 'scratch operand']
  #allocation6 [shape = 'f32[56,768]{1,0:T(8,128)}', space=vmem, size = 0x2a000, scoped, tag = 'scratch operand']
  #allocation7 [shape = 'bf16[48,4608]{1,0:T(8,128)(2,1)}', space=vmem, size = 0x6c000, scoped, tag = 'scratch operand']
  %s0 = inlined_call_operand.vmem [shape: bf16[48,384], index: 0, kind: input, shape index: {}]
  %s1 = inlined_call_operand.hbm [shape: bf16[384,512], index: 1, kind: input, shape index: {}]
  %s2 = inlined_call_operand.hbm [shape: bf16[896,1024], index: 2, kind: input, shape index: {}]
  %s3 = inlined_call_operand.hbm [shape: f32[1,1024], index: 3, kind: input, shape index: {}]
  %s4 = inlined_call_operand.vmem [shape: bf16[4608,128], index: 4, kind: input, shape index: {}]
  %s5 = inlined_call_operand.hbm [shape: f32[1,128], index: 5, kind: input, shape index: {}]
  %s6 = inlined_call_operand.vmem [shape: f32[48,128], index: 6, kind: output, shape index: {}]
  %s7 = sld [smem:[#allocation0]]
  $region50: #{dehazenet_forward.1} parent=0
    _
  %s9 = ssub.s32 1, %s7
  %s10 = scalar_select 0, %s9, %s7
  $region1: #{dehazenet_forward.1} parent=0
    #allocation8 [shape = 'u8[393216]{0}', space=vmem, size = 0x60000, scoped, tag = 'input window, operand 1, single buffered']
    #allocation9 [shape = 's32[1]{0}', space=sflag, size = 0x4, scoped, tag = 'scoped memory for dehazenet_forward.1']
    #allocation10 [shape = 'u8[1835008]{0}', space=vmem, size = 0x1c0000, scoped, tag = 'input window, operand 2, single buffered']
    #allocation11 [shape = 's32[1]{0}', space=sflag, size = 0x4, scoped, tag = 'scoped memory for dehazenet_forward.1']
    #allocation12 [shape = 'u8[4096]{0}', space=vmem, size = 0x1000, scoped, tag = 'input window, operand 3, single buffered']
    #allocation13 [shape = 'u8[512]{0}', space=vmem, size = 0x400, scoped, tag = 'input window, operand 5, single buffered']
    #allocation14 [shape = 's32[1]{0}', space=sflag, size = 0x4, scoped, tag = 'scoped memory for dehazenet_forward.1']
    %11 = vsyncpa [#allocation9], 0
    %12 = vsyncpa [#allocation11], 0
    %13 = vsyncpa [#allocation14], 0
    // Predicated region
    $region2: #{dehazenet_forward.1} parent=1 // pred_check
      _
    $region3: #{dehazenet_forward.1} parent=1 // pred_check_branch
      %15 = sbr.rel (0) target = $region5
    $region4: #{dehazenet_forward.1} parent=1 // pred_region
      _
    $region5: #{dehazenet_forward.1} parent=1 // pred_fallthru
      _
    // Predicated region
    $region6: #{dehazenet_forward.1} parent=1 // pred_check
      _
    $region7: #{dehazenet_forward.1} parent=1 // pred_check_branch
      %17 = sbr.rel (0) target = $region9
    $region8: #{dehazenet_forward.1} parent=1 // pred_region
      %s19 = ssub.s32 12288, 12288
      %20 = vsyncadd [#allocation9], %s19
      %s21 = sshll.u32 [#allocation8], 4
      %s22 = int_to_ptr.vmem [resolvable:$true] %s21
      %27 = dma.hbm_to_vmem [thread:$0]  %s1, 12288, %s22, [#allocation9], 256, 256, 16
    $region9: #{dehazenet_forward.1} parent=1 // pred_fallthru
      _
    // Predicated region
    $region10: #{dehazenet_forward.1} parent=1 // pred_check
      _
    $region11: #{dehazenet_forward.1} parent=1 // pred_check_branch
      %29 = sbr.rel (0) target = $region13
    $region12: #{dehazenet_forward.1} parent=1 // pred_region
      %s31 = ssub.s32 57344, 57344
      %32 = vsyncadd [#allocation11], %s31
      %s33 = sshll.u32 [#allocation10], 4
      %s34 = int_to_ptr.vmem [resolvable:$true] %s33
      %39 = dma.hbm_to_vmem [thread:$0]  %s2, 57344, %s34, [#allocation11], 512, 512, 32
    $region13: #{dehazenet_forward.1} parent=1 // pred_fallthru
      _
    // Predicated region
    $region14: #{dehazenet_forward.1} parent=1 // pred_check
      _
    $region15: #{dehazenet_forward.1} parent=1 // pred_check_branch
      %41 = sbr.rel (0) target = $region17
    $region16: #{dehazenet_forward.1} parent=1 // pred_region
      %s43 = ssub.s32 128, 128
      %44 = vsyncadd [#allocation11], %s43
      %s46 = sshll.u32 [#allocation12], 4
      %s47 = int_to_ptr.vmem [resolvable:$true] %s46
      %49 = dma.hbm_to_vmem [thread:$0]  %s3, 128, %s47, [#allocation11]
    $region17: #{dehazenet_forward.1} parent=1 // pred_fallthru
      _
    // Predicated region
    $region18: #{dehazenet_forward.1} parent=1 // pred_check
      _
    $region19: #{dehazenet_forward.1} parent=1 // pred_check_branch
      %51 = sbr.rel (0) target = $region21
    $region20: #{dehazenet_forward.1} parent=1 // pred_region
      _
    $region21: #{dehazenet_forward.1} parent=1 // pred_fallthru
      _
    // Predicated region
    $region22: #{dehazenet_forward.1} parent=1 // pred_check
      _
    $region23: #{dehazenet_forward.1} parent=1 // pred_check_branch
      %53 = sbr.rel (0) target = $region25
    $region24: #{dehazenet_forward.1} parent=1 // pred_region
      %s55 = ssub.s32 16, 16
      %56 = vsyncadd [#allocation14], %s55
      %s58 = sshll.u32 [#allocation13], 4
      %s59 = int_to_ptr.vmem [resolvable:$true] %s58
      %61 = dma.hbm_to_vmem [thread:$0]  %s5, 16, %s59, [#allocation14]
    $region25: #{dehazenet_forward.1} parent=1 // pred_fallthru
      _
    // Predicated region
    $region26: #{dehazenet_forward.1} parent=1 // pred_check
      _
    $region27: #{dehazenet_forward.1} parent=1 // pred_check_branch
      %63 = sbr.rel (0) target = $region29
    $region28: #{dehazenet_forward.1} parent=1 // pred_region
      %64 = dma.done [#allocation9], 12288
    $region29: #{dehazenet_forward.1} parent=1 // pred_fallthru
      _
    // Predicated region
    $region30: #{dehazenet_forward.1} parent=1 // pred_check
      _
    $region31: #{dehazenet_forward.1} parent=1 // pred_check_branch
      %66 = sbr.rel (0) target = $region33
    $region32: #{dehazenet_forward.1} parent=1 // pred_region
      %67 = dma.done [#allocation11], 57344
    $region33: #{dehazenet_forward.1} parent=1 // pred_fallthru
      _
    // Predicated region
    $region34: #{dehazenet_forward.1} parent=1 // pred_check
      _
    $region35: #{dehazenet_forward.1} parent=1 // pred_check_branch
      %69 = sbr.rel (0) target = $region37
    $region36: #{dehazenet_forward.1} parent=1 // pred_region
      %70 = dma.done [#allocation11], 128
    $region37: #{dehazenet_forward.1} parent=1 // pred_fallthru
      _
    // Predicated region
    $region38: #{dehazenet_forward.1} parent=1 // pred_check
      _
    $region39: #{dehazenet_forward.1} parent=1 // pred_check_branch
      %72 = sbr.rel (0) target = $region41
    $region40: #{dehazenet_forward.1} parent=1 // pred_region
      %73 = dma.done [#allocation14], 16
    $region41: #{dehazenet_forward.1} parent=1 // pred_fallthru
      _
    %v75 = vld [vmem:[%s0] sm:$0xff]
    %v76 = vld [vmem:[%s0 + $0x8] sm:$0xf]
    %v77 = vld [vmem:[%s0 + $0xc] sm:$0xff]
    %v78 = vld [vmem:[%s0 + $0x14] sm:$0xf]
    %v79 = vld [vmem:[%s0 + $0x18] sm:$0xff]
    %v80 = vld [vmem:[%s0 + $0x20] sm:$0xf]
    %v81 = vld [vmem:[%s0 + $0x24] sm:$0xff]
    %v82 = vld [vmem:[%s0 + $0x2c] sm:$0xf]
    %v83 = vld [vmem:[%s0 + $0x30] sm:$0xff]
    %v84 = vld [vmem:[%s0 + $0x38] sm:$0xf]
    %v85 = vld [vmem:[%s0 + $0x3c] sm:$0xff]
    %v86 = vld [vmem:[%s0 + $0x44] sm:$0xf]
    %v87 = vld [vmem:[#allocation8] sm:$0xff]
    %v88 = vld [vmem:[#allocation8 + $0x8] sm:$0xff]
    %v89 = vld [vmem:[#allocation8 + $0x10] sm:$0xff]
    %v90 = vld [vmem:[#allocation8 + $0x18] sm:$0xff]
    %v91 = vld [vmem:[#allocation8 + $0x20] sm:$0xff]
    %v92 = vld [vmem:[#allocation8 + $0x28] sm:$0xff]
    %v93 = vld [vmem:[#allocation8 + $0x30] sm:$0xff]
    %v94 = vld [vmem:[#allocation8 + $0x38] sm:$0xff]
    %v95 = vld [vmem:[#allocation8 + $0x40] sm:$0xff]
    %v96 = vld [vmem:[#allocation8 + $0x48] sm:$0xff]
    %v97 = vld [vmem:[#allocation8 + $0x50] sm:$0xff]
    %v98 = vld [vmem:[#allocation8 + $0x58] sm:$0xff]
    %v99 = vld [vmem:[#allocation8 + $0x60] sm:$0xff]
    %v100 = vld [vmem:[#allocation8 + $0x68] sm:$0xff]
    %v101 = vld [vmem:[#allocation8 + $0x70] sm:$0xff]
    %v102 = vld [vmem:[#allocation8 + $0x78] sm:$0xff]
    %v103 = vld [vmem:[#allocation8 + $0x80] sm:$0xff]
    %v104 = vld [vmem:[#allocation8 + $0x88] sm:$0xff]
    %v105 = vld [vmem:[#allocation8 + $0x90] sm:$0xff]
    %v106 = vld [vmem:[#allocation8 + $0x98] sm:$0xff]
    %v107 = vld [vmem:[#allocation8 + $0xa0] sm:$0xff]
    %v108 = vld [vmem:[#allocation8 + $0xa8] sm:$0xff]
    %v109 = vld [vmem:[#allocation8 + $0xb0] sm:$0xff]
    %v110 = vld [vmem:[#allocation8 + $0xb8] sm:$0xff]
    %v111 = vld [vmem:[#allocation8 + $0xc0] sm:$0xff]
    %v112 = vld [vmem:[#allocation8 + $0xc8] sm:$0xff]
    %v113 = vld [vmem:[#allocation8 + $0xd0] sm:$0xff]
    %v114 = vld [vmem:[#allocation8 + $0xd8] sm:$0xff]
    %v115 = vld [vmem:[#allocation8 + $0xe0] sm:$0xff]
    %v116 = vld [vmem:[#allocation8 + $0xe8] sm:$0xff]
    %v117 = vld [vmem:[#allocation8 + $0xf0] sm:$0xff]
    %v118 = vld [vmem:[#allocation8 + $0xf8] sm:$0xff]
    %v119 = vld [vmem:[#allocation8 + $0x100] sm:$0xff]
    %v120 = vld [vmem:[#allocation8 + $0x108] sm:$0xff]
    %v121 = vld [vmem:[#allocation8 + $0x110] sm:$0xff]
    %v122 = vld [vmem:[#allocation8 + $0x118] sm:$0xff]
    %v123 = vld [vmem:[#allocation8 + $0x120] sm:$0xff]
    %v124 = vld [vmem:[#allocation8 + $0x128] sm:$0xff]
    %v125 = vld [vmem:[#allocation8 + $0x130] sm:$0xff]
    %v126 = vld [vmem:[#allocation8 + $0x138] sm:$0xff]
    %v127 = vld [vmem:[#allocation8 + $0x140] sm:$0xff]
    %v128 = vld [vmem:[#allocation8 + $0x148] sm:$0xff]
    %v129 = vld [vmem:[#allocation8 + $0x150] sm:$0xff]
    %v130 = vld [vmem:[#allocation8 + $0x158] sm:$0xff]
    %v131 = vld [vmem:[#allocation8 + $0x160] sm:$0xff]
    %v132 = vld [vmem:[#allocation8 + $0x168] sm:$0xff]
    %v133 = vld [vmem:[#allocation8 + $0x170] sm:$0xff]
    %v134 = vld [vmem:[#allocation8 + $0x178] sm:$0xff]
    %v135 = vld [vmem:[#allocation8 + $0x180] sm:$0xff]
    %v136 = vld [vmem:[#allocation8 + $0x188] sm:$0xff]
    %v137 = vld [vmem:[#allocation8 + $0x190] sm:$0xff]
    %v138 = vld [vmem:[#allocation8 + $0x198] sm:$0xff]
    %v139 = vld [vmem:[#allocation8 + $0x1a0] sm:$0xff]
    %v140 = vld [vmem:[#allocation8 + $0x1a8] sm:$0xff]
    %v141 = vld [vmem:[#allocation8 + $0x1b0] sm:$0xff]
    %v142 = vld [vmem:[#allocation8 + $0x1b8] sm:$0xff]
    %v143 = vld [vmem:[#allocation8 + $0x1c0] sm:$0xff]
    %v144 = vld [vmem:[#allocation8 + $0x1c8] sm:$0xff]
    %v145 = vld [vmem:[#allocation8 + $0x1d0] sm:$0xff]
    %v146 = vld [vmem:[#allocation8 + $0x1d8] sm:$0xff]
    %v147 = vld [vmem:[#allocation8 + $0x1e0] sm:$0xff]
    %v148 = vld [vmem:[#allocation8 + $0x1e8] sm:$0xff]
    %v149 = vld [vmem:[#allocation8 + $0x1f0] sm:$0xff]
    %v150 = vld [vmem:[#allocation8 + $0x1f8] sm:$0xff]
    %v151 = vld [vmem:[#allocation8 + $0x200] sm:$0xff]
    %v152 = vld [vmem:[#allocation8 + $0x208] sm:$0xff]
    %v153 = vld [vmem:[#allocation8 + $0x210] sm:$0xff]
    %v154 = vld [vmem:[#allocation8 + $0x218] sm:$0xff]
    %v155 = vld [vmem:[#allocation8 + $0x220] sm:$0xff]
    %v156 = vld [vmem:[#allocation8 + $0x228] sm:$0xff]
    %v157 = vld [vmem:[#allocation8 + $0x230] sm:$0xff]
    %v158 = vld [vmem:[#allocation8 + $0x238] sm:$0xff]
    %v159 = vld [vmem:[#allocation8 + $0x240] sm:$0xff]
    %v160 = vld [vmem:[#allocation8 + $0x248] sm:$0xff]
    %v161 = vld [vmem:[#allocation8 + $0x250] sm:$0xff]
    %v162 = vld [vmem:[#allocation8 + $0x258] sm:$0xff]
    %v163 = vld [vmem:[#allocation8 + $0x260] sm:$0xff]
    %v164 = vld [vmem:[#allocation8 + $0x268] sm:$0xff]
    %v165 = vld [vmem:[#allocation8 + $0x270] sm:$0xff]
    %v166 = vld [vmem:[#allocation8 + $0x278] sm:$0xff]
    %v167 = vld [vmem:[#allocation8 + $0x280] sm:$0xff]
    %v168 = vld [vmem:[#allocation8 + $0x288] sm:$0xff]
    %v169 = vld [vmem:[#allocation8 + $0x290] sm:$0xff]
    %v170 = vld [vmem:[#allocation8 + $0x298] sm:$0xff]
    %v171 = vld [vmem:[#allocation8 + $0x2a0] sm:$0xff]
    %v172 = vld [vmem:[#allocation8 + $0x2a8] sm:$0xff]
    %v173 = vld [vmem:[#allocation8 + $0x2b0] sm:$0xff]
    %v174 = vld [vmem:[#allocation8 + $0x2b8] sm:$0xff]
    %v175 = vld [vmem:[#allocation8 + $0x2c0] sm:$0xff]
    %v176 = vld [vmem:[#allocation8 + $0x2c8] sm:$0xff]
    %v177 = vld [vmem:[#allocation8 + $0x2d0] sm:$0xff]
    %v178 = vld [vmem:[#allocation8 + $0x2d8] sm:$0xff]
    %v179 = vld [vmem:[#allocation8 + $0x2e0] sm:$0xff]
    %v180 = vld [vmem:[#allocation8 + $0x2e8] sm:$0xff]
    %v181 = vld [vmem:[#allocation8 + $0x2f0] sm:$0xff]
    %v182 = vld [vmem:[#allocation8 + $0x2f8] sm:$0xff]
    %v195 = vunpack.c.l.b16 %v75
    %v196 = vunpack.c.h.b16 %v75
    %v197 = vunpack.c.l.b16 %v76
    %v198 = vunpack.c.l.b16 %v77
    %v199 = vunpack.c.h.b16 %v77
    %v200 = vunpack.c.l.b16 %v78
    %v201 = vunpack.c.l.b16 %v79
    %v202 = vunpack.c.h.b16 %v79
    %v203 = vunpack.c.l.b16 %v80
    %v204 = vunpack.c.l.b16 %v81
    %v205 = vunpack.c.h.b16 %v81
    %v206 = vunpack.c.l.b16 %v82
    %v207 = vunpack.c.l.b16 %v83
    %v208 = vunpack.c.h.b16 %v83
    %v209 = vunpack.c.l.b16 %v84
    %v210 = vunpack.c.l.b16 %v85
    %v211 = vunpack.c.h.b16 %v85
    %v212 = vunpack.c.l.b16 %v86
    %v213 = vpack.c.b16 %v198, %v195
    %v214 = vpack.c.b16 %v199, %v196
    %v215 = vpack.c.b16 %v200, %v197
    %v216 = vpack.c.b16 %v204, %v201
    %v217 = vpack.c.b16 %v205, %v202
    %v218 = vpack.c.b16 %v206, %v203
    %v219 = vpack.c.b16 %v210, %v207
    %v220 = vpack.c.b16 %v211, %v208
    %v221 = vpack.c.b16 %v212, %v209
    %v327 = vunpack.c.l.b16 %v87
    %v328 = vunpack.c.h.b16 %v87
    %v329 = vunpack.c.l.b16 %v88
    %v330 = vunpack.c.h.b16 %v88
    %v331 = vunpack.c.l.b16 %v89
    %v332 = vunpack.c.h.b16 %v89
    %v333 = vunpack.c.l.b16 %v90
    %v334 = vunpack.c.h.b16 %v90
    %v335 = vunpack.c.l.b16 %v91
    %v336 = vunpack.c.h.b16 %v91
    %v337 = vunpack.c.l.b16 %v92
    %v338 = vunpack.c.h.b16 %v92
    %v339 = vunpack.c.l.b16 %v93
    %v340 = vunpack.c.h.b16 %v93
    %v341 = vunpack.c.l.b16 %v94
    %v342 = vunpack.c.h.b16 %v94
    %v343 = vunpack.c.l.b16 %v95
    %v344 = vunpack.c.h.b16 %v95
    %v345 = vunpack.c.l.b16 %v96
    %v346 = vunpack.c.h.b16 %v96
    %v347 = vunpack.c.l.b16 %v97
    %v348 = vunpack.c.h.b16 %v97
    %v349 = vunpack.c.l.b16 %v98
    %v350 = vunpack.c.h.b16 %v98
    %v351 = vunpack.c.l.b16 %v99
    %v352 = vunpack.c.h.b16 %v99
    %v353 = vunpack.c.l.b16 %v100
    %v354 = vunpack.c.h.b16 %v100
    %v355 = vunpack.c.l.b16 %v101
    %v356 = vunpack.c.h.b16 %v101
    %v357 = vunpack.c.l.b16 %v102
    %v358 = vunpack.c.h.b16 %v102
    %v359 = vunpack.c.l.b16 %v103
    %v360 = vunpack.c.h.b16 %v103
    %v361 = vunpack.c.l.b16 %v104
    %v362 = vunpack.c.h.b16 %v104
    %v363 = vunpack.c.l.b16 %v105
    %v364 = vunpack.c.h.b16 %v105
    %v365 = vunpack.c.l.b16 %v106
    %v366 = vunpack.c.h.b16 %v106
    %v367 = vunpack.c.l.b16 %v107
    %v368 = vunpack.c.h.b16 %v107
    %v369 = vunpack.c.l.b16 %v108
    %v370 = vunpack.c.h.b16 %v108
    %v371 = vunpack.c.l.b16 %v109
    %v372 = vunpack.c.h.b16 %v109
    %v373 = vunpack.c.l.b16 %v110
    %v374 = vunpack.c.h.b16 %v110
    %v375 = vunpack.c.l.b16 %v111
    %v376 = vunpack.c.h.b16 %v111
    %v377 = vunpack.c.l.b16 %v112
    %v378 = vunpack.c.h.b16 %v112
    %v379 = vunpack.c.l.b16 %v113
    %v380 = vunpack.c.h.b16 %v113
    %v381 = vunpack.c.l.b16 %v114
    %v382 = vunpack.c.h.b16 %v114
    %v383 = vunpack.c.l.b16 %v115
    %v384 = vunpack.c.h.b16 %v115
    %v385 = vunpack.c.l.b16 %v116
    %v386 = vunpack.c.h.b16 %v116
    %v387 = vunpack.c.l.b16 %v117
    %v388 = vunpack.c.h.b16 %v117
    %v389 = vunpack.c.l.b16 %v118
    %v390 = vunpack.c.h.b16 %v118
    %v391 = vunpack.c.l.b16 %v119
    %v392 = vunpack.c.h.b16 %v119
    %v393 = vunpack.c.l.b16 %v120
    %v394 = vunpack.c.h.b16 %v120
    %v395 = vunpack.c.l.b16 %v121
    %v396 = vunpack.c.h.b16 %v121
    %v397 = vunpack.c.l.b16 %v122
    %v398 = vunpack.c.h.b16 %v122
    %v399 = vunpack.c.l.b16 %v123
    %v400 = vunpack.c.h.b16 %v123
    %v401 = vunpack.c.l.b16 %v124
    %v402 = vunpack.c.h.b16 %v124
    %v403 = vunpack.c.l.b16 %v125
    %v404 = vunpack.c.h.b16 %v125
    %v405 = vunpack.c.l.b16 %v126
    %v406 = vunpack.c.h.b16 %v126
    %v407 = vunpack.c.l.b16 %v127
    %v408 = vunpack.c.h.b16 %v127
    %v409 = vunpack.c.l.b16 %v128
    %v410 = vunpack.c.h.b16 %v128
    %v411 = vunpack.c.l.b16 %v129
    %v412 = vunpack.c.h.b16 %v129
    %v413 = vunpack.c.l.b16 %v130
    %v414 = vunpack.c.h.b16 %v130
    %v415 = vunpack.c.l.b16 %v131
    %v416 = vunpack.c.h.b16 %v131
    %v417 = vunpack.c.l.b16 %v132
    %v418 = vunpack.c.h.b16 %v132
    %v419 = vunpack.c.l.b16 %v133
    %v420 = vunpack.c.h.b16 %v133
    %v421 = vunpack.c.l.b16 %v134
    %v422 = vunpack.c.h.b16 %v134
    %v423 = vunpack.c.l.b16 %v135
    %v424 = vunpack.c.h.b16 %v135
    %v425 = vunpack.c.l.b16 %v136
    %v426 = vunpack.c.h.b16 %v136
    %v427 = vunpack.c.l.b16 %v137
    %v428 = vunpack.c.h.b16 %v137
    %v429 = vunpack.c.l.b16 %v138
    %v430 = vunpack.c.h.b16 %v138
    %v431 = vunpack.c.l.b16 %v139
    %v432 = vunpack.c.h.b16 %v139
    %v433 = vunpack.c.l.b16 %v140
    %v434 = vunpack.c.h.b16 %v140
    %v435 = vunpack.c.l.b16 %v141
    %v436 = vunpack.c.h.b16 %v141
    %v437 = vunpack.c.l.b16 %v142
    %v438 = vunpack.c.h.b16 %v142
    %v439 = vunpack.c.l.b16 %v143
    %v440 = vunpack.c.h.b16 %v143
    %v441 = vunpack.c.l.b16 %v144
    %v442 = vunpack.c.h.b16 %v144
    %v443 = vunpack.c.l.b16 %v145
    %v444 = vunpack.c.h.b16 %v145
    %v445 = vunpack.c.l.b16 %v146
    %v446 = vunpack.c.h.b16 %v146
    %v447 = vunpack.c.l.b16 %v147
    %v448 = vunpack.c.h.b16 %v147
    %v449 = vunpack.c.l.b16 %v148
    %v450 = vunpack.c.h.b16 %v148
    %v451 = vunpack.c.l.b16 %v149
    %v452 = vunpack.c.h.b16 %v149
    %v453 = vunpack.c.l.b16 %v150
    %v454 = vunpack.c.h.b16 %v150
    %v455 = vunpack.c.l.b16 %v151
    %v456 = vunpack.c.h.b16 %v151
    %v457 = vunpack.c.l.b16 %v152
    %v458 = vunpack.c.h.b16 %v152
    %v459 = vunpack.c.l.b16 %v153
    %v460 = vunpack.c.h.b16 %v153
    %v461 = vunpack.c.l.b16 %v154
    %v462 = vunpack.c.h.b16 %v154
    %v463 = vunpack.c.l.b16 %v155
    %v464 = vunpack.c.h.b16 %v155
    %v465 = vunpack.c.l.b16 %v156
    %v466 = vunpack.c.h.b16 %v156
    %v467 = vunpack.c.l.b16 %v157
    %v468 = vunpack.c.h.b16 %v157
    %v469 = vunpack.c.l.b16 %v158
    %v470 = vunpack.c.h.b16 %v158
    %v471 = vunpack.c.l.b16 %v159
    %v472 = vunpack.c.h.b16 %v159
    %v473 = vunpack.c.l.b16 %v160
    %v474 = vunpack.c.h.b16 %v160
    %v475 = vunpack.c.l.b16 %v161
    %v476 = vunpack.c.h.b16 %v161
    %v477 = vunpack.c.l.b16 %v162
    %v478 = vunpack.c.h.b16 %v162
    %v479 = vunpack.c.l.b16 %v163
    %v480 = vunpack.c.h.b16 %v163
    %v481 = vunpack.c.l.b16 %v164
    %v482 = vunpack.c.h.b16 %v164
    %v483 = vunpack.c.l.b16 %v165
    %v484 = vunpack.c.h.b16 %v165
    %v485 = vunpack.c.l.b16 %v166
    %v486 = vunpack.c.h.b16 %v166
    %v487 = vunpack.c.l.b16 %v167
    %v488 = vunpack.c.h.b16 %v167
    %v489 = vunpack.c.l.b16 %v168
    %v490 = vunpack.c.h.b16 %v168
    %v491 = vunpack.c.l.b16 %v169
    %v492 = vunpack.c.h.b16 %v169
    %v493 = vunpack.c.l.b16 %v170
    %v494 = vunpack.c.h.b16 %v170
    %v495 = vunpack.c.l.b16 %v171
    %v496 = vunpack.c.h.b16 %v171
    %v497 = vunpack.c.l.b16 %v172
    %v498 = vunpack.c.h.b16 %v172
    %v499 = vunpack.c.l.b16 %v173
    %v500 = vunpack.c.h.b16 %v173
    %v501 = vunpack.c.l.b16 %v174
    %v502 = vunpack.c.h.b16 %v174
    %v503 = vunpack.c.l.b16 %v175
    %v504 = vunpack.c.h.b16 %v175
    %v505 = vunpack.c.l.b16 %v176
    %v506 = vunpack.c.h.b16 %v176
    %v507 = vunpack.c.l.b16 %v177
    %v508 = vunpack.c.h.b16 %v177
    %v509 = vunpack.c.l.b16 %v178
    %v510 = vunpack.c.h.b16 %v178
    %v511 = vunpack.c.l.b16 %v179
    %v512 = vunpack.c.h.b16 %v179
    %v513 = vunpack.c.l.b16 %v180
    %v514 = vunpack.c.h.b16 %v180
    %v515 = vunpack.c.l.b16 %v181
    %v516 = vunpack.c.h.b16 %v181
    %v517 = vunpack.c.l.b16 %v182
    %v518 = vunpack.c.h.b16 %v182
    %v519 = vpack.c.b16 %v331, %v327
    %v520 = vpack.c.b16 %v332, %v328
    %v521 = vpack.c.b16 %v333, %v329
    %v522 = vpack.c.b16 %v334, %v330
    %v523 = vpack.c.b16 %v339, %v335
    %v524 = vpack.c.b16 %v340, %v336
    %v525 = vpack.c.b16 %v341, %v337
    %v526 = vpack.c.b16 %v342, %v338
    %v527 = vpack.c.b16 %v347, %v343
    %v528 = vpack.c.b16 %v348, %v344
    %v529 = vpack.c.b16 %v349, %v345
    %v530 = vpack.c.b16 %v350, %v346
    %v531 = vpack.c.b16 %v355, %v351
    %v532 = vpack.c.b16 %v356, %v352
    %v533 = vpack.c.b16 %v357, %v353
    %v534 = vpack.c.b16 %v358, %v354
    %v535 = vpack.c.b16 %v363, %v359
    %v536 = vpack.c.b16 %v364, %v360
    %v537 = vpack.c.b16 %v365, %v361
    %v538 = vpack.c.b16 %v366, %v362
    %v539 = vpack.c.b16 %v371, %v367
    %v540 = vpack.c.b16 %v372, %v368
    %v541 = vpack.c.b16 %v373, %v369
    %v542 = vpack.c.b16 %v374, %v370
    %v543 = vpack.c.b16 %v379, %v375
    %v544 = vpack.c.b16 %v380, %v376
    %v545 = vpack.c.b16 %v381, %v377
    %v546 = vpack.c.b16 %v382, %v378
    %v547 = vpack.c.b16 %v387, %v383
    %v548 = vpack.c.b16 %v388, %v384
    %v549 = vpack.c.b16 %v389, %v385
    %v550 = vpack.c.b16 %v390, %v386
    %v551 = vpack.c.b16 %v395, %v391
    %v552 = vpack.c.b16 %v396, %v392
    %v553 = vpack.c.b16 %v397, %v393
    %v554 = vpack.c.b16 %v398, %v394
    %v555 = vpack.c.b16 %v403, %v399
    %v556 = vpack.c.b16 %v404, %v400
    %v557 = vpack.c.b16 %v405, %v401
    %v558 = vpack.c.b16 %v406, %v402
    %v559 = vpack.c.b16 %v411, %v407
    %v560 = vpack.c.b16 %v412, %v408
    %v561 = vpack.c.b16 %v413, %v409
    %v562 = vpack.c.b16 %v414, %v410
    %v563 = vpack.c.b16 %v419, %v415
    %v564 = vpack.c.b16 %v420, %v416
    %v565 = vpack.c.b16 %v421, %v417
    %v566 = vpack.c.b16 %v422, %v418
    %v567 = vpack.c.b16 %v427, %v423
    %v568 = vpack.c.b16 %v428, %v424
    %v569 = vpack.c.b16 %v429, %v425
    %v570 = vpack.c.b16 %v430, %v426
    %v571 = vpack.c.b16 %v435, %v431
    %v572 = vpack.c.b16 %v436, %v432
    %v573 = vpack.c.b16 %v437, %v433
    %v574 = vpack.c.b16 %v438, %v434
    %v575 = vpack.c.b16 %v443, %v439
    %v576 = vpack.c.b16 %v444, %v440
    %v577 = vpack.c.b16 %v445, %v441
    %v578 = vpack.c.b16 %v446, %v442
    %v579 = vpack.c.b16 %v451, %v447
    %v580 = vpack.c.b16 %v452, %v448
    %v581 = vpack.c.b16 %v453, %v449
    %v582 = vpack.c.b16 %v454, %v450
    %v583 = vpack.c.b16 %v459, %v455
    %v584 = vpack.c.b16 %v460, %v456
    %v585 = vpack.c.b16 %v461, %v457
    %v586 = vpack.c.b16 %v462, %v458
    %v587 = vpack.c.b16 %v467, %v463
    %v588 = vpack.c.b16 %v468, %v464
    %v589 = vpack.c.b16 %v469, %v465
    %v590 = vpack.c.b16 %v470, %v466
    %v591 = vpack.c.b16 %v475, %v471
    %v592 = vpack.c.b16 %v476, %v472
    %v593 = vpack.c.b16 %v477, %v473
    %v594 = vpack.c.b16 %v478, %v474
    %v595 = vpack.c.b16 %v483, %v479
    %v596 = vpack.c.b16 %v484, %v480
    %v597 = vpack.c.b16 %v485, %v481
    %v598 = vpack.c.b16 %v486, %v482
    %v599 = vpack.c.b16 %v491, %v487
    %v600 = vpack.c.b16 %v492, %v488
    %v601 = vpack.c.b16 %v493, %v489
    %v602 = vpack.c.b16 %v494, %v490
    %v603 = vpack.c.b16 %v499, %v495
    %v604 = vpack.c.b16 %v500, %v496
    %v605 = vpack.c.b16 %v501, %v497
    %v606 = vpack.c.b16 %v502, %v498
    %v607 = vpack.c.b16 %v507, %v503
    %v608 = vpack.c.b16 %v508, %v504
    %v609 = vpack.c.b16 %v509, %v505
    %v610 = vpack.c.b16 %v510, %v506
    %v611 = vpack.c.b16 %v515, %v511
    %v612 = vpack.c.b16 %v516, %v512
    %v613 = vpack.c.b16 %v517, %v513
    %v614 = vpack.c.b16 %v518, %v514
    %711 = vmatprep.subr.bf16.mxu0 %v548
    %712 = vmatpush1.bf16.msra.mxu0 %v547
    %713 = vmatprep.subr.bf16.mxu0 %v544
    %714 = vmatpush1.bf16.msra.mxu0 %v543
    %715 = vmatprep.subr.bf16.mxu0 %v540
    %716 = vmatpush1.bf16.msra.mxu0 %v539
    %717 = vmatprep.subr.bf16.mxu0 %v536
    %718 = vmatpush1.bf16.msra.mxu0 %v535
    %719 = vmatprep.subr.bf16.mxu0 %v532
    %720 = vmatpush1.bf16.msra.mxu0 %v531
    %721 = vmatprep.subr.bf16.mxu0 %v528
    %722 = vmatpush1.bf16.msra.mxu0 %v527
    %723 = vmatprep.subr.bf16.mxu0 %v524
    %724 = vmatpush1.bf16.msra.mxu0 %v523
    %725 = vmatprep.subr.bf16.mxu0 %v520
    %726 = vmatpush1.bf16.msra.mxu0 %v519
    %727 = vmatprep.subr.bf16.mxu0 %v580
    %728 = vmatpush2.bf16.msra.mxu0 %v579
    %729 = vmatprep.subr.bf16.mxu0 %v576
    %730 = vmatpush2.bf16.msra.mxu0 %v575
    %731 = vmatprep.subr.bf16.mxu0 %v572
    %732 = vmatpush2.bf16.msra.mxu0 %v571
    %733 = vmatprep.subr.bf16.mxu0 %v568
    %734 = vmatpush2.bf16.msra.mxu0 %v567
    %735 = vmatprep.subr.bf16.mxu0 %v564
    %736 = vmatpush2.bf16.msra.mxu0 %v563
    %737 = vmatprep.subr.bf16.mxu0 %v560
    %738 = vmatpush2.bf16.msra.mxu0 %v559
    %739 = vmatprep.subr.bf16.mxu0 %v556
    %740 = vmatpush2.bf16.msra.mxu0 %v555
    %741 = vmatprep.subr.bf16.mxu0 %v552
    %742 = vmatpush2.bf16.msra.mxu0 %v551
    %743 = vmatprep.mubr.bf16.mxu0 %v214
    %744 = vmatmul.mubr.bf16.gmra.mxu0 %v213
    %v745 = vpop.f32.mrf.mxu0
    %v746 = vadd.f32 0.0, %v745
    %v747 = vpop.f32.mrf.mxu0
    %v748 = vadd.f32 0.0, %v747
    %v749 = vpop.f32.mrf.mxu0
    %v750 = vadd.f32 0.0, %v749
    %v751 = vpop.f32.mrf.mxu0
    %v752 = vadd.f32 0.0, %v751
    %753 = vmatprep.mubr.bf16.mxu0 %v217
    %754 = vmatmul.mubr.bf16.gmra.mxu0 %v216
    %v755 = vpop.f32.mrf.mxu0
    %v756 = vadd.f32 0.0, %v755
    %v757 = vpop.f32.mrf.mxu0
    %v758 = vadd.f32 0.0, %v757
    %v759 = vpop.f32.mrf.mxu0
    %v760 = vadd.f32 0.0, %v759
    %v761 = vpop.f32.mrf.mxu0
    %v762 = vadd.f32 0.0, %v761
    %763 = vmatprep.mubr.bf16.mxu0 %v220
    %764 = vmatmul.mubr.bf16.gmra.mxu0 %v219
    %v765 = vpop.f32.mrf.mxu0
    %v766 = vadd.f32 0.0, %v765
    %v767 = vpop.f32.mrf.mxu0
    %v768 = vadd.f32 0.0, %v767
    %v769 = vpop.f32.mrf.mxu0
    %v770 = vadd.f32 0.0, %v769
    %v771 = vpop.f32.mrf.mxu0
    %v772 = vadd.f32 0.0, %v771
    %773 = vdwg.mxu0
    %774 = vmatprep.subr.bf16.mxu0 %v612
    %775 = vmatpush1.bf16.msra.mxu0 %v611
    %776 = vmatprep.subr.bf16.mxu0 %v608
    %777 = vmatpush1.bf16.msra.mxu0 %v607
    %778 = vmatprep.subr.bf16.mxu0 %v604
    %779 = vmatpush1.bf16.msra.mxu0 %v603
    %780 = vmatprep.subr.bf16.mxu0 %v600
    %781 = vmatpush1.bf16.msra.mxu0 %v599
    %782 = vmatprep.subr.bf16.mxu0 %v596
    %783 = vmatpush1.bf16.msra.mxu0 %v595
    %784 = vmatprep.subr.bf16.mxu0 %v592
    %785 = vmatpush1.bf16.msra.mxu0 %v591
    %786 = vmatprep.subr.bf16.mxu0 %v588
    %787 = vmatpush1.bf16.msra.mxu0 %v587
    %788 = vmatprep.subr.bf16.mxu0 %v584
    %789 = vmatpush1.bf16.msra.mxu0 %v583
    %790 = vmatprep.subr.bf16.mxu0 0
    %791 = vmatpush2.bf16.msra.mxu0 0
    %792 = vmatprep.subr.bf16.mxu0 0
    %793 = vmatpush2.bf16.msra.mxu0 0
    %794 = vmatprep.subr.bf16.mxu0 0
    %795 = vmatpush2.bf16.msra.mxu0 0
    %796 = vmatprep.subr.bf16.mxu0 0
    %797 = vmatpush2.bf16.msra.mxu0 0
    %798 = vmatprep.subr.bf16.mxu0 0
    %799 = vmatpush2.bf16.msra.mxu0 0
    %800 = vmatprep.subr.bf16.mxu0 0
    %801 = vmatpush2.bf16.msra.mxu0 0
    %802 = vmatprep.subr.bf16.mxu0 0
    %803 = vmatpush2.bf16.msra.mxu0 0
    %804 = vmatprep.subr.bf16.mxu0 0
    %805 = vmatpush2.bf16.msra.mxu0 0
    %806 = vmatprep.mubr.bf16.mxu0 0
    %807 = vmatmul.mubr.bf16.gmra.mxu0 %v215
    %v808 = vpop.f32.mrf.mxu0
    %v809 = vadd.f32 %v746, %v808
    %v810 = vpop.f32.mrf.mxu0
    %v811 = vadd.f32 %v748, %v810
    %v812 = vpop.f32.mrf.mxu0
    %v813 = vadd.f32 %v750, %v812
    %v814 = vpop.f32.mrf.mxu0
    %v815 = vadd.f32 %v752, %v814
    %816 = vmatprep.mubr.bf16.mxu0 0
    %817 = vmatmul.mubr.bf16.gmra.mxu0 %v218
    %v818 = vpop.f32.mrf.mxu0
    %v819 = vadd.f32 %v756, %v818
    %v820 = vpop.f32.mrf.mxu0
    %v821 = vadd.f32 %v758, %v820
    %v822 = vpop.f32.mrf.mxu0
    %v823 = vadd.f32 %v760, %v822
    %v824 = vpop.f32.mrf.mxu0
    %v825 = vadd.f32 %v762, %v824
    %826 = vmatprep.mubr.bf16.mxu0 0
    %827 = vmatmul.mubr.bf16.gmra.mxu0 %v221
    %v828 = vpop.f32.mrf.mxu0
    %v829 = vadd.f32 %v766, %v828
    %v830 = vpop.f32.mrf.mxu0
    %v831 = vadd.f32 %v768, %v830
    %v832 = vpop.f32.mrf.mxu0
    %v833 = vadd.f32 %v770, %v832
    %v834 = vpop.f32.mrf.mxu0
    %v835 = vadd.f32 %v772, %v834
    %836 = vdwg.mxu0
    %837 = vmatprep.subr.bf16.mxu0 %v550
    %838 = vmatpush1.bf16.msra.mxu0 %v549
    %839 = vmatprep.subr.bf16.mxu0 %v546
    %840 = vmatpush1.bf16.msra.mxu0 %v545
    %841 = vmatprep.subr.bf16.mxu0 %v542
    %842 = vmatpush1.bf16.msra.mxu0 %v541
    %843 = vmatprep.subr.bf16.mxu0 %v538
    %844 = vmatpush1.bf16.msra.mxu0 %v537
    %845 = vmatprep.subr.bf16.mxu0 %v534
    %846 = vmatpush1.bf16.msra.mxu0 %v533
    %847 = vmatprep.subr.bf16.mxu0 %v530
    %848 = vmatpush1.bf16.msra.mxu0 %v529
    %849 = vmatprep.subr.bf16.mxu0 %v526
    %850 = vmatpush1.bf16.msra.mxu0 %v525
    %851 = vmatprep.subr.bf16.mxu0 %v522
    %852 = vmatpush1.bf16.msra.mxu0 %v521
    %853 = vmatprep.subr.bf16.mxu0 %v582
    %854 = vmatpush2.bf16.msra.mxu0 %v581
    %855 = vmatprep.subr.bf16.mxu0 %v578
    %856 = vmatpush2.bf16.msra.mxu0 %v577
    %857 = vmatprep.subr.bf16.mxu0 %v574
    %858 = vmatpush2.bf16.msra.mxu0 %v573
    %859 = vmatprep.subr.bf16.mxu0 %v570
    %860 = vmatpush2.bf16.msra.mxu0 %v569
    %861 = vmatprep.subr.bf16.mxu0 %v566
    %862 = vmatpush2.bf16.msra.mxu0 %v565
    %863 = vmatprep.subr.bf16.mxu0 %v562
    %864 = vmatpush2.bf16.msra.mxu0 %v561
    %865 = vmatprep.subr.bf16.mxu0 %v558
    %866 = vmatpush2.bf16.msra.mxu0 %v557
    %867 = vmatprep.subr.bf16.mxu0 %v554
    %868 = vmatpush2.bf16.msra.mxu0 %v553
    %869 = vmatprep.mubr.bf16.mxu0 %v214
    %870 = vmatmul.mubr.bf16.gmra.mxu0 %v213
    %v871 = vpop.f32.mrf.mxu0
    %v872 = vadd.f32 0.0, %v871
    %v873 = vpop.f32.mrf.mxu0
    %v874 = vadd.f32 0.0, %v873
    %v875 = vpop.f32.mrf.mxu0
    %v876 = vadd.f32 0.0, %v875
    %v877 = vpop.f32.mrf.mxu0
    %v878 = vadd.f32 0.0, %v877
    %879 = vmatprep.mubr.bf16.mxu0 %v217
    %880 = vmatmul.mubr.bf16.gmra.mxu0 %v216
    %v881 = vpop.f32.mrf.mxu0
    %v882 = vadd.f32 0.0, %v881
    %v883 = vpop.f32.mrf.mxu0
    %v884 = vadd.f32 0.0, %v883
    %v885 = vpop.f32.mrf.mxu0
    %v886 = vadd.f32 0.0, %v885
    %v887 = vpop.f32.mrf.mxu0
    %v888 = vadd.f32 0.0, %v887
    %889 = vmatprep.mubr.bf16.mxu0 %v220
    %890 = vmatmul.mubr.bf16.gmra.mxu0 %v219
    %v891 = vpop.f32.mrf.mxu0
    %v892 = vadd.f32 0.0, %v891
    %v893 = vpop.f32.mrf.mxu0
    %v894 = vadd.f32 0.0, %v893
    %v895 = vpop.f32.mrf.mxu0
    %v896 = vadd.f32 0.0, %v895
    %v897 = vpop.f32.mrf.mxu0
    %v898 = vadd.f32 0.0, %v897
    %899 = vdwg.mxu0
    %900 = vmatprep.subr.bf16.mxu0 %v614
    %901 = vmatpush1.bf16.msra.mxu0 %v613
    %902 = vmatprep.subr.bf16.mxu0 %v610
    %903 = vmatpush1.bf16.msra.mxu0 %v609
    %904 = vmatprep.subr.bf16.mxu0 %v606
    %905 = vmatpush1.bf16.msra.mxu0 %v605
    %906 = vmatprep.subr.bf16.mxu0 %v602
    %907 = vmatpush1.bf16.msra.mxu0 %v601
    %908 = vmatprep.subr.bf16.mxu0 %v598
    %909 = vmatpush1.bf16.msra.mxu0 %v597
    %910 = vmatprep.subr.bf16.mxu0 %v594
    %911 = vmatpush1.bf16.msra.mxu0 %v593
    %912 = vmatprep.subr.bf16.mxu0 %v590
    %913 = vmatpush1.bf16.msra.mxu0 %v589
    %914 = vmatprep.subr.bf16.mxu0 %v586
    %915 = vmatpush1.bf16.msra.mxu0 %v585
    %916 = vmatprep.subr.bf16.mxu0 0
    %917 = vmatpush2.bf16.msra.mxu0 0
    %918 = vmatprep.subr.bf16.mxu0 0
    %919 = vmatpush2.bf16.msra.mxu0 0
    %920 = vmatprep.subr.bf16.mxu0 0
    %921 = vmatpush2.bf16.msra.mxu0 0
    %922 = vmatprep.subr.bf16.mxu0 0
    %923 = vmatpush2.bf16.msra.mxu0 0
    %924 = vmatprep.subr.bf16.mxu0 0
    %925 = vmatpush2.bf16.msra.mxu0 0
    %926 = vmatprep.subr.bf16.mxu0 0
    %927 = vmatpush2.bf16.msra.mxu0 0
    %928 = vmatprep.subr.bf16.mxu0 0
    %929 = vmatpush2.bf16.msra.mxu0 0
    %930 = vmatprep.subr.bf16.mxu0 0
    %931 = vmatpush2.bf16.msra.mxu0 0
    %932 = vmatprep.mubr.bf16.mxu0 0
    %933 = vmatmul.mubr.bf16.gmra.mxu0 %v215
    %v934 = vpop.f32.mrf.mxu0
    %v935 = vadd.f32 %v872, %v934
    %v936 = vpop.f32.mrf.mxu0
    %v937 = vadd.f32 %v874, %v936
    %v938 = vpop.f32.mrf.mxu0
    %v939 = vadd.f32 %v876, %v938
    %v940 = vpop.f32.mrf.mxu0
    %v941 = vadd.f32 %v878, %v940
    %942 = vmatprep.mubr.bf16.mxu0 0
    %943 = vmatmul.mubr.bf16.gmra.mxu0 %v218
    %v944 = vpop.f32.mrf.mxu0
    %v945 = vadd.f32 %v882, %v944
    %v946 = vpop.f32.mrf.mxu0
    %v947 = vadd.f32 %v884, %v946
    %v948 = vpop.f32.mrf.mxu0
    %v949 = vadd.f32 %v886, %v948
    %v950 = vpop.f32.mrf.mxu0
    %v951 = vadd.f32 %v888, %v950
    %952 = vmatprep.mubr.bf16.mxu0 0
    %953 = vmatmul.mubr.bf16.gmra.mxu0 %v221
    %v954 = vpop.f32.mrf.mxu0
    %v955 = vadd.f32 %v892, %v954
    %v956 = vpop.f32.mrf.mxu0
    %v957 = vadd.f32 %v894, %v956
    %v958 = vpop.f32.mrf.mxu0
    %v959 = vadd.f32 %v896, %v958
    %v960 = vpop.f32.mrf.mxu0
    %v961 = vadd.f32 %v898, %v960
    %962 = vdwg.mxu0
    %v963 = vmax.f32 %v809, %v811
    %v964 = vmax.f32 %v813, %v815
    %v965 = vmax.f32 %v819, %v821
    %v966 = vmax.f32 %v823, %v825
    %v967 = vmax.f32 %v829, %v831
    %v968 = vmax.f32 %v833, %v835
    %v969 = vmax.f32 %v963, %v935
    %v970 = vmax.f32 %v964, %v939
    %v971 = vmax.f32 %v965, %v945
    %v972 = vmax.f32 %v966, %v949
    %v973 = vmax.f32 %v967, %v955
    %v974 = vmax.f32 %v968, %v959
    %v975 = vmax.f32 %v969, %v937
    %v976 = vmax.f32 %v970, %v941
    %v977 = vmax.f32 %v971, %v947
    %v978 = vmax.f32 %v972, %v951
    %v979 = vmax.f32 %v973, %v957
    %v980 = vmax.f32 %v974, %v961
    %981 = vst [vmem:[#allocation2] sm:$0xff] 0.0
    %982 = vst [vmem:[#allocation2 + $0x8] sm:$0xff] %v975
    %983 = vst [vmem:[#allocation2 + $0x10] sm:$0xff] %v976
    %984 = vst [vmem:[#allocation2 + $0x18] sm:$0xff] %v977
    %985 = vst [vmem:[#allocation2 + $0x20] sm:$0xff] %v978
    %986 = vst [vmem:[#allocation2 + $0x28] sm:$0xff] %v979
    %987 = vst [vmem:[#allocation2 + $0x30] sm:$0xff] %v980
    %988 = vst [vmem:[#allocation2 + $0x38] sm:$0xff] 0.0
    %v989 = vld [vmem:[#allocation2 + $0x5] sm:$0xff]
    %v990 = vld [vmem:[#allocation2 + $0xd] sm:$0xff]
    %v991 = vld [vmem:[#allocation2 + $0x15] sm:$0xff]
    %v992 = vld [vmem:[#allocation2 + $0x1d] sm:$0xff]
    %v993 = vld [vmem:[#allocation2 + $0x25] sm:$0xff]
    %v994 = vld [vmem:[#allocation2 + $0x2d] sm:$0xff]
    %v995 = vpack.c.bf16 %v990, %v989
    %v996 = vpack.c.bf16 %v992, %v991
    %v997 = vpack.c.bf16 %v994, %v993
    %v1001 = vunpack.c.l.b16 %v995
    %v1002 = vunpack.c.h.b16 %v995
    %v1003 = vunpack.c.l.b16 %v996
    %v1004 = vunpack.c.h.b16 %v996
    %v1005 = vunpack.c.l.b16 %v997
    %v1006 = vunpack.c.h.b16 %v997
    %v1007 = vpack.c.b16 %v1001, %v1001
    %v1008 = vpack.c.b16 %v1002, %v1002
    %v1009 = vpack.c.b16 %v1003, %v1003
    %v1010 = vpack.c.b16 %v1004, %v1004
    %v1011 = vpack.c.b16 %v1005, %v1005
    %v1012 = vpack.c.b16 %v1006, %v1006
    %1019 = vst [vmem:[#allocation3] sm:$0xf] %v1007
    %1020 = vst [vmem:[#allocation3 + $0x1c] sm:$0xf] %v1008
    %1021 = vst [vmem:[#allocation3 + $0x38] sm:$0xf] %v1009
    %1022 = vst [vmem:[#allocation3 + $0x54] sm:$0xf] %v1010
    %1023 = vst [vmem:[#allocation3 + $0x70] sm:$0xf] %v1011
    %1024 = vst [vmem:[#allocation3 + $0x8c] sm:$0xf] %v1012
    %v1025 = vld [vmem:[#allocation2 + $0x6] sm:$0xff]
    %v1026 = vld [vmem:[#allocation2 + $0xe] sm:$0xff]
    %v1027 = vld [vmem:[#allocation2 + $0x16] sm:$0xff]
    %v1028 = vld [vmem:[#allocation2 + $0x1e] sm:$0xff]
    %v1029 = vld [vmem:[#allocation2 + $0x26] sm:$0xff]
    %v1030 = vld [vmem:[#allocation2 + $0x2e] sm:$0xff]
    %v1031 = vpack.c.bf16 %v1026, %v1025
    %v1032 = vpack.c.bf16 %v1028, %v1027
    %v1033 = vpack.c.bf16 %v1030, %v1029
    %v1037 = vunpack.c.l.b16 %v1031
    %v1038 = vunpack.c.h.b16 %v1031
    %v1039 = vunpack.c.l.b16 %v1032
    %v1040 = vunpack.c.h.b16 %v1032
    %v1041 = vunpack.c.l.b16 %v1033
    %v1042 = vunpack.c.h.b16 %v1033
    %v1043 = vpack.c.b16 %v1037, %v1037
    %v1044 = vpack.c.b16 %v1038, %v1038
    %v1045 = vpack.c.b16 %v1039, %v1039
    %v1046 = vpack.c.b16 %v1040, %v1040
    %v1047 = vpack.c.b16 %v1041, %v1041
    %v1048 = vpack.c.b16 %v1042, %v1042
    %1055 = vst [vmem:[#allocation3 + $0x4] sm:$0xf] %v1043
    %1056 = vst [vmem:[#allocation3 + $0x20] sm:$0xf] %v1044
    %1057 = vst [vmem:[#allocation3 + $0x3c] sm:$0xf] %v1045
    %1058 = vst [vmem:[#allocation3 + $0x58] sm:$0xf] %v1046
    %1059 = vst [vmem:[#allocation3 + $0x74] sm:$0xf] %v1047
    %1060 = vst [vmem:[#allocation3 + $0x90] sm:$0xf] %v1048
    %v1061 = vld [vmem:[#allocation2 + $0x7] sm:$0xff]
    %v1062 = vld [vmem:[#allocation2 + $0xf] sm:$0xff]
    %v1063 = vld [vmem:[#allocation2 + $0x17] sm:$0xff]
    %v1064 = vld [vmem:[#allocation2 + $0x1f] sm:$0xff]
    %v1065 = vld [vmem:[#allocation2 + $0x27] sm:$0xff]
    %v1066 = vld [vmem:[#allocation2 + $0x2f] sm:$0xff]
    %v1067 = vpack.c.bf16 %v1062, %v1061
    %v1068 = vpack.c.bf16 %v1064, %v1063
    %v1069 = vpack.c.bf16 %v1066, %v1065
    %v1073 = vunpack.c.l.b16 %v1067
    %v1074 = vunpack.c.h.b16 %v1067
    %v1075 = vunpack.c.l.b16 %v1068
    %v1076 = vunpack.c.h.b16 %v1068
    %v1077 = vunpack.c.l.b16 %v1069
    %v1078 = vunpack.c.h.b16 %v1069
    %v1079 = vpack.c.b16 %v1073, %v1073
    %v1080 = vpack.c.b16 %v1074, %v1074
    %v1081 = vpack.c.b16 %v1075, %v1075
    %v1082 = vpack.c.b16 %v1076, %v1076
    %v1083 = vpack.c.b16 %v1077, %v1077
    %v1084 = vpack.c.b16 %v1078, %v1078
    %1091 = vst [vmem:[#allocation3 + $0x8] sm:$0xf] %v1079
    %1092 = vst [vmem:[#allocation3 + $0x24] sm:$0xf] %v1080
    %1093 = vst [vmem:[#allocation3 + $0x40] sm:$0xf] %v1081
    %1094 = vst [vmem:[#allocation3 + $0x5c] sm:$0xf] %v1082
    %1095 = vst [vmem:[#allocation3 + $0x78] sm:$0xf] %v1083
    %1096 = vst [vmem:[#allocation3 + $0x94] sm:$0xf] %v1084
    %v1097 = vld [vmem:[#allocation2 + $0x8] sm:$0xff]
    %v1098 = vld [vmem:[#allocation2 + $0x10] sm:$0xff]
    %v1099 = vld [vmem:[#allocation2 + $0x18] sm:$0xff]
    %v1100 = vld [vmem:[#allocation2 + $0x20] sm:$0xff]
    %v1101 = vld [vmem:[#allocation2 + $0x28] sm:$0xff]
    %v1102 = vld [vmem:[#allocation2 + $0x30] sm:$0xff]
    %v1103 = vpack.c.bf16 %v1098, %v1097
    %v1104 = vpack.c.bf16 %v1100, %v1099
    %v1105 = vpack.c.bf16 %v1102, %v1101
    %v1109 = vunpack.c.l.b16 %v1103
    %v1110 = vunpack.c.h.b16 %v1103
    %v1111 = vunpack.c.l.b16 %v1104
    %v1112 = vunpack.c.h.b16 %v1104
    %v1113 = vunpack.c.l.b16 %v1105
    %v1114 = vunpack.c.h.b16 %v1105
    %v1115 = vpack.c.b16 %v1109, %v1109
    %v1116 = vpack.c.b16 %v1110, %v1110
    %v1117 = vpack.c.b16 %v1111, %v1111
    %v1118 = vpack.c.b16 %v1112, %v1112
    %v1119 = vpack.c.b16 %v1113, %v1113
    %v1120 = vpack.c.b16 %v1114, %v1114
    %1127 = vst [vmem:[#allocation3 + $0xc] sm:$0xf] %v1115
    %1128 = vst [vmem:[#allocation3 + $0x28] sm:$0xf] %v1116
    %1129 = vst [vmem:[#allocation3 + $0x44] sm:$0xf] %v1117
    %1130 = vst [vmem:[#allocation3 + $0x60] sm:$0xf] %v1118
    %1131 = vst [vmem:[#allocation3 + $0x7c] sm:$0xf] %v1119
    %1132 = vst [vmem:[#allocation3 + $0x98] sm:$0xf] %v1120
    %v1133 = vld [vmem:[#allocation2 + $0x9] sm:$0xff]
    %v1134 = vld [vmem:[#allocation2 + $0x11] sm:$0xff]
    %v1135 = vld [vmem:[#allocation2 + $0x19] sm:$0xff]
    %v1136 = vld [vmem:[#allocation2 + $0x21] sm:$0xff]
    %v1137 = vld [vmem:[#allocation2 + $0x29] sm:$0xff]
    %v1138 = vld [vmem:[#allocation2 + $0x31] sm:$0xff]
    %v1139 = vpack.c.bf16 %v1134, %v1133
    %v1140 = vpack.c.bf16 %v1136, %v1135
    %v1141 = vpack.c.bf16 %v1138, %v1137
    %v1145 = vunpack.c.l.b16 %v1139
    %v1146 = vunpack.c.h.b16 %v1139
    %v1147 = vunpack.c.l.b16 %v1140
    %v1148 = vunpack.c.h.b16 %v1140
    %v1149 = vunpack.c.l.b16 %v1141
    %v1150 = vunpack.c.h.b16 %v1141
    %v1151 = vpack.c.b16 %v1145, %v1145
    %v1152 = vpack.c.b16 %v1146, %v1146
    %v1153 = vpack.c.b16 %v1147, %v1147
    %v1154 = vpack.c.b16 %v1148, %v1148
    %v1155 = vpack.c.b16 %v1149, %v1149
    %v1156 = vpack.c.b16 %v1150, %v1150
    %1163 = vst [vmem:[#allocation3 + $0x10] sm:$0xf] %v1151
    %1164 = vst [vmem:[#allocation3 + $0x2c] sm:$0xf] %v1152
    %1165 = vst [vmem:[#allocation3 + $0x48] sm:$0xf] %v1153
    %1166 = vst [vmem:[#allocation3 + $0x64] sm:$0xf] %v1154
    %1167 = vst [vmem:[#allocation3 + $0x80] sm:$0xf] %v1155
    %1168 = vst [vmem:[#allocation3 + $0x9c] sm:$0xf] %v1156
    %v1169 = vld [vmem:[#allocation2 + $0xa] sm:$0xff]
    %v1170 = vld [vmem:[#allocation2 + $0x12] sm:$0xff]
    %v1171 = vld [vmem:[#allocation2 + $0x1a] sm:$0xff]
    %v1172 = vld [vmem:[#allocation2 + $0x22] sm:$0xff]
    %v1173 = vld [vmem:[#allocation2 + $0x2a] sm:$0xff]
    %v1174 = vld [vmem:[#allocation2 + $0x32] sm:$0xff]
    %v1175 = vpack.c.bf16 %v1170, %v1169
    %v1176 = vpack.c.bf16 %v1172, %v1171
    %v1177 = vpack.c.bf16 %v1174, %v1173
    %v1181 = vunpack.c.l.b16 %v1175
    %v1182 = vunpack.c.h.b16 %v1175
    %v1183 = vunpack.c.l.b16 %v1176
    %v1184 = vunpack.c.h.b16 %v1176
    %v1185 = vunpack.c.l.b16 %v1177
    %v1186 = vunpack.c.h.b16 %v1177
    %v1187 = vpack.c.b16 %v1181, %v1181
    %v1188 = vpack.c.b16 %v1182, %v1182
    %v1189 = vpack.c.b16 %v1183, %v1183
    %v1190 = vpack.c.b16 %v1184, %v1184
    %v1191 = vpack.c.b16 %v1185, %v1185
    %v1192 = vpack.c.b16 %v1186, %v1186
    %1199 = vst [vmem:[#allocation3 + $0x14] sm:$0xf] %v1187
    %1200 = vst [vmem:[#allocation3 + $0x30] sm:$0xf] %v1188
    %1201 = vst [vmem:[#allocation3 + $0x4c] sm:$0xf] %v1189
    %1202 = vst [vmem:[#allocation3 + $0x68] sm:$0xf] %v1190
    %1203 = vst [vmem:[#allocation3 + $0x84] sm:$0xf] %v1191
    %1204 = vst [vmem:[#allocation3 + $0xa0] sm:$0xf] %v1192
    %v1205 = vld [vmem:[#allocation2 + $0xb] sm:$0xff]
    %v1206 = vld [vmem:[#allocation2 + $0x13] sm:$0xff]
    %v1207 = vld [vmem:[#allocation2 + $0x1b] sm:$0xff]
    %v1208 = vld [vmem:[#allocation2 + $0x23] sm:$0xff]
    %v1209 = vld [vmem:[#allocation2 + $0x2b] sm:$0xff]
    %v1210 = vld [vmem:[#allocation2 + $0x33] sm:$0xff]
    %v1211 = vpack.c.bf16 %v1206, %v1205
    %v1212 = vpack.c.bf16 %v1208, %v1207
    %v1213 = vpack.c.bf16 %v1210, %v1209
    %v1217 = vunpack.c.l.b16 %v1211
    %v1218 = vunpack.c.h.b16 %v1211
    %v1219 = vunpack.c.l.b16 %v1212
    %v1220 = vunpack.c.h.b16 %v1212
    %v1221 = vunpack.c.l.b16 %v1213
    %v1222 = vunpack.c.h.b16 %v1213
    %v1223 = vpack.c.b16 %v1217, %v1217
    %v1224 = vpack.c.b16 %v1218, %v1218
    %v1225 = vpack.c.b16 %v1219, %v1219
    %v1226 = vpack.c.b16 %v1220, %v1220
    %v1227 = vpack.c.b16 %v1221, %v1221
    %v1228 = vpack.c.b16 %v1222, %v1222
    %1235 = vst [vmem:[#allocation3 + $0x18] sm:$0xf] %v1223
    %1236 = vst [vmem:[#allocation3 + $0x34] sm:$0xf] %v1224
    %1237 = vst [vmem:[#allocation3 + $0x50] sm:$0xf] %v1225
    %1238 = vst [vmem:[#allocation3 + $0x6c] sm:$0xf] %v1226
    %1239 = vst [vmem:[#allocation3 + $0x88] sm:$0xf] %v1227
    %1240 = vst [vmem:[#allocation3 + $0xa4] sm:$0xf] %v1228
    %v1241 = vld [vmem:[#allocation3] sm:$0xff]
    %v1242 = vld [vmem:[#allocation3 + $0x8] sm:$0xff]
    %v1243 = vld [vmem:[#allocation3 + $0x10] sm:$0xff]
    %v1244 = vld [vmem:[#allocation3 + $0x18] sm:$0xf]
    %v1245 = vld [vmem:[#allocation3 + $0x1c] sm:$0xff]
    %v1246 = vld [vmem:[#allocation3 + $0x24] sm:$0xff]
    %v1247 = vld [vmem:[#allocation3 + $0x2c] sm:$0xff]
    %v1248 = vld [vmem:[#allocation3 + $0x34] sm:$0xf]
    %v1249 = vld [vmem:[#allocation3 + $0x38] sm:$0xff]
    %v1250 = vld [vmem:[#allocation3 + $0x40] sm:$0xff]
    %v1251 = vld [vmem:[#allocation3 + $0x48] sm:$0xff]
    %v1252 = vld [vmem:[#allocation3 + $0x50] sm:$0xf]
    %v1253 = vld [vmem:[#allocation3 + $0x54] sm:$0xff]
    %v1254 = vld [vmem:[#allocation3 + $0x5c] sm:$0xff]
    %v1255 = vld [vmem:[#allocation3 + $0x64] sm:$0xff]
    %v1256 = vld [vmem:[#allocation3 + $0x6c] sm:$0xf]
    %v1257 = vld [vmem:[#allocation3 + $0x70] sm:$0xff]
    %v1258 = vld [vmem:[#allocation3 + $0x78] sm:$0xff]
    %v1259 = vld [vmem:[#allocation3 + $0x80] sm:$0xff]
    %v1260 = vld [vmem:[#allocation3 + $0x88] sm:$0xf]
    %v1261 = vld [vmem:[#allocation3 + $0x8c] sm:$0xff]
    %v1262 = vld [vmem:[#allocation3 + $0x94] sm:$0xff]
    %v1263 = vld [vmem:[#allocation3 + $0x9c] sm:$0xff]
    %v1264 = vld [vmem:[#allocation3 + $0xa4] sm:$0xf]
    %v1265 = vld [vmem:[#allocation10] sm:$0xff]
    %v1266 = vld [vmem:[#allocation10 + $0x8] sm:$0xff]
    %v1267 = vld [vmem:[#allocation10 + $0x10] sm:$0xff]
    %v1268 = vld [vmem:[#allocation10 + $0x18] sm:$0xff]
    %v1269 = vld [vmem:[#allocation10 + $0x20] sm:$0xff]
    %v1270 = vld [vmem:[#allocation10 + $0x28] sm:$0xff]
    %v1271 = vld [vmem:[#allocation10 + $0x30] sm:$0xff]
    %v1272 = vld [vmem:[#allocation10 + $0x38] sm:$0xff]
    %v1273 = vld [vmem:[#allocation10 + $0x40] sm:$0xff]
    %v1274 = vld [vmem:[#allocation10 + $0x48] sm:$0xff]
    %v1275 = vld [vmem:[#allocation10 + $0x50] sm:$0xff]
    %v1276 = vld [vmem:[#allocation10 + $0x58] sm:$0xff]
    %v1277 = vld [vmem:[#allocation10 + $0x60] sm:$0xff]
    %v1278 = vld [vmem:[#allocation10 + $0x68] sm:$0xff]
    %v1279 = vld [vmem:[#allocation10 + $0x70] sm:$0xff]
    %v1280 = vld [vmem:[#allocation10 + $0x78] sm:$0xff]
    %v1281 = vld [vmem:[#allocation10 + $0x80] sm:$0xff]
    %v1282 = vld [vmem:[#allocation10 + $0x88] sm:$0xff]
    %v1283 = vld [vmem:[#allocation10 + $0x90] sm:$0xff]
    %v1284 = vld [vmem:[#allocation10 + $0x98] sm:$0xff]
    %v1285 = vld [vmem:[#allocation10 + $0xa0] sm:$0xff]
    %v1286 = vld [vmem:[#allocation10 + $0xa8] sm:$0xff]
    %v1287 = vld [vmem:[#allocation10 + $0xb0] sm:$0xff]
    %v1288 = vld [vmem:[#allocation10 + $0xb8] sm:$0xff]
    %v1289 = vld [vmem:[#allocation10 + $0xc0] sm:$0xff]
    %v1290 = vld [vmem:[#allocation10 + $0xc8] sm:$0xff]
    %v1291 = vld [vmem:[#allocation10 + $0xd0] sm:$0xff]
    %v1292 = vld [vmem:[#allocation10 + $0xd8] sm:$0xff]
    %v1293 = vld [vmem:[#allocation10 + $0xe0] sm:$0xff]
    %v1294 = vld [vmem:[#allocation10 + $0xe8] sm:$0xff]
    %v1295 = vld [vmem:[#allocation10 + $0xf0] sm:$0xff]
    %v1296 = vld [vmem:[#allocation10 + $0xf8] sm:$0xff]
    %v1297 = vld [vmem:[#allocation10 + $0x100] sm:$0xff]
    %v1298 = vld [vmem:[#allocation10 + $0x108] sm:$0xff]
    %v1299 = vld [vmem:[#allocation10 + $0x110] sm:$0xff]
    %v1300 = vld [vmem:[#allocation10 + $0x118] sm:$0xff]
    %v1301 = vld [vmem:[#allocation10 + $0x120] sm:$0xff]
    %v1302 = vld [vmem:[#allocation10 + $0x128] sm:$0xff]
    %v1303 = vld [vmem:[#allocation10 + $0x130] sm:$0xff]
    %v1304 = vld [vmem:[#allocation10 + $0x138] sm:$0xff]
    %v1305 = vld [vmem:[#allocation10 + $0x140] sm:$0xff]
    %v1306 = vld [vmem:[#allocation10 + $0x148] sm:$0xff]
    %v1307 = vld [vmem:[#allocation10 + $0x150] sm:$0xff]
    %v1308 = vld [vmem:[#allocation10 + $0x158] sm:$0xff]
    %v1309 = vld [vmem:[#allocation10 + $0x160] sm:$0xff]
    %v1310 = vld [vmem:[#allocation10 + $0x168] sm:$0xff]
    %v1311 = vld [vmem:[#allocation10 + $0x170] sm:$0xff]
    %v1312 = vld [vmem:[#allocation10 + $0x178] sm:$0xff]
    %v1313 = vld [vmem:[#allocation10 + $0x180] sm:$0xff]
    %v1314 = vld [vmem:[#allocation10 + $0x188] sm:$0xff]
    %v1315 = vld [vmem:[#allocation10 + $0x190] sm:$0xff]
    %v1316 = vld [vmem:[#allocation10 + $0x198] sm:$0xff]
    %v1317 = vld [vmem:[#allocation10 + $0x1a0] sm:$0xff]
    %v1318 = vld [vmem:[#allocation10 + $0x1a8] sm:$0xff]
    %v1319 = vld [vmem:[#allocation10 + $0x1b0] sm:$0xff]
    %v1320 = vld [vmem:[#allocation10 + $0x1b8] sm:$0xff]
    %v1321 = vld [vmem:[#allocation10 + $0x1c0] sm:$0xff]
    %v1322 = vld [vmem:[#allocation10 + $0x1c8] sm:$0xff]
    %v1323 = vld [vmem:[#allocation10 + $0x1d0] sm:$0xff]
    %v1324 = vld [vmem:[#allocation10 + $0x1d8] sm:$0xff]
    %v1325 = vld [vmem:[#allocation10 + $0x1e0] sm:$0xff]
    %v1326 = vld [vmem:[#allocation10 + $0x1e8] sm:$0xff]
    %v1327 = vld [vmem:[#allocation10 + $0x1f0] sm:$0xff]
    %v1328 = vld [vmem:[#allocation10 + $0x1f8] sm:$0xff]
    %v1329 = vld [vmem:[#allocation10 + $0x200] sm:$0xff]
    %v1330 = vld [vmem:[#allocation10 + $0x208] sm:$0xff]
    %v1331 = vld [vmem:[#allocation10 + $0x210] sm:$0xff]
    %v1332 = vld [vmem:[#allocation10 + $0x218] sm:$0xff]
    %v1333 = vld [vmem:[#allocation10 + $0x220] sm:$0xff]
    %v1334 = vld [vmem:[#allocation10 + $0x228] sm:$0xff]
    %v1335 = vld [vmem:[#allocation10 + $0x230] sm:$0xff]
    %v1336 = vld [vmem:[#allocation10 + $0x238] sm:$0xff]
    %v1337 = vld [vmem:[#allocation10 + $0x240] sm:$0xff]
    %v1338 = vld [vmem:[#allocation10 + $0x248] sm:$0xff]
    %v1339 = vld [vmem:[#allocation10 + $0x250] sm:$0xff]
    %v1340 = vld [vmem:[#allocation10 + $0x258] sm:$0xff]
    %v1341 = vld [vmem:[#allocation10 + $0x260] sm:$0xff]
    %v1342 = vld [vmem:[#allocation10 + $0x268] sm:$0xff]
    %v1343 = vld [vmem:[#allocation10 + $0x270] sm:$0xff]
    %v1344 = vld [vmem:[#allocation10 + $0x278] sm:$0xff]
    %v1345 = vld [vmem:[#allocation10 + $0x280] sm:$0xff]
    %v1346 = vld [vmem:[#allocation10 + $0x288] sm:$0xff]
    %v1347 = vld [vmem:[#allocation10 + $0x290] sm:$0xff]
    %v1348 = vld [vmem:[#allocation10 + $0x298] sm:$0xff]
    %v1349 = vld [vmem:[#allocation10 + $0x2a0] sm:$0xff]
    %v1350 = vld [vmem:[#allocation10 + $0x2a8] sm:$0xff]
    %v1351 = vld [vmem:[#allocation10 + $0x2b0] sm:$0xff]
    %v1352 = vld [vmem:[#allocation10 + $0x2b8] sm:$0xff]
    %v1353 = vld [vmem:[#allocation10 + $0x2c0] sm:$0xff]
    %v1354 = vld [vmem:[#allocation10 + $0x2c8] sm:$0xff]
    %v1355 = vld [vmem:[#allocation10 + $0x2d0] sm:$0xff]
    %v1356 = vld [vmem:[#allocation10 + $0x2d8] sm:$0xff]
    %v1357 = vld [vmem:[#allocation10 + $0x2e0] sm:$0xff]
    %v1358 = vld [vmem:[#allocation10 + $0x2e8] sm:$0xff]
    %v1359 = vld [vmem:[#allocation10 + $0x2f0] sm:$0xff]
    %v1360 = vld [vmem:[#allocation10 + $0x2f8] sm:$0xff]
    %v1361 = vld [vmem:[#allocation10 + $0x300] sm:$0xff]
    %v1362 = vld [vmem:[#allocation10 + $0x308] sm:$0xff]
    %v1363 = vld [vmem:[#allocation10 + $0x310] sm:$0xff]
    %v1364 = vld [vmem:[#allocation10 + $0x318] sm:$0xff]
    %v1365 = vld [vmem:[#allocation10 + $0x320] sm:$0xff]
    %v1366 = vld [vmem:[#allocation10 + $0x328] sm:$0xff]
    %v1367 = vld [vmem:[#allocation10 + $0x330] sm:$0xff]
    %v1368 = vld [vmem:[#allocation10 + $0x338] sm:$0xff]
    %v1369 = vld [vmem:[#allocation10 + $0x340] sm:$0xff]
    %v1370 = vld [vmem:[#allocation10 + $0x348] sm:$0xff]
    %v1371 = vld [vmem:[#allocation10 + $0x350] sm:$0xff]
    %v1372 = vld [vmem:[#allocation10 + $0x358] sm:$0xff]
    %v1373 = vld [vmem:[#allocation10 + $0x360] sm:$0xff]
    %v1374 = vld [vmem:[#allocation10 + $0x368] sm:$0xff]
    %v1375 = vld [vmem:[#allocation10 + $0x370] sm:$0xff]
    %v1376 = vld [vmem:[#allocation10 + $0x378] sm:$0xff]
    %v1377 = vld [vmem:[#allocation10 + $0x380] sm:$0xff]
    %v1378 = vld [vmem:[#allocation10 + $0x388] sm:$0xff]
    %v1379 = vld [vmem:[#allocation10 + $0x390] sm:$0xff]
    %v1380 = vld [vmem:[#allocation10 + $0x398] sm:$0xff]
    %v1381 = vld [vmem:[#allocation10 + $0x3a0] sm:$0xff]
    %v1382 = vld [vmem:[#allocation10 + $0x3a8] sm:$0xff]
    %v1383 = vld [vmem:[#allocation10 + $0x3b0] sm:$0xff]
    %v1384 = vld [vmem:[#allocation10 + $0x3b8] sm:$0xff]
    %v1385 = vld [vmem:[#allocation10 + $0x3c0] sm:$0xff]
    %v1386 = vld [vmem:[#allocation10 + $0x3c8] sm:$0xff]
    %v1387 = vld [vmem:[#allocation10 + $0x3d0] sm:$0xff]
    %v1388 = vld [vmem:[#allocation10 + $0x3d8] sm:$0xff]
    %v1389 = vld [vmem:[#allocation10 + $0x3e0] sm:$0xff]
    %v1390 = vld [vmem:[#allocation10 + $0x3e8] sm:$0xff]
    %v1391 = vld [vmem:[#allocation10 + $0x3f0] sm:$0xff]
    %v1392 = vld [vmem:[#allocation10 + $0x3f8] sm:$0xff]
    %v1393 = vld [vmem:[#allocation10 + $0x400] sm:$0xff]
    %v1394 = vld [vmem:[#allocation10 + $0x408] sm:$0xff]
    %v1395 = vld [vmem:[#allocation10 + $0x410] sm:$0xff]
    %v1396 = vld [vmem:[#allocation10 + $0x418] sm:$0xff]
    %v1397 = vld [vmem:[#allocation10 + $0x420] sm:$0xff]
    %v1398 = vld [vmem:[#allocation10 + $0x428] sm:$0xff]
    %v1399 = vld [vmem:[#allocation10 + $0x430] sm:$0xff]
    %v1400 = vld [vmem:[#allocation10 + $0x438] sm:$0xff]
    %v1401 = vld [vmem:[#allocation10 + $0x440] sm:$0xff]
    %v1402 = vld [vmem:[#allocation10 + $0x448] sm:$0xff]
    %v1403 = vld [vmem:[#allocation10 + $0x450] sm:$0xff]
    %v1404 = vld [vmem:[#allocation10 + $0x458] sm:$0xff]
    %v1405 = vld [vmem:[#allocation10 + $0x460] sm:$0xff]
    %v1406 = vld [vmem:[#allocation10 + $0x468] sm:$0xff]
    %v1407 = vld [vmem:[#allocation10 + $0x470] sm:$0xff]
    %v1408 = vld [vmem:[#allocation10 + $0x478] sm:$0xff]
    %v1409 = vld [vmem:[#allocation10 + $0x480] sm:$0xff]
    %v1410 = vld [vmem:[#allocation10 + $0x488] sm:$0xff]
    %v1411 = vld [vmem:[#allocation10 + $0x490] sm:$0xff]
    %v1412 = vld [vmem:[#allocation10 + $0x498] sm:$0xff]
    %v1413 = vld [vmem:[#allocation10 + $0x4a0] sm:$0xff]
    %v1414 = vld [vmem:[#allocation10 + $0x4a8] sm:$0xff]
    %v1415 = vld [vmem:[#allocation10 + $0x4b0] sm:$0xff]
    %v1416 = vld [vmem:[#allocation10 + $0x4b8] sm:$0xff]
    %v1417 = vld [vmem:[#allocation10 + $0x4c0] sm:$0xff]
    %v1418 = vld [vmem:[#allocation10 + $0x4c8] sm:$0xff]
    %v1419 = vld [vmem:[#allocation10 + $0x4d0] sm:$0xff]
    %v1420 = vld [vmem:[#allocation10 + $0x4d8] sm:$0xff]
    %v1421 = vld [vmem:[#allocation10 + $0x4e0] sm:$0xff]
    %v1422 = vld [vmem:[#allocation10 + $0x4e8] sm:$0xff]
    %v1423 = vld [vmem:[#allocation10 + $0x4f0] sm:$0xff]
    %v1424 = vld [vmem:[#allocation10 + $0x4f8] sm:$0xff]
    %v1425 = vld [vmem:[#allocation10 + $0x500] sm:$0xff]
    %v1426 = vld [vmem:[#allocation10 + $0x508] sm:$0xff]
    %v1427 = vld [vmem:[#allocation10 + $0x510] sm:$0xff]
    %v1428 = vld [vmem:[#allocation10 + $0x518] sm:$0xff]
    %v1429 = vld [vmem:[#allocation10 + $0x520] sm:$0xff]
    %v1430 = vld [vmem:[#allocation10 + $0x528] sm:$0xff]
    %v1431 = vld [vmem:[#allocation10 + $0x530] sm:$0xff]
    %v1432 = vld [vmem:[#allocation10 + $0x538] sm:$0xff]
    %v1433 = vld [vmem:[#allocation10 + $0x540] sm:$0xff]
    %v1434 = vld [vmem:[#allocation10 + $0x548] sm:$0xff]
    %v1435 = vld [vmem:[#allocation10 + $0x550] sm:$0xff]
    %v1436 = vld [vmem:[#allocation10 + $0x558] sm:$0xff]
    %v1437 = vld [vmem:[#allocation10 + $0x560] sm:$0xff]
    %v1438 = vld [vmem:[#allocation10 + $0x568] sm:$0xff]
    %v1439 = vld [vmem:[#allocation10 + $0x570] sm:$0xff]
    %v1440 = vld [vmem:[#allocation10 + $0x578] sm:$0xff]
    %v1441 = vld [vmem:[#allocation10 + $0x580] sm:$0xff]
    %v1442 = vld [vmem:[#allocation10 + $0x588] sm:$0xff]
    %v1443 = vld [vmem:[#allocation10 + $0x590] sm:$0xff]
    %v1444 = vld [vmem:[#allocation10 + $0x598] sm:$0xff]
    %v1445 = vld [vmem:[#allocation10 + $0x5a0] sm:$0xff]
    %v1446 = vld [vmem:[#allocation10 + $0x5a8] sm:$0xff]
    %v1447 = vld [vmem:[#allocation10 + $0x5b0] sm:$0xff]
    %v1448 = vld [vmem:[#allocation10 + $0x5b8] sm:$0xff]
    %v1449 = vld [vmem:[#allocation10 + $0x5c0] sm:$0xff]
    %v1450 = vld [vmem:[#allocation10 + $0x5c8] sm:$0xff]
    %v1451 = vld [vmem:[#allocation10 + $0x5d0] sm:$0xff]
    %v1452 = vld [vmem:[#allocation10 + $0x5d8] sm:$0xff]
    %v1453 = vld [vmem:[#allocation10 + $0x5e0] sm:$0xff]
    %v1454 = vld [vmem:[#allocation10 + $0x5e8] sm:$0xff]
    %v1455 = vld [vmem:[#allocation10 + $0x5f0] sm:$0xff]
    %v1456 = vld [vmem:[#allocation10 + $0x5f8] sm:$0xff]
    %v1457 = vld [vmem:[#allocation10 + $0x600] sm:$0xff]
    %v1458 = vld [vmem:[#allocation10 + $0x608] sm:$0xff]
    %v1459 = vld [vmem:[#allocation10 + $0x610] sm:$0xff]
    %v1460 = vld [vmem:[#allocation10 + $0x618] sm:$0xff]
    %v1461 = vld [vmem:[#allocation10 + $0x620] sm:$0xff]
    %v1462 = vld [vmem:[#allocation10 + $0x628] sm:$0xff]
    %v1463 = vld [vmem:[#allocation10 + $0x630] sm:$0xff]
    %v1464 = vld [vmem:[#allocation10 + $0x638] sm:$0xff]
    %v1465 = vld [vmem:[#allocation10 + $0x640] sm:$0xff]
    %v1466 = vld [vmem:[#allocation10 + $0x648] sm:$0xff]
    %v1467 = vld [vmem:[#allocation10 + $0x650] sm:$0xff]
    %v1468 = vld [vmem:[#allocation10 + $0x658] sm:$0xff]
    %v1469 = vld [vmem:[#allocation10 + $0x660] sm:$0xff]
    %v1470 = vld [vmem:[#allocation10 + $0x668] sm:$0xff]
    %v1471 = vld [vmem:[#allocation10 + $0x670] sm:$0xff]
    %v1472 = vld [vmem:[#allocation10 + $0x678] sm:$0xff]
    %v1473 = vld [vmem:[#allocation10 + $0x680] sm:$0xff]
    %v1474 = vld [vmem:[#allocation10 + $0x688] sm:$0xff]
    %v1475 = vld [vmem:[#allocation10 + $0x690] sm:$0xff]
    %v1476 = vld [vmem:[#allocation10 + $0x698] sm:$0xff]
    %v1477 = vld [vmem:[#allocation10 + $0x6a0] sm:$0xff]
    %v1478 = vld [vmem:[#allocation10 + $0x6a8] sm:$0xff]
    %v1479 = vld [vmem:[#allocation10 + $0x6b0] sm:$0xff]
    %v1480 = vld [vmem:[#allocation10 + $0x6b8] sm:$0xff]
    %v1481 = vld [vmem:[#allocation10 + $0x6c0] sm:$0xff]
    %v1482 = vld [vmem:[#allocation10 + $0x6c8] sm:$0xff]
    %v1483 = vld [vmem:[#allocation10 + $0x6d0] sm:$0xff]
    %v1484 = vld [vmem:[#allocation10 + $0x6d8] sm:$0xff]
    %v1485 = vld [vmem:[#allocation10 + $0x6e0] sm:$0xff]
    %v1486 = vld [vmem:[#allocation10 + $0x6e8] sm:$0xff]
    %v1487 = vld [vmem:[#allocation10 + $0x6f0] sm:$0xff]
    %v1488 = vld [vmem:[#allocation10 + $0x6f8] sm:$0xff]
    %v1489 = vld [vmem:[#allocation10 + $0x700] sm:$0xff]
    %v1490 = vld [vmem:[#allocation10 + $0x708] sm:$0xff]
    %v1491 = vld [vmem:[#allocation10 + $0x710] sm:$0xff]
    %v1492 = vld [vmem:[#allocation10 + $0x718] sm:$0xff]
    %v1493 = vld [vmem:[#allocation10 + $0x720] sm:$0xff]
    %v1494 = vld [vmem:[#allocation10 + $0x728] sm:$0xff]
    %v1495 = vld [vmem:[#allocation10 + $0x730] sm:$0xff]
    %v1496 = vld [vmem:[#allocation10 + $0x738] sm:$0xff]
    %v1497 = vld [vmem:[#allocation10 + $0x740] sm:$0xff]
    %v1498 = vld [vmem:[#allocation10 + $0x748] sm:$0xff]
    %v1499 = vld [vmem:[#allocation10 + $0x750] sm:$0xff]
    %v1500 = vld [vmem:[#allocation10 + $0x758] sm:$0xff]
    %v1501 = vld [vmem:[#allocation10 + $0x760] sm:$0xff]
    %v1502 = vld [vmem:[#allocation10 + $0x768] sm:$0xff]
    %v1503 = vld [vmem:[#allocation10 + $0x770] sm:$0xff]
    %v1504 = vld [vmem:[#allocation10 + $0x778] sm:$0xff]
    %v1505 = vld [vmem:[#allocation10 + $0x780] sm:$0xff]
    %v1506 = vld [vmem:[#allocation10 + $0x788] sm:$0xff]
    %v1507 = vld [vmem:[#allocation10 + $0x790] sm:$0xff]
    %v1508 = vld [vmem:[#allocation10 + $0x798] sm:$0xff]
    %v1509 = vld [vmem:[#allocation10 + $0x7a0] sm:$0xff]
    %v1510 = vld [vmem:[#allocation10 + $0x7a8] sm:$0xff]
    %v1511 = vld [vmem:[#allocation10 + $0x7b0] sm:$0xff]
    %v1512 = vld [vmem:[#allocation10 + $0x7b8] sm:$0xff]
    %v1513 = vld [vmem:[#allocation10 + $0x7c0] sm:$0xff]
    %v1514 = vld [vmem:[#allocation10 + $0x7c8] sm:$0xff]
    %v1515 = vld [vmem:[#allocation10 + $0x7d0] sm:$0xff]
    %v1516 = vld [vmem:[#allocation10 + $0x7d8] sm:$0xff]
    %v1517 = vld [vmem:[#allocation10 + $0x7e0] sm:$0xff]
    %v1518 = vld [vmem:[#allocation10 + $0x7e8] sm:$0xff]
    %v1519 = vld [vmem:[#allocation10 + $0x7f0] sm:$0xff]
    %v1520 = vld [vmem:[#allocation10 + $0x7f8] sm:$0xff]
    %v1521 = vld [vmem:[#allocation10 + $0x800] sm:$0xff]
    %v1522 = vld [vmem:[#allocation10 + $0x808] sm:$0xff]
    %v1523 = vld [vmem:[#allocation10 + $0x810] sm:$0xff]
    %v1524 = vld [vmem:[#allocation10 + $0x818] sm:$0xff]
    %v1525 = vld [vmem:[#allocation10 + $0x820] sm:$0xff]
    %v1526 = vld [vmem:[#allocation10 + $0x828] sm:$0xff]
    %v1527 = vld [vmem:[#allocation10 + $0x830] sm:$0xff]
    %v1528 = vld [vmem:[#allocation10 + $0x838] sm:$0xff]
    %v1529 = vld [vmem:[#allocation10 + $0x840] sm:$0xff]
    %v1530 = vld [vmem:[#allocation10 + $0x848] sm:$0xff]
    %v1531 = vld [vmem:[#allocation10 + $0x850] sm:$0xff]
    %v1532 = vld [vmem:[#allocation10 + $0x858] sm:$0xff]
    %v1533 = vld [vmem:[#allocation10 + $0x860] sm:$0xff]
    %v1534 = vld [vmem:[#allocation10 + $0x868] sm:$0xff]
    %v1535 = vld [vmem:[#allocation10 + $0x870] sm:$0xff]
    %v1536 = vld [vmem:[#allocation10 + $0x878] sm:$0xff]
    %v1537 = vld [vmem:[#allocation10 + $0x880] sm:$0xff]
    %v1538 = vld [vmem:[#allocation10 + $0x888] sm:$0xff]
    %v1539 = vld [vmem:[#allocation10 + $0x890] sm:$0xff]
    %v1540 = vld [vmem:[#allocation10 + $0x898] sm:$0xff]
    %v1541 = vld [vmem:[#allocation10 + $0x8a0] sm:$0xff]
    %v1542 = vld [vmem:[#allocation10 + $0x8a8] sm:$0xff]
    %v1543 = vld [vmem:[#allocation10 + $0x8b0] sm:$0xff]
    %v1544 = vld [vmem:[#allocation10 + $0x8b8] sm:$0xff]
    %v1545 = vld [vmem:[#allocation10 + $0x8c0] sm:$0xff]
    %v1546 = vld [vmem:[#allocation10 + $0x8c8] sm:$0xff]
    %v1547 = vld [vmem:[#allocation10 + $0x8d0] sm:$0xff]
    %v1548 = vld [vmem:[#allocation10 + $0x8d8] sm:$0xff]
    %v1549 = vld [vmem:[#allocation10 + $0x8e0] sm:$0xff]
    %v1550 = vld [vmem:[#allocation10 + $0x8e8] sm:$0xff]
    %v1551 = vld [vmem:[#allocation10 + $0x8f0] sm:$0xff]
    %v1552 = vld [vmem:[#allocation10 + $0x8f8] sm:$0xff]
    %v1553 = vld [vmem:[#allocation10 + $0x900] sm:$0xff]
    %v1554 = vld [vmem:[#allocation10 + $0x908] sm:$0xff]
    %v1555 = vld [vmem:[#allocation10 + $0x910] sm:$0xff]
    %v1556 = vld [vmem:[#allocation10 + $0x918] sm:$0xff]
    %v1557 = vld [vmem:[#allocation10 + $0x920] sm:$0xff]
    %v1558 = vld [vmem:[#allocation10 + $0x928] sm:$0xff]
    %v1559 = vld [vmem:[#allocation10 + $0x930] sm:$0xff]
    %v1560 = vld [vmem:[#allocation10 + $0x938] sm:$0xff]
    %v1561 = vld [vmem:[#allocation10 + $0x940] sm:$0xff]
    %v1562 = vld [vmem:[#allocation10 + $0x948] sm:$0xff]
    %v1563 = vld [vmem:[#allocation10 + $0x950] sm:$0xff]
    %v1564 = vld [vmem:[#allocation10 + $0x958] sm:$0xff]
    %v1565 = vld [vmem:[#allocation10 + $0x960] sm:$0xff]
    %v1566 = vld [vmem:[#allocation10 + $0x968] sm:$0xff]
    %v1567 = vld [vmem:[#allocation10 + $0x970] sm:$0xff]
    %v1568 = vld [vmem:[#allocation10 + $0x978] sm:$0xff]
    %v1569 = vld [vmem:[#allocation10 + $0x980] sm:$0xff]
    %v1570 = vld [vmem:[#allocation10 + $0x988] sm:$0xff]
    %v1571 = vld [vmem:[#allocation10 + $0x990] sm:$0xff]
    %v1572 = vld [vmem:[#allocation10 + $0x998] sm:$0xff]
    %v1573 = vld [vmem:[#allocation10 + $0x9a0] sm:$0xff]
    %v1574 = vld [vmem:[#allocation10 + $0x9a8] sm:$0xff]
    %v1575 = vld [vmem:[#allocation10 + $0x9b0] sm:$0xff]
    %v1576 = vld [vmem:[#allocation10 + $0x9b8] sm:$0xff]
    %v1577 = vld [vmem:[#allocation10 + $0x9c0] sm:$0xff]
    %v1578 = vld [vmem:[#allocation10 + $0x9c8] sm:$0xff]
    %v1579 = vld [vmem:[#allocation10 + $0x9d0] sm:$0xff]
    %v1580 = vld [vmem:[#allocation10 + $0x9d8] sm:$0xff]
    %v1581 = vld [vmem:[#allocation10 + $0x9e0] sm:$0xff]
    %v1582 = vld [vmem:[#allocation10 + $0x9e8] sm:$0xff]
    %v1583 = vld [vmem:[#allocation10 + $0x9f0] sm:$0xff]
    %v1584 = vld [vmem:[#allocation10 + $0x9f8] sm:$0xff]
    %v1585 = vld [vmem:[#allocation10 + $0xa00] sm:$0xff]
    %v1586 = vld [vmem:[#allocation10 + $0xa08] sm:$0xff]
    %v1587 = vld [vmem:[#allocation10 + $0xa10] sm:$0xff]
    %v1588 = vld [vmem:[#allocation10 + $0xa18] sm:$0xff]
    %v1589 = vld [vmem:[#allocation10 + $0xa20] sm:$0xff]
    %v1590 = vld [vmem:[#allocation10 + $0xa28] sm:$0xff]
    %v1591 = vld [vmem:[#allocation10 + $0xa30] sm:$0xff]
    %v1592 = vld [vmem:[#allocation10 + $0xa38] sm:$0xff]
    %v1593 = vld [vmem:[#allocation10 + $0xa40] sm:$0xff]
    %v1594 = vld [vmem:[#allocation10 + $0xa48] sm:$0xff]
    %v1595 = vld [vmem:[#allocation10 + $0xa50] sm:$0xff]
    %v1596 = vld [vmem:[#allocation10 + $0xa58] sm:$0xff]
    %v1597 = vld [vmem:[#allocation10 + $0xa60] sm:$0xff]
    %v1598 = vld [vmem:[#allocation10 + $0xa68] sm:$0xff]
    %v1599 = vld [vmem:[#allocation10 + $0xa70] sm:$0xff]
    %v1600 = vld [vmem:[#allocation10 + $0xa78] sm:$0xff]
    %v1601 = vld [vmem:[#allocation10 + $0xa80] sm:$0xff]
    %v1602 = vld [vmem:[#allocation10 + $0xa88] sm:$0xff]
    %v1603 = vld [vmem:[#allocation10 + $0xa90] sm:$0xff]
    %v1604 = vld [vmem:[#allocation10 + $0xa98] sm:$0xff]
    %v1605 = vld [vmem:[#allocation10 + $0xaa0] sm:$0xff]
    %v1606 = vld [vmem:[#allocation10 + $0xaa8] sm:$0xff]
    %v1607 = vld [vmem:[#allocation10 + $0xab0] sm:$0xff]
    %v1608 = vld [vmem:[#allocation10 + $0xab8] sm:$0xff]
    %v1609 = vld [vmem:[#allocation10 + $0xac0] sm:$0xff]
    %v1610 = vld [vmem:[#allocation10 + $0xac8] sm:$0xff]
    %v1611 = vld [vmem:[#allocation10 + $0xad0] sm:$0xff]
    %v1612 = vld [vmem:[#allocation10 + $0xad8] sm:$0xff]
    %v1613 = vld [vmem:[#allocation10 + $0xae0] sm:$0xff]
    %v1614 = vld [vmem:[#allocation10 + $0xae8] sm:$0xff]
    %v1615 = vld [vmem:[#allocation10 + $0xaf0] sm:$0xff]
    %v1616 = vld [vmem:[#allocation10 + $0xaf8] sm:$0xff]
    %v1617 = vld [vmem:[#allocation10 + $0xb00] sm:$0xff]
    %v1618 = vld [vmem:[#allocation10 + $0xb08] sm:$0xff]
    %v1619 = vld [vmem:[#allocation10 + $0xb10] sm:$0xff]
    %v1620 = vld [vmem:[#allocation10 + $0xb18] sm:$0xff]
    %v1621 = vld [vmem:[#allocation10 + $0xb20] sm:$0xff]
    %v1622 = vld [vmem:[#allocation10 + $0xb28] sm:$0xff]
    %v1623 = vld [vmem:[#allocation10 + $0xb30] sm:$0xff]
    %v1624 = vld [vmem:[#allocation10 + $0xb38] sm:$0xff]
    %v1625 = vld [vmem:[#allocation10 + $0xb40] sm:$0xff]
    %v1626 = vld [vmem:[#allocation10 + $0xb48] sm:$0xff]
    %v1627 = vld [vmem:[#allocation10 + $0xb50] sm:$0xff]
    %v1628 = vld [vmem:[#allocation10 + $0xb58] sm:$0xff]
    %v1629 = vld [vmem:[#allocation10 + $0xb60] sm:$0xff]
    %v1630 = vld [vmem:[#allocation10 + $0xb68] sm:$0xff]
    %v1631 = vld [vmem:[#allocation10 + $0xb70] sm:$0xff]
    %v1632 = vld [vmem:[#allocation10 + $0xb78] sm:$0xff]
    %v1633 = vld [vmem:[#allocation10 + $0xb80] sm:$0xff]
    %v1634 = vld [vmem:[#allocation10 + $0xb88] sm:$0xff]
    %v1635 = vld [vmem:[#allocation10 + $0xb90] sm:$0xff]
    %v1636 = vld [vmem:[#allocation10 + $0xb98] sm:$0xff]
    %v1637 = vld [vmem:[#allocation10 + $0xba0] sm:$0xff]
    %v1638 = vld [vmem:[#allocation10 + $0xba8] sm:$0xff]
    %v1639 = vld [vmem:[#allocation10 + $0xbb0] sm:$0xff]
    %v1640 = vld [vmem:[#allocation10 + $0xbb8] sm:$0xff]
    %v1641 = vld [vmem:[#allocation10 + $0xbc0] sm:$0xff]
    %v1642 = vld [vmem:[#allocation10 + $0xbc8] sm:$0xff]
    %v1643 = vld [vmem:[#allocation10 + $0xbd0] sm:$0xff]
    %v1644 = vld [vmem:[#allocation10 + $0xbd8] sm:$0xff]
    %v1645 = vld [vmem:[#allocation10 + $0xbe0] sm:$0xff]
    %v1646 = vld [vmem:[#allocation10 + $0xbe8] sm:$0xff]
    %v1647 = vld [vmem:[#allocation10 + $0xbf0] sm:$0xff]
    %v1648 = vld [vmem:[#allocation10 + $0xbf8] sm:$0xff]
    %v1649 = vld [vmem:[#allocation10 + $0xc00] sm:$0xff]
    %v1650 = vld [vmem:[#allocation10 + $0xc08] sm:$0xff]
    %v1651 = vld [vmem:[#allocation10 + $0xc10] sm:$0xff]
    %v1652 = vld [vmem:[#allocation10 + $0xc18] sm:$0xff]
    %v1653 = vld [vmem:[#allocation10 + $0xc20] sm:$0xff]
    %v1654 = vld [vmem:[#allocation10 + $0xc28] sm:$0xff]
    %v1655 = vld [vmem:[#allocation10 + $0xc30] sm:$0xff]
    %v1656 = vld [vmem:[#allocation10 + $0xc38] sm:$0xff]
    %v1657 = vld [vmem:[#allocation10 + $0xc40] sm:$0xff]
    %v1658 = vld [vmem:[#allocation10 + $0xc48] sm:$0xff]
    %v1659 = vld [vmem:[#allocation10 + $0xc50] sm:$0xff]
    %v1660 = vld [vmem:[#allocation10 + $0xc58] sm:$0xff]
    %v1661 = vld [vmem:[#allocation10 + $0xc60] sm:$0xff]
    %v1662 = vld [vmem:[#allocation10 + $0xc68] sm:$0xff]
    %v1663 = vld [vmem:[#allocation10 + $0xc70] sm:$0xff]
    %v1664 = vld [vmem:[#allocation10 + $0xc78] sm:$0xff]
    %v1665 = vld [vmem:[#allocation10 + $0xc80] sm:$0xff]
    %v1666 = vld [vmem:[#allocation10 + $0xc88] sm:$0xff]
    %v1667 = vld [vmem:[#allocation10 + $0xc90] sm:$0xff]
    %v1668 = vld [vmem:[#allocation10 + $0xc98] sm:$0xff]
    %v1669 = vld [vmem:[#allocation10 + $0xca0] sm:$0xff]
    %v1670 = vld [vmem:[#allocation10 + $0xca8] sm:$0xff]
    %v1671 = vld [vmem:[#allocation10 + $0xcb0] sm:$0xff]
    %v1672 = vld [vmem:[#allocation10 + $0xcb8] sm:$0xff]
    %v1673 = vld [vmem:[#allocation10 + $0xcc0] sm:$0xff]
    %v1674 = vld [vmem:[#allocation10 + $0xcc8] sm:$0xff]
    %v1675 = vld [vmem:[#allocation10 + $0xcd0] sm:$0xff]
    %v1676 = vld [vmem:[#allocation10 + $0xcd8] sm:$0xff]
    %v1677 = vld [vmem:[#allocation10 + $0xce0] sm:$0xff]
    %v1678 = vld [vmem:[#allocation10 + $0xce8] sm:$0xff]
    %v1679 = vld [vmem:[#allocation10 + $0xcf0] sm:$0xff]
    %v1680 = vld [vmem:[#allocation10 + $0xcf8] sm:$0xff]
    %v1681 = vld [vmem:[#allocation10 + $0xd00] sm:$0xff]
    %v1682 = vld [vmem:[#allocation10 + $0xd08] sm:$0xff]
    %v1683 = vld [vmem:[#allocation10 + $0xd10] sm:$0xff]
    %v1684 = vld [vmem:[#allocation10 + $0xd18] sm:$0xff]
    %v1685 = vld [vmem:[#allocation10 + $0xd20] sm:$0xff]
    %v1686 = vld [vmem:[#allocation10 + $0xd28] sm:$0xff]
    %v1687 = vld [vmem:[#allocation10 + $0xd30] sm:$0xff]
    %v1688 = vld [vmem:[#allocation10 + $0xd38] sm:$0xff]
    %v1689 = vld [vmem:[#allocation10 + $0xd40] sm:$0xff]
    %v1690 = vld [vmem:[#allocation10 + $0xd48] sm:$0xff]
    %v1691 = vld [vmem:[#allocation10 + $0xd50] sm:$0xff]
    %v1692 = vld [vmem:[#allocation10 + $0xd58] sm:$0xff]
    %v1693 = vld [vmem:[#allocation10 + $0xd60] sm:$0xff]
    %v1694 = vld [vmem:[#allocation10 + $0xd68] sm:$0xff]
    %v1695 = vld [vmem:[#allocation10 + $0xd70] sm:$0xff]
    %v1696 = vld [vmem:[#allocation10 + $0xd78] sm:$0xff]
    %v1697 = vld [vmem:[#allocation10 + $0xd80] sm:$0xff]
    %v1698 = vld [vmem:[#allocation10 + $0xd88] sm:$0xff]
    %v1699 = vld [vmem:[#allocation10 + $0xd90] sm:$0xff]
    %v1700 = vld [vmem:[#allocation10 + $0xd98] sm:$0xff]
    %v1701 = vld [vmem:[#allocation10 + $0xda0] sm:$0xff]
    %v1702 = vld [vmem:[#allocation10 + $0xda8] sm:$0xff]
    %v1703 = vld [vmem:[#allocation10 + $0xdb0] sm:$0xff]
    %v1704 = vld [vmem:[#allocation10 + $0xdb8] sm:$0xff]
    %v1705 = vld [vmem:[#allocation10 + $0xdc0] sm:$0xff]
    %v1706 = vld [vmem:[#allocation10 + $0xdc8] sm:$0xff]
    %v1707 = vld [vmem:[#allocation10 + $0xdd0] sm:$0xff]
    %v1708 = vld [vmem:[#allocation10 + $0xdd8] sm:$0xff]
    %v1709 = vld [vmem:[#allocation10 + $0xde0] sm:$0xff]
    %v1710 = vld [vmem:[#allocation10 + $0xde8] sm:$0xff]
    %v1711 = vld [vmem:[#allocation10 + $0xdf0] sm:$0xff]
    %v1712 = vld [vmem:[#allocation10 + $0xdf8] sm:$0xff]
    %v1713 = vld [vmem:[#allocation12] sm:$0xff]
    %v1715 = vlaneseq
    %v1716 = vshrl.u32 %v1715, 7
    %v1717 = vsub.s32 0, %v1716
    %v1718 = vrot.slane %v1713, %v1717
    %v1719 = vlaneseq
    %v1720 = vshrl.u32 %v1719, 7
    %v1721 = vsub.s32 1, %v1720
    %v1722 = vrot.slane %v1713, %v1721
    %v1723 = vlaneseq
    %v1724 = vshrl.u32 %v1723, 7
    %v1725 = vsub.s32 2, %v1724
    %v1726 = vrot.slane %v1713, %v1725
    %v1727 = vlaneseq
    %v1728 = vshrl.u32 %v1727, 7
    %v1729 = vsub.s32 3, %v1728
    %v1730 = vrot.slane %v1713, %v1729
    %v1731 = vlaneseq
    %v1732 = vshrl.u32 %v1731, 7
    %v1733 = vsub.s32 4, %v1732
    %v1734 = vrot.slane %v1713, %v1733
    %v1735 = vlaneseq
    %v1736 = vshrl.u32 %v1735, 7
    %v1737 = vsub.s32 5, %v1736
    %v1738 = vrot.slane %v1713, %v1737
    %v1739 = vlaneseq
    %v1740 = vshrl.u32 %v1739, 7
    %v1741 = vsub.s32 6, %v1740
    %v1742 = vrot.slane %v1713, %v1741
    %v1743 = vlaneseq
    %v1744 = vshrl.u32 %v1743, 7
    %v1745 = vsub.s32 7, %v1744
    %v1746 = vrot.slane %v1713, %v1745
    %v1779 = vunpack.c.l.b16 %v1241
    %v1780 = vunpack.c.h.b16 %v1241
    %v1781 = vunpack.c.l.b16 %v1242
    %v1782 = vunpack.c.h.b16 %v1242
    %v1783 = vunpack.c.l.b16 %v1243
    %v1784 = vunpack.c.h.b16 %v1243
    %v1785 = vunpack.c.l.b16 %v1244
    %v1786 = vunpack.c.l.b16 %v1245
    %v1787 = vunpack.c.h.b16 %v1245
    %v1788 = vunpack.c.l.b16 %v1246
    %v1789 = vunpack.c.h.b16 %v1246
    %v1790 = vunpack.c.l.b16 %v1247
    %v1791 = vunpack.c.h.b16 %v1247
    %v1792 = vunpack.c.l.b16 %v1248
    %v1793 = vunpack.c.l.b16 %v1249
    %v1794 = vunpack.c.h.b16 %v1249
    %v1795 = vunpack.c.l.b16 %v1250
    %v1796 = vunpack.c.h.b16 %v1250
    %v1797 = vunpack.c.l.b16 %v1251
    %v1798 = vunpack.c.h.b16 %v1251
    %v1799 = vunpack.c.l.b16 %v1252
    %v1800 = vunpack.c.l.b16 %v1253
    %v1801 = vunpack.c.h.b16 %v1253
    %v1802 = vunpack.c.l.b16 %v1254
    %v1803 = vunpack.c.h.b16 %v1254
    %v1804 = vunpack.c.l.b16 %v1255
    %v1805 = vunpack.c.h.b16 %v1255
    %v1806 = vunpack.c.l.b16 %v1256
    %v1807 = vunpack.c.l.b16 %v1257
    %v1808 = vunpack.c.h.b16 %v1257
    %v1809 = vunpack.c.l.b16 %v1258
    %v1810 = vunpack.c.h.b16 %v1258
    %v1811 = vunpack.c.l.b16 %v1259
    %v1812 = vunpack.c.h.b16 %v1259
    %v1813 = vunpack.c.l.b16 %v1260
    %v1814 = vunpack.c.l.b16 %v1261
    %v1815 = vunpack.c.h.b16 %v1261
    %v1816 = vunpack.c.l.b16 %v1262
    %v1817 = vunpack.c.h.b16 %v1262
    %v1818 = vunpack.c.l.b16 %v1263
    %v1819 = vunpack.c.h.b16 %v1263
    %v1820 = vunpack.c.l.b16 %v1264
    %v1821 = vpack.c.b16 %v1786, %v1779
    %v1822 = vpack.c.b16 %v1787, %v1780
    %v1823 = vpack.c.b16 %v1788, %v1781
    %v1824 = vpack.c.b16 %v1789, %v1782
    %v1825 = vpack.c.b16 %v1790, %v1783
    %v1826 = vpack.c.b16 %v1791, %v1784
    %v1827 = vpack.c.b16 %v1792, %v1785
    %v1828 = vpack.c.b16 %v1800, %v1793
    %v1829 = vpack.c.b16 %v1801, %v1794
    %v1830 = vpack.c.b16 %v1802, %v1795
    %v1831 = vpack.c.b16 %v1803, %v1796
    %v1832 = vpack.c.b16 %v1804, %v1797
    %v1833 = vpack.c.b16 %v1805, %v1798
    %v1834 = vpack.c.b16 %v1806, %v1799
    %v1835 = vpack.c.b16 %v1814, %v1807
    %v1836 = vpack.c.b16 %v1815, %v1808
    %v1837 = vpack.c.b16 %v1816, %v1809
    %v1838 = vpack.c.b16 %v1817, %v1810
    %v1839 = vpack.c.b16 %v1818, %v1811
    %v1840 = vpack.c.b16 %v1819, %v1812
    %v1841 = vpack.c.b16 %v1820, %v1813
    %v2311 = vunpack.c.l.b16 %v1265
    %v2312 = vunpack.c.h.b16 %v1265
    %v2313 = vunpack.c.l.b16 %v1266
    %v2314 = vunpack.c.h.b16 %v1266
    %v2315 = vunpack.c.l.b16 %v1267
    %v2316 = vunpack.c.h.b16 %v1267
    %v2317 = vunpack.c.l.b16 %v1268
    %v2318 = vunpack.c.h.b16 %v1268
    %v2319 = vunpack.c.l.b16 %v1269
    %v2320 = vunpack.c.h.b16 %v1269
    %v2321 = vunpack.c.l.b16 %v1270
    %v2322 = vunpack.c.h.b16 %v1270
    %v2323 = vunpack.c.l.b16 %v1271
    %v2324 = vunpack.c.h.b16 %v1271
    %v2325 = vunpack.c.l.b16 %v1272
    %v2326 = vunpack.c.h.b16 %v1272
    %v2327 = vunpack.c.l.b16 %v1273
    %v2328 = vunpack.c.h.b16 %v1273
    %v2329 = vunpack.c.l.b16 %v1274
    %v2330 = vunpack.c.h.b16 %v1274
    %v2331 = vunpack.c.l.b16 %v1275
    %v2332 = vunpack.c.h.b16 %v1275
    %v2333 = vunpack.c.l.b16 %v1276
    %v2334 = vunpack.c.h.b16 %v1276
    %v2335 = vunpack.c.l.b16 %v1277
    %v2336 = vunpack.c.h.b16 %v1277
    %v2337 = vunpack.c.l.b16 %v1278
    %v2338 = vunpack.c.h.b16 %v1278
    %v2339 = vunpack.c.l.b16 %v1279
    %v2340 = vunpack.c.h.b16 %v1279
    %v2341 = vunpack.c.l.b16 %v1280
    %v2342 = vunpack.c.h.b16 %v1280
    %v2343 = vunpack.c.l.b16 %v1281
    %v2344 = vunpack.c.h.b16 %v1281
    %v2345 = vunpack.c.l.b16 %v1282
    %v2346 = vunpack.c.h.b16 %v1282
    %v2347 = vunpack.c.l.b16 %v1283
    %v2348 = vunpack.c.h.b16 %v1283
    %v2349 = vunpack.c.l.b16 %v1284
    %v2350 = vunpack.c.h.b16 %v1284
    %v2351 = vunpack.c.l.b16 %v1285
    %v2352 = vunpack.c.h.b16 %v1285
    %v2353 = vunpack.c.l.b16 %v1286
    %v2354 = vunpack.c.h.b16 %v1286
    %v2355 = vunpack.c.l.b16 %v1287
    %v2356 = vunpack.c.h.b16 %v1287
    %v2357 = vunpack.c.l.b16 %v1288
    %v2358 = vunpack.c.h.b16 %v1288
    %v2359 = vunpack.c.l.b16 %v1289
    %v2360 = vunpack.c.h.b16 %v1289
    %v2361 = vunpack.c.l.b16 %v1290
    %v2362 = vunpack.c.h.b16 %v1290
    %v2363 = vunpack.c.l.b16 %v1291
    %v2364 = vunpack.c.h.b16 %v1291
    %v2365 = vunpack.c.l.b16 %v1292
    %v2366 = vunpack.c.h.b16 %v1292
    %v2367 = vunpack.c.l.b16 %v1293
    %v2368 = vunpack.c.h.b16 %v1293
    %v2369 = vunpack.c.l.b16 %v1294
    %v2370 = vunpack.c.h.b16 %v1294
    %v2371 = vunpack.c.l.b16 %v1295
    %v2372 = vunpack.c.h.b16 %v1295
    %v2373 = vunpack.c.l.b16 %v1296
    %v2374 = vunpack.c.h.b16 %v1296
    %v2375 = vunpack.c.l.b16 %v1297
    %v2376 = vunpack.c.h.b16 %v1297
    %v2377 = vunpack.c.l.b16 %v1298
    %v2378 = vunpack.c.h.b16 %v1298
    %v2379 = vunpack.c.l.b16 %v1299
    %v2380 = vunpack.c.h.b16 %v1299
    %v2381 = vunpack.c.l.b16 %v1300
    %v2382 = vunpack.c.h.b16 %v1300
    %v2383 = vunpack.c.l.b16 %v1301
    %v2384 = vunpack.c.h.b16 %v1301
    %v2385 = vunpack.c.l.b16 %v1302
    %v2386 = vunpack.c.h.b16 %v1302
    %v2387 = vunpack.c.l.b16 %v1303
    %v2388 = vunpack.c.h.b16 %v1303
    %v2389 = vunpack.c.l.b16 %v1304
    %v2390 = vunpack.c.h.b16 %v1304
    %v2391 = vunpack.c.l.b16 %v1305
    %v2392 = vunpack.c.h.b16 %v1305
    %v2393 = vunpack.c.l.b16 %v1306
    %v2394 = vunpack.c.h.b16 %v1306
    %v2395 = vunpack.c.l.b16 %v1307
    %v2396 = vunpack.c.h.b16 %v1307
    %v2397 = vunpack.c.l.b16 %v1308
    %v2398 = vunpack.c.h.b16 %v1308
    %v2399 = vunpack.c.l.b16 %v1309
    %v2400 = vunpack.c.h.b16 %v1309
    %v2401 = vunpack.c.l.b16 %v1310
    %v2402 = vunpack.c.h.b16 %v1310
    %v2403 = vunpack.c.l.b16 %v1311
    %v2404 = vunpack.c.h.b16 %v1311
    %v2405 = vunpack.c.l.b16 %v1312
    %v2406 = vunpack.c.h.b16 %v1312
    %v2407 = vunpack.c.l.b16 %v1313
    %v2408 = vunpack.c.h.b16 %v1313
    %v2409 = vunpack.c.l.b16 %v1314
    %v2410 = vunpack.c.h.b16 %v1314
    %v2411 = vunpack.c.l.b16 %v1315
    %v2412 = vunpack.c.h.b16 %v1315
    %v2413 = vunpack.c.l.b16 %v1316
    %v2414 = vunpack.c.h.b16 %v1316
    %v2415 = vunpack.c.l.b16 %v1317
    %v2416 = vunpack.c.h.b16 %v1317
    %v2417 = vunpack.c.l.b16 %v1318
    %v2418 = vunpack.c.h.b16 %v1318
    %v2419 = vunpack.c.l.b16 %v1319
    %v2420 = vunpack.c.h.b16 %v1319
    %v2421 = vunpack.c.l.b16 %v1320
    %v2422 = vunpack.c.h.b16 %v1320
    %v2423 = vunpack.c.l.b16 %v1321
    %v2424 = vunpack.c.h.b16 %v1321
    %v2425 = vunpack.c.l.b16 %v1322
    %v2426 = vunpack.c.h.b16 %v1322
    %v2427 = vunpack.c.l.b16 %v1323
    %v2428 = vunpack.c.h.b16 %v1323
    %v2429 = vunpack.c.l.b16 %v1324
    %v2430 = vunpack.c.h.b16 %v1324
    %v2431 = vunpack.c.l.b16 %v1325
    %v2432 = vunpack.c.h.b16 %v1325
    %v2433 = vunpack.c.l.b16 %v1326
    %v2434 = vunpack.c.h.b16 %v1326
    %v2435 = vunpack.c.l.b16 %v1327
    %v2436 = vunpack.c.h.b16 %v1327
    %v2437 = vunpack.c.l.b16 %v1328
    %v2438 = vunpack.c.h.b16 %v1328
    %v2439 = vunpack.c.l.b16 %v1329
    %v2440 = vunpack.c.h.b16 %v1329
    %v2441 = vunpack.c.l.b16 %v1330
    %v2442 = vunpack.c.h.b16 %v1330
    %v2443 = vunpack.c.l.b16 %v1331
    %v2444 = vunpack.c.h.b16 %v1331
    %v2445 = vunpack.c.l.b16 %v1332
    %v2446 = vunpack.c.h.b16 %v1332
    %v2447 = vunpack.c.l.b16 %v1333
    %v2448 = vunpack.c.h.b16 %v1333
    %v2449 = vunpack.c.l.b16 %v1334
    %v2450 = vunpack.c.h.b16 %v1334
    %v2451 = vunpack.c.l.b16 %v1335
    %v2452 = vunpack.c.h.b16 %v1335
    %v2453 = vunpack.c.l.b16 %v1336
    %v2454 = vunpack.c.h.b16 %v1336
    %v2455 = vunpack.c.l.b16 %v1337
    %v2456 = vunpack.c.h.b16 %v1337
    %v2457 = vunpack.c.l.b16 %v1338
    %v2458 = vunpack.c.h.b16 %v1338
    %v2459 = vunpack.c.l.b16 %v1339
    %v2460 = vunpack.c.h.b16 %v1339
    %v2461 = vunpack.c.l.b16 %v1340
    %v2462 = vunpack.c.h.b16 %v1340
    %v2463 = vunpack.c.l.b16 %v1341
    %v2464 = vunpack.c.h.b16 %v1341
    %v2465 = vunpack.c.l.b16 %v1342
    %v2466 = vunpack.c.h.b16 %v1342
    %v2467 = vunpack.c.l.b16 %v1343
    %v2468 = vunpack.c.h.b16 %v1343
    %v2469 = vunpack.c.l.b16 %v1344
    %v2470 = vunpack.c.h.b16 %v1344
    %v2471 = vunpack.c.l.b16 %v1345
    %v2472 = vunpack.c.h.b16 %v1345
    %v2473 = vunpack.c.l.b16 %v1346
    %v2474 = vunpack.c.h.b16 %v1346
    %v2475 = vunpack.c.l.b16 %v1347
    %v2476 = vunpack.c.h.b16 %v1347
    %v2477 = vunpack.c.l.b16 %v1348
    %v2478 = vunpack.c.h.b16 %v1348
    %v2479 = vunpack.c.l.b16 %v1349
    %v2480 = vunpack.c.h.b16 %v1349
    %v2481 = vunpack.c.l.b16 %v1350
    %v2482 = vunpack.c.h.b16 %v1350
    %v2483 = vunpack.c.l.b16 %v1351
    %v2484 = vunpack.c.h.b16 %v1351
    %v2485 = vunpack.c.l.b16 %v1352
    %v2486 = vunpack.c.h.b16 %v1352
    %v2487 = vunpack.c.l.b16 %v1353
    %v2488 = vunpack.c.h.b16 %v1353
    %v2489 = vunpack.c.l.b16 %v1354
    %v2490 = vunpack.c.h.b16 %v1354
    %v2491 = vunpack.c.l.b16 %v1355
    %v2492 = vunpack.c.h.b16 %v1355
    %v2493 = vunpack.c.l.b16 %v1356
    %v2494 = vunpack.c.h.b16 %v1356
    %v2495 = vunpack.c.l.b16 %v1357
    %v2496 = vunpack.c.h.b16 %v1357
    %v2497 = vunpack.c.l.b16 %v1358
    %v2498 = vunpack.c.h.b16 %v1358
    %v2499 = vunpack.c.l.b16 %v1359
    %v2500 = vunpack.c.h.b16 %v1359
    %v2501 = vunpack.c.l.b16 %v1360
    %v2502 = vunpack.c.h.b16 %v1360
    %v2503 = vunpack.c.l.b16 %v1361
    %v2504 = vunpack.c.h.b16 %v1361
    %v2505 = vunpack.c.l.b16 %v1362
    %v2506 = vunpack.c.h.b16 %v1362
    %v2507 = vunpack.c.l.b16 %v1363
    %v2508 = vunpack.c.h.b16 %v1363
    %v2509 = vunpack.c.l.b16 %v1364
    %v2510 = vunpack.c.h.b16 %v1364
    %v2511 = vunpack.c.l.b16 %v1365
    %v2512 = vunpack.c.h.b16 %v1365
    %v2513 = vunpack.c.l.b16 %v1366
    %v2514 = vunpack.c.h.b16 %v1366
    %v2515 = vunpack.c.l.b16 %v1367
    %v2516 = vunpack.c.h.b16 %v1367
    %v2517 = vunpack.c.l.b16 %v1368
    %v2518 = vunpack.c.h.b16 %v1368
    %v2519 = vunpack.c.l.b16 %v1369
    %v2520 = vunpack.c.h.b16 %v1369
    %v2521 = vunpack.c.l.b16 %v1370
    %v2522 = vunpack.c.h.b16 %v1370
    %v2523 = vunpack.c.l.b16 %v1371
    %v2524 = vunpack.c.h.b16 %v1371
    %v2525 = vunpack.c.l.b16 %v1372
    %v2526 = vunpack.c.h.b16 %v1372
    %v2527 = vunpack.c.l.b16 %v1373
    %v2528 = vunpack.c.h.b16 %v1373
    %v2529 = vunpack.c.l.b16 %v1374
    %v2530 = vunpack.c.h.b16 %v1374
    %v2531 = vunpack.c.l.b16 %v1375
    %v2532 = vunpack.c.h.b16 %v1375
    %v2533 = vunpack.c.l.b16 %v1376
    %v2534 = vunpack.c.h.b16 %v1376
    %v2535 = vunpack.c.l.b16 %v1377
    %v2536 = vunpack.c.h.b16 %v1377
    %v2537 = vunpack.c.l.b16 %v1378
    %v2538 = vunpack.c.h.b16 %v1378
    %v2539 = vunpack.c.l.b16 %v1379
    %v2540 = vunpack.c.h.b16 %v1379
    %v2541 = vunpack.c.l.b16 %v1380
    %v2542 = vunpack.c.h.b16 %v1380
    %v2543 = vunpack.c.l.b16 %v1381
    %v2544 = vunpack.c.h.b16 %v1381
    %v2545 = vunpack.c.l.b16 %v1382
    %v2546 = vunpack.c.h.b16 %v1382
    %v2547 = vunpack.c.l.b16 %v1383
    %v2548 = vunpack.c.h.b16 %v1383
    %v2549 = vunpack.c.l.b16 %v1384
    %v2550 = vunpack.c.h.b16 %v1384
    %v2551 = vunpack.c.l.b16 %v1385
    %v2552 = vunpack.c.h.b16 %v1385
    %v2553 = vunpack.c.l.b16 %v1386
    %v2554 = vunpack.c.h.b16 %v1386
    %v2555 = vunpack.c.l.b16 %v1387
    %v2556 = vunpack.c.h.b16 %v1387
    %v2557 = vunpack.c.l.b16 %v1388
    %v2558 = vunpack.c.h.b16 %v1388
    %v2559 = vunpack.c.l.b16 %v1389
    %v2560 = vunpack.c.h.b16 %v1389
    %v2561 = vunpack.c.l.b16 %v1390
    %v2562 = vunpack.c.h.b16 %v1390
    %v2563 = vunpack.c.l.b16 %v1391
    %v2564 = vunpack.c.h.b16 %v1391
    %v2565 = vunpack.c.l.b16 %v1392
    %v2566 = vunpack.c.h.b16 %v1392
    %v2567 = vunpack.c.l.b16 %v1393
    %v2568 = vunpack.c.h.b16 %v1393
    %v2569 = vunpack.c.l.b16 %v1394
    %v2570 = vunpack.c.h.b16 %v1394
    %v2571 = vunpack.c.l.b16 %v1395
    %v2572 = vunpack.c.h.b16 %v1395
    %v2573 = vunpack.c.l.b16 %v1396
    %v2574 = vunpack.c.h.b16 %v1396
    %v2575 = vunpack.c.l.b16 %v1397
    %v2576 = vunpack.c.h.b16 %v1397
    %v2577 = vunpack.c.l.b16 %v1398
    %v2578 = vunpack.c.h.b16 %v1398
    %v2579 = vunpack.c.l.b16 %v1399
    %v2580 = vunpack.c.h.b16 %v1399
    %v2581 = vunpack.c.l.b16 %v1400
    %v2582 = vunpack.c.h.b16 %v1400
    %v2583 = vunpack.c.l.b16 %v1401
    %v2584 = vunpack.c.h.b16 %v1401
    %v2585 = vunpack.c.l.b16 %v1402
    %v2586 = vunpack.c.h.b16 %v1402
    %v2587 = vunpack.c.l.b16 %v1403
    %v2588 = vunpack.c.h.b16 %v1403
    %v2589 = vunpack.c.l.b16 %v1404
    %v2590 = vunpack.c.h.b16 %v1404
    %v2591 = vunpack.c.l.b16 %v1405
    %v2592 = vunpack.c.h.b16 %v1405
    %v2593 = vunpack.c.l.b16 %v1406
    %v2594 = vunpack.c.h.b16 %v1406
    %v2595 = vunpack.c.l.b16 %v1407
    %v2596 = vunpack.c.h.b16 %v1407
    %v2597 = vunpack.c.l.b16 %v1408
    %v2598 = vunpack.c.h.b16 %v1408
    %v2599 = vunpack.c.l.b16 %v1409
    %v2600 = vunpack.c.h.b16 %v1409
    %v2601 = vunpack.c.l.b16 %v1410
    %v2602 = vunpack.c.h.b16 %v1410
    %v2603 = vunpack.c.l.b16 %v1411
    %v2604 = vunpack.c.h.b16 %v1411
    %v2605 = vunpack.c.l.b16 %v1412
    %v2606 = vunpack.c.h.b16 %v1412
    %v2607 = vunpack.c.l.b16 %v1413
    %v2608 = vunpack.c.h.b16 %v1413
    %v2609 = vunpack.c.l.b16 %v1414
    %v2610 = vunpack.c.h.b16 %v1414
    %v2611 = vunpack.c.l.b16 %v1415
    %v2612 = vunpack.c.h.b16 %v1415
    %v2613 = vunpack.c.l.b16 %v1416
    %v2614 = vunpack.c.h.b16 %v1416
    %v2615 = vunpack.c.l.b16 %v1417
    %v2616 = vunpack.c.h.b16 %v1417
    %v2617 = vunpack.c.l.b16 %v1418
    %v2618 = vunpack.c.h.b16 %v1418
    %v2619 = vunpack.c.l.b16 %v1419
    %v2620 = vunpack.c.h.b16 %v1419
    %v2621 = vunpack.c.l.b16 %v1420
    %v2622 = vunpack.c.h.b16 %v1420
    %v2623 = vunpack.c.l.b16 %v1421
    %v2624 = vunpack.c.h.b16 %v1421
    %v2625 = vunpack.c.l.b16 %v1422
    %v2626 = vunpack.c.h.b16 %v1422
    %v2627 = vunpack.c.l.b16 %v1423
    %v2628 = vunpack.c.h.b16 %v1423
    %v2629 = vunpack.c.l.b16 %v1424
    %v2630 = vunpack.c.h.b16 %v1424
    %v2631 = vunpack.c.l.b16 %v1425
    %v2632 = vunpack.c.h.b16 %v1425
    %v2633 = vunpack.c.l.b16 %v1426
    %v2634 = vunpack.c.h.b16 %v1426
    %v2635 = vunpack.c.l.b16 %v1427
    %v2636 = vunpack.c.h.b16 %v1427
    %v2637 = vunpack.c.l.b16 %v1428
    %v2638 = vunpack.c.h.b16 %v1428
    %v2639 = vunpack.c.l.b16 %v1429
    %v2640 = vunpack.c.h.b16 %v1429
    %v2641 = vunpack.c.l.b16 %v1430
    %v2642 = vunpack.c.h.b16 %v1430
    %v2643 = vunpack.c.l.b16 %v1431
    %v2644 = vunpack.c.h.b16 %v1431
    %v2645 = vunpack.c.l.b16 %v1432
    %v2646 = vunpack.c.h.b16 %v1432
    %v2647 = vunpack.c.l.b16 %v1433
    %v2648 = vunpack.c.h.b16 %v1433
    %v2649 = vunpack.c.l.b16 %v1434
    %v2650 = vunpack.c.h.b16 %v1434
    %v2651 = vunpack.c.l.b16 %v1435
    %v2652 = vunpack.c.h.b16 %v1435
    %v2653 = vunpack.c.l.b16 %v1436
    %v2654 = vunpack.c.h.b16 %v1436
    %v2655 = vunpack.c.l.b16 %v1437
    %v2656 = vunpack.c.h.b16 %v1437
    %v2657 = vunpack.c.l.b16 %v1438
    %v2658 = vunpack.c.h.b16 %v1438
    %v2659 = vunpack.c.l.b16 %v1439
    %v2660 = vunpack.c.h.b16 %v1439
    %v2661 = vunpack.c.l.b16 %v1440
    %v2662 = vunpack.c.h.b16 %v1440
    %v2663 = vunpack.c.l.b16 %v1441
    %v2664 = vunpack.c.h.b16 %v1441
    %v2665 = vunpack.c.l.b16 %v1442
    %v2666 = vunpack.c.h.b16 %v1442
    %v2667 = vunpack.c.l.b16 %v1443
    %v2668 = vunpack.c.h.b16 %v1443
    %v2669 = vunpack.c.l.b16 %v1444
    %v2670 = vunpack.c.h.b16 %v1444
    %v2671 = vunpack.c.l.b16 %v1445
    %v2672 = vunpack.c.h.b16 %v1445
    %v2673 = vunpack.c.l.b16 %v1446
    %v2674 = vunpack.c.h.b16 %v1446
    %v2675 = vunpack.c.l.b16 %v1447
    %v2676 = vunpack.c.h.b16 %v1447
    %v2677 = vunpack.c.l.b16 %v1448
    %v2678 = vunpack.c.h.b16 %v1448
    %v2679 = vunpack.c.l.b16 %v1449
    %v2680 = vunpack.c.h.b16 %v1449
    %v2681 = vunpack.c.l.b16 %v1450
    %v2682 = vunpack.c.h.b16 %v1450
    %v2683 = vunpack.c.l.b16 %v1451
    %v2684 = vunpack.c.h.b16 %v1451
    %v2685 = vunpack.c.l.b16 %v1452
    %v2686 = vunpack.c.h.b16 %v1452
    %v2687 = vunpack.c.l.b16 %v1453
    %v2688 = vunpack.c.h.b16 %v1453
    %v2689 = vunpack.c.l.b16 %v1454
    %v2690 = vunpack.c.h.b16 %v1454
    %v2691 = vunpack.c.l.b16 %v1455
    %v2692 = vunpack.c.h.b16 %v1455
    %v2693 = vunpack.c.l.b16 %v1456
    %v2694 = vunpack.c.h.b16 %v1456
    %v2695 = vunpack.c.l.b16 %v1457
    %v2696 = vunpack.c.h.b16 %v1457
    %v2697 = vunpack.c.l.b16 %v1458
    %v2698 = vunpack.c.h.b16 %v1458
    %v2699 = vunpack.c.l.b16 %v1459
    %v2700 = vunpack.c.h.b16 %v1459
    %v2701 = vunpack.c.l.b16 %v1460
    %v2702 = vunpack.c.h.b16 %v1460
    %v2703 = vunpack.c.l.b16 %v1461
    %v2704 = vunpack.c.h.b16 %v1461
    %v2705 = vunpack.c.l.b16 %v1462
    %v2706 = vunpack.c.h.b16 %v1462
    %v2707 = vunpack.c.l.b16 %v1463
    %v2708 = vunpack.c.h.b16 %v1463
    %v2709 = vunpack.c.l.b16 %v1464
    %v2710 = vunpack.c.h.b16 %v1464
    %v2711 = vunpack.c.l.b16 %v1465
    %v2712 = vunpack.c.h.b16 %v1465
    %v2713 = vunpack.c.l.b16 %v1466
    %v2714 = vunpack.c.h.b16 %v1466
    %v2715 = vunpack.c.l.b16 %v1467
    %v2716 = vunpack.c.h.b16 %v1467
    %v2717 = vunpack.c.l.b16 %v1468
    %v2718 = vunpack.c.h.b16 %v1468
    %v2719 = vunpack.c.l.b16 %v1469
    %v2720 = vunpack.c.h.b16 %v1469
    %v2721 = vunpack.c.l.b16 %v1470
    %v2722 = vunpack.c.h.b16 %v1470
    %v2723 = vunpack.c.l.b16 %v1471
    %v2724 = vunpack.c.h.b16 %v1471
    %v2725 = vunpack.c.l.b16 %v1472
    %v2726 = vunpack.c.h.b16 %v1472
    %v2727 = vunpack.c.l.b16 %v1473
    %v2728 = vunpack.c.h.b16 %v1473
    %v2729 = vunpack.c.l.b16 %v1474
    %v2730 = vunpack.c.h.b16 %v1474
    %v2731 = vunpack.c.l.b16 %v1475
    %v2732 = vunpack.c.h.b16 %v1475
    %v2733 = vunpack.c.l.b16 %v1476
    %v2734 = vunpack.c.h.b16 %v1476
    %v2735 = vunpack.c.l.b16 %v1477
    %v2736 = vunpack.c.h.b16 %v1477
    %v2737 = vunpack.c.l.b16 %v1478
    %v2738 = vunpack.c.h.b16 %v1478
    %v2739 = vunpack.c.l.b16 %v1479
    %v2740 = vunpack.c.h.b16 %v1479
    %v2741 = vunpack.c.l.b16 %v1480
    %v2742 = vunpack.c.h.b16 %v1480
    %v2743 = vunpack.c.l.b16 %v1481
    %v2744 = vunpack.c.h.b16 %v1481
    %v2745 = vunpack.c.l.b16 %v1482
    %v2746 = vunpack.c.h.b16 %v1482
    %v2747 = vunpack.c.l.b16 %v1483
    %v2748 = vunpack.c.h.b16 %v1483
    %v2749 = vunpack.c.l.b16 %v1484
    %v2750 = vunpack.c.h.b16 %v1484
    %v2751 = vunpack.c.l.b16 %v1485
    %v2752 = vunpack.c.h.b16 %v1485
    %v2753 = vunpack.c.l.b16 %v1486
    %v2754 = vunpack.c.h.b16 %v1486
    %v2755 = vunpack.c.l.b16 %v1487
    %v2756 = vunpack.c.h.b16 %v1487
    %v2757 = vunpack.c.l.b16 %v1488
    %v2758 = vunpack.c.h.b16 %v1488
    %v2759 = vunpack.c.l.b16 %v1489
    %v2760 = vunpack.c.h.b16 %v1489
    %v2761 = vunpack.c.l.b16 %v1490
    %v2762 = vunpack.c.h.b16 %v1490
    %v2763 = vunpack.c.l.b16 %v1491
    %v2764 = vunpack.c.h.b16 %v1491
    %v2765 = vunpack.c.l.b16 %v1492
    %v2766 = vunpack.c.h.b16 %v1492
    %v2767 = vunpack.c.l.b16 %v1493
    %v2768 = vunpack.c.h.b16 %v1493
    %v2769 = vunpack.c.l.b16 %v1494
    %v2770 = vunpack.c.h.b16 %v1494
    %v2771 = vunpack.c.l.b16 %v1495
    %v2772 = vunpack.c.h.b16 %v1495
    %v2773 = vunpack.c.l.b16 %v1496
    %v2774 = vunpack.c.h.b16 %v1496
    %v2775 = vunpack.c.l.b16 %v1497
    %v2776 = vunpack.c.h.b16 %v1497
    %v2777 = vunpack.c.l.b16 %v1498
    %v2778 = vunpack.c.h.b16 %v1498
    %v2779 = vunpack.c.l.b16 %v1499
    %v2780 = vunpack.c.h.b16 %v1499
    %v2781 = vunpack.c.l.b16 %v1500
    %v2782 = vunpack.c.h.b16 %v1500
    %v2783 = vunpack.c.l.b16 %v1501
    %v2784 = vunpack.c.h.b16 %v1501
    %v2785 = vunpack.c.l.b16 %v1502
    %v2786 = vunpack.c.h.b16 %v1502
    %v2787 = vunpack.c.l.b16 %v1503
    %v2788 = vunpack.c.h.b16 %v1503
    %v2789 = vunpack.c.l.b16 %v1504
    %v2790 = vunpack.c.h.b16 %v1504
    %v2791 = vunpack.c.l.b16 %v1505
    %v2792 = vunpack.c.h.b16 %v1505
    %v2793 = vunpack.c.l.b16 %v1506
    %v2794 = vunpack.c.h.b16 %v1506
    %v2795 = vunpack.c.l.b16 %v1507
    %v2796 = vunpack.c.h.b16 %v1507
    %v2797 = vunpack.c.l.b16 %v1508
    %v2798 = vunpack.c.h.b16 %v1508
    %v2799 = vunpack.c.l.b16 %v1509
    %v2800 = vunpack.c.h.b16 %v1509
    %v2801 = vunpack.c.l.b16 %v1510
    %v2802 = vunpack.c.h.b16 %v1510
    %v2803 = vunpack.c.l.b16 %v1511
    %v2804 = vunpack.c.h.b16 %v1511
    %v2805 = vunpack.c.l.b16 %v1512
    %v2806 = vunpack.c.h.b16 %v1512
    %v2807 = vunpack.c.l.b16 %v1513
    %v2808 = vunpack.c.h.b16 %v1513
    %v2809 = vunpack.c.l.b16 %v1514
    %v2810 = vunpack.c.h.b16 %v1514
    %v2811 = vunpack.c.l.b16 %v1515
    %v2812 = vunpack.c.h.b16 %v1515
    %v2813 = vunpack.c.l.b16 %v1516
    %v2814 = vunpack.c.h.b16 %v1516
    %v2815 = vunpack.c.l.b16 %v1517
    %v2816 = vunpack.c.h.b16 %v1517
    %v2817 = vunpack.c.l.b16 %v1518
    %v2818 = vunpack.c.h.b16 %v1518
    %v2819 = vunpack.c.l.b16 %v1519
    %v2820 = vunpack.c.h.b16 %v1519
    %v2821 = vunpack.c.l.b16 %v1520
    %v2822 = vunpack.c.h.b16 %v1520
    %v2823 = vunpack.c.l.b16 %v1521
    %v2824 = vunpack.c.h.b16 %v1521
    %v2825 = vunpack.c.l.b16 %v1522
    %v2826 = vunpack.c.h.b16 %v1522
    %v2827 = vunpack.c.l.b16 %v1523
    %v2828 = vunpack.c.h.b16 %v1523
    %v2829 = vunpack.c.l.b16 %v1524
    %v2830 = vunpack.c.h.b16 %v1524
    %v2831 = vunpack.c.l.b16 %v1525
    %v2832 = vunpack.c.h.b16 %v1525
    %v2833 = vunpack.c.l.b16 %v1526
    %v2834 = vunpack.c.h.b16 %v1526
    %v2835 = vunpack.c.l.b16 %v1527
    %v2836 = vunpack.c.h.b16 %v1527
    %v2837 = vunpack.c.l.b16 %v1528
    %v2838 = vunpack.c.h.b16 %v1528
    %v2839 = vunpack.c.l.b16 %v1529
    %v2840 = vunpack.c.h.b16 %v1529
    %v2841 = vunpack.c.l.b16 %v1530
    %v2842 = vunpack.c.h.b16 %v1530
    %v2843 = vunpack.c.l.b16 %v1531
    %v2844 = vunpack.c.h.b16 %v1531
    %v2845 = vunpack.c.l.b16 %v1532
    %v2846 = vunpack.c.h.b16 %v1532
    %v2847 = vunpack.c.l.b16 %v1533
    %v2848 = vunpack.c.h.b16 %v1533
    %v2849 = vunpack.c.l.b16 %v1534
    %v2850 = vunpack.c.h.b16 %v1534
    %v2851 = vunpack.c.l.b16 %v1535
    %v2852 = vunpack.c.h.b16 %v1535
    %v2853 = vunpack.c.l.b16 %v1536
    %v2854 = vunpack.c.h.b16 %v1536
    %v2855 = vunpack.c.l.b16 %v1537
    %v2856 = vunpack.c.h.b16 %v1537
    %v2857 = vunpack.c.l.b16 %v1538
    %v2858 = vunpack.c.h.b16 %v1538
    %v2859 = vunpack.c.l.b16 %v1539
    %v2860 = vunpack.c.h.b16 %v1539
    %v2861 = vunpack.c.l.b16 %v1540
    %v2862 = vunpack.c.h.b16 %v1540
    %v2863 = vunpack.c.l.b16 %v1541
    %v2864 = vunpack.c.h.b16 %v1541
    %v2865 = vunpack.c.l.b16 %v1542
    %v2866 = vunpack.c.h.b16 %v1542
    %v2867 = vunpack.c.l.b16 %v1543
    %v2868 = vunpack.c.h.b16 %v1543
    %v2869 = vunpack.c.l.b16 %v1544
    %v2870 = vunpack.c.h.b16 %v1544
    %v2871 = vunpack.c.l.b16 %v1545
    %v2872 = vunpack.c.h.b16 %v1545
    %v2873 = vunpack.c.l.b16 %v1546
    %v2874 = vunpack.c.h.b16 %v1546
    %v2875 = vunpack.c.l.b16 %v1547
    %v2876 = vunpack.c.h.b16 %v1547
    %v2877 = vunpack.c.l.b16 %v1548
    %v2878 = vunpack.c.h.b16 %v1548
    %v2879 = vunpack.c.l.b16 %v1549
    %v2880 = vunpack.c.h.b16 %v1549
    %v2881 = vunpack.c.l.b16 %v1550
    %v2882 = vunpack.c.h.b16 %v1550
    %v2883 = vunpack.c.l.b16 %v1551
    %v2884 = vunpack.c.h.b16 %v1551
    %v2885 = vunpack.c.l.b16 %v1552
    %v2886 = vunpack.c.h.b16 %v1552
    %v2887 = vunpack.c.l.b16 %v1553
    %v2888 = vunpack.c.h.b16 %v1553
    %v2889 = vunpack.c.l.b16 %v1554
    %v2890 = vunpack.c.h.b16 %v1554
    %v2891 = vunpack.c.l.b16 %v1555
    %v2892 = vunpack.c.h.b16 %v1555
    %v2893 = vunpack.c.l.b16 %v1556
    %v2894 = vunpack.c.h.b16 %v1556
    %v2895 = vunpack.c.l.b16 %v1557
    %v2896 = vunpack.c.h.b16 %v1557
    %v2897 = vunpack.c.l.b16 %v1558
    %v2898 = vunpack.c.h.b16 %v1558
    %v2899 = vunpack.c.l.b16 %v1559
    %v2900 = vunpack.c.h.b16 %v1559
    %v2901 = vunpack.c.l.b16 %v1560
    %v2902 = vunpack.c.h.b16 %v1560
    %v2903 = vunpack.c.l.b16 %v1561
    %v2904 = vunpack.c.h.b16 %v1561
    %v2905 = vunpack.c.l.b16 %v1562
    %v2906 = vunpack.c.h.b16 %v1562
    %v2907 = vunpack.c.l.b16 %v1563
    %v2908 = vunpack.c.h.b16 %v1563
    %v2909 = vunpack.c.l.b16 %v1564
    %v2910 = vunpack.c.h.b16 %v1564
    %v2911 = vunpack.c.l.b16 %v1565
    %v2912 = vunpack.c.h.b16 %v1565
    %v2913 = vunpack.c.l.b16 %v1566
    %v2914 = vunpack.c.h.b16 %v1566
    %v2915 = vunpack.c.l.b16 %v1567
    %v2916 = vunpack.c.h.b16 %v1567
    %v2917 = vunpack.c.l.b16 %v1568
    %v2918 = vunpack.c.h.b16 %v1568
    %v2919 = vunpack.c.l.b16 %v1569
    %v2920 = vunpack.c.h.b16 %v1569
    %v2921 = vunpack.c.l.b16 %v1570
    %v2922 = vunpack.c.h.b16 %v1570
    %v2923 = vunpack.c.l.b16 %v1571
    %v2924 = vunpack.c.h.b16 %v1571
    %v2925 = vunpack.c.l.b16 %v1572
    %v2926 = vunpack.c.h.b16 %v1572
    %v2927 = vunpack.c.l.b16 %v1573
    %v2928 = vunpack.c.h.b16 %v1573
    %v2929 = vunpack.c.l.b16 %v1574
    %v2930 = vunpack.c.h.b16 %v1574
    %v2931 = vunpack.c.l.b16 %v1575
    %v2932 = vunpack.c.h.b16 %v1575
    %v2933 = vunpack.c.l.b16 %v1576
    %v2934 = vunpack.c.h.b16 %v1576
    %v2935 = vunpack.c.l.b16 %v1577
    %v2936 = vunpack.c.h.b16 %v1577
    %v2937 = vunpack.c.l.b16 %v1578
    %v2938 = vunpack.c.h.b16 %v1578
    %v2939 = vunpack.c.l.b16 %v1579
    %v2940 = vunpack.c.h.b16 %v1579
    %v2941 = vunpack.c.l.b16 %v1580
    %v2942 = vunpack.c.h.b16 %v1580
    %v2943 = vunpack.c.l.b16 %v1581
    %v2944 = vunpack.c.h.b16 %v1581
    %v2945 = vunpack.c.l.b16 %v1582
    %v2946 = vunpack.c.h.b16 %v1582
    %v2947 = vunpack.c.l.b16 %v1583
    %v2948 = vunpack.c.h.b16 %v1583
    %v2949 = vunpack.c.l.b16 %v1584
    %v2950 = vunpack.c.h.b16 %v1584
    %v2951 = vunpack.c.l.b16 %v1585
    %v2952 = vunpack.c.h.b16 %v1585
    %v2953 = vunpack.c.l.b16 %v1586
    %v2954 = vunpack.c.h.b16 %v1586
    %v2955 = vunpack.c.l.b16 %v1587
    %v2956 = vunpack.c.h.b16 %v1587
    %v2957 = vunpack.c.l.b16 %v1588
    %v2958 = vunpack.c.h.b16 %v1588
    %v2959 = vunpack.c.l.b16 %v1589
    %v2960 = vunpack.c.h.b16 %v1589
    %v2961 = vunpack.c.l.b16 %v1590
    %v2962 = vunpack.c.h.b16 %v1590
    %v2963 = vunpack.c.l.b16 %v1591
    %v2964 = vunpack.c.h.b16 %v1591
    %v2965 = vunpack.c.l.b16 %v1592
    %v2966 = vunpack.c.h.b16 %v1592
    %v2967 = vunpack.c.l.b16 %v1593
    %v2968 = vunpack.c.h.b16 %v1593
    %v2969 = vunpack.c.l.b16 %v1594
    %v2970 = vunpack.c.h.b16 %v1594
    %v2971 = vunpack.c.l.b16 %v1595
    %v2972 = vunpack.c.h.b16 %v1595
    %v2973 = vunpack.c.l.b16 %v1596
    %v2974 = vunpack.c.h.b16 %v1596
    %v2975 = vunpack.c.l.b16 %v1597
    %v2976 = vunpack.c.h.b16 %v1597
    %v2977 = vunpack.c.l.b16 %v1598
    %v2978 = vunpack.c.h.b16 %v1598
    %v2979 = vunpack.c.l.b16 %v1599
    %v2980 = vunpack.c.h.b16 %v1599
    %v2981 = vunpack.c.l.b16 %v1600
    %v2982 = vunpack.c.h.b16 %v1600
    %v2983 = vunpack.c.l.b16 %v1601
    %v2984 = vunpack.c.h.b16 %v1601
    %v2985 = vunpack.c.l.b16 %v1602
    %v2986 = vunpack.c.h.b16 %v1602
    %v2987 = vunpack.c.l.b16 %v1603
    %v2988 = vunpack.c.h.b16 %v1603
    %v2989 = vunpack.c.l.b16 %v1604
    %v2990 = vunpack.c.h.b16 %v1604
    %v2991 = vunpack.c.l.b16 %v1605
    %v2992 = vunpack.c.h.b16 %v1605
    %v2993 = vunpack.c.l.b16 %v1606
    %v2994 = vunpack.c.h.b16 %v1606
    %v2995 = vunpack.c.l.b16 %v1607
    %v2996 = vunpack.c.h.b16 %v1607
    %v2997 = vunpack.c.l.b16 %v1608
    %v2998 = vunpack.c.h.b16 %v1608
    %v2999 = vunpack.c.l.b16 %v1609
    %v3000 = vunpack.c.h.b16 %v1609
    %v3001 = vunpack.c.l.b16 %v1610
    %v3002 = vunpack.c.h.b16 %v1610
    %v3003 = vunpack.c.l.b16 %v1611
    %v3004 = vunpack.c.h.b16 %v1611
    %v3005 = vunpack.c.l.b16 %v1612
    %v3006 = vunpack.c.h.b16 %v1612
    %v3007 = vunpack.c.l.b16 %v1613
    %v3008 = vunpack.c.h.b16 %v1613
    %v3009 = vunpack.c.l.b16 %v1614
    %v3010 = vunpack.c.h.b16 %v1614
    %v3011 = vunpack.c.l.b16 %v1615
    %v3012 = vunpack.c.h.b16 %v1615
    %v3013 = vunpack.c.l.b16 %v1616
    %v3014 = vunpack.c.h.b16 %v1616
    %v3015 = vunpack.c.l.b16 %v1617
    %v3016 = vunpack.c.h.b16 %v1617
    %v3017 = vunpack.c.l.b16 %v1618
    %v3018 = vunpack.c.h.b16 %v1618
    %v3019 = vunpack.c.l.b16 %v1619
    %v3020 = vunpack.c.h.b16 %v1619
    %v3021 = vunpack.c.l.b16 %v1620
    %v3022 = vunpack.c.h.b16 %v1620
    %v3023 = vunpack.c.l.b16 %v1621
    %v3024 = vunpack.c.h.b16 %v1621
    %v3025 = vunpack.c.l.b16 %v1622
    %v3026 = vunpack.c.h.b16 %v1622
    %v3027 = vunpack.c.l.b16 %v1623
    %v3028 = vunpack.c.h.b16 %v1623
    %v3029 = vunpack.c.l.b16 %v1624
    %v3030 = vunpack.c.h.b16 %v1624
    %v3031 = vunpack.c.l.b16 %v1625
    %v3032 = vunpack.c.h.b16 %v1625
    %v3033 = vunpack.c.l.b16 %v1626
    %v3034 = vunpack.c.h.b16 %v1626
    %v3035 = vunpack.c.l.b16 %v1627
    %v3036 = vunpack.c.h.b16 %v1627
    %v3037 = vunpack.c.l.b16 %v1628
    %v3038 = vunpack.c.h.b16 %v1628
    %v3039 = vunpack.c.l.b16 %v1629
    %v3040 = vunpack.c.h.b16 %v1629
    %v3041 = vunpack.c.l.b16 %v1630
    %v3042 = vunpack.c.h.b16 %v1630
    %v3043 = vunpack.c.l.b16 %v1631
    %v3044 = vunpack.c.h.b16 %v1631
    %v3045 = vunpack.c.l.b16 %v1632
    %v3046 = vunpack.c.h.b16 %v1632
    %v3047 = vunpack.c.l.b16 %v1633
    %v3048 = vunpack.c.h.b16 %v1633
    %v3049 = vunpack.c.l.b16 %v1634
    %v3050 = vunpack.c.h.b16 %v1634
    %v3051 = vunpack.c.l.b16 %v1635
    %v3052 = vunpack.c.h.b16 %v1635
    %v3053 = vunpack.c.l.b16 %v1636
    %v3054 = vunpack.c.h.b16 %v1636
    %v3055 = vunpack.c.l.b16 %v1637
    %v3056 = vunpack.c.h.b16 %v1637
    %v3057 = vunpack.c.l.b16 %v1638
    %v3058 = vunpack.c.h.b16 %v1638
    %v3059 = vunpack.c.l.b16 %v1639
    %v3060 = vunpack.c.h.b16 %v1639
    %v3061 = vunpack.c.l.b16 %v1640
    %v3062 = vunpack.c.h.b16 %v1640
    %v3063 = vunpack.c.l.b16 %v1641
    %v3064 = vunpack.c.h.b16 %v1641
    %v3065 = vunpack.c.l.b16 %v1642
    %v3066 = vunpack.c.h.b16 %v1642
    %v3067 = vunpack.c.l.b16 %v1643
    %v3068 = vunpack.c.h.b16 %v1643
    %v3069 = vunpack.c.l.b16 %v1644
    %v3070 = vunpack.c.h.b16 %v1644
    %v3071 = vunpack.c.l.b16 %v1645
    %v3072 = vunpack.c.h.b16 %v1645
    %v3073 = vunpack.c.l.b16 %v1646
    %v3074 = vunpack.c.h.b16 %v1646
    %v3075 = vunpack.c.l.b16 %v1647
    %v3076 = vunpack.c.h.b16 %v1647
    %v3077 = vunpack.c.l.b16 %v1648
    %v3078 = vunpack.c.h.b16 %v1648
    %v3079 = vunpack.c.l.b16 %v1649
    %v3080 = vunpack.c.h.b16 %v1649
    %v3081 = vunpack.c.l.b16 %v1650
    %v3082 = vunpack.c.h.b16 %v1650
    %v3083 = vunpack.c.l.b16 %v1651
    %v3084 = vunpack.c.h.b16 %v1651
    %v3085 = vunpack.c.l.b16 %v1652
    %v3086 = vunpack.c.h.b16 %v1652
    %v3087 = vunpack.c.l.b16 %v1653
    %v3088 = vunpack.c.h.b16 %v1653
    %v3089 = vunpack.c.l.b16 %v1654
    %v3090 = vunpack.c.h.b16 %v1654
    %v3091 = vunpack.c.l.b16 %v1655
    %v3092 = vunpack.c.h.b16 %v1655
    %v3093 = vunpack.c.l.b16 %v1656
    %v3094 = vunpack.c.h.b16 %v1656
    %v3095 = vunpack.c.l.b16 %v1657
    %v3096 = vunpack.c.h.b16 %v1657
    %v3097 = vunpack.c.l.b16 %v1658
    %v3098 = vunpack.c.h.b16 %v1658
    %v3099 = vunpack.c.l.b16 %v1659
    %v3100 = vunpack.c.h.b16 %v1659
    %v3101 = vunpack.c.l.b16 %v1660
    %v3102 = vunpack.c.h.b16 %v1660
    %v3103 = vunpack.c.l.b16 %v1661
    %v3104 = vunpack.c.h.b16 %v1661
    %v3105 = vunpack.c.l.b16 %v1662
    %v3106 = vunpack.c.h.b16 %v1662
    %v3107 = vunpack.c.l.b16 %v1663
    %v3108 = vunpack.c.h.b16 %v1663
    %v3109 = vunpack.c.l.b16 %v1664
    %v3110 = vunpack.c.h.b16 %v1664
    %v3111 = vunpack.c.l.b16 %v1665
    %v3112 = vunpack.c.h.b16 %v1665
    %v3113 = vunpack.c.l.b16 %v1666
    %v3114 = vunpack.c.h.b16 %v1666
    %v3115 = vunpack.c.l.b16 %v1667
    %v3116 = vunpack.c.h.b16 %v1667
    %v3117 = vunpack.c.l.b16 %v1668
    %v3118 = vunpack.c.h.b16 %v1668
    %v3119 = vunpack.c.l.b16 %v1669
    %v3120 = vunpack.c.h.b16 %v1669
    %v3121 = vunpack.c.l.b16 %v1670
    %v3122 = vunpack.c.h.b16 %v1670
    %v3123 = vunpack.c.l.b16 %v1671
    %v3124 = vunpack.c.h.b16 %v1671
    %v3125 = vunpack.c.l.b16 %v1672
    %v3126 = vunpack.c.h.b16 %v1672
    %v3127 = vunpack.c.l.b16 %v1673
    %v3128 = vunpack.c.h.b16 %v1673
    %v3129 = vunpack.c.l.b16 %v1674
    %v3130 = vunpack.c.h.b16 %v1674
    %v3131 = vunpack.c.l.b16 %v1675
    %v3132 = vunpack.c.h.b16 %v1675
    %v3133 = vunpack.c.l.b16 %v1676
    %v3134 = vunpack.c.h.b16 %v1676
    %v3135 = vunpack.c.l.b16 %v1677
    %v3136 = vunpack.c.h.b16 %v1677
    %v3137 = vunpack.c.l.b16 %v1678
    %v3138 = vunpack.c.h.b16 %v1678
    %v3139 = vunpack.c.l.b16 %v1679
    %v3140 = vunpack.c.h.b16 %v1679
    %v3141 = vunpack.c.l.b16 %v1680
    %v3142 = vunpack.c.h.b16 %v1680
    %v3143 = vunpack.c.l.b16 %v1681
    %v3144 = vunpack.c.h.b16 %v1681
    %v3145 = vunpack.c.l.b16 %v1682
    %v3146 = vunpack.c.h.b16 %v1682
    %v3147 = vunpack.c.l.b16 %v1683
    %v3148 = vunpack.c.h.b16 %v1683
    %v3149 = vunpack.c.l.b16 %v1684
    %v3150 = vunpack.c.h.b16 %v1684
    %v3151 = vunpack.c.l.b16 %v1685
    %v3152 = vunpack.c.h.b16 %v1685
    %v3153 = vunpack.c.l.b16 %v1686
    %v3154 = vunpack.c.h.b16 %v1686
    %v3155 = vunpack.c.l.b16 %v1687
    %v3156 = vunpack.c.h.b16 %v1687
    %v3157 = vunpack.c.l.b16 %v1688
    %v3158 = vunpack.c.h.b16 %v1688
    %v3159 = vunpack.c.l.b16 %v1689
    %v3160 = vunpack.c.h.b16 %v1689
    %v3161 = vunpack.c.l.b16 %v1690
    %v3162 = vunpack.c.h.b16 %v1690
    %v3163 = vunpack.c.l.b16 %v1691
    %v3164 = vunpack.c.h.b16 %v1691
    %v3165 = vunpack.c.l.b16 %v1692
    %v3166 = vunpack.c.h.b16 %v1692
    %v3167 = vunpack.c.l.b16 %v1693
    %v3168 = vunpack.c.h.b16 %v1693
    %v3169 = vunpack.c.l.b16 %v1694
    %v3170 = vunpack.c.h.b16 %v1694
    %v3171 = vunpack.c.l.b16 %v1695
    %v3172 = vunpack.c.h.b16 %v1695
    %v3173 = vunpack.c.l.b16 %v1696
    %v3174 = vunpack.c.h.b16 %v1696
    %v3175 = vunpack.c.l.b16 %v1697
    %v3176 = vunpack.c.h.b16 %v1697
    %v3177 = vunpack.c.l.b16 %v1698
    %v3178 = vunpack.c.h.b16 %v1698
    %v3179 = vunpack.c.l.b16 %v1699
    %v3180 = vunpack.c.h.b16 %v1699
    %v3181 = vunpack.c.l.b16 %v1700
    %v3182 = vunpack.c.h.b16 %v1700
    %v3183 = vunpack.c.l.b16 %v1701
    %v3184 = vunpack.c.h.b16 %v1701
    %v3185 = vunpack.c.l.b16 %v1702
    %v3186 = vunpack.c.h.b16 %v1702
    %v3187 = vunpack.c.l.b16 %v1703
    %v3188 = vunpack.c.h.b16 %v1703
    %v3189 = vunpack.c.l.b16 %v1704
    %v3190 = vunpack.c.h.b16 %v1704
    %v3191 = vunpack.c.l.b16 %v1705
    %v3192 = vunpack.c.h.b16 %v1705
    %v3193 = vunpack.c.l.b16 %v1706
    %v3194 = vunpack.c.h.b16 %v1706
    %v3195 = vunpack.c.l.b16 %v1707
    %v3196 = vunpack.c.h.b16 %v1707
    %v3197 = vunpack.c.l.b16 %v1708
    %v3198 = vunpack.c.h.b16 %v1708
    %v3199 = vunpack.c.l.b16 %v1709
    %v3200 = vunpack.c.h.b16 %v1709
    %v3201 = vunpack.c.l.b16 %v1710
    %v3202 = vunpack.c.h.b16 %v1710
    %v3203 = vunpack.c.l.b16 %v1711
    %v3204 = vunpack.c.h.b16 %v1711
    %v3205 = vunpack.c.l.b16 %v1712
    %v3206 = vunpack.c.h.b16 %v1712
    %v3207 = vpack.c.b16 %v2319, %v2311
    %v3208 = vpack.c.b16 %v2320, %v2312
    %v3209 = vpack.c.b16 %v2321, %v2313
    %v3210 = vpack.c.b16 %v2322, %v2314
    %v3211 = vpack.c.b16 %v2323, %v2315
    %v3212 = vpack.c.b16 %v2324, %v2316
    %v3213 = vpack.c.b16 %v2325, %v2317
    %v3214 = vpack.c.b16 %v2326, %v2318
    %v3215 = vpack.c.b16 %v2335, %v2327
    %v3216 = vpack.c.b16 %v2336, %v2328
    %v3217 = vpack.c.b16 %v2337, %v2329
    %v3218 = vpack.c.b16 %v2338, %v2330
    %v3219 = vpack.c.b16 %v2339, %v2331
    %v3220 = vpack.c.b16 %v2340, %v2332
    %v3221 = vpack.c.b16 %v2341, %v2333
    %v3222 = vpack.c.b16 %v2342, %v2334
    %v3223 = vpack.c.b16 %v2351, %v2343
    %v3224 = vpack.c.b16 %v2352, %v2344
    %v3225 = vpack.c.b16 %v2353, %v2345
    %v3226 = vpack.c.b16 %v2354, %v2346
    %v3227 = vpack.c.b16 %v2355, %v2347
    %v3228 = vpack.c.b16 %v2356, %v2348
    %v3229 = vpack.c.b16 %v2357, %v2349
    %v3230 = vpack.c.b16 %v2358, %v2350
    %v3231 = vpack.c.b16 %v2367, %v2359
    %v3232 = vpack.c.b16 %v2368, %v2360
    %v3233 = vpack.c.b16 %v2369, %v2361
    %v3234 = vpack.c.b16 %v2370, %v2362
    %v3235 = vpack.c.b16 %v2371, %v2363
    %v3236 = vpack.c.b16 %v2372, %v2364
    %v3237 = vpack.c.b16 %v2373, %v2365
    %v3238 = vpack.c.b16 %v2374, %v2366
    %v3239 = vpack.c.b16 %v2383, %v2375
    %v3240 = vpack.c.b16 %v2384, %v2376
    %v3241 = vpack.c.b16 %v2385, %v2377
    %v3242 = vpack.c.b16 %v2386, %v2378
    %v3243 = vpack.c.b16 %v2387, %v2379
    %v3244 = vpack.c.b16 %v2388, %v2380
    %v3245 = vpack.c.b16 %v2389, %v2381
    %v3246 = vpack.c.b16 %v2390, %v2382
    %v3247 = vpack.c.b16 %v2399, %v2391
    %v3248 = vpack.c.b16 %v2400, %v2392
    %v3249 = vpack.c.b16 %v2401, %v2393
    %v3250 = vpack.c.b16 %v2402, %v2394
    %v3251 = vpack.c.b16 %v2403, %v2395
    %v3252 = vpack.c.b16 %v2404, %v2396
    %v3253 = vpack.c.b16 %v2405, %v2397
    %v3254 = vpack.c.b16 %v2406, %v2398
    %v3255 = vpack.c.b16 %v2415, %v2407
    %v3256 = vpack.c.b16 %v2416, %v2408
    %v3257 = vpack.c.b16 %v2417, %v2409
    %v3258 = vpack.c.b16 %v2418, %v2410
    %v3259 = vpack.c.b16 %v2419, %v2411
    %v3260 = vpack.c.b16 %v2420, %v2412
    %v3261 = vpack.c.b16 %v2421, %v2413
    %v3262 = vpack.c.b16 %v2422, %v2414
    %v3263 = vpack.c.b16 %v2431, %v2423
    %v3264 = vpack.c.b16 %v2432, %v2424
    %v3265 = vpack.c.b16 %v2433, %v2425
    %v3266 = vpack.c.b16 %v2434, %v2426
    %v3267 = vpack.c.b16 %v2435, %v2427
    %v3268 = vpack.c.b16 %v2436, %v2428
    %v3269 = vpack.c.b16 %v2437, %v2429
    %v3270 = vpack.c.b16 %v2438, %v2430
    %v3271 = vpack.c.b16 %v2447, %v2439
    %v3272 = vpack.c.b16 %v2448, %v2440
    %v3273 = vpack.c.b16 %v2449, %v2441
    %v3274 = vpack.c.b16 %v2450, %v2442
    %v3275 = vpack.c.b16 %v2451, %v2443
    %v3276 = vpack.c.b16 %v2452, %v2444
    %v3277 = vpack.c.b16 %v2453, %v2445
    %v3278 = vpack.c.b16 %v2454, %v2446
    %v3279 = vpack.c.b16 %v2463, %v2455
    %v3280 = vpack.c.b16 %v2464, %v2456
    %v3281 = vpack.c.b16 %v2465, %v2457
    %v3282 = vpack.c.b16 %v2466, %v2458
    %v3283 = vpack.c.b16 %v2467, %v2459
    %v3284 = vpack.c.b16 %v2468, %v2460
    %v3285 = vpack.c.b16 %v2469, %v2461
    %v3286 = vpack.c.b16 %v2470, %v2462
    %v3287 = vpack.c.b16 %v2479, %v2471
    %v3288 = vpack.c.b16 %v2480, %v2472
    %v3289 = vpack.c.b16 %v2481, %v2473
    %v3290 = vpack.c.b16 %v2482, %v2474
    %v3291 = vpack.c.b16 %v2483, %v2475
    %v3292 = vpack.c.b16 %v2484, %v2476
    %v3293 = vpack.c.b16 %v2485, %v2477
    %v3294 = vpack.c.b16 %v2486, %v2478
    %v3295 = vpack.c.b16 %v2495, %v2487
    %v3296 = vpack.c.b16 %v2496, %v2488
    %v3297 = vpack.c.b16 %v2497, %v2489
    %v3298 = vpack.c.b16 %v2498, %v2490
    %v3299 = vpack.c.b16 %v2499, %v2491
    %v3300 = vpack.c.b16 %v2500, %v2492
    %v3301 = vpack.c.b16 %v2501, %v2493
    %v3302 = vpack.c.b16 %v2502, %v2494
    %v3303 = vpack.c.b16 %v2511, %v2503
    %v3304 = vpack.c.b16 %v2512, %v2504
    %v3305 = vpack.c.b16 %v2513, %v2505
    %v3306 = vpack.c.b16 %v2514, %v2506
    %v3307 = vpack.c.b16 %v2515, %v2507
    %v3308 = vpack.c.b16 %v2516, %v2508
    %v3309 = vpack.c.b16 %v2517, %v2509
    %v3310 = vpack.c.b16 %v2518, %v2510
    %v3311 = vpack.c.b16 %v2527, %v2519
    %v3312 = vpack.c.b16 %v2528, %v2520
    %v3313 = vpack.c.b16 %v2529, %v2521
    %v3314 = vpack.c.b16 %v2530, %v2522
    %v3315 = vpack.c.b16 %v2531, %v2523
    %v3316 = vpack.c.b16 %v2532, %v2524
    %v3317 = vpack.c.b16 %v2533, %v2525
    %v3318 = vpack.c.b16 %v2534, %v2526
    %v3319 = vpack.c.b16 %v2543, %v2535
    %v3320 = vpack.c.b16 %v2544, %v2536
    %v3321 = vpack.c.b16 %v2545, %v2537
    %v3322 = vpack.c.b16 %v2546, %v2538
    %v3323 = vpack.c.b16 %v2547, %v2539
    %v3324 = vpack.c.b16 %v2548, %v2540
    %v3325 = vpack.c.b16 %v2549, %v2541
    %v3326 = vpack.c.b16 %v2550, %v2542
    %v3327 = vpack.c.b16 %v2559, %v2551
    %v3328 = vpack.c.b16 %v2560, %v2552
    %v3329 = vpack.c.b16 %v2561, %v2553
    %v3330 = vpack.c.b16 %v2562, %v2554
    %v3331 = vpack.c.b16 %v2563, %v2555
    %v3332 = vpack.c.b16 %v2564, %v2556
    %v3333 = vpack.c.b16 %v2565, %v2557
    %v3334 = vpack.c.b16 %v2566, %v2558
    %v3335 = vpack.c.b16 %v2575, %v2567
    %v3336 = vpack.c.b16 %v2576, %v2568
    %v3337 = vpack.c.b16 %v2577, %v2569
    %v3338 = vpack.c.b16 %v2578, %v2570
    %v3339 = vpack.c.b16 %v2579, %v2571
    %v3340 = vpack.c.b16 %v2580, %v2572
    %v3341 = vpack.c.b16 %v2581, %v2573
    %v3342 = vpack.c.b16 %v2582, %v2574
    %v3343 = vpack.c.b16 %v2591, %v2583
    %v3344 = vpack.c.b16 %v2592, %v2584
    %v3345 = vpack.c.b16 %v2593, %v2585
    %v3346 = vpack.c.b16 %v2594, %v2586
    %v3347 = vpack.c.b16 %v2595, %v2587
    %v3348 = vpack.c.b16 %v2596, %v2588
    %v3349 = vpack.c.b16 %v2597, %v2589
    %v3350 = vpack.c.b16 %v2598, %v2590
    %v3351 = vpack.c.b16 %v2607, %v2599
    %v3352 = vpack.c.b16 %v2608, %v2600
    %v3353 = vpack.c.b16 %v2609, %v2601
    %v3354 = vpack.c.b16 %v2610, %v2602
    %v3355 = vpack.c.b16 %v2611, %v2603
    %v3356 = vpack.c.b16 %v2612, %v2604
    %v3357 = vpack.c.b16 %v2613, %v2605
    %v3358 = vpack.c.b16 %v2614, %v2606
    %v3359 = vpack.c.b16 %v2623, %v2615
    %v3360 = vpack.c.b16 %v2624, %v2616
    %v3361 = vpack.c.b16 %v2625, %v2617
    %v3362 = vpack.c.b16 %v2626, %v2618
    %v3363 = vpack.c.b16 %v2627, %v2619
    %v3364 = vpack.c.b16 %v2628, %v2620
    %v3365 = vpack.c.b16 %v2629, %v2621
    %v3366 = vpack.c.b16 %v2630, %v2622
    %v3367 = vpack.c.b16 %v2639, %v2631
    %v3368 = vpack.c.b16 %v2640, %v2632
    %v3369 = vpack.c.b16 %v2641, %v2633
    %v3370 = vpack.c.b16 %v2642, %v2634
    %v3371 = vpack.c.b16 %v2643, %v2635
    %v3372 = vpack.c.b16 %v2644, %v2636
    %v3373 = vpack.c.b16 %v2645, %v2637
    %v3374 = vpack.c.b16 %v2646, %v2638
    %v3375 = vpack.c.b16 %v2655, %v2647
    %v3376 = vpack.c.b16 %v2656, %v2648
    %v3377 = vpack.c.b16 %v2657, %v2649
    %v3378 = vpack.c.b16 %v2658, %v2650
    %v3379 = vpack.c.b16 %v2659, %v2651
    %v3380 = vpack.c.b16 %v2660, %v2652
    %v3381 = vpack.c.b16 %v2661, %v2653
    %v3382 = vpack.c.b16 %v2662, %v2654
    %v3383 = vpack.c.b16 %v2671, %v2663
    %v3384 = vpack.c.b16 %v2672, %v2664
    %v3385 = vpack.c.b16 %v2673, %v2665
    %v3386 = vpack.c.b16 %v2674, %v2666
    %v3387 = vpack.c.b16 %v2675, %v2667
    %v3388 = vpack.c.b16 %v2676, %v2668
    %v3389 = vpack.c.b16 %v2677, %v2669
    %v3390 = vpack.c.b16 %v2678, %v2670
    %v3391 = vpack.c.b16 %v2687, %v2679
    %v3392 = vpack.c.b16 %v2688, %v2680
    %v3393 = vpack.c.b16 %v2689, %v2681
    %v3394 = vpack.c.b16 %v2690, %v2682
    %v3395 = vpack.c.b16 %v2691, %v2683
    %v3396 = vpack.c.b16 %v2692, %v2684
    %v3397 = vpack.c.b16 %v2693, %v2685
    %v3398 = vpack.c.b16 %v2694, %v2686
    %v3399 = vpack.c.b16 %v2703, %v2695
    %v3400 = vpack.c.b16 %v2704, %v2696
    %v3401 = vpack.c.b16 %v2705, %v2697
    %v3402 = vpack.c.b16 %v2706, %v2698
    %v3403 = vpack.c.b16 %v2707, %v2699
    %v3404 = vpack.c.b16 %v2708, %v2700
    %v3405 = vpack.c.b16 %v2709, %v2701
    %v3406 = vpack.c.b16 %v2710, %v2702
    %v3407 = vpack.c.b16 %v2719, %v2711
    %v3408 = vpack.c.b16 %v2720, %v2712
    %v3409 = vpack.c.b16 %v2721, %v2713
    %v3410 = vpack.c.b16 %v2722, %v2714
    %v3411 = vpack.c.b16 %v2723, %v2715
    %v3412 = vpack.c.b16 %v2724, %v2716
    %v3413 = vpack.c.b16 %v2725, %v2717
    %v3414 = vpack.c.b16 %v2726, %v2718
    %v3415 = vpack.c.b16 %v2735, %v2727
    %v3416 = vpack.c.b16 %v2736, %v2728
    %v3417 = vpack.c.b16 %v2737, %v2729
    %v3418 = vpack.c.b16 %v2738, %v2730
    %v3419 = vpack.c.b16 %v2739, %v2731
    %v3420 = vpack.c.b16 %v2740, %v2732
    %v3421 = vpack.c.b16 %v2741, %v2733
    %v3422 = vpack.c.b16 %v2742, %v2734
    %v3423 = vpack.c.b16 %v2751, %v2743
    %v3424 = vpack.c.b16 %v2752, %v2744
    %v3425 = vpack.c.b16 %v2753, %v2745
    %v3426 = vpack.c.b16 %v2754, %v2746
    %v3427 = vpack.c.b16 %v2755, %v2747
    %v3428 = vpack.c.b16 %v2756, %v2748
    %v3429 = vpack.c.b16 %v2757, %v2749
    %v3430 = vpack.c.b16 %v2758, %v2750
    %v3431 = vpack.c.b16 %v2767, %v2759
    %v3432 = vpack.c.b16 %v2768, %v2760
    %v3433 = vpack.c.b16 %v2769, %v2761
    %v3434 = vpack.c.b16 %v2770, %v2762
    %v3435 = vpack.c.b16 %v2771, %v2763
    %v3436 = vpack.c.b16 %v2772, %v2764
    %v3437 = vpack.c.b16 %v2773, %v2765
    %v3438 = vpack.c.b16 %v2774, %v2766
    %v3439 = vpack.c.b16 %v2783, %v2775
    %v3440 = vpack.c.b16 %v2784, %v2776
    %v3441 = vpack.c.b16 %v2785, %v2777
    %v3442 = vpack.c.b16 %v2786, %v2778
    %v3443 = vpack.c.b16 %v2787, %v2779
    %v3444 = vpack.c.b16 %v2788, %v2780
    %v3445 = vpack.c.b16 %v2789, %v2781
    %v3446 = vpack.c.b16 %v2790, %v2782
    %v3447 = vpack.c.b16 %v2799, %v2791
    %v3448 = vpack.c.b16 %v2800, %v2792
    %v3449 = vpack.c.b16 %v2801, %v2793
    %v3450 = vpack.c.b16 %v2802, %v2794
    %v3451 = vpack.c.b16 %v2803, %v2795
    %v3452 = vpack.c.b16 %v2804, %v2796
    %v3453 = vpack.c.b16 %v2805, %v2797
    %v3454 = vpack.c.b16 %v2806, %v2798
    %v3455 = vpack.c.b16 %v2815, %v2807
    %v3456 = vpack.c.b16 %v2816, %v2808
    %v3457 = vpack.c.b16 %v2817, %v2809
    %v3458 = vpack.c.b16 %v2818, %v2810
    %v3459 = vpack.c.b16 %v2819, %v2811
    %v3460 = vpack.c.b16 %v2820, %v2812
    %v3461 = vpack.c.b16 %v2821, %v2813
    %v3462 = vpack.c.b16 %v2822, %v2814
    %v3463 = vpack.c.b16 %v2831, %v2823
    %v3464 = vpack.c.b16 %v2832, %v2824
    %v3465 = vpack.c.b16 %v2833, %v2825
    %v3466 = vpack.c.b16 %v2834, %v2826
    %v3467 = vpack.c.b16 %v2835, %v2827
    %v3468 = vpack.c.b16 %v2836, %v2828
    %v3469 = vpack.c.b16 %v2837, %v2829
    %v3470 = vpack.c.b16 %v2838, %v2830
    %v3471 = vpack.c.b16 %v2847, %v2839
    %v3472 = vpack.c.b16 %v2848, %v2840
    %v3473 = vpack.c.b16 %v2849, %v2841
    %v3474 = vpack.c.b16 %v2850, %v2842
    %v3475 = vpack.c.b16 %v2851, %v2843
    %v3476 = vpack.c.b16 %v2852, %v2844
    %v3477 = vpack.c.b16 %v2853, %v2845
    %v3478 = vpack.c.b16 %v2854, %v2846
    %v3479 = vpack.c.b16 %v2863, %v2855
    %v3480 = vpack.c.b16 %v2864, %v2856
    %v3481 = vpack.c.b16 %v2865, %v2857
    %v3482 = vpack.c.b16 %v2866, %v2858
    %v3483 = vpack.c.b16 %v2867, %v2859
    %v3484 = vpack.c.b16 %v2868, %v2860
    %v3485 = vpack.c.b16 %v2869, %v2861
    %v3486 = vpack.c.b16 %v2870, %v2862
    %v3487 = vpack.c.b16 %v2879, %v2871
    %v3488 = vpack.c.b16 %v2880, %v2872
    %v3489 = vpack.c.b16 %v2881, %v2873
    %v3490 = vpack.c.b16 %v2882, %v2874
    %v3491 = vpack.c.b16 %v2883, %v2875
    %v3492 = vpack.c.b16 %v2884, %v2876
    %v3493 = vpack.c.b16 %v2885, %v2877
    %v3494 = vpack.c.b16 %v2886, %v2878
    %v3495 = vpack.c.b16 %v2895, %v2887
    %v3496 = vpack.c.b16 %v2896, %v2888
    %v3497 = vpack.c.b16 %v2897, %v2889
    %v3498 = vpack.c.b16 %v2898, %v2890
    %v3499 = vpack.c.b16 %v2899, %v2891
    %v3500 = vpack.c.b16 %v2900, %v2892
    %v3501 = vpack.c.b16 %v2901, %v2893
    %v3502 = vpack.c.b16 %v2902, %v2894
    %v3503 = vpack.c.b16 %v2911, %v2903
    %v3504 = vpack.c.b16 %v2912, %v2904
    %v3505 = vpack.c.b16 %v2913, %v2905
    %v3506 = vpack.c.b16 %v2914, %v2906
    %v3507 = vpack.c.b16 %v2915, %v2907
    %v3508 = vpack.c.b16 %v2916, %v2908
    %v3509 = vpack.c.b16 %v2917, %v2909
    %v3510 = vpack.c.b16 %v2918, %v2910
    %v3511 = vpack.c.b16 %v2927, %v2919
    %v3512 = vpack.c.b16 %v2928, %v2920
    %v3513 = vpack.c.b16 %v2929, %v2921
    %v3514 = vpack.c.b16 %v2930, %v2922
    %v3515 = vpack.c.b16 %v2931, %v2923
    %v3516 = vpack.c.b16 %v2932, %v2924
    %v3517 = vpack.c.b16 %v2933, %v2925
    %v3518 = vpack.c.b16 %v2934, %v2926
    %v3519 = vpack.c.b16 %v2943, %v2935
    %v3520 = vpack.c.b16 %v2944, %v2936
    %v3521 = vpack.c.b16 %v2945, %v2937
    %v3522 = vpack.c.b16 %v2946, %v2938
    %v3523 = vpack.c.b16 %v2947, %v2939
    %v3524 = vpack.c.b16 %v2948, %v2940
    %v3525 = vpack.c.b16 %v2949, %v2941
    %v3526 = vpack.c.b16 %v2950, %v2942
    %v3527 = vpack.c.b16 %v2959, %v2951
    %v3528 = vpack.c.b16 %v2960, %v2952
    %v3529 = vpack.c.b16 %v2961, %v2953
    %v3530 = vpack.c.b16 %v2962, %v2954
    %v3531 = vpack.c.b16 %v2963, %v2955
    %v3532 = vpack.c.b16 %v2964, %v2956
    %v3533 = vpack.c.b16 %v2965, %v2957
    %v3534 = vpack.c.b16 %v2966, %v2958
    %v3535 = vpack.c.b16 %v2975, %v2967
    %v3536 = vpack.c.b16 %v2976, %v2968
    %v3537 = vpack.c.b16 %v2977, %v2969
    %v3538 = vpack.c.b16 %v2978, %v2970
    %v3539 = vpack.c.b16 %v2979, %v2971
    %v3540 = vpack.c.b16 %v2980, %v2972
    %v3541 = vpack.c.b16 %v2981, %v2973
    %v3542 = vpack.c.b16 %v2982, %v2974
    %v3543 = vpack.c.b16 %v2991, %v2983
    %v3544 = vpack.c.b16 %v2992, %v2984
    %v3545 = vpack.c.b16 %v2993, %v2985
    %v3546 = vpack.c.b16 %v2994, %v2986
    %v3547 = vpack.c.b16 %v2995, %v2987
    %v3548 = vpack.c.b16 %v2996, %v2988
    %v3549 = vpack.c.b16 %v2997, %v2989
    %v3550 = vpack.c.b16 %v2998, %v2990
    %v3551 = vpack.c.b16 %v3007, %v2999
    %v3552 = vpack.c.b16 %v3008, %v3000
    %v3553 = vpack.c.b16 %v3009, %v3001
    %v3554 = vpack.c.b16 %v3010, %v3002
    %v3555 = vpack.c.b16 %v3011, %v3003
    %v3556 = vpack.c.b16 %v3012, %v3004
    %v3557 = vpack.c.b16 %v3013, %v3005
    %v3558 = vpack.c.b16 %v3014, %v3006
    %v3559 = vpack.c.b16 %v3023, %v3015
    %v3560 = vpack.c.b16 %v3024, %v3016
    %v3561 = vpack.c.b16 %v3025, %v3017
    %v3562 = vpack.c.b16 %v3026, %v3018
    %v3563 = vpack.c.b16 %v3027, %v3019
    %v3564 = vpack.c.b16 %v3028, %v3020
    %v3565 = vpack.c.b16 %v3029, %v3021
    %v3566 = vpack.c.b16 %v3030, %v3022
    %v3567 = vpack.c.b16 %v3039, %v3031
    %v3568 = vpack.c.b16 %v3040, %v3032
    %v3569 = vpack.c.b16 %v3041, %v3033
    %v3570 = vpack.c.b16 %v3042, %v3034
    %v3571 = vpack.c.b16 %v3043, %v3035
    %v3572 = vpack.c.b16 %v3044, %v3036
    %v3573 = vpack.c.b16 %v3045, %v3037
    %v3574 = vpack.c.b16 %v3046, %v3038
    %v3575 = vpack.c.b16 %v3055, %v3047
    %v3576 = vpack.c.b16 %v3056, %v3048
    %v3577 = vpack.c.b16 %v3057, %v3049
    %v3578 = vpack.c.b16 %v3058, %v3050
    %v3579 = vpack.c.b16 %v3059, %v3051
    %v3580 = vpack.c.b16 %v3060, %v3052
    %v3581 = vpack.c.b16 %v3061, %v3053
    %v3582 = vpack.c.b16 %v3062, %v3054
    %v3583 = vpack.c.b16 %v3071, %v3063
    %v3584 = vpack.c.b16 %v3072, %v3064
    %v3585 = vpack.c.b16 %v3073, %v3065
    %v3586 = vpack.c.b16 %v3074, %v3066
    %v3587 = vpack.c.b16 %v3075, %v3067
    %v3588 = vpack.c.b16 %v3076, %v3068
    %v3589 = vpack.c.b16 %v3077, %v3069
    %v3590 = vpack.c.b16 %v3078, %v3070
    %v3591 = vpack.c.b16 %v3087, %v3079
    %v3592 = vpack.c.b16 %v3088, %v3080
    %v3593 = vpack.c.b16 %v3089, %v3081
    %v3594 = vpack.c.b16 %v3090, %v3082
    %v3595 = vpack.c.b16 %v3091, %v3083
    %v3596 = vpack.c.b16 %v3092, %v3084
    %v3597 = vpack.c.b16 %v3093, %v3085
    %v3598 = vpack.c.b16 %v3094, %v3086
    %v3599 = vpack.c.b16 %v3103, %v3095
    %v3600 = vpack.c.b16 %v3104, %v3096
    %v3601 = vpack.c.b16 %v3105, %v3097
    %v3602 = vpack.c.b16 %v3106, %v3098
    %v3603 = vpack.c.b16 %v3107, %v3099
    %v3604 = vpack.c.b16 %v3108, %v3100
    %v3605 = vpack.c.b16 %v3109, %v3101
    %v3606 = vpack.c.b16 %v3110, %v3102
    %v3607 = vpack.c.b16 %v3119, %v3111
    %v3608 = vpack.c.b16 %v3120, %v3112
    %v3609 = vpack.c.b16 %v3121, %v3113
    %v3610 = vpack.c.b16 %v3122, %v3114
    %v3611 = vpack.c.b16 %v3123, %v3115
    %v3612 = vpack.c.b16 %v3124, %v3116
    %v3613 = vpack.c.b16 %v3125, %v3117
    %v3614 = vpack.c.b16 %v3126, %v3118
    %v3615 = vpack.c.b16 %v3135, %v3127
    %v3616 = vpack.c.b16 %v3136, %v3128
    %v3617 = vpack.c.b16 %v3137, %v3129
    %v3618 = vpack.c.b16 %v3138, %v3130
    %v3619 = vpack.c.b16 %v3139, %v3131
    %v3620 = vpack.c.b16 %v3140, %v3132
    %v3621 = vpack.c.b16 %v3141, %v3133
    %v3622 = vpack.c.b16 %v3142, %v3134
    %v3623 = vpack.c.b16 %v3151, %v3143
    %v3624 = vpack.c.b16 %v3152, %v3144
    %v3625 = vpack.c.b16 %v3153, %v3145
    %v3626 = vpack.c.b16 %v3154, %v3146
    %v3627 = vpack.c.b16 %v3155, %v3147
    %v3628 = vpack.c.b16 %v3156, %v3148
    %v3629 = vpack.c.b16 %v3157, %v3149
    %v3630 = vpack.c.b16 %v3158, %v3150
    %v3631 = vpack.c.b16 %v3167, %v3159
    %v3632 = vpack.c.b16 %v3168, %v3160
    %v3633 = vpack.c.b16 %v3169, %v3161
    %v3634 = vpack.c.b16 %v3170, %v3162
    %v3635 = vpack.c.b16 %v3171, %v3163
    %v3636 = vpack.c.b16 %v3172, %v3164
    %v3637 = vpack.c.b16 %v3173, %v3165
    %v3638 = vpack.c.b16 %v3174, %v3166
    %v3639 = vpack.c.b16 %v3183, %v3175
    %v3640 = vpack.c.b16 %v3184, %v3176
    %v3641 = vpack.c.b16 %v3185, %v3177
    %v3642 = vpack.c.b16 %v3186, %v3178
    %v3643 = vpack.c.b16 %v3187, %v3179
    %v3644 = vpack.c.b16 %v3188, %v3180
    %v3645 = vpack.c.b16 %v3189, %v3181
    %v3646 = vpack.c.b16 %v3190, %v3182
    %v3647 = vpack.c.b16 %v3199, %v3191
    %v3648 = vpack.c.b16 %v3200, %v3192
    %v3649 = vpack.c.b16 %v3201, %v3193
    %v3650 = vpack.c.b16 %v3202, %v3194
    %v3651 = vpack.c.b16 %v3203, %v3195
    %v3652 = vpack.c.b16 %v3204, %v3196
    %v3653 = vpack.c.b16 %v3205, %v3197
    %v3654 = vpack.c.b16 %v3206, %v3198
    %4103 = vmatprep.subr.bf16.mxu0 %v3264
    %4104 = vmatpush1.bf16.msra.mxu0 %v3263
    %4105 = vmatprep.subr.bf16.mxu0 %v3256
    %4106 = vmatpush1.bf16.msra.mxu0 %v3255
    %4107 = vmatprep.subr.bf16.mxu0 %v3248
    %4108 = vmatpush1.bf16.msra.mxu0 %v3247
    %4109 = vmatprep.subr.bf16.mxu0 %v3240
    %4110 = vmatpush1.bf16.msra.mxu0 %v3239
    %4111 = vmatprep.subr.bf16.mxu0 %v3232
    %4112 = vmatpush1.bf16.msra.mxu0 %v3231
    %4113 = vmatprep.subr.bf16.mxu0 %v3224
    %4114 = vmatpush1.bf16.msra.mxu0 %v3223
    %4115 = vmatprep.subr.bf16.mxu0 %v3216
    %4116 = vmatpush1.bf16.msra.mxu0 %v3215
    %4117 = vmatprep.subr.bf16.mxu0 %v3208
    %4118 = vmatpush1.bf16.msra.mxu0 %v3207
    %4119 = vmatprep.subr.bf16.mxu0 %v3328
    %4120 = vmatpush2.bf16.msra.mxu0 %v3327
    %4121 = vmatprep.subr.bf16.mxu0 %v3320
    %4122 = vmatpush2.bf16.msra.mxu0 %v3319
    %4123 = vmatprep.subr.bf16.mxu0 %v3312
    %4124 = vmatpush2.bf16.msra.mxu0 %v3311
    %4125 = vmatprep.subr.bf16.mxu0 %v3304
    %4126 = vmatpush2.bf16.msra.mxu0 %v3303
    %4127 = vmatprep.subr.bf16.mxu0 %v3296
    %4128 = vmatpush2.bf16.msra.mxu0 %v3295
    %4129 = vmatprep.subr.bf16.mxu0 %v3288
    %4130 = vmatpush2.bf16.msra.mxu0 %v3287
    %4131 = vmatprep.subr.bf16.mxu0 %v3280
    %4132 = vmatpush2.bf16.msra.mxu0 %v3279
    %4133 = vmatprep.subr.bf16.mxu0 %v3272
    %4134 = vmatpush2.bf16.msra.mxu0 %v3271
    %4135 = vmatprep.mubr.bf16.mxu0 %v1822
    %4136 = vmatmul.mubr.bf16.gmra.mxu0 %v1821
    %v4137 = vpop.f32.mrf.mxu0
    %v4138 = vadd.f32 %v1718, %v4137
    %v4139 = vpop.f32.mrf.mxu0
    %v4140 = vadd.f32 %v1722, %v4139
    %v4141 = vpop.f32.mrf.mxu0
    %v4142 = vadd.f32 %v1718, %v4141
    %v4143 = vpop.f32.mrf.mxu0
    %v4144 = vadd.f32 %v1722, %v4143
    %4145 = vmatprep.mubr.bf16.mxu0 %v1829
    %4146 = vmatmul.mubr.bf16.gmra.mxu0 %v1828
    %v4147 = vpop.f32.mrf.mxu0
    %v4148 = vadd.f32 %v1718, %v4147
    %v4149 = vpop.f32.mrf.mxu0
    %v4150 = vadd.f32 %v1722, %v4149
    %v4151 = vpop.f32.mrf.mxu0
    %v4152 = vadd.f32 %v1718, %v4151
    %v4153 = vpop.f32.mrf.mxu0
    %v4154 = vadd.f32 %v1722, %v4153
    %4155 = vmatprep.mubr.bf16.mxu0 %v1836
    %4156 = vmatmul.mubr.bf16.gmra.mxu0 %v1835
    %v4157 = vpop.f32.mrf.mxu0
    %v4158 = vadd.f32 %v1718, %v4157
    %v4159 = vpop.f32.mrf.mxu0
    %v4160 = vadd.f32 %v1722, %v4159
    %v4161 = vpop.f32.mrf.mxu0
    %v4162 = vadd.f32 %v1718, %v4161
    %v4163 = vpop.f32.mrf.mxu0
    %v4164 = vadd.f32 %v1722, %v4163
    %4165 = vdwg.mxu0
    %4166 = vmatprep.subr.bf16.mxu0 %v3392
    %4167 = vmatpush1.bf16.msra.mxu0 %v3391
    %4168 = vmatprep.subr.bf16.mxu0 %v3384
    %4169 = vmatpush1.bf16.msra.mxu0 %v3383
    %4170 = vmatprep.subr.bf16.mxu0 %v3376
    %4171 = vmatpush1.bf16.msra.mxu0 %v3375
    %4172 = vmatprep.subr.bf16.mxu0 %v3368
    %4173 = vmatpush1.bf16.msra.mxu0 %v3367
    %4174 = vmatprep.subr.bf16.mxu0 %v3360
    %4175 = vmatpush1.bf16.msra.mxu0 %v3359
    %4176 = vmatprep.subr.bf16.mxu0 %v3352
    %4177 = vmatpush1.bf16.msra.mxu0 %v3351
    %4178 = vmatprep.subr.bf16.mxu0 %v3344
    %4179 = vmatpush1.bf16.msra.mxu0 %v3343
    %4180 = vmatprep.subr.bf16.mxu0 %v3336
    %4181 = vmatpush1.bf16.msra.mxu0 %v3335
    %4182 = vmatprep.subr.bf16.mxu0 %v3456
    %4183 = vmatpush2.bf16.msra.mxu0 %v3455
    %4184 = vmatprep.subr.bf16.mxu0 %v3448
    %4185 = vmatpush2.bf16.msra.mxu0 %v3447
    %4186 = vmatprep.subr.bf16.mxu0 %v3440
    %4187 = vmatpush2.bf16.msra.mxu0 %v3439
    %4188 = vmatprep.subr.bf16.mxu0 %v3432
    %4189 = vmatpush2.bf16.msra.mxu0 %v3431
    %4190 = vmatprep.subr.bf16.mxu0 %v3424
    %4191 = vmatpush2.bf16.msra.mxu0 %v3423
    %4192 = vmatprep.subr.bf16.mxu0 %v3416
    %4193 = vmatpush2.bf16.msra.mxu0 %v3415
    %4194 = vmatprep.subr.bf16.mxu0 %v3408
    %4195 = vmatpush2.bf16.msra.mxu0 %v3407
    %4196 = vmatprep.subr.bf16.mxu0 %v3400
    %4197 = vmatpush2.bf16.msra.mxu0 %v3399
    %4198 = vmatprep.mubr.bf16.mxu0 %v1824
    %4199 = vmatmul.mubr.bf16.gmra.mxu0 %v1823
    %v4200 = vpop.f32.mrf.mxu0
    %v4201 = vadd.f32 %v4138, %v4200
    %v4202 = vpop.f32.mrf.mxu0
    %v4203 = vadd.f32 %v4140, %v4202
    %v4204 = vpop.f32.mrf.mxu0
    %v4205 = vadd.f32 %v4142, %v4204
    %v4206 = vpop.f32.mrf.mxu0
    %v4207 = vadd.f32 %v4144, %v4206
    %4208 = vmatprep.mubr.bf16.mxu0 %v1831
    %4209 = vmatmul.mubr.bf16.gmra.mxu0 %v1830
    %v4210 = vpop.f32.mrf.mxu0
    %v4211 = vadd.f32 %v4148, %v4210
    %v4212 = vpop.f32.mrf.mxu0
    %v4213 = vadd.f32 %v4150, %v4212
    %v4214 = vpop.f32.mrf.mxu0
    %v4215 = vadd.f32 %v4152, %v4214
    %v4216 = vpop.f32.mrf.mxu0
    %v4217 = vadd.f32 %v4154, %v4216
    %4218 = vmatprep.mubr.bf16.mxu0 %v1838
    %4219 = vmatmul.mubr.bf16.gmra.mxu0 %v1837
    %v4220 = vpop.f32.mrf.mxu0
    %v4221 = vadd.f32 %v4158, %v4220
    %v4222 = vpop.f32.mrf.mxu0
    %v4223 = vadd.f32 %v4160, %v4222
    %v4224 = vpop.f32.mrf.mxu0
    %v4225 = vadd.f32 %v4162, %v4224
    %v4226 = vpop.f32.mrf.mxu0
    %v4227 = vadd.f32 %v4164, %v4226
    %4228 = vdwg.mxu0
    %4229 = vmatprep.subr.bf16.mxu0 %v3520
    %4230 = vmatpush1.bf16.msra.mxu0 %v3519
    %4231 = vmatprep.subr.bf16.mxu0 %v3512
    %4232 = vmatpush1.bf16.msra.mxu0 %v3511
    %4233 = vmatprep.subr.bf16.mxu0 %v3504
    %4234 = vmatpush1.bf16.msra.mxu0 %v3503
    %4235 = vmatprep.subr.bf16.mxu0 %v3496
    %4236 = vmatpush1.bf16.msra.mxu0 %v3495
    %4237 = vmatprep.subr.bf16.mxu0 %v3488
    %4238 = vmatpush1.bf16.msra.mxu0 %v3487
    %4239 = vmatprep.subr.bf16.mxu0 %v3480
    %4240 = vmatpush1.bf16.msra.mxu0 %v3479
    %4241 = vmatprep.subr.bf16.mxu0 %v3472
    %4242 = vmatpush1.bf16.msra.mxu0 %v3471
    %4243 = vmatprep.subr.bf16.mxu0 %v3464
    %4244 = vmatpush1.bf16.msra.mxu0 %v3463
    %4245 = vmatprep.subr.bf16.mxu0 %v3584
    %4246 = vmatpush2.bf16.msra.mxu0 %v3583
    %4247 = vmatprep.subr.bf16.mxu0 %v3576
    %4248 = vmatpush2.bf16.msra.mxu0 %v3575
    %4249 = vmatprep.subr.bf16.mxu0 %v3568
    %4250 = vmatpush2.bf16.msra.mxu0 %v3567
    %4251 = vmatprep.subr.bf16.mxu0 %v3560
    %4252 = vmatpush2.bf16.msra.mxu0 %v3559
    %4253 = vmatprep.subr.bf16.mxu0 %v3552
    %4254 = vmatpush2.bf16.msra.mxu0 %v3551
    %4255 = vmatprep.subr.bf16.mxu0 %v3544
    %4256 = vmatpush2.bf16.msra.mxu0 %v3543
    %4257 = vmatprep.subr.bf16.mxu0 %v3536
    %4258 = vmatpush2.bf16.msra.mxu0 %v3535
    %4259 = vmatprep.subr.bf16.mxu0 %v3528
    %4260 = vmatpush2.bf16.msra.mxu0 %v3527
    %4261 = vmatprep.mubr.bf16.mxu0 %v1826
    %4262 = vmatmul.mubr.bf16.gmra.mxu0 %v1825
    %v4263 = vpop.f32.mrf.mxu0
    %v4264 = vadd.f32 %v4201, %v4263
    %v4265 = vpop.f32.mrf.mxu0
    %v4266 = vadd.f32 %v4203, %v4265
    %v4267 = vpop.f32.mrf.mxu0
    %v4268 = vadd.f32 %v4205, %v4267
    %v4269 = vpop.f32.mrf.mxu0
    %v4270 = vadd.f32 %v4207, %v4269
    %4271 = vmatprep.mubr.bf16.mxu0 %v1833
    %4272 = vmatmul.mubr.bf16.gmra.mxu0 %v1832
    %v4273 = vpop.f32.mrf.mxu0
    %v4274 = vadd.f32 %v4211, %v4273
    %v4275 = vpop.f32.mrf.mxu0
    %v4276 = vadd.f32 %v4213, %v4275
    %v4277 = vpop.f32.mrf.mxu0
    %v4278 = vadd.f32 %v4215, %v4277
    %v4279 = vpop.f32.mrf.mxu0
    %v4280 = vadd.f32 %v4217, %v4279
    %4281 = vmatprep.mubr.bf16.mxu0 %v1840
    %4282 = vmatmul.mubr.bf16.gmra.mxu0 %v1839
    %v4283 = vpop.f32.mrf.mxu0
    %v4284 = vadd.f32 %v4221, %v4283
    %v4285 = vpop.f32.mrf.mxu0
    %v4286 = vadd.f32 %v4223, %v4285
    %v4287 = vpop.f32.mrf.mxu0
    %v4288 = vadd.f32 %v4225, %v4287
    %v4289 = vpop.f32.mrf.mxu0
    %v4290 = vadd.f32 %v4227, %v4289
    %4291 = vdwg.mxu0
    %4292 = vmatprep.subr.bf16.mxu0 %v3648
    %4293 = vmatpush1.bf16.msra.mxu0 %v3647
    %4294 = vmatprep.subr.bf16.mxu0 %v3640
    %4295 = vmatpush1.bf16.msra.mxu0 %v3639
    %4296 = vmatprep.subr.bf16.mxu0 %v3632
    %4297 = vmatpush1.bf16.msra.mxu0 %v3631
    %4298 = vmatprep.subr.bf16.mxu0 %v3624
    %4299 = vmatpush1.bf16.msra.mxu0 %v3623
    %4300 = vmatprep.subr.bf16.mxu0 %v3616
    %4301 = vmatpush1.bf16.msra.mxu0 %v3615
    %4302 = vmatprep.subr.bf16.mxu0 %v3608
    %4303 = vmatpush1.bf16.msra.mxu0 %v3607
    %4304 = vmatprep.subr.bf16.mxu0 %v3600
    %4305 = vmatpush1.bf16.msra.mxu0 %v3599
    %4306 = vmatprep.subr.bf16.mxu0 %v3592
    %4307 = vmatpush1.bf16.msra.mxu0 %v3591
    %4308 = vmatprep.subr.bf16.mxu0 0
    %4309 = vmatpush2.bf16.msra.mxu0 0
    %4310 = vmatprep.subr.bf16.mxu0 0
    %4311 = vmatpush2.bf16.msra.mxu0 0
    %4312 = vmatprep.subr.bf16.mxu0 0
    %4313 = vmatpush2.bf16.msra.mxu0 0
    %4314 = vmatprep.subr.bf16.mxu0 0
    %4315 = vmatpush2.bf16.msra.mxu0 0
    %4316 = vmatprep.subr.bf16.mxu0 0
    %4317 = vmatpush2.bf16.msra.mxu0 0
    %4318 = vmatprep.subr.bf16.mxu0 0
    %4319 = vmatpush2.bf16.msra.mxu0 0
    %4320 = vmatprep.subr.bf16.mxu0 0
    %4321 = vmatpush2.bf16.msra.mxu0 0
    %4322 = vmatprep.subr.bf16.mxu0 0
    %4323 = vmatpush2.bf16.msra.mxu0 0
    %4324 = vmatprep.mubr.bf16.mxu0 0
    %4325 = vmatmul.mubr.bf16.gmra.mxu0 %v1827
    %v4326 = vpop.f32.mrf.mxu0
    %v4327 = vadd.f32 %v4264, %v4326
    %v4328 = vpop.f32.mrf.mxu0
    %v4329 = vadd.f32 %v4266, %v4328
    %v4330 = vpop.f32.mrf.mxu0
    %v4331 = vadd.f32 %v4268, %v4330
    %v4332 = vpop.f32.mrf.mxu0
    %v4333 = vadd.f32 %v4270, %v4332
    %4334 = vmatprep.mubr.bf16.mxu0 0
    %4335 = vmatmul.mubr.bf16.gmra.mxu0 %v1834
    %v4336 = vpop.f32.mrf.mxu0
    %v4337 = vadd.f32 %v4274, %v4336
    %v4338 = vpop.f32.mrf.mxu0
    %v4339 = vadd.f32 %v4276, %v4338
    %v4340 = vpop.f32.mrf.mxu0
    %v4341 = vadd.f32 %v4278, %v4340
    %v4342 = vpop.f32.mrf.mxu0
    %v4343 = vadd.f32 %v4280, %v4342
    %4344 = vmatprep.mubr.bf16.mxu0 0
    %4345 = vmatmul.mubr.bf16.gmra.mxu0 %v1841
    %v4346 = vpop.f32.mrf.mxu0
    %v4347 = vadd.f32 %v4284, %v4346
    %v4348 = vpop.f32.mrf.mxu0
    %v4349 = vadd.f32 %v4286, %v4348
    %v4350 = vpop.f32.mrf.mxu0
    %v4351 = vadd.f32 %v4288, %v4350
    %v4352 = vpop.f32.mrf.mxu0
    %v4353 = vadd.f32 %v4290, %v4352
    %4354 = vdwg.mxu0
    %4355 = vmatprep.subr.bf16.mxu0 %v3266
    %4356 = vmatpush1.bf16.msra.mxu0 %v3265
    %4357 = vmatprep.subr.bf16.mxu0 %v3258
    %4358 = vmatpush1.bf16.msra.mxu0 %v3257
    %4359 = vmatprep.subr.bf16.mxu0 %v3250
    %4360 = vmatpush1.bf16.msra.mxu0 %v3249
    %4361 = vmatprep.subr.bf16.mxu0 %v3242
    %4362 = vmatpush1.bf16.msra.mxu0 %v3241
    %4363 = vmatprep.subr.bf16.mxu0 %v3234
    %4364 = vmatpush1.bf16.msra.mxu0 %v3233
    %4365 = vmatprep.subr.bf16.mxu0 %v3226
    %4366 = vmatpush1.bf16.msra.mxu0 %v3225
    %4367 = vmatprep.subr.bf16.mxu0 %v3218
    %4368 = vmatpush1.bf16.msra.mxu0 %v3217
    %4369 = vmatprep.subr.bf16.mxu0 %v3210
    %4370 = vmatpush1.bf16.msra.mxu0 %v3209
    %4371 = vmatprep.subr.bf16.mxu0 %v3330
    %4372 = vmatpush2.bf16.msra.mxu0 %v3329
    %4373 = vmatprep.subr.bf16.mxu0 %v3322
    %4374 = vmatpush2.bf16.msra.mxu0 %v3321
    %4375 = vmatprep.subr.bf16.mxu0 %v3314
    %4376 = vmatpush2.bf16.msra.mxu0 %v3313
    %4377 = vmatprep.subr.bf16.mxu0 %v3306
    %4378 = vmatpush2.bf16.msra.mxu0 %v3305
    %4379 = vmatprep.subr.bf16.mxu0 %v3298
    %4380 = vmatpush2.bf16.msra.mxu0 %v3297
    %4381 = vmatprep.subr.bf16.mxu0 %v3290
    %4382 = vmatpush2.bf16.msra.mxu0 %v3289
    %4383 = vmatprep.subr.bf16.mxu0 %v3282
    %4384 = vmatpush2.bf16.msra.mxu0 %v3281
    %4385 = vmatprep.subr.bf16.mxu0 %v3274
    %4386 = vmatpush2.bf16.msra.mxu0 %v3273
    %4387 = vmatprep.mubr.bf16.mxu0 %v1822
    %4388 = vmatmul.mubr.bf16.gmra.mxu0 %v1821
    %v4389 = vpop.f32.mrf.mxu0
    %v4390 = vadd.f32 %v1726, %v4389
    %v4391 = vpop.f32.mrf.mxu0
    %v4392 = vadd.f32 %v1730, %v4391
    %v4393 = vpop.f32.mrf.mxu0
    %v4394 = vadd.f32 %v1726, %v4393
    %v4395 = vpop.f32.mrf.mxu0
    %v4396 = vadd.f32 %v1730, %v4395
    %4397 = vmatprep.mubr.bf16.mxu0 %v1829
    %4398 = vmatmul.mubr.bf16.gmra.mxu0 %v1828
    %v4399 = vpop.f32.mrf.mxu0
    %v4400 = vadd.f32 %v1726, %v4399
    %v4401 = vpop.f32.mrf.mxu0
    %v4402 = vadd.f32 %v1730, %v4401
    %v4403 = vpop.f32.mrf.mxu0
    %v4404 = vadd.f32 %v1726, %v4403
    %v4405 = vpop.f32.mrf.mxu0
    %v4406 = vadd.f32 %v1730, %v4405
    %4407 = vmatprep.mubr.bf16.mxu0 %v1836
    %4408 = vmatmul.mubr.bf16.gmra.mxu0 %v1835
    %v4409 = vpop.f32.mrf.mxu0
    %v4410 = vadd.f32 %v1726, %v4409
    %v4411 = vpop.f32.mrf.mxu0
    %v4412 = vadd.f32 %v1730, %v4411
    %v4413 = vpop.f32.mrf.mxu0
    %v4414 = vadd.f32 %v1726, %v4413
    %v4415 = vpop.f32.mrf.mxu0
    %v4416 = vadd.f32 %v1730, %v4415
    %4417 = vdwg.mxu0
    %4418 = vmatprep.subr.bf16.mxu0 %v3394
    %4419 = vmatpush1.bf16.msra.mxu0 %v3393
    %4420 = vmatprep.subr.bf16.mxu0 %v3386
    %4421 = vmatpush1.bf16.msra.mxu0 %v3385
    %4422 = vmatprep.subr.bf16.mxu0 %v3378
    %4423 = vmatpush1.bf16.msra.mxu0 %v3377
    %4424 = vmatprep.subr.bf16.mxu0 %v3370
    %4425 = vmatpush1.bf16.msra.mxu0 %v3369
    %4426 = vmatprep.subr.bf16.mxu0 %v3362
    %4427 = vmatpush1.bf16.msra.mxu0 %v3361
    %4428 = vmatprep.subr.bf16.mxu0 %v3354
    %4429 = vmatpush1.bf16.msra.mxu0 %v3353
    %4430 = vmatprep.subr.bf16.mxu0 %v3346
    %4431 = vmatpush1.bf16.msra.mxu0 %v3345
    %4432 = vmatprep.subr.bf16.mxu0 %v3338
    %4433 = vmatpush1.bf16.msra.mxu0 %v3337
    %4434 = vmatprep.subr.bf16.mxu0 %v3458
    %4435 = vmatpush2.bf16.msra.mxu0 %v3457
    %4436 = vmatprep.subr.bf16.mxu0 %v3450
    %4437 = vmatpush2.bf16.msra.mxu0 %v3449
    %4438 = vmatprep.subr.bf16.mxu0 %v3442
    %4439 = vmatpush2.bf16.msra.mxu0 %v3441
    %4440 = vmatprep.subr.bf16.mxu0 %v3434
    %4441 = vmatpush2.bf16.msra.mxu0 %v3433
    %4442 = vmatprep.subr.bf16.mxu0 %v3426
    %4443 = vmatpush2.bf16.msra.mxu0 %v3425
    %4444 = vmatprep.subr.bf16.mxu0 %v3418
    %4445 = vmatpush2.bf16.msra.mxu0 %v3417
    %4446 = vmatprep.subr.bf16.mxu0 %v3410
    %4447 = vmatpush2.bf16.msra.mxu0 %v3409
    %4448 = vmatprep.subr.bf16.mxu0 %v3402
    %4449 = vmatpush2.bf16.msra.mxu0 %v3401
    %4450 = vmatprep.mubr.bf16.mxu0 %v1824
    %4451 = vmatmul.mubr.bf16.gmra.mxu0 %v1823
    %v4452 = vpop.f32.mrf.mxu0
    %v4453 = vadd.f32 %v4390, %v4452
    %v4454 = vpop.f32.mrf.mxu0
    %v4455 = vadd.f32 %v4392, %v4454
    %v4456 = vpop.f32.mrf.mxu0
    %v4457 = vadd.f32 %v4394, %v4456
    %v4458 = vpop.f32.mrf.mxu0
    %v4459 = vadd.f32 %v4396, %v4458
    %4460 = vmatprep.mubr.bf16.mxu0 %v1831
    %4461 = vmatmul.mubr.bf16.gmra.mxu0 %v1830
    %v4462 = vpop.f32.mrf.mxu0
    %v4463 = vadd.f32 %v4400, %v4462
    %v4464 = vpop.f32.mrf.mxu0
    %v4465 = vadd.f32 %v4402, %v4464
    %v4466 = vpop.f32.mrf.mxu0
    %v4467 = vadd.f32 %v4404, %v4466
    %v4468 = vpop.f32.mrf.mxu0
    %v4469 = vadd.f32 %v4406, %v4468
    %4470 = vmatprep.mubr.bf16.mxu0 %v1838
    %4471 = vmatmul.mubr.bf16.gmra.mxu0 %v1837
    %v4472 = vpop.f32.mrf.mxu0
    %v4473 = vadd.f32 %v4410, %v4472
    %v4474 = vpop.f32.mrf.mxu0
    %v4475 = vadd.f32 %v4412, %v4474
    %v4476 = vpop.f32.mrf.mxu0
    %v4477 = vadd.f32 %v4414, %v4476
    %v4478 = vpop.f32.mrf.mxu0
    %v4479 = vadd.f32 %v4416, %v4478
    %4480 = vdwg.mxu0
    %4481 = vmatprep.subr.bf16.mxu0 %v3522
    %4482 = vmatpush1.bf16.msra.mxu0 %v3521
    %4483 = vmatprep.subr.bf16.mxu0 %v3514
    %4484 = vmatpush1.bf16.msra.mxu0 %v3513
    %4485 = vmatprep.subr.bf16.mxu0 %v3506
    %4486 = vmatpush1.bf16.msra.mxu0 %v3505
    %4487 = vmatprep.subr.bf16.mxu0 %v3498
    %4488 = vmatpush1.bf16.msra.mxu0 %v3497
    %4489 = vmatprep.subr.bf16.mxu0 %v3490
    %4490 = vmatpush1.bf16.msra.mxu0 %v3489
    %4491 = vmatprep.subr.bf16.mxu0 %v3482
    %4492 = vmatpush1.bf16.msra.mxu0 %v3481
    %4493 = vmatprep.subr.bf16.mxu0 %v3474
    %4494 = vmatpush1.bf16.msra.mxu0 %v3473
    %4495 = vmatprep.subr.bf16.mxu0 %v3466
    %4496 = vmatpush1.bf16.msra.mxu0 %v3465
    %4497 = vmatprep.subr.bf16.mxu0 %v3586
    %4498 = vmatpush2.bf16.msra.mxu0 %v3585
    %4499 = vmatprep.subr.bf16.mxu0 %v3578
    %4500 = vmatpush2.bf16.msra.mxu0 %v3577
    %4501 = vmatprep.subr.bf16.mxu0 %v3570
    %4502 = vmatpush2.bf16.msra.mxu0 %v3569
    %4503 = vmatprep.subr.bf16.mxu0 %v3562
    %4504 = vmatpush2.bf16.msra.mxu0 %v3561
    %4505 = vmatprep.subr.bf16.mxu0 %v3554
    %4506 = vmatpush2.bf16.msra.mxu0 %v3553
    %4507 = vmatprep.subr.bf16.mxu0 %v3546
    %4508 = vmatpush2.bf16.msra.mxu0 %v3545
    %4509 = vmatprep.subr.bf16.mxu0 %v3538
    %4510 = vmatpush2.bf16.msra.mxu0 %v3537
    %4511 = vmatprep.subr.bf16.mxu0 %v3530
    %4512 = vmatpush2.bf16.msra.mxu0 %v3529
    %4513 = vmatprep.mubr.bf16.mxu0 %v1826
    %4514 = vmatmul.mubr.bf16.gmra.mxu0 %v1825
    %v4515 = vpop.f32.mrf.mxu0
    %v4516 = vadd.f32 %v4453, %v4515
    %v4517 = vpop.f32.mrf.mxu0
    %v4518 = vadd.f32 %v4455, %v4517
    %v4519 = vpop.f32.mrf.mxu0
    %v4520 = vadd.f32 %v4457, %v4519
    %v4521 = vpop.f32.mrf.mxu0
    %v4522 = vadd.f32 %v4459, %v4521
    %4523 = vmatprep.mubr.bf16.mxu0 %v1833
    %4524 = vmatmul.mubr.bf16.gmra.mxu0 %v1832
    %v4525 = vpop.f32.mrf.mxu0
    %v4526 = vadd.f32 %v4463, %v4525
    %v4527 = vpop.f32.mrf.mxu0
    %v4528 = vadd.f32 %v4465, %v4527
    %v4529 = vpop.f32.mrf.mxu0
    %v4530 = vadd.f32 %v4467, %v4529
    %v4531 = vpop.f32.mrf.mxu0
    %v4532 = vadd.f32 %v4469, %v4531
    %4533 = vmatprep.mubr.bf16.mxu0 %v1840
    %4534 = vmatmul.mubr.bf16.gmra.mxu0 %v1839
    %v4535 = vpop.f32.mrf.mxu0
    %v4536 = vadd.f32 %v4473, %v4535
    %v4537 = vpop.f32.mrf.mxu0
    %v4538 = vadd.f32 %v4475, %v4537
    %v4539 = vpop.f32.mrf.mxu0
    %v4540 = vadd.f32 %v4477, %v4539
    %v4541 = vpop.f32.mrf.mxu0
    %v4542 = vadd.f32 %v4479, %v4541
    %4543 = vdwg.mxu0
    %4544 = vmatprep.subr.bf16.mxu0 %v3650
    %4545 = vmatpush1.bf16.msra.mxu0 %v3649
    %4546 = vmatprep.subr.bf16.mxu0 %v3642
    %4547 = vmatpush1.bf16.msra.mxu0 %v3641
    %4548 = vmatprep.subr.bf16.mxu0 %v3634
    %4549 = vmatpush1.bf16.msra.mxu0 %v3633
    %4550 = vmatprep.subr.bf16.mxu0 %v3626
    %4551 = vmatpush1.bf16.msra.mxu0 %v3625
    %4552 = vmatprep.subr.bf16.mxu0 %v3618
    %4553 = vmatpush1.bf16.msra.mxu0 %v3617
    %4554 = vmatprep.subr.bf16.mxu0 %v3610
    %4555 = vmatpush1.bf16.msra.mxu0 %v3609
    %4556 = vmatprep.subr.bf16.mxu0 %v3602
    %4557 = vmatpush1.bf16.msra.mxu0 %v3601
    %4558 = vmatprep.subr.bf16.mxu0 %v3594
    %4559 = vmatpush1.bf16.msra.mxu0 %v3593
    %4560 = vmatprep.subr.bf16.mxu0 0
    %4561 = vmatpush2.bf16.msra.mxu0 0
    %4562 = vmatprep.subr.bf16.mxu0 0
    %4563 = vmatpush2.bf16.msra.mxu0 0
    %4564 = vmatprep.subr.bf16.mxu0 0
    %4565 = vmatpush2.bf16.msra.mxu0 0
    %4566 = vmatprep.subr.bf16.mxu0 0
    %4567 = vmatpush2.bf16.msra.mxu0 0
    %4568 = vmatprep.subr.bf16.mxu0 0
    %4569 = vmatpush2.bf16.msra.mxu0 0
    %4570 = vmatprep.subr.bf16.mxu0 0
    %4571 = vmatpush2.bf16.msra.mxu0 0
    %4572 = vmatprep.subr.bf16.mxu0 0
    %4573 = vmatpush2.bf16.msra.mxu0 0
    %4574 = vmatprep.subr.bf16.mxu0 0
    %4575 = vmatpush2.bf16.msra.mxu0 0
    %4576 = vmatprep.mubr.bf16.mxu0 0
    %4577 = vmatmul.mubr.bf16.gmra.mxu0 %v1827
    %v4578 = vpop.f32.mrf.mxu0
    %v4579 = vadd.f32 %v4516, %v4578
    %v4580 = vpop.f32.mrf.mxu0
    %v4581 = vadd.f32 %v4518, %v4580
    %v4582 = vpop.f32.mrf.mxu0
    %v4583 = vadd.f32 %v4520, %v4582
    %v4584 = vpop.f32.mrf.mxu0
    %v4585 = vadd.f32 %v4522, %v4584
    %4586 = vmatprep.mubr.bf16.mxu0 0
    %4587 = vmatmul.mubr.bf16.gmra.mxu0 %v1834
    %v4588 = vpop.f32.mrf.mxu0
    %v4589 = vadd.f32 %v4526, %v4588
    %v4590 = vpop.f32.mrf.mxu0
    %v4591 = vadd.f32 %v4528, %v4590
    %v4592 = vpop.f32.mrf.mxu0
    %v4593 = vadd.f32 %v4530, %v4592
    %v4594 = vpop.f32.mrf.mxu0
    %v4595 = vadd.f32 %v4532, %v4594
    %4596 = vmatprep.mubr.bf16.mxu0 0
    %4597 = vmatmul.mubr.bf16.gmra.mxu0 %v1841
    %v4598 = vpop.f32.mrf.mxu0
    %v4599 = vadd.f32 %v4536, %v4598
    %v4600 = vpop.f32.mrf.mxu0
    %v4601 = vadd.f32 %v4538, %v4600
    %v4602 = vpop.f32.mrf.mxu0
    %v4603 = vadd.f32 %v4540, %v4602
    %v4604 = vpop.f32.mrf.mxu0
    %v4605 = vadd.f32 %v4542, %v4604
    %4606 = vdwg.mxu0
    %4607 = vmatprep.subr.bf16.mxu0 %v3268
    %4608 = vmatpush1.bf16.msra.mxu0 %v3267
    %4609 = vmatprep.subr.bf16.mxu0 %v3260
    %4610 = vmatpush1.bf16.msra.mxu0 %v3259
    %4611 = vmatprep.subr.bf16.mxu0 %v3252
    %4612 = vmatpush1.bf16.msra.mxu0 %v3251
    %4613 = vmatprep.subr.bf16.mxu0 %v3244
    %4614 = vmatpush1.bf16.msra.mxu0 %v3243
    %4615 = vmatprep.subr.bf16.mxu0 %v3236
    %4616 = vmatpush1.bf16.msra.mxu0 %v3235
    %4617 = vmatprep.subr.bf16.mxu0 %v3228
    %4618 = vmatpush1.bf16.msra.mxu0 %v3227
    %4619 = vmatprep.subr.bf16.mxu0 %v3220
    %4620 = vmatpush1.bf16.msra.mxu0 %v3219
    %4621 = vmatprep.subr.bf16.mxu0 %v3212
    %4622 = vmatpush1.bf16.msra.mxu0 %v3211
    %4623 = vmatprep.subr.bf16.mxu0 %v3332
    %4624 = vmatpush2.bf16.msra.mxu0 %v3331
    %4625 = vmatprep.subr.bf16.mxu0 %v3324
    %4626 = vmatpush2.bf16.msra.mxu0 %v3323
    %4627 = vmatprep.subr.bf16.mxu0 %v3316
    %4628 = vmatpush2.bf16.msra.mxu0 %v3315
    %4629 = vmatprep.subr.bf16.mxu0 %v3308
    %4630 = vmatpush2.bf16.msra.mxu0 %v3307
    %4631 = vmatprep.subr.bf16.mxu0 %v3300
    %4632 = vmatpush2.bf16.msra.mxu0 %v3299
    %4633 = vmatprep.subr.bf16.mxu0 %v3292
    %4634 = vmatpush2.bf16.msra.mxu0 %v3291
    %4635 = vmatprep.subr.bf16.mxu0 %v3284
    %4636 = vmatpush2.bf16.msra.mxu0 %v3283
    %4637 = vmatprep.subr.bf16.mxu0 %v3276
    %4638 = vmatpush2.bf16.msra.mxu0 %v3275
    %4639 = vmatprep.mubr.bf16.mxu0 %v1822
    %4640 = vmatmul.mubr.bf16.gmra.mxu0 %v1821
    %v4641 = vpop.f32.mrf.mxu0
    %v4642 = vadd.f32 %v1734, %v4641
    %v4643 = vpop.f32.mrf.mxu0
    %v4644 = vadd.f32 %v1738, %v4643
    %v4645 = vpop.f32.mrf.mxu0
    %v4646 = vadd.f32 %v1734, %v4645
    %v4647 = vpop.f32.mrf.mxu0
    %v4648 = vadd.f32 %v1738, %v4647
    %4649 = vmatprep.mubr.bf16.mxu0 %v1829
    %4650 = vmatmul.mubr.bf16.gmra.mxu0 %v1828
    %v4651 = vpop.f32.mrf.mxu0
    %v4652 = vadd.f32 %v1734, %v4651
    %v4653 = vpop.f32.mrf.mxu0
    %v4654 = vadd.f32 %v1738, %v4653
    %v4655 = vpop.f32.mrf.mxu0
    %v4656 = vadd.f32 %v1734, %v4655
    %v4657 = vpop.f32.mrf.mxu0
    %v4658 = vadd.f32 %v1738, %v4657
    %4659 = vmatprep.mubr.bf16.mxu0 %v1836
    %4660 = vmatmul.mubr.bf16.gmra.mxu0 %v1835
    %v4661 = vpop.f32.mrf.mxu0
    %v4662 = vadd.f32 %v1734, %v4661
    %v4663 = vpop.f32.mrf.mxu0
    %v4664 = vadd.f32 %v1738, %v4663
    %v4665 = vpop.f32.mrf.mxu0
    %v4666 = vadd.f32 %v1734, %v4665
    %v4667 = vpop.f32.mrf.mxu0
    %v4668 = vadd.f32 %v1738, %v4667
    %4669 = vdwg.mxu0
    %4670 = vmatprep.subr.bf16.mxu0 %v3396
    %4671 = vmatpush1.bf16.msra.mxu0 %v3395
    %4672 = vmatprep.subr.bf16.mxu0 %v3388
    %4673 = vmatpush1.bf16.msra.mxu0 %v3387
    %4674 = vmatprep.subr.bf16.mxu0 %v3380
    %4675 = vmatpush1.bf16.msra.mxu0 %v3379
    %4676 = vmatprep.subr.bf16.mxu0 %v3372
    %4677 = vmatpush1.bf16.msra.mxu0 %v3371
    %4678 = vmatprep.subr.bf16.mxu0 %v3364
    %4679 = vmatpush1.bf16.msra.mxu0 %v3363
    %4680 = vmatprep.subr.bf16.mxu0 %v3356
    %4681 = vmatpush1.bf16.msra.mxu0 %v3355
    %4682 = vmatprep.subr.bf16.mxu0 %v3348
    %4683 = vmatpush1.bf16.msra.mxu0 %v3347
    %4684 = vmatprep.subr.bf16.mxu0 %v3340
    %4685 = vmatpush1.bf16.msra.mxu0 %v3339
    %4686 = vmatprep.subr.bf16.mxu0 %v3460
    %4687 = vmatpush2.bf16.msra.mxu0 %v3459
    %4688 = vmatprep.subr.bf16.mxu0 %v3452
    %4689 = vmatpush2.bf16.msra.mxu0 %v3451
    %4690 = vmatprep.subr.bf16.mxu0 %v3444
    %4691 = vmatpush2.bf16.msra.mxu0 %v3443
    %4692 = vmatprep.subr.bf16.mxu0 %v3436
    %4693 = vmatpush2.bf16.msra.mxu0 %v3435
    %4694 = vmatprep.subr.bf16.mxu0 %v3428
    %4695 = vmatpush2.bf16.msra.mxu0 %v3427
    %4696 = vmatprep.subr.bf16.mxu0 %v3420
    %4697 = vmatpush2.bf16.msra.mxu0 %v3419
    %4698 = vmatprep.subr.bf16.mxu0 %v3412
    %4699 = vmatpush2.bf16.msra.mxu0 %v3411
    %4700 = vmatprep.subr.bf16.mxu0 %v3404
    %4701 = vmatpush2.bf16.msra.mxu0 %v3403
    %4702 = vmatprep.mubr.bf16.mxu0 %v1824
    %4703 = vmatmul.mubr.bf16.gmra.mxu0 %v1823
    %v4704 = vpop.f32.mrf.mxu0
    %v4705 = vadd.f32 %v4642, %v4704
    %v4706 = vpop.f32.mrf.mxu0
    %v4707 = vadd.f32 %v4644, %v4706
    %v4708 = vpop.f32.mrf.mxu0
    %v4709 = vadd.f32 %v4646, %v4708
    %v4710 = vpop.f32.mrf.mxu0
    %v4711 = vadd.f32 %v4648, %v4710
    %4712 = vmatprep.mubr.bf16.mxu0 %v1831
    %4713 = vmatmul.mubr.bf16.gmra.mxu0 %v1830
    %v4714 = vpop.f32.mrf.mxu0
    %v4715 = vadd.f32 %v4652, %v4714
    %v4716 = vpop.f32.mrf.mxu0
    %v4717 = vadd.f32 %v4654, %v4716
    %v4718 = vpop.f32.mrf.mxu0
    %v4719 = vadd.f32 %v4656, %v4718
    %v4720 = vpop.f32.mrf.mxu0
    %v4721 = vadd.f32 %v4658, %v4720
    %4722 = vmatprep.mubr.bf16.mxu0 %v1838
    %4723 = vmatmul.mubr.bf16.gmra.mxu0 %v1837
    %v4724 = vpop.f32.mrf.mxu0
    %v4725 = vadd.f32 %v4662, %v4724
    %v4726 = vpop.f32.mrf.mxu0
    %v4727 = vadd.f32 %v4664, %v4726
    %v4728 = vpop.f32.mrf.mxu0
    %v4729 = vadd.f32 %v4666, %v4728
    %v4730 = vpop.f32.mrf.mxu0
    %v4731 = vadd.f32 %v4668, %v4730
    %4732 = vdwg.mxu0
    %4733 = vmatprep.subr.bf16.mxu0 %v3524
    %4734 = vmatpush1.bf16.msra.mxu0 %v3523
    %4735 = vmatprep.subr.bf16.mxu0 %v3516
    %4736 = vmatpush1.bf16.msra.mxu0 %v3515
    %4737 = vmatprep.subr.bf16.mxu0 %v3508
    %4738 = vmatpush1.bf16.msra.mxu0 %v3507
    %4739 = vmatprep.subr.bf16.mxu0 %v3500
    %4740 = vmatpush1.bf16.msra.mxu0 %v3499
    %4741 = vmatprep.subr.bf16.mxu0 %v3492
    %4742 = vmatpush1.bf16.msra.mxu0 %v3491
    %4743 = vmatprep.subr.bf16.mxu0 %v3484
    %4744 = vmatpush1.bf16.msra.mxu0 %v3483
    %4745 = vmatprep.subr.bf16.mxu0 %v3476
    %4746 = vmatpush1.bf16.msra.mxu0 %v3475
    %4747 = vmatprep.subr.bf16.mxu0 %v3468
    %4748 = vmatpush1.bf16.msra.mxu0 %v3467
    %4749 = vmatprep.subr.bf16.mxu0 %v3588
    %4750 = vmatpush2.bf16.msra.mxu0 %v3587
    %4751 = vmatprep.subr.bf16.mxu0 %v3580
    %4752 = vmatpush2.bf16.msra.mxu0 %v3579
    %4753 = vmatprep.subr.bf16.mxu0 %v3572
    %4754 = vmatpush2.bf16.msra.mxu0 %v3571
    %4755 = vmatprep.subr.bf16.mxu0 %v3564
    %4756 = vmatpush2.bf16.msra.mxu0 %v3563
    %4757 = vmatprep.subr.bf16.mxu0 %v3556
    %4758 = vmatpush2.bf16.msra.mxu0 %v3555
    %4759 = vmatprep.subr.bf16.mxu0 %v3548
    %4760 = vmatpush2.bf16.msra.mxu0 %v3547
    %4761 = vmatprep.subr.bf16.mxu0 %v3540
    %4762 = vmatpush2.bf16.msra.mxu0 %v3539
    %4763 = vmatprep.subr.bf16.mxu0 %v3532
    %4764 = vmatpush2.bf16.msra.mxu0 %v3531
    %4765 = vmatprep.mubr.bf16.mxu0 %v1826
    %4766 = vmatmul.mubr.bf16.gmra.mxu0 %v1825
    %v4767 = vpop.f32.mrf.mxu0
    %v4768 = vadd.f32 %v4705, %v4767
    %v4769 = vpop.f32.mrf.mxu0
    %v4770 = vadd.f32 %v4707, %v4769
    %v4771 = vpop.f32.mrf.mxu0
    %v4772 = vadd.f32 %v4709, %v4771
    %v4773 = vpop.f32.mrf.mxu0
    %v4774 = vadd.f32 %v4711, %v4773
    %4775 = vmatprep.mubr.bf16.mxu0 %v1833
    %4776 = vmatmul.mubr.bf16.gmra.mxu0 %v1832
    %v4777 = vpop.f32.mrf.mxu0
    %v4778 = vadd.f32 %v4715, %v4777
    %v4779 = vpop.f32.mrf.mxu0
    %v4780 = vadd.f32 %v4717, %v4779
    %v4781 = vpop.f32.mrf.mxu0
    %v4782 = vadd.f32 %v4719, %v4781
    %v4783 = vpop.f32.mrf.mxu0
    %v4784 = vadd.f32 %v4721, %v4783
    %4785 = vmatprep.mubr.bf16.mxu0 %v1840
    %4786 = vmatmul.mubr.bf16.gmra.mxu0 %v1839
    %v4787 = vpop.f32.mrf.mxu0
    %v4788 = vadd.f32 %v4725, %v4787
    %v4789 = vpop.f32.mrf.mxu0
    %v4790 = vadd.f32 %v4727, %v4789
    %v4791 = vpop.f32.mrf.mxu0
    %v4792 = vadd.f32 %v4729, %v4791
    %v4793 = vpop.f32.mrf.mxu0
    %v4794 = vadd.f32 %v4731, %v4793
    %4795 = vdwg.mxu0
    %4796 = vmatprep.subr.bf16.mxu0 %v3652
    %4797 = vmatpush1.bf16.msra.mxu0 %v3651
    %4798 = vmatprep.subr.bf16.mxu0 %v3644
    %4799 = vmatpush1.bf16.msra.mxu0 %v3643
    %4800 = vmatprep.subr.bf16.mxu0 %v3636
    %4801 = vmatpush1.bf16.msra.mxu0 %v3635
    %4802 = vmatprep.subr.bf16.mxu0 %v3628
    %4803 = vmatpush1.bf16.msra.mxu0 %v3627
    %4804 = vmatprep.subr.bf16.mxu0 %v3620
    %4805 = vmatpush1.bf16.msra.mxu0 %v3619
    %4806 = vmatprep.subr.bf16.mxu0 %v3612
    %4807 = vmatpush1.bf16.msra.mxu0 %v3611
    %4808 = vmatprep.subr.bf16.mxu0 %v3604
    %4809 = vmatpush1.bf16.msra.mxu0 %v3603
    %4810 = vmatprep.subr.bf16.mxu0 %v3596
    %4811 = vmatpush1.bf16.msra.mxu0 %v3595
    %4812 = vmatprep.subr.bf16.mxu0 0
    %4813 = vmatpush2.bf16.msra.mxu0 0
    %4814 = vmatprep.subr.bf16.mxu0 0
    %4815 = vmatpush2.bf16.msra.mxu0 0
    %4816 = vmatprep.subr.bf16.mxu0 0
    %4817 = vmatpush2.bf16.msra.mxu0 0
    %4818 = vmatprep.subr.bf16.mxu0 0
    %4819 = vmatpush2.bf16.msra.mxu0 0
    %4820 = vmatprep.subr.bf16.mxu0 0
    %4821 = vmatpush2.bf16.msra.mxu0 0
    %4822 = vmatprep.subr.bf16.mxu0 0
    %4823 = vmatpush2.bf16.msra.mxu0 0
    %4824 = vmatprep.subr.bf16.mxu0 0
    %4825 = vmatpush2.bf16.msra.mxu0 0
    %4826 = vmatprep.subr.bf16.mxu0 0
    %4827 = vmatpush2.bf16.msra.mxu0 0
    %4828 = vmatprep.mubr.bf16.mxu0 0
    %4829 = vmatmul.mubr.bf16.gmra.mxu0 %v1827
    %v4830 = vpop.f32.mrf.mxu0
    %v4831 = vadd.f32 %v4768, %v4830
    %v4832 = vpop.f32.mrf.mxu0
    %v4833 = vadd.f32 %v4770, %v4832
    %v4834 = vpop.f32.mrf.mxu0
    %v4835 = vadd.f32 %v4772, %v4834
    %v4836 = vpop.f32.mrf.mxu0
    %v4837 = vadd.f32 %v4774, %v4836
    %4838 = vmatprep.mubr.bf16.mxu0 0
    %4839 = vmatmul.mubr.bf16.gmra.mxu0 %v1834
    %v4840 = vpop.f32.mrf.mxu0
    %v4841 = vadd.f32 %v4778, %v4840
    %v4842 = vpop.f32.mrf.mxu0
    %v4843 = vadd.f32 %v4780, %v4842
    %v4844 = vpop.f32.mrf.mxu0
    %v4845 = vadd.f32 %v4782, %v4844
    %v4846 = vpop.f32.mrf.mxu0
    %v4847 = vadd.f32 %v4784, %v4846
    %4848 = vmatprep.mubr.bf16.mxu0 0
    %4849 = vmatmul.mubr.bf16.gmra.mxu0 %v1841
    %v4850 = vpop.f32.mrf.mxu0
    %v4851 = vadd.f32 %v4788, %v4850
    %v4852 = vpop.f32.mrf.mxu0
    %v4853 = vadd.f32 %v4790, %v4852
    %v4854 = vpop.f32.mrf.mxu0
    %v4855 = vadd.f32 %v4792, %v4854
    %v4856 = vpop.f32.mrf.mxu0
    %v4857 = vadd.f32 %v4794, %v4856
    %4858 = vdwg.mxu0
    %4859 = vmatprep.subr.bf16.mxu0 %v3270
    %4860 = vmatpush1.bf16.msra.mxu0 %v3269
    %4861 = vmatprep.subr.bf16.mxu0 %v3262
    %4862 = vmatpush1.bf16.msra.mxu0 %v3261
    %4863 = vmatprep.subr.bf16.mxu0 %v3254
    %4864 = vmatpush1.bf16.msra.mxu0 %v3253
    %4865 = vmatprep.subr.bf16.mxu0 %v3246
    %4866 = vmatpush1.bf16.msra.mxu0 %v3245
    %4867 = vmatprep.subr.bf16.mxu0 %v3238
    %4868 = vmatpush1.bf16.msra.mxu0 %v3237
    %4869 = vmatprep.subr.bf16.mxu0 %v3230
    %4870 = vmatpush1.bf16.msra.mxu0 %v3229
    %4871 = vmatprep.subr.bf16.mxu0 %v3222
    %4872 = vmatpush1.bf16.msra.mxu0 %v3221
    %4873 = vmatprep.subr.bf16.mxu0 %v3214
    %4874 = vmatpush1.bf16.msra.mxu0 %v3213
    %4875 = vmatprep.subr.bf16.mxu0 %v3334
    %4876 = vmatpush2.bf16.msra.mxu0 %v3333
    %4877 = vmatprep.subr.bf16.mxu0 %v3326
    %4878 = vmatpush2.bf16.msra.mxu0 %v3325
    %4879 = vmatprep.subr.bf16.mxu0 %v3318
    %4880 = vmatpush2.bf16.msra.mxu0 %v3317
    %4881 = vmatprep.subr.bf16.mxu0 %v3310
    %4882 = vmatpush2.bf16.msra.mxu0 %v3309
    %4883 = vmatprep.subr.bf16.mxu0 %v3302
    %4884 = vmatpush2.bf16.msra.mxu0 %v3301
    %4885 = vmatprep.subr.bf16.mxu0 %v3294
    %4886 = vmatpush2.bf16.msra.mxu0 %v3293
    %4887 = vmatprep.subr.bf16.mxu0 %v3286
    %4888 = vmatpush2.bf16.msra.mxu0 %v3285
    %4889 = vmatprep.subr.bf16.mxu0 %v3278
    %4890 = vmatpush2.bf16.msra.mxu0 %v3277
    %4891 = vmatprep.mubr.bf16.mxu0 %v1822
    %4892 = vmatmul.mubr.bf16.gmra.mxu0 %v1821
    %v4893 = vpop.f32.mrf.mxu0
    %v4894 = vadd.f32 %v1742, %v4893
    %v4895 = vpop.f32.mrf.mxu0
    %v4896 = vadd.f32 %v1746, %v4895
    %v4897 = vpop.f32.mrf.mxu0
    %v4898 = vadd.f32 %v1742, %v4897
    %v4899 = vpop.f32.mrf.mxu0
    %v4900 = vadd.f32 %v1746, %v4899
    %4901 = vmatprep.mubr.bf16.mxu0 %v1829
    %4902 = vmatmul.mubr.bf16.gmra.mxu0 %v1828
    %v4903 = vpop.f32.mrf.mxu0
    %v4904 = vadd.f32 %v1742, %v4903
    %v4905 = vpop.f32.mrf.mxu0
    %v4906 = vadd.f32 %v1746, %v4905
    %v4907 = vpop.f32.mrf.mxu0
    %v4908 = vadd.f32 %v1742, %v4907
    %v4909 = vpop.f32.mrf.mxu0
    %v4910 = vadd.f32 %v1746, %v4909
    %4911 = vmatprep.mubr.bf16.mxu0 %v1836
    %4912 = vmatmul.mubr.bf16.gmra.mxu0 %v1835
    %v4913 = vpop.f32.mrf.mxu0
    %v4914 = vadd.f32 %v1742, %v4913
    %v4915 = vpop.f32.mrf.mxu0
    %v4916 = vadd.f32 %v1746, %v4915
    %v4917 = vpop.f32.mrf.mxu0
    %v4918 = vadd.f32 %v1742, %v4917
    %v4919 = vpop.f32.mrf.mxu0
    %v4920 = vadd.f32 %v1746, %v4919
    %4921 = vdwg.mxu0
    %4922 = vmatprep.subr.bf16.mxu0 %v3398
    %4923 = vmatpush1.bf16.msra.mxu0 %v3397
    %4924 = vmatprep.subr.bf16.mxu0 %v3390
    %4925 = vmatpush1.bf16.msra.mxu0 %v3389
    %4926 = vmatprep.subr.bf16.mxu0 %v3382
    %4927 = vmatpush1.bf16.msra.mxu0 %v3381
    %4928 = vmatprep.subr.bf16.mxu0 %v3374
    %4929 = vmatpush1.bf16.msra.mxu0 %v3373
    %4930 = vmatprep.subr.bf16.mxu0 %v3366
    %4931 = vmatpush1.bf16.msra.mxu0 %v3365
    %4932 = vmatprep.subr.bf16.mxu0 %v3358
    %4933 = vmatpush1.bf16.msra.mxu0 %v3357
    %4934 = vmatprep.subr.bf16.mxu0 %v3350
    %4935 = vmatpush1.bf16.msra.mxu0 %v3349
    %4936 = vmatprep.subr.bf16.mxu0 %v3342
    %4937 = vmatpush1.bf16.msra.mxu0 %v3341
    %4938 = vmatprep.subr.bf16.mxu0 %v3462
    %4939 = vmatpush2.bf16.msra.mxu0 %v3461
    %4940 = vmatprep.subr.bf16.mxu0 %v3454
    %4941 = vmatpush2.bf16.msra.mxu0 %v3453
    %4942 = vmatprep.subr.bf16.mxu0 %v3446
    %4943 = vmatpush2.bf16.msra.mxu0 %v3445
    %4944 = vmatprep.subr.bf16.mxu0 %v3438
    %4945 = vmatpush2.bf16.msra.mxu0 %v3437
    %4946 = vmatprep.subr.bf16.mxu0 %v3430
    %4947 = vmatpush2.bf16.msra.mxu0 %v3429
    %4948 = vmatprep.subr.bf16.mxu0 %v3422
    %4949 = vmatpush2.bf16.msra.mxu0 %v3421
    %4950 = vmatprep.subr.bf16.mxu0 %v3414
    %4951 = vmatpush2.bf16.msra.mxu0 %v3413
    %4952 = vmatprep.subr.bf16.mxu0 %v3406
    %4953 = vmatpush2.bf16.msra.mxu0 %v3405
    %4954 = vmatprep.mubr.bf16.mxu0 %v1824
    %4955 = vmatmul.mubr.bf16.gmra.mxu0 %v1823
    %v4956 = vpop.f32.mrf.mxu0
    %v4957 = vadd.f32 %v4894, %v4956
    %v4958 = vpop.f32.mrf.mxu0
    %v4959 = vadd.f32 %v4896, %v4958
    %v4960 = vpop.f32.mrf.mxu0
    %v4961 = vadd.f32 %v4898, %v4960
    %v4962 = vpop.f32.mrf.mxu0
    %v4963 = vadd.f32 %v4900, %v4962
    %4964 = vmatprep.mubr.bf16.mxu0 %v1831
    %4965 = vmatmul.mubr.bf16.gmra.mxu0 %v1830
    %v4966 = vpop.f32.mrf.mxu0
    %v4967 = vadd.f32 %v4904, %v4966
    %v4968 = vpop.f32.mrf.mxu0
    %v4969 = vadd.f32 %v4906, %v4968
    %v4970 = vpop.f32.mrf.mxu0
    %v4971 = vadd.f32 %v4908, %v4970
    %v4972 = vpop.f32.mrf.mxu0
    %v4973 = vadd.f32 %v4910, %v4972
    %4974 = vmatprep.mubr.bf16.mxu0 %v1838
    %4975 = vmatmul.mubr.bf16.gmra.mxu0 %v1837
    %v4976 = vpop.f32.mrf.mxu0
    %v4977 = vadd.f32 %v4914, %v4976
    %v4978 = vpop.f32.mrf.mxu0
    %v4979 = vadd.f32 %v4916, %v4978
    %v4980 = vpop.f32.mrf.mxu0
    %v4981 = vadd.f32 %v4918, %v4980
    %v4982 = vpop.f32.mrf.mxu0
    %v4983 = vadd.f32 %v4920, %v4982
    %4984 = vdwg.mxu0
    %4985 = vmatprep.subr.bf16.mxu0 %v3526
    %4986 = vmatpush1.bf16.msra.mxu0 %v3525
    %4987 = vmatprep.subr.bf16.mxu0 %v3518
    %4988 = vmatpush1.bf16.msra.mxu0 %v3517
    %4989 = vmatprep.subr.bf16.mxu0 %v3510
    %4990 = vmatpush1.bf16.msra.mxu0 %v3509
    %4991 = vmatprep.subr.bf16.mxu0 %v3502
    %4992 = vmatpush1.bf16.msra.mxu0 %v3501
    %4993 = vmatprep.subr.bf16.mxu0 %v3494
    %4994 = vmatpush1.bf16.msra.mxu0 %v3493
    %4995 = vmatprep.subr.bf16.mxu0 %v3486
    %4996 = vmatpush1.bf16.msra.mxu0 %v3485
    %4997 = vmatprep.subr.bf16.mxu0 %v3478
    %4998 = vmatpush1.bf16.msra.mxu0 %v3477
    %4999 = vmatprep.subr.bf16.mxu0 %v3470
    %5000 = vmatpush1.bf16.msra.mxu0 %v3469
    %5001 = vmatprep.subr.bf16.mxu0 %v3590
    %5002 = vmatpush2.bf16.msra.mxu0 %v3589
    %5003 = vmatprep.subr.bf16.mxu0 %v3582
    %5004 = vmatpush2.bf16.msra.mxu0 %v3581
    %5005 = vmatprep.subr.bf16.mxu0 %v3574
    %5006 = vmatpush2.bf16.msra.mxu0 %v3573
    %5007 = vmatprep.subr.bf16.mxu0 %v3566
    %5008 = vmatpush2.bf16.msra.mxu0 %v3565
    %5009 = vmatprep.subr.bf16.mxu0 %v3558
    %5010 = vmatpush2.bf16.msra.mxu0 %v3557
    %5011 = vmatprep.subr.bf16.mxu0 %v3550
    %5012 = vmatpush2.bf16.msra.mxu0 %v3549
    %5013 = vmatprep.subr.bf16.mxu0 %v3542
    %5014 = vmatpush2.bf16.msra.mxu0 %v3541
    %5015 = vmatprep.subr.bf16.mxu0 %v3534
    %5016 = vmatpush2.bf16.msra.mxu0 %v3533
    %5017 = vmatprep.mubr.bf16.mxu0 %v1826
    %5018 = vmatmul.mubr.bf16.gmra.mxu0 %v1825
    %v5019 = vpop.f32.mrf.mxu0
    %v5020 = vadd.f32 %v4957, %v5019
    %v5021 = vpop.f32.mrf.mxu0
    %v5022 = vadd.f32 %v4959, %v5021
    %v5023 = vpop.f32.mrf.mxu0
    %v5024 = vadd.f32 %v4961, %v5023
    %v5025 = vpop.f32.mrf.mxu0
    %v5026 = vadd.f32 %v4963, %v5025
    %5027 = vmatprep.mubr.bf16.mxu0 %v1833
    %5028 = vmatmul.mubr.bf16.gmra.mxu0 %v1832
    %v5029 = vpop.f32.mrf.mxu0
    %v5030 = vadd.f32 %v4967, %v5029
    %v5031 = vpop.f32.mrf.mxu0
    %v5032 = vadd.f32 %v4969, %v5031
    %v5033 = vpop.f32.mrf.mxu0
    %v5034 = vadd.f32 %v4971, %v5033
    %v5035 = vpop.f32.mrf.mxu0
    %v5036 = vadd.f32 %v4973, %v5035
    %5037 = vmatprep.mubr.bf16.mxu0 %v1840
    %5038 = vmatmul.mubr.bf16.gmra.mxu0 %v1839
    %v5039 = vpop.f32.mrf.mxu0
    %v5040 = vadd.f32 %v4977, %v5039
    %v5041 = vpop.f32.mrf.mxu0
    %v5042 = vadd.f32 %v4979, %v5041
    %v5043 = vpop.f32.mrf.mxu0
    %v5044 = vadd.f32 %v4981, %v5043
    %v5045 = vpop.f32.mrf.mxu0
    %v5046 = vadd.f32 %v4983, %v5045
    %5047 = vdwg.mxu0
    %5048 = vmatprep.subr.bf16.mxu0 %v3654
    %5049 = vmatpush1.bf16.msra.mxu0 %v3653
    %5050 = vmatprep.subr.bf16.mxu0 %v3646
    %5051 = vmatpush1.bf16.msra.mxu0 %v3645
    %5052 = vmatprep.subr.bf16.mxu0 %v3638
    %5053 = vmatpush1.bf16.msra.mxu0 %v3637
    %5054 = vmatprep.subr.bf16.mxu0 %v3630
    %5055 = vmatpush1.bf16.msra.mxu0 %v3629
    %5056 = vmatprep.subr.bf16.mxu0 %v3622
    %5057 = vmatpush1.bf16.msra.mxu0 %v3621
    %5058 = vmatprep.subr.bf16.mxu0 %v3614
    %5059 = vmatpush1.bf16.msra.mxu0 %v3613
    %5060 = vmatprep.subr.bf16.mxu0 %v3606
    %5061 = vmatpush1.bf16.msra.mxu0 %v3605
    %5062 = vmatprep.subr.bf16.mxu0 %v3598
    %5063 = vmatpush1.bf16.msra.mxu0 %v3597
    %5064 = vmatprep.subr.bf16.mxu0 0
    %5065 = vmatpush2.bf16.msra.mxu0 0
    %5066 = vmatprep.subr.bf16.mxu0 0
    %5067 = vmatpush2.bf16.msra.mxu0 0
    %5068 = vmatprep.subr.bf16.mxu0 0
    %5069 = vmatpush2.bf16.msra.mxu0 0
    %5070 = vmatprep.subr.bf16.mxu0 0
    %5071 = vmatpush2.bf16.msra.mxu0 0
    %5072 = vmatprep.subr.bf16.mxu0 0
    %5073 = vmatpush2.bf16.msra.mxu0 0
    %5074 = vmatprep.subr.bf16.mxu0 0
    %5075 = vmatpush2.bf16.msra.mxu0 0
    %5076 = vmatprep.subr.bf16.mxu0 0
    %5077 = vmatpush2.bf16.msra.mxu0 0
    %5078 = vmatprep.subr.bf16.mxu0 0
    %5079 = vmatpush2.bf16.msra.mxu0 0
    %5080 = vmatprep.mubr.bf16.mxu0 0
    %5081 = vmatmul.mubr.bf16.gmra.mxu0 %v1827
    %v5082 = vpop.f32.mrf.mxu0
    %v5083 = vadd.f32 %v5020, %v5082
    %v5084 = vpop.f32.mrf.mxu0
    %v5085 = vadd.f32 %v5022, %v5084
    %v5086 = vpop.f32.mrf.mxu0
    %v5087 = vadd.f32 %v5024, %v5086
    %v5088 = vpop.f32.mrf.mxu0
    %v5089 = vadd.f32 %v5026, %v5088
    %5090 = vmatprep.mubr.bf16.mxu0 0
    %5091 = vmatmul.mubr.bf16.gmra.mxu0 %v1834
    %v5092 = vpop.f32.mrf.mxu0
    %v5093 = vadd.f32 %v5030, %v5092
    %v5094 = vpop.f32.mrf.mxu0
    %v5095 = vadd.f32 %v5032, %v5094
    %v5096 = vpop.f32.mrf.mxu0
    %v5097 = vadd.f32 %v5034, %v5096
    %v5098 = vpop.f32.mrf.mxu0
    %v5099 = vadd.f32 %v5036, %v5098
    %5100 = vmatprep.mubr.bf16.mxu0 0
    %5101 = vmatmul.mubr.bf16.gmra.mxu0 %v1841
    %v5102 = vpop.f32.mrf.mxu0
    %v5103 = vadd.f32 %v5040, %v5102
    %v5104 = vpop.f32.mrf.mxu0
    %v5105 = vadd.f32 %v5042, %v5104
    %v5106 = vpop.f32.mrf.mxu0
    %v5107 = vadd.f32 %v5044, %v5106
    %v5108 = vpop.f32.mrf.mxu0
    %v5109 = vadd.f32 %v5046, %v5108
    %5110 = vdwg.mxu0
    %5111 = vst [vmem:[#allocation4] sm:$0xff] %v4327
    %5112 = vst [vmem:[#allocation4 + $0x8] sm:$0xff] %v4329
    %5113 = vst [vmem:[#allocation4 + $0x10] sm:$0xff] %v4579
    %5114 = vst [vmem:[#allocation4 + $0x18] sm:$0xff] %v4581
    %5115 = vst [vmem:[#allocation4 + $0x20] sm:$0xff] %v4831
    %5116 = vst [vmem:[#allocation4 + $0x28] sm:$0xff] %v4833
    %5117 = vst [vmem:[#allocation4 + $0x30] sm:$0xff] %v5083
    %5118 = vst [vmem:[#allocation4 + $0x38] sm:$0xff] %v5085
    %5119 = vst [vmem:[#allocation4 + $0x40] sm:$0xff] %v4331
    %5120 = vst [vmem:[#allocation4 + $0x48] sm:$0xff] %v4333
    %5121 = vst [vmem:[#allocation4 + $0x50] sm:$0xff] %v4583
    %5122 = vst [vmem:[#allocation4 + $0x58] sm:$0xff] %v4585
    %5123 = vst [vmem:[#allocation4 + $0x60] sm:$0xff] %v4835
    %5124 = vst [vmem:[#allocation4 + $0x68] sm:$0xff] %v4837
    %5125 = vst [vmem:[#allocation4 + $0x70] sm:$0xff] %v5087
    %5126 = vst [vmem:[#allocation4 + $0x78] sm:$0xff] %v5089
    %5127 = vst [vmem:[#allocation4 + $0x80] sm:$0xff] %v4337
    %5128 = vst [vmem:[#allocation4 + $0x88] sm:$0xff] %v4339
    %5129 = vst [vmem:[#allocation4 + $0x90] sm:$0xff] %v4589
    %5130 = vst [vmem:[#allocation4 + $0x98] sm:$0xff] %v4591
    %5131 = vst [vmem:[#allocation4 + $0xa0] sm:$0xff] %v4841
    %5132 = vst [vmem:[#allocation4 + $0xa8] sm:$0xff] %v4843
    %5133 = vst [vmem:[#allocation4 + $0xb0] sm:$0xff] %v5093
    %5134 = vst [vmem:[#allocation4 + $0xb8] sm:$0xff] %v5095
    %5135 = vst [vmem:[#allocation4 + $0xc0] sm:$0xff] %v4341
    %5136 = vst [vmem:[#allocation4 + $0xc8] sm:$0xff] %v4343
    %5137 = vst [vmem:[#allocation4 + $0xd0] sm:$0xff] %v4593
    %5138 = vst [vmem:[#allocation4 + $0xd8] sm:$0xff] %v4595
    %5139 = vst [vmem:[#allocation4 + $0xe0] sm:$0xff] %v4845
    %5140 = vst [vmem:[#allocation4 + $0xe8] sm:$0xff] %v4847
    %5141 = vst [vmem:[#allocation4 + $0xf0] sm:$0xff] %v5097
    %5142 = vst [vmem:[#allocation4 + $0xf8] sm:$0xff] %v5099
    %5143 = vst [vmem:[#allocation4 + $0x100] sm:$0xff] %v4347
    %5144 = vst [vmem:[#allocation4 + $0x108] sm:$0xff] %v4349
    %5145 = vst [vmem:[#allocation4 + $0x110] sm:$0xff] %v4599
    %5146 = vst [vmem:[#allocation4 + $0x118] sm:$0xff] %v4601
    %5147 = vst [vmem:[#allocation4 + $0x120] sm:$0xff] %v4851
    %5148 = vst [vmem:[#allocation4 + $0x128] sm:$0xff] %v4853
    %5149 = vst [vmem:[#allocation4 + $0x130] sm:$0xff] %v5103
    %5150 = vst [vmem:[#allocation4 + $0x138] sm:$0xff] %v5105
    %5151 = vst [vmem:[#allocation4 + $0x140] sm:$0xff] %v4351
    %5152 = vst [vmem:[#allocation4 + $0x148] sm:$0xff] %v4353
    %5153 = vst [vmem:[#allocation4 + $0x150] sm:$0xff] %v4603
    %5154 = vst [vmem:[#allocation4 + $0x158] sm:$0xff] %v4605
    %5155 = vst [vmem:[#allocation4 + $0x160] sm:$0xff] %v4855
    %5156 = vst [vmem:[#allocation4 + $0x168] sm:$0xff] %v4857
    %5157 = vst [vmem:[#allocation4 + $0x170] sm:$0xff] %v5107
    %5158 = vst [vmem:[#allocation4 + $0x178] sm:$0xff] %v5109
    %5159 = vst [vmem:[#allocation4 + $0x180] sm:$0xff] 0.0
    %5160 = vst [vmem:[#allocation4 + $0x188] sm:$0xff] 0.0
    %5161 = vst [vmem:[#allocation4 + $0x190] sm:$0xff] 0.0
    %5162 = vst [vmem:[#allocation4 + $0x198] sm:$0xff] 0.0
    %5163 = vst [vmem:[#allocation4 + $0x1a0] sm:$0xff] 0.0
    %5164 = vst [vmem:[#allocation4 + $0x1a8] sm:$0xff] 0.0
    %5165 = vst [vmem:[#allocation4 + $0x1b0] sm:$0xff] 0.0
    %5166 = vst [vmem:[#allocation4 + $0x1b8] sm:$0xff] 0.0
    %v5167 = vld [vmem:[#allocation4] sm:$0xff]
    %v5168 = vld [vmem:[#allocation4 + $0x8] sm:$0xff]
    %v5169 = vld [vmem:[#allocation4 + $0x10] sm:$0xff]
    %v5170 = vld [vmem:[#allocation4 + $0x18] sm:$0xff]
    %v5171 = vld [vmem:[#allocation4 + $0x20] sm:$0xff]
    %v5172 = vld [vmem:[#allocation4 + $0x28] sm:$0xff]
    %v5173 = vld [vmem:[#allocation4 + $0x30] sm:$0xff]
    %v5174 = vld [vmem:[#allocation4 + $0x38] sm:$0xff]
    %v5175 = vld [vmem:[#allocation4 + $0x40] sm:$0xff]
    %v5176 = vld [vmem:[#allocation4 + $0x48] sm:$0xff]
    %v5177 = vld [vmem:[#allocation4 + $0x50] sm:$0xff]
    %v5178 = vld [vmem:[#allocation4 + $0x58] sm:$0xff]
    %v5179 = vld [vmem:[#allocation4 + $0x60] sm:$0xff]
    %v5180 = vld [vmem:[#allocation4 + $0x68] sm:$0xff]
    %v5181 = vld [vmem:[#allocation4 + $0x70] sm:$0xff]
    %v5182 = vld [vmem:[#allocation4 + $0x78] sm:$0xff]
    %v5183 = vld [vmem:[#allocation4 + $0x80] sm:$0xff]
    %v5184 = vld [vmem:[#allocation4 + $0x88] sm:$0xff]
    %v5185 = vld [vmem:[#allocation4 + $0x90] sm:$0xff]
    %v5186 = vld [vmem:[#allocation4 + $0x98] sm:$0xff]
    %v5187 = vld [vmem:[#allocation4 + $0xa0] sm:$0xff]
    %v5188 = vld [vmem:[#allocation4 + $0xa8] sm:$0xff]
    %v5189 = vld [vmem:[#allocation4 + $0xb0] sm:$0xff]
    %v5190 = vld [vmem:[#allocation4 + $0xb8] sm:$0xff]
    %v5191 = vld [vmem:[#allocation4 + $0xc0] sm:$0xff]
    %v5192 = vld [vmem:[#allocation4 + $0xc8] sm:$0xff]
    %v5193 = vld [vmem:[#allocation4 + $0xd0] sm:$0xff]
    %v5194 = vld [vmem:[#allocation4 + $0xd8] sm:$0xff]
    %v5195 = vld [vmem:[#allocation4 + $0xe0] sm:$0xff]
    %v5196 = vld [vmem:[#allocation4 + $0xe8] sm:$0xff]
    %v5197 = vld [vmem:[#allocation4 + $0xf0] sm:$0xff]
    %v5198 = vld [vmem:[#allocation4 + $0xf8] sm:$0xff]
    %v5199 = vld [vmem:[#allocation4 + $0x100] sm:$0xff]
    %v5200 = vld [vmem:[#allocation4 + $0x108] sm:$0xff]
    %v5201 = vld [vmem:[#allocation4 + $0x110] sm:$0xff]
    %v5202 = vld [vmem:[#allocation4 + $0x118] sm:$0xff]
    %v5203 = vld [vmem:[#allocation4 + $0x120] sm:$0xff]
    %v5204 = vld [vmem:[#allocation4 + $0x128] sm:$0xff]
    %v5205 = vld [vmem:[#allocation4 + $0x130] sm:$0xff]
    %v5206 = vld [vmem:[#allocation4 + $0x138] sm:$0xff]
    %v5207 = vld [vmem:[#allocation4 + $0x140] sm:$0xff]
    %v5208 = vld [vmem:[#allocation4 + $0x148] sm:$0xff]
    %v5209 = vld [vmem:[#allocation4 + $0x150] sm:$0xff]
    %v5210 = vld [vmem:[#allocation4 + $0x158] sm:$0xff]
    %v5211 = vld [vmem:[#allocation4 + $0x160] sm:$0xff]
    %v5212 = vld [vmem:[#allocation4 + $0x168] sm:$0xff]
    %v5213 = vld [vmem:[#allocation4 + $0x170] sm:$0xff]
    %v5214 = vld [vmem:[#allocation4 + $0x178] sm:$0xff]
    %v5215 = vld [vmem:[#allocation4] sm:$0xfe]
    %v5216 = vld [vmem:[#allocation4 + $0x8] sm:$0xfe]
    %v5217 = vld [vmem:[#allocation4 + $0x10] sm:$0xfe]
    %v5218 = vld [vmem:[#allocation4 + $0x18] sm:$0xfe]
    %v5219 = vld [vmem:[#allocation4 + $0x20] sm:$0xfe]
    %v5220 = vld [vmem:[#allocation4 + $0x28] sm:$0xfe]
    %v5221 = vld [vmem:[#allocation4 + $0x30] sm:$0xfe]
    %v5222 = vld [vmem:[#allocation4 + $0x38] sm:$0xfe]
    %v5223 = vld [vmem:[#allocation4 + $0x40] sm:$0xff]
    %v5224 = vld [vmem:[#allocation4 + $0x48] sm:$0xff]
    %v5225 = vld [vmem:[#allocation4 + $0x50] sm:$0xff]
    %v5226 = vld [vmem:[#allocation4 + $0x58] sm:$0xff]
    %v5227 = vld [vmem:[#allocation4 + $0x60] sm:$0xff]
    %v5228 = vld [vmem:[#allocation4 + $0x68] sm:$0xff]
    %v5229 = vld [vmem:[#allocation4 + $0x70] sm:$0xff]
    %v5230 = vld [vmem:[#allocation4 + $0x78] sm:$0xff]
    %v5231 = vld [vmem:[#allocation4 + $0x80] sm:$0xff]
    %v5232 = vld [vmem:[#allocation4 + $0x88] sm:$0xff]
    %v5233 = vld [vmem:[#allocation4 + $0x90] sm:$0xff]
    %v5234 = vld [vmem:[#allocation4 + $0x98] sm:$0xff]
    %v5235 = vld [vmem:[#allocation4 + $0xa0] sm:$0xff]
    %v5236 = vld [vmem:[#allocation4 + $0xa8] sm:$0xff]
    %v5237 = vld [vmem:[#allocation4 + $0xb0] sm:$0xff]
    %v5238 = vld [vmem:[#allocation4 + $0xb8] sm:$0xff]
    %v5239 = vld [vmem:[#allocation4 + $0xc0] sm:$0xff]
    %v5240 = vld [vmem:[#allocation4 + $0xc8] sm:$0xff]
    %v5241 = vld [vmem:[#allocation4 + $0xd0] sm:$0xff]
    %v5242 = vld [vmem:[#allocation4 + $0xd8] sm:$0xff]
    %v5243 = vld [vmem:[#allocation4 + $0xe0] sm:$0xff]
    %v5244 = vld [vmem:[#allocation4 + $0xe8] sm:$0xff]
    %v5245 = vld [vmem:[#allocation4 + $0xf0] sm:$0xff]
    %v5246 = vld [vmem:[#allocation4 + $0xf8] sm:$0xff]
    %v5247 = vld [vmem:[#allocation4 + $0x100] sm:$0xff]
    %v5248 = vld [vmem:[#allocation4 + $0x108] sm:$0xff]
    %v5249 = vld [vmem:[#allocation4 + $0x110] sm:$0xff]
    %v5250 = vld [vmem:[#allocation4 + $0x118] sm:$0xff]
    %v5251 = vld [vmem:[#allocation4 + $0x120] sm:$0xff]
    %v5252 = vld [vmem:[#allocation4 + $0x128] sm:$0xff]
    %v5253 = vld [vmem:[#allocation4 + $0x130] sm:$0xff]
    %v5254 = vld [vmem:[#allocation4 + $0x138] sm:$0xff]
    %v5255 = vld [vmem:[#allocation4 + $0x140] sm:$0xff]
    %v5256 = vld [vmem:[#allocation4 + $0x148] sm:$0xff]
    %v5257 = vld [vmem:[#allocation4 + $0x150] sm:$0xff]
    %v5258 = vld [vmem:[#allocation4 + $0x158] sm:$0xff]
    %v5259 = vld [vmem:[#allocation4 + $0x160] sm:$0xff]
    %v5260 = vld [vmem:[#allocation4 + $0x168] sm:$0xff]
    %v5261 = vld [vmem:[#allocation4 + $0x170] sm:$0xff]
    %v5262 = vld [vmem:[#allocation4 + $0x178] sm:$0xff]
    %v5263 = vld [vmem:[#allocation4 + $0x180] sm:$0x1]
    %v5264 = vld [vmem:[#allocation4 + $0x188] sm:$0x1]
    %v5265 = vld [vmem:[#allocation4 + $0x190] sm:$0x1]
    %v5266 = vld [vmem:[#allocation4 + $0x198] sm:$0x1]
    %v5267 = vld [vmem:[#allocation4 + $0x1a0] sm:$0x1]
    %v5268 = vld [vmem:[#allocation4 + $0x1a8] sm:$0x1]
    %v5269 = vld [vmem:[#allocation4 + $0x1b0] sm:$0x1]
    %v5270 = vld [vmem:[#allocation4 + $0x1b8] sm:$0x1]
    %vm5327 = vcmask 1046528
    %v5328 = vrot.slane %v5215, 1
    %v5329 = vrot.slane %v5223, 1
    %v5330 = vsel %vm5327, %v5328, %v5329
    %v5331 = vrot.slane %v5216, 1
    %v5332 = vrot.slane %v5224, 1
    %v5333 = vsel %vm5327, %v5331, %v5332
    %v5334 = vrot.slane %v5217, 1
    %v5335 = vrot.slane %v5225, 1
    %v5336 = vsel %vm5327, %v5334, %v5335
    %v5337 = vrot.slane %v5218, 1
    %v5338 = vrot.slane %v5226, 1
    %v5339 = vsel %vm5327, %v5337, %v5338
    %v5340 = vrot.slane %v5219, 1
    %v5341 = vrot.slane %v5227, 1
    %v5342 = vsel %vm5327, %v5340, %v5341
    %v5343 = vrot.slane %v5220, 1
    %v5344 = vrot.slane %v5228, 1
    %v5345 = vsel %vm5327, %v5343, %v5344
    %v5346 = vrot.slane %v5221, 1
    %v5347 = vrot.slane %v5229, 1
    %v5348 = vsel %vm5327, %v5346, %v5347
    %v5349 = vrot.slane %v5222, 1
    %v5350 = vrot.slane %v5230, 1
    %v5351 = vsel %vm5327, %v5349, %v5350
    %v5352 = vrot.slane %v5231, 1
    %v5353 = vsel %vm5327, %v5329, %v5352
    %v5354 = vrot.slane %v5232, 1
    %v5355 = vsel %vm5327, %v5332, %v5354
    %v5356 = vrot.slane %v5233, 1
    %v5357 = vsel %vm5327, %v5335, %v5356
    %v5358 = vrot.slane %v5234, 1
    %v5359 = vsel %vm5327, %v5338, %v5358
    %v5360 = vrot.slane %v5235, 1
    %v5361 = vsel %vm5327, %v5341, %v5360
    %v5362 = vrot.slane %v5236, 1
    %v5363 = vsel %vm5327, %v5344, %v5362
    %v5364 = vrot.slane %v5237, 1
    %v5365 = vsel %vm5327, %v5347, %v5364
    %v5366 = vrot.slane %v5238, 1
    %v5367 = vsel %vm5327, %v5350, %v5366
    %v5368 = vrot.slane %v5239, 1
    %v5369 = vsel %vm5327, %v5352, %v5368
    %v5370 = vrot.slane %v5240, 1
    %v5371 = vsel %vm5327, %v5354, %v5370
    %v5372 = vrot.slane %v5241, 1
    %v5373 = vsel %vm5327, %v5356, %v5372
    %v5374 = vrot.slane %v5242, 1
    %v5375 = vsel %vm5327, %v5358, %v5374
    %v5376 = vrot.slane %v5243, 1
    %v5377 = vsel %vm5327, %v5360, %v5376
    %v5378 = vrot.slane %v5244, 1
    %v5379 = vsel %vm5327, %v5362, %v5378
    %v5380 = vrot.slane %v5245, 1
    %v5381 = vsel %vm5327, %v5364, %v5380
    %v5382 = vrot.slane %v5246, 1
    %v5383 = vsel %vm5327, %v5366, %v5382
    %v5384 = vrot.slane %v5247, 1
    %v5385 = vsel %vm5327, %v5368, %v5384
    %v5386 = vrot.slane %v5248, 1
    %v5387 = vsel %vm5327, %v5370, %v5386
    %v5388 = vrot.slane %v5249, 1
    %v5389 = vsel %vm5327, %v5372, %v5388
    %v5390 = vrot.slane %v5250, 1
    %v5391 = vsel %vm5327, %v5374, %v5390
    %v5392 = vrot.slane %v5251, 1
    %v5393 = vsel %vm5327, %v5376, %v5392
    %v5394 = vrot.slane %v5252, 1
    %v5395 = vsel %vm5327, %v5378, %v5394
    %v5396 = vrot.slane %v5253, 1
    %v5397 = vsel %vm5327, %v5380, %v5396
    %v5398 = vrot.slane %v5254, 1
    %v5399 = vsel %vm5327, %v5382, %v5398
    %v5400 = vrot.slane %v5255, 1
    %v5401 = vsel %vm5327, %v5384, %v5400
    %v5402 = vrot.slane %v5256, 1
    %v5403 = vsel %vm5327, %v5386, %v5402
    %v5404 = vrot.slane %v5257, 1
    %v5405 = vsel %vm5327, %v5388, %v5404
    %v5406 = vrot.slane %v5258, 1
    %v5407 = vsel %vm5327, %v5390, %v5406
    %v5408 = vrot.slane %v5259, 1
    %v5409 = vsel %vm5327, %v5392, %v5408
    %v5410 = vrot.slane %v5260, 1
    %v5411 = vsel %vm5327, %v5394, %v5410
    %v5412 = vrot.slane %v5261, 1
    %v5413 = vsel %vm5327, %v5396, %v5412
    %v5414 = vrot.slane %v5262, 1
    %v5415 = vsel %vm5327, %v5398, %v5414
    %v5416 = vrot.slane %v5263, 1
    %v5417 = vsel %vm5327, %v5400, %v5416
    %v5418 = vrot.slane %v5264, 1
    %v5419 = vsel %vm5327, %v5402, %v5418
    %v5420 = vrot.slane %v5265, 1
    %v5421 = vsel %vm5327, %v5404, %v5420
    %v5422 = vrot.slane %v5266, 1
    %v5423 = vsel %vm5327, %v5406, %v5422
    %v5424 = vrot.slane %v5267, 1
    %v5425 = vsel %vm5327, %v5408, %v5424
    %v5426 = vrot.slane %v5268, 1
    %v5427 = vsel %vm5327, %v5410, %v5426
    %v5428 = vrot.slane %v5269, 1
    %v5429 = vsel %vm5327, %v5412, %v5428
    %v5430 = vrot.slane %v5270, 1
    %v5431 = vsel %vm5327, %v5414, %v5430
    %v5480 = vmax.f32 %v5167, %v5330
    %v5481 = vmax.f32 %v5168, %v5333
    %v5482 = vmax.f32 %v5169, %v5336
    %v5483 = vmax.f32 %v5170, %v5339
    %v5484 = vmax.f32 %v5171, %v5342
    %v5485 = vmax.f32 %v5172, %v5345
    %v5486 = vmax.f32 %v5173, %v5348
    %v5487 = vmax.f32 %v5174, %v5351
    %v5488 = vmax.f32 %v5175, %v5353
    %v5489 = vmax.f32 %v5176, %v5355
    %v5490 = vmax.f32 %v5177, %v5357
    %v5491 = vmax.f32 %v5178, %v5359
    %v5492 = vmax.f32 %v5179, %v5361
    %v5493 = vmax.f32 %v5180, %v5363
    %v5494 = vmax.f32 %v5181, %v5365
    %v5495 = vmax.f32 %v5182, %v5367
    %v5496 = vmax.f32 %v5183, %v5369
    %v5497 = vmax.f32 %v5184, %v5371
    %v5498 = vmax.f32 %v5185, %v5373
    %v5499 = vmax.f32 %v5186, %v5375
    %v5500 = vmax.f32 %v5187, %v5377
    %v5501 = vmax.f32 %v5188, %v5379
    %v5502 = vmax.f32 %v5189, %v5381
    %v5503 = vmax.f32 %v5190, %v5383
    %v5504 = vmax.f32 %v5191, %v5385
    %v5505 = vmax.f32 %v5192, %v5387
    %v5506 = vmax.f32 %v5193, %v5389
    %v5507 = vmax.f32 %v5194, %v5391
    %v5508 = vmax.f32 %v5195, %v5393
    %v5509 = vmax.f32 %v5196, %v5395
    %v5510 = vmax.f32 %v5197, %v5397
    %v5511 = vmax.f32 %v5198, %v5399
    %v5512 = vmax.f32 %v5199, %v5401
    %v5513 = vmax.f32 %v5200, %v5403
    %v5514 = vmax.f32 %v5201, %v5405
    %v5515 = vmax.f32 %v5202, %v5407
    %v5516 = vmax.f32 %v5203, %v5409
    %v5517 = vmax.f32 %v5204, %v5411
    %v5518 = vmax.f32 %v5205, %v5413
    %v5519 = vmax.f32 %v5206, %v5415
    %v5520 = vmax.f32 %v5207, %v5417
    %v5521 = vmax.f32 %v5208, %v5419
    %v5522 = vmax.f32 %v5209, %v5421
    %v5523 = vmax.f32 %v5210, %v5423
    %v5524 = vmax.f32 %v5211, %v5425
    %v5525 = vmax.f32 %v5212, %v5427
    %v5526 = vmax.f32 %v5213, %v5429
    %v5527 = vmax.f32 %v5214, %v5431
    %v5528 = vld [vmem:[#allocation4] sm:$0xfc]
    %v5529 = vld [vmem:[#allocation4 + $0x8] sm:$0xfc]
    %v5530 = vld [vmem:[#allocation4 + $0x10] sm:$0xfc]
    %v5531 = vld [vmem:[#allocation4 + $0x18] sm:$0xfc]
    %v5532 = vld [vmem:[#allocation4 + $0x20] sm:$0xfc]
    %v5533 = vld [vmem:[#allocation4 + $0x28] sm:$0xfc]
    %v5534 = vld [vmem:[#allocation4 + $0x30] sm:$0xfc]
    %v5535 = vld [vmem:[#allocation4 + $0x38] sm:$0xfc]
    %v5536 = vld [vmem:[#allocation4 + $0x180] sm:$0x3]
    %v5537 = vld [vmem:[#allocation4 + $0x188] sm:$0x3]
    %v5538 = vld [vmem:[#allocation4 + $0x190] sm:$0x3]
    %v5539 = vld [vmem:[#allocation4 + $0x198] sm:$0x3]
    %v5540 = vld [vmem:[#allocation4 + $0x1a0] sm:$0x3]
    %v5541 = vld [vmem:[#allocation4 + $0x1a8] sm:$0x3]
    %v5542 = vld [vmem:[#allocation4 + $0x1b0] sm:$0x3]
    %v5543 = vld [vmem:[#allocation4 + $0x1b8] sm:$0x3]
    %vm5560 = vcmask 1045504
    %v5561 = vrot.slane %v5528, 2
    %v5562 = vrot.slane %v5223, 2
    %v5563 = vsel %vm5560, %v5561, %v5562
    %v5564 = vrot.slane %v5529, 2
    %v5565 = vrot.slane %v5224, 2
    %v5566 = vsel %vm5560, %v5564, %v5565
    %v5567 = vrot.slane %v5530, 2
    %v5568 = vrot.slane %v5225, 2
    %v5569 = vsel %vm5560, %v5567, %v5568
    %v5570 = vrot.slane %v5531, 2
    %v5571 = vrot.slane %v5226, 2
    %v5572 = vsel %vm5560, %v5570, %v5571
    %v5573 = vrot.slane %v5532, 2
    %v5574 = vrot.slane %v5227, 2
    %v5575 = vsel %vm5560, %v5573, %v5574
    %v5576 = vrot.slane %v5533, 2
    %v5577 = vrot.slane %v5228, 2
    %v5578 = vsel %vm5560, %v5576, %v5577
    %v5579 = vrot.slane %v5534, 2
    %v5580 = vrot.slane %v5229, 2
    %v5581 = vsel %vm5560, %v5579, %v5580
    %v5582 = vrot.slane %v5535, 2
    %v5583 = vrot.slane %v5230, 2
    %v5584 = vsel %vm5560, %v5582, %v5583
    %v5585 = vrot.slane %v5231, 2
    %v5586 = vsel %vm5560, %v5562, %v5585
    %v5587 = vrot.slane %v5232, 2
    %v5588 = vsel %vm5560, %v5565, %v5587
    %v5589 = vrot.slane %v5233, 2
    %v5590 = vsel %vm5560, %v5568, %v5589
    %v5591 = vrot.slane %v5234, 2
    %v5592 = vsel %vm5560, %v5571, %v5591
    %v5593 = vrot.slane %v5235, 2
    %v5594 = vsel %vm5560, %v5574, %v5593
    %v5595 = vrot.slane %v5236, 2
    %v5596 = vsel %vm5560, %v5577, %v5595
    %v5597 = vrot.slane %v5237, 2
    %v5598 = vsel %vm5560, %v5580, %v5597
    %v5599 = vrot.slane %v5238, 2
    %v5600 = vsel %vm5560, %v5583, %v5599
    %v5601 = vrot.slane %v5239, 2
    %v5602 = vsel %vm5560, %v5585, %v5601
    %v5603 = vrot.slane %v5240, 2
    %v5604 = vsel %vm5560, %v5587, %v5603
    %v5605 = vrot.slane %v5241, 2
    %v5606 = vsel %vm5560, %v5589, %v5605
    %v5607 = vrot.slane %v5242, 2
    %v5608 = vsel %vm5560, %v5591, %v5607
    %v5609 = vrot.slane %v5243, 2
    %v5610 = vsel %vm5560, %v5593, %v5609
    %v5611 = vrot.slane %v5244, 2
    %v5612 = vsel %vm5560, %v5595, %v5611
    %v5613 = vrot.slane %v5245, 2
    %v5614 = vsel %vm5560, %v5597, %v5613
    %v5615 = vrot.slane %v5246, 2
    %v5616 = vsel %vm5560, %v5599, %v5615
    %v5617 = vrot.slane %v5247, 2
    %v5618 = vsel %vm5560, %v5601, %v5617
    %v5619 = vrot.slane %v5248, 2
    %v5620 = vsel %vm5560, %v5603, %v5619
    %v5621 = vrot.slane %v5249, 2
    %v5622 = vsel %vm5560, %v5605, %v5621
    %v5623 = vrot.slane %v5250, 2
    %v5624 = vsel %vm5560, %v5607, %v5623
    %v5625 = vrot.slane %v5251, 2
    %v5626 = vsel %vm5560, %v5609, %v5625
    %v5627 = vrot.slane %v5252, 2
    %v5628 = vsel %vm5560, %v5611, %v5627
    %v5629 = vrot.slane %v5253, 2
    %v5630 = vsel %vm5560, %v5613, %v5629
    %v5631 = vrot.slane %v5254, 2
    %v5632 = vsel %vm5560, %v5615, %v5631
    %v5633 = vrot.slane %v5255, 2
    %v5634 = vsel %vm5560, %v5617, %v5633
    %v5635 = vrot.slane %v5256, 2
    %v5636 = vsel %vm5560, %v5619, %v5635
    %v5637 = vrot.slane %v5257, 2
    %v5638 = vsel %vm5560, %v5621, %v5637
    %v5639 = vrot.slane %v5258, 2
    %v5640 = vsel %vm5560, %v5623, %v5639
    %v5641 = vrot.slane %v5259, 2
    %v5642 = vsel %vm5560, %v5625, %v5641
    %v5643 = vrot.slane %v5260, 2
    %v5644 = vsel %vm5560, %v5627, %v5643
    %v5645 = vrot.slane %v5261, 2
    %v5646 = vsel %vm5560, %v5629, %v5645
    %v5647 = vrot.slane %v5262, 2
    %v5648 = vsel %vm5560, %v5631, %v5647
    %v5649 = vrot.slane %v5536, 2
    %v5650 = vsel %vm5560, %v5633, %v5649
    %v5651 = vrot.slane %v5537, 2
    %v5652 = vsel %vm5560, %v5635, %v5651
    %v5653 = vrot.slane %v5538, 2
    %v5654 = vsel %vm5560, %v5637, %v5653
    %v5655 = vrot.slane %v5539, 2
    %v5656 = vsel %vm5560, %v5639, %v5655
    %v5657 = vrot.slane %v5540, 2
    %v5658 = vsel %vm5560, %v5641, %v5657
    %v5659 = vrot.slane %v5541, 2
    %v5660 = vsel %vm5560, %v5643, %v5659
    %v5661 = vrot.slane %v5542, 2
    %v5662 = vsel %vm5560, %v5645, %v5661
    %v5663 = vrot.slane %v5543, 2
    %v5664 = vsel %vm5560, %v5647, %v5663
    %v5713 = vmax.f32 %v5480, %v5563
    %v5714 = vmax.f32 %v5481, %v5566
    %v5715 = vmax.f32 %v5482, %v5569
    %v5716 = vmax.f32 %v5483, %v5572
    %v5717 = vmax.f32 %v5484, %v5575
    %v5718 = vmax.f32 %v5485, %v5578
    %v5719 = vmax.f32 %v5486, %v5581
    %v5720 = vmax.f32 %v5487, %v5584
    %v5721 = vmax.f32 %v5488, %v5586
    %v5722 = vmax.f32 %v5489, %v5588
    %v5723 = vmax.f32 %v5490, %v5590
    %v5724 = vmax.f32 %v5491, %v5592
    %v5725 = vmax.f32 %v5492, %v5594
    %v5726 = vmax.f32 %v5493, %v5596
    %v5727 = vmax.f32 %v5494, %v5598
    %v5728 = vmax.f32 %v5495, %v5600
    %v5729 = vmax.f32 %v5496, %v5602
    %v5730 = vmax.f32 %v5497, %v5604
    %v5731 = vmax.f32 %v5498, %v5606
    %v5732 = vmax.f32 %v5499, %v5608
    %v5733 = vmax.f32 %v5500, %v5610
    %v5734 = vmax.f32 %v5501, %v5612
    %v5735 = vmax.f32 %v5502, %v5614
    %v5736 = vmax.f32 %v5503, %v5616
    %v5737 = vmax.f32 %v5504, %v5618
    %v5738 = vmax.f32 %v5505, %v5620
    %v5739 = vmax.f32 %v5506, %v5622
    %v5740 = vmax.f32 %v5507, %v5624
    %v5741 = vmax.f32 %v5508, %v5626
    %v5742 = vmax.f32 %v5509, %v5628
    %v5743 = vmax.f32 %v5510, %v5630
    %v5744 = vmax.f32 %v5511, %v5632
    %v5745 = vmax.f32 %v5512, %v5634
    %v5746 = vmax.f32 %v5513, %v5636
    %v5747 = vmax.f32 %v5514, %v5638
    %v5748 = vmax.f32 %v5515, %v5640
    %v5749 = vmax.f32 %v5516, %v5642
    %v5750 = vmax.f32 %v5517, %v5644
    %v5751 = vmax.f32 %v5518, %v5646
    %v5752 = vmax.f32 %v5519, %v5648
    %v5753 = vmax.f32 %v5520, %v5650
    %v5754 = vmax.f32 %v5521, %v5652
    %v5755 = vmax.f32 %v5522, %v5654
    %v5756 = vmax.f32 %v5523, %v5656
    %v5757 = vmax.f32 %v5524, %v5658
    %v5758 = vmax.f32 %v5525, %v5660
    %v5759 = vmax.f32 %v5526, %v5662
    %v5760 = vmax.f32 %v5527, %v5664
    %v5761 = vld [vmem:[#allocation4] sm:$0xf8]
    %v5762 = vld [vmem:[#allocation4 + $0x8] sm:$0xf8]
    %v5763 = vld [vmem:[#allocation4 + $0x10] sm:$0xf8]
    %v5764 = vld [vmem:[#allocation4 + $0x18] sm:$0xf8]
    %v5765 = vld [vmem:[#allocation4 + $0x20] sm:$0xf8]
    %v5766 = vld [vmem:[#allocation4 + $0x28] sm:$0xf8]
    %v5767 = vld [vmem:[#allocation4 + $0x30] sm:$0xf8]
    %v5768 = vld [vmem:[#allocation4 + $0x38] sm:$0xf8]
    %v5769 = vld [vmem:[#allocation4 + $0x180] sm:$0x7]
    %v5770 = vld [vmem:[#allocation4 + $0x188] sm:$0x7]
    %v5771 = vld [vmem:[#allocation4 + $0x190] sm:$0x7]
    %v5772 = vld [vmem:[#allocation4 + $0x198] sm:$0x7]
    %v5773 = vld [vmem:[#allocation4 + $0x1a0] sm:$0x7]
    %v5774 = vld [vmem:[#allocation4 + $0x1a8] sm:$0x7]
    %v5775 = vld [vmem:[#allocation4 + $0x1b0] sm:$0x7]
    %v5776 = vld [vmem:[#allocation4 + $0x1b8] sm:$0x7]
    %vm5793 = vcmask 1044480
    %v5794 = vrot.slane %v5761, 3
    %v5795 = vrot.slane %v5223, 3
    %v5796 = vsel %vm5793, %v5794, %v5795
    %v5797 = vrot.slane %v5762, 3
    %v5798 = vrot.slane %v5224, 3
    %v5799 = vsel %vm5793, %v5797, %v5798
    %v5800 = vrot.slane %v5763, 3
    %v5801 = vrot.slane %v5225, 3
    %v5802 = vsel %vm5793, %v5800, %v5801
    %v5803 = vrot.slane %v5764, 3
    %v5804 = vrot.slane %v5226, 3
    %v5805 = vsel %vm5793, %v5803, %v5804
    %v5806 = vrot.slane %v5765, 3
    %v5807 = vrot.slane %v5227, 3
    %v5808 = vsel %vm5793, %v5806, %v5807
    %v5809 = vrot.slane %v5766, 3
    %v5810 = vrot.slane %v5228, 3
    %v5811 = vsel %vm5793, %v5809, %v5810
    %v5812 = vrot.slane %v5767, 3
    %v5813 = vrot.slane %v5229, 3
    %v5814 = vsel %vm5793, %v5812, %v5813
    %v5815 = vrot.slane %v5768, 3
    %v5816 = vrot.slane %v5230, 3
    %v5817 = vsel %vm5793, %v5815, %v5816
    %v5818 = vrot.slane %v5231, 3
    %v5819 = vsel %vm5793, %v5795, %v5818
    %v5820 = vrot.slane %v5232, 3
    %v5821 = vsel %vm5793, %v5798, %v5820
    %v5822 = vrot.slane %v5233, 3
    %v5823 = vsel %vm5793, %v5801, %v5822
    %v5824 = vrot.slane %v5234, 3
    %v5825 = vsel %vm5793, %v5804, %v5824
    %v5826 = vrot.slane %v5235, 3
    %v5827 = vsel %vm5793, %v5807, %v5826
    %v5828 = vrot.slane %v5236, 3
    %v5829 = vsel %vm5793, %v5810, %v5828
    %v5830 = vrot.slane %v5237, 3
    %v5831 = vsel %vm5793, %v5813, %v5830
    %v5832 = vrot.slane %v5238, 3
    %v5833 = vsel %vm5793, %v5816, %v5832
    %v5834 = vrot.slane %v5239, 3
    %v5835 = vsel %vm5793, %v5818, %v5834
    %v5836 = vrot.slane %v5240, 3
    %v5837 = vsel %vm5793, %v5820, %v5836
    %v5838 = vrot.slane %v5241, 3
    %v5839 = vsel %vm5793, %v5822, %v5838
    %v5840 = vrot.slane %v5242, 3
    %v5841 = vsel %vm5793, %v5824, %v5840
    %v5842 = vrot.slane %v5243, 3
    %v5843 = vsel %vm5793, %v5826, %v5842
    %v5844 = vrot.slane %v5244, 3
    %v5845 = vsel %vm5793, %v5828, %v5844
    %v5846 = vrot.slane %v5245, 3
    %v5847 = vsel %vm5793, %v5830, %v5846
    %v5848 = vrot.slane %v5246, 3
    %v5849 = vsel %vm5793, %v5832, %v5848
    %v5850 = vrot.slane %v5247, 3
    %v5851 = vsel %vm5793, %v5834, %v5850
    %v5852 = vrot.slane %v5248, 3
    %v5853 = vsel %vm5793, %v5836, %v5852
    %v5854 = vrot.slane %v5249, 3
    %v5855 = vsel %vm5793, %v5838, %v5854
    %v5856 = vrot.slane %v5250, 3
    %v5857 = vsel %vm5793, %v5840, %v5856
    %v5858 = vrot.slane %v5251, 3
    %v5859 = vsel %vm5793, %v5842, %v5858
    %v5860 = vrot.slane %v5252, 3
    %v5861 = vsel %vm5793, %v5844, %v5860
    %v5862 = vrot.slane %v5253, 3
    %v5863 = vsel %vm5793, %v5846, %v5862
    %v5864 = vrot.slane %v5254, 3
    %v5865 = vsel %vm5793, %v5848, %v5864
    %v5866 = vrot.slane %v5255, 3
    %v5867 = vsel %vm5793, %v5850, %v5866
    %v5868 = vrot.slane %v5256, 3
    %v5869 = vsel %vm5793, %v5852, %v5868
    %v5870 = vrot.slane %v5257, 3
    %v5871 = vsel %vm5793, %v5854, %v5870
    %v5872 = vrot.slane %v5258, 3
    %v5873 = vsel %vm5793, %v5856, %v5872
    %v5874 = vrot.slane %v5259, 3
    %v5875 = vsel %vm5793, %v5858, %v5874
    %v5876 = vrot.slane %v5260, 3
    %v5877 = vsel %vm5793, %v5860, %v5876
    %v5878 = vrot.slane %v5261, 3
    %v5879 = vsel %vm5793, %v5862, %v5878
    %v5880 = vrot.slane %v5262, 3
    %v5881 = vsel %vm5793, %v5864, %v5880
    %v5882 = vrot.slane %v5769, 3
    %v5883 = vsel %vm5793, %v5866, %v5882
    %v5884 = vrot.slane %v5770, 3
    %v5885 = vsel %vm5793, %v5868, %v5884
    %v5886 = vrot.slane %v5771, 3
    %v5887 = vsel %vm5793, %v5870, %v5886
    %v5888 = vrot.slane %v5772, 3
    %v5889 = vsel %vm5793, %v5872, %v5888
    %v5890 = vrot.slane %v5773, 3
    %v5891 = vsel %vm5793, %v5874, %v5890
    %v5892 = vrot.slane %v5774, 3
    %v5893 = vsel %vm5793, %v5876, %v5892
    %v5894 = vrot.slane %v5775, 3
    %v5895 = vsel %vm5793, %v5878, %v5894
    %v5896 = vrot.slane %v5776, 3
    %v5897 = vsel %vm5793, %v5880, %v5896
    %v5946 = vmax.f32 %v5713, %v5796
    %v5947 = vmax.f32 %v5714, %v5799
    %v5948 = vmax.f32 %v5715, %v5802
    %v5949 = vmax.f32 %v5716, %v5805
    %v5950 = vmax.f32 %v5717, %v5808
    %v5951 = vmax.f32 %v5718, %v5811
    %v5952 = vmax.f32 %v5719, %v5814
    %v5953 = vmax.f32 %v5720, %v5817
    %v5954 = vmax.f32 %v5721, %v5819
    %v5955 = vmax.f32 %v5722, %v5821
    %v5956 = vmax.f32 %v5723, %v5823
    %v5957 = vmax.f32 %v5724, %v5825
    %v5958 = vmax.f32 %v5725, %v5827
    %v5959 = vmax.f32 %v5726, %v5829
    %v5960 = vmax.f32 %v5727, %v5831
    %v5961 = vmax.f32 %v5728, %v5833
    %v5962 = vmax.f32 %v5729, %v5835
    %v5963 = vmax.f32 %v5730, %v5837
    %v5964 = vmax.f32 %v5731, %v5839
    %v5965 = vmax.f32 %v5732, %v5841
    %v5966 = vmax.f32 %v5733, %v5843
    %v5967 = vmax.f32 %v5734, %v5845
    %v5968 = vmax.f32 %v5735, %v5847
    %v5969 = vmax.f32 %v5736, %v5849
    %v5970 = vmax.f32 %v5737, %v5851
    %v5971 = vmax.f32 %v5738, %v5853
    %v5972 = vmax.f32 %v5739, %v5855
    %v5973 = vmax.f32 %v5740, %v5857
    %v5974 = vmax.f32 %v5741, %v5859
    %v5975 = vmax.f32 %v5742, %v5861
    %v5976 = vmax.f32 %v5743, %v5863
    %v5977 = vmax.f32 %v5744, %v5865
    %v5978 = vmax.f32 %v5745, %v5867
    %v5979 = vmax.f32 %v5746, %v5869
    %v5980 = vmax.f32 %v5747, %v5871
    %v5981 = vmax.f32 %v5748, %v5873
    %v5982 = vmax.f32 %v5749, %v5875
    %v5983 = vmax.f32 %v5750, %v5877
    %v5984 = vmax.f32 %v5751, %v5879
    %v5985 = vmax.f32 %v5752, %v5881
    %v5986 = vmax.f32 %v5753, %v5883
    %v5987 = vmax.f32 %v5754, %v5885
    %v5988 = vmax.f32 %v5755, %v5887
    %v5989 = vmax.f32 %v5756, %v5889
    %v5990 = vmax.f32 %v5757, %v5891
    %v5991 = vmax.f32 %v5758, %v5893
    %v5992 = vmax.f32 %v5759, %v5895
    %v5993 = vmax.f32 %v5760, %v5897
    %v5994 = vld [vmem:[#allocation4] sm:$0xf0]
    %v5995 = vld [vmem:[#allocation4 + $0x8] sm:$0xf0]
    %v5996 = vld [vmem:[#allocation4 + $0x10] sm:$0xf0]
    %v5997 = vld [vmem:[#allocation4 + $0x18] sm:$0xf0]
    %v5998 = vld [vmem:[#allocation4 + $0x20] sm:$0xf0]
    %v5999 = vld [vmem:[#allocation4 + $0x28] sm:$0xf0]
    %v6000 = vld [vmem:[#allocation4 + $0x30] sm:$0xf0]
    %v6001 = vld [vmem:[#allocation4 + $0x38] sm:$0xf0]
    %v6002 = vld [vmem:[#allocation4 + $0x180] sm:$0xf]
    %v6003 = vld [vmem:[#allocation4 + $0x188] sm:$0xf]
    %v6004 = vld [vmem:[#allocation4 + $0x190] sm:$0xf]
    %v6005 = vld [vmem:[#allocation4 + $0x198] sm:$0xf]
    %v6006 = vld [vmem:[#allocation4 + $0x1a0] sm:$0xf]
    %v6007 = vld [vmem:[#allocation4 + $0x1a8] sm:$0xf]
    %v6008 = vld [vmem:[#allocation4 + $0x1b0] sm:$0xf]
    %v6009 = vld [vmem:[#allocation4 + $0x1b8] sm:$0xf]
    %vm6026 = vcmask 1043456
    %v6027 = vrot.slane %v5994, 4
    %v6028 = vrot.slane %v5223, 4
    %v6029 = vsel %vm6026, %v6027, %v6028
    %v6030 = vrot.slane %v5995, 4
    %v6031 = vrot.slane %v5224, 4
    %v6032 = vsel %vm6026, %v6030, %v6031
    %v6033 = vrot.slane %v5996, 4
    %v6034 = vrot.slane %v5225, 4
    %v6035 = vsel %vm6026, %v6033, %v6034
    %v6036 = vrot.slane %v5997, 4
    %v6037 = vrot.slane %v5226, 4
    %v6038 = vsel %vm6026, %v6036, %v6037
    %v6039 = vrot.slane %v5998, 4
    %v6040 = vrot.slane %v5227, 4
    %v6041 = vsel %vm6026, %v6039, %v6040
    %v6042 = vrot.slane %v5999, 4
    %v6043 = vrot.slane %v5228, 4
    %v6044 = vsel %vm6026, %v6042, %v6043
    %v6045 = vrot.slane %v6000, 4
    %v6046 = vrot.slane %v5229, 4
    %v6047 = vsel %vm6026, %v6045, %v6046
    %v6048 = vrot.slane %v6001, 4
    %v6049 = vrot.slane %v5230, 4
    %v6050 = vsel %vm6026, %v6048, %v6049
    %v6051 = vrot.slane %v5231, 4
    %v6052 = vsel %vm6026, %v6028, %v6051
    %v6053 = vrot.slane %v5232, 4
    %v6054 = vsel %vm6026, %v6031, %v6053
    %v6055 = vrot.slane %v5233, 4
    %v6056 = vsel %vm6026, %v6034, %v6055
    %v6057 = vrot.slane %v5234, 4
    %v6058 = vsel %vm6026, %v6037, %v6057
    %v6059 = vrot.slane %v5235, 4
    %v6060 = vsel %vm6026, %v6040, %v6059
    %v6061 = vrot.slane %v5236, 4
    %v6062 = vsel %vm6026, %v6043, %v6061
    %v6063 = vrot.slane %v5237, 4
    %v6064 = vsel %vm6026, %v6046, %v6063
    %v6065 = vrot.slane %v5238, 4
    %v6066 = vsel %vm6026, %v6049, %v6065
    %v6067 = vrot.slane %v5239, 4
    %v6068 = vsel %vm6026, %v6051, %v6067
    %v6069 = vrot.slane %v5240, 4
    %v6070 = vsel %vm6026, %v6053, %v6069
    %v6071 = vrot.slane %v5241, 4
    %v6072 = vsel %vm6026, %v6055, %v6071
    %v6073 = vrot.slane %v5242, 4
    %v6074 = vsel %vm6026, %v6057, %v6073
    %v6075 = vrot.slane %v5243, 4
    %v6076 = vsel %vm6026, %v6059, %v6075
    %v6077 = vrot.slane %v5244, 4
    %v6078 = vsel %vm6026, %v6061, %v6077
    %v6079 = vrot.slane %v5245, 4
    %v6080 = vsel %vm6026, %v6063, %v6079
    %v6081 = vrot.slane %v5246, 4
    %v6082 = vsel %vm6026, %v6065, %v6081
    %v6083 = vrot.slane %v5247, 4
    %v6084 = vsel %vm6026, %v6067, %v6083
    %v6085 = vrot.slane %v5248, 4
    %v6086 = vsel %vm6026, %v6069, %v6085
    %v6087 = vrot.slane %v5249, 4
    %v6088 = vsel %vm6026, %v6071, %v6087
    %v6089 = vrot.slane %v5250, 4
    %v6090 = vsel %vm6026, %v6073, %v6089
    %v6091 = vrot.slane %v5251, 4
    %v6092 = vsel %vm6026, %v6075, %v6091
    %v6093 = vrot.slane %v5252, 4
    %v6094 = vsel %vm6026, %v6077, %v6093
    %v6095 = vrot.slane %v5253, 4
    %v6096 = vsel %vm6026, %v6079, %v6095
    %v6097 = vrot.slane %v5254, 4
    %v6098 = vsel %vm6026, %v6081, %v6097
    %v6099 = vrot.slane %v5255, 4
    %v6100 = vsel %vm6026, %v6083, %v6099
    %v6101 = vrot.slane %v5256, 4
    %v6102 = vsel %vm6026, %v6085, %v6101
    %v6103 = vrot.slane %v5257, 4
    %v6104 = vsel %vm6026, %v6087, %v6103
    %v6105 = vrot.slane %v5258, 4
    %v6106 = vsel %vm6026, %v6089, %v6105
    %v6107 = vrot.slane %v5259, 4
    %v6108 = vsel %vm6026, %v6091, %v6107
    %v6109 = vrot.slane %v5260, 4
    %v6110 = vsel %vm6026, %v6093, %v6109
    %v6111 = vrot.slane %v5261, 4
    %v6112 = vsel %vm6026, %v6095, %v6111
    %v6113 = vrot.slane %v5262, 4
    %v6114 = vsel %vm6026, %v6097, %v6113
    %v6115 = vrot.slane %v6002, 4
    %v6116 = vsel %vm6026, %v6099, %v6115
    %v6117 = vrot.slane %v6003, 4
    %v6118 = vsel %vm6026, %v6101, %v6117
    %v6119 = vrot.slane %v6004, 4
    %v6120 = vsel %vm6026, %v6103, %v6119
    %v6121 = vrot.slane %v6005, 4
    %v6122 = vsel %vm6026, %v6105, %v6121
    %v6123 = vrot.slane %v6006, 4
    %v6124 = vsel %vm6026, %v6107, %v6123
    %v6125 = vrot.slane %v6007, 4
    %v6126 = vsel %vm6026, %v6109, %v6125
    %v6127 = vrot.slane %v6008, 4
    %v6128 = vsel %vm6026, %v6111, %v6127
    %v6129 = vrot.slane %v6009, 4
    %v6130 = vsel %vm6026, %v6113, %v6129
    %v6179 = vmax.f32 %v5946, %v6029
    %v6180 = vmax.f32 %v5947, %v6032
    %v6181 = vmax.f32 %v5948, %v6035
    %v6182 = vmax.f32 %v5949, %v6038
    %v6183 = vmax.f32 %v5950, %v6041
    %v6184 = vmax.f32 %v5951, %v6044
    %v6185 = vmax.f32 %v5952, %v6047
    %v6186 = vmax.f32 %v5953, %v6050
    %v6187 = vmax.f32 %v5954, %v6052
    %v6188 = vmax.f32 %v5955, %v6054
    %v6189 = vmax.f32 %v5956, %v6056
    %v6190 = vmax.f32 %v5957, %v6058
    %v6191 = vmax.f32 %v5958, %v6060
    %v6192 = vmax.f32 %v5959, %v6062
    %v6193 = vmax.f32 %v5960, %v6064
    %v6194 = vmax.f32 %v5961, %v6066
    %v6195 = vmax.f32 %v5962, %v6068
    %v6196 = vmax.f32 %v5963, %v6070
    %v6197 = vmax.f32 %v5964, %v6072
    %v6198 = vmax.f32 %v5965, %v6074
    %v6199 = vmax.f32 %v5966, %v6076
    %v6200 = vmax.f32 %v5967, %v6078
    %v6201 = vmax.f32 %v5968, %v6080
    %v6202 = vmax.f32 %v5969, %v6082
    %v6203 = vmax.f32 %v5970, %v6084
    %v6204 = vmax.f32 %v5971, %v6086
    %v6205 = vmax.f32 %v5972, %v6088
    %v6206 = vmax.f32 %v5973, %v6090
    %v6207 = vmax.f32 %v5974, %v6092
    %v6208 = vmax.f32 %v5975, %v6094
    %v6209 = vmax.f32 %v5976, %v6096
    %v6210 = vmax.f32 %v5977, %v6098
    %v6211 = vmax.f32 %v5978, %v6100
    %v6212 = vmax.f32 %v5979, %v6102
    %v6213 = vmax.f32 %v5980, %v6104
    %v6214 = vmax.f32 %v5981, %v6106
    %v6215 = vmax.f32 %v5982, %v6108
    %v6216 = vmax.f32 %v5983, %v6110
    %v6217 = vmax.f32 %v5984, %v6112
    %v6218 = vmax.f32 %v5985, %v6114
    %v6219 = vmax.f32 %v5986, %v6116
    %v6220 = vmax.f32 %v5987, %v6118
    %v6221 = vmax.f32 %v5988, %v6120
    %v6222 = vmax.f32 %v5989, %v6122
    %v6223 = vmax.f32 %v5990, %v6124
    %v6224 = vmax.f32 %v5991, %v6126
    %v6225 = vmax.f32 %v5992, %v6128
    %v6226 = vmax.f32 %v5993, %v6130
    %v6227 = vld [vmem:[#allocation4] sm:$0xe0]
    %v6228 = vld [vmem:[#allocation4 + $0x8] sm:$0xe0]
    %v6229 = vld [vmem:[#allocation4 + $0x10] sm:$0xe0]
    %v6230 = vld [vmem:[#allocation4 + $0x18] sm:$0xe0]
    %v6231 = vld [vmem:[#allocation4 + $0x20] sm:$0xe0]
    %v6232 = vld [vmem:[#allocation4 + $0x28] sm:$0xe0]
    %v6233 = vld [vmem:[#allocation4 + $0x30] sm:$0xe0]
    %v6234 = vld [vmem:[#allocation4 + $0x38] sm:$0xe0]
    %v6235 = vld [vmem:[#allocation4 + $0x180] sm:$0x1f]
    %v6236 = vld [vmem:[#allocation4 + $0x188] sm:$0x1f]
    %v6237 = vld [vmem:[#allocation4 + $0x190] sm:$0x1f]
    %v6238 = vld [vmem:[#allocation4 + $0x198] sm:$0x1f]
    %v6239 = vld [vmem:[#allocation4 + $0x1a0] sm:$0x1f]
    %v6240 = vld [vmem:[#allocation4 + $0x1a8] sm:$0x1f]
    %v6241 = vld [vmem:[#allocation4 + $0x1b0] sm:$0x1f]
    %v6242 = vld [vmem:[#allocation4 + $0x1b8] sm:$0x1f]
    %vm6259 = vcmask 1042432
    %v6260 = vrot.slane %v6227, 5
    %v6261 = vrot.slane %v5223, 5
    %v6262 = vsel %vm6259, %v6260, %v6261
    %v6263 = vrot.slane %v6228, 5
    %v6264 = vrot.slane %v5224, 5
    %v6265 = vsel %vm6259, %v6263, %v6264
    %v6266 = vrot.slane %v6229, 5
    %v6267 = vrot.slane %v5225, 5
    %v6268 = vsel %vm6259, %v6266, %v6267
    %v6269 = vrot.slane %v6230, 5
    %v6270 = vrot.slane %v5226, 5
    %v6271 = vsel %vm6259, %v6269, %v6270
    %v6272 = vrot.slane %v6231, 5
    %v6273 = vrot.slane %v5227, 5
    %v6274 = vsel %vm6259, %v6272, %v6273
    %v6275 = vrot.slane %v6232, 5
    %v6276 = vrot.slane %v5228, 5
    %v6277 = vsel %vm6259, %v6275, %v6276
    %v6278 = vrot.slane %v6233, 5
    %v6279 = vrot.slane %v5229, 5
    %v6280 = vsel %vm6259, %v6278, %v6279
    %v6281 = vrot.slane %v6234, 5
    %v6282 = vrot.slane %v5230, 5
    %v6283 = vsel %vm6259, %v6281, %v6282
    %v6284 = vrot.slane %v5231, 5
    %v6285 = vsel %vm6259, %v6261, %v6284
    %v6286 = vrot.slane %v5232, 5
    %v6287 = vsel %vm6259, %v6264, %v6286
    %v6288 = vrot.slane %v5233, 5
    %v6289 = vsel %vm6259, %v6267, %v6288
    %v6290 = vrot.slane %v5234, 5
    %v6291 = vsel %vm6259, %v6270, %v6290
    %v6292 = vrot.slane %v5235, 5
    %v6293 = vsel %vm6259, %v6273, %v6292
    %v6294 = vrot.slane %v5236, 5
    %v6295 = vsel %vm6259, %v6276, %v6294
    %v6296 = vrot.slane %v5237, 5
    %v6297 = vsel %vm6259, %v6279, %v6296
    %v6298 = vrot.slane %v5238, 5
    %v6299 = vsel %vm6259, %v6282, %v6298
    %v6300 = vrot.slane %v5239, 5
    %v6301 = vsel %vm6259, %v6284, %v6300
    %v6302 = vrot.slane %v5240, 5
    %v6303 = vsel %vm6259, %v6286, %v6302
    %v6304 = vrot.slane %v5241, 5
    %v6305 = vsel %vm6259, %v6288, %v6304
    %v6306 = vrot.slane %v5242, 5
    %v6307 = vsel %vm6259, %v6290, %v6306
    %v6308 = vrot.slane %v5243, 5
    %v6309 = vsel %vm6259, %v6292, %v6308
    %v6310 = vrot.slane %v5244, 5
    %v6311 = vsel %vm6259, %v6294, %v6310
    %v6312 = vrot.slane %v5245, 5
    %v6313 = vsel %vm6259, %v6296, %v6312
    %v6314 = vrot.slane %v5246, 5
    %v6315 = vsel %vm6259, %v6298, %v6314
    %v6316 = vrot.slane %v5247, 5
    %v6317 = vsel %vm6259, %v6300, %v6316
    %v6318 = vrot.slane %v5248, 5
    %v6319 = vsel %vm6259, %v6302, %v6318
    %v6320 = vrot.slane %v5249, 5
    %v6321 = vsel %vm6259, %v6304, %v6320
    %v6322 = vrot.slane %v5250, 5
    %v6323 = vsel %vm6259, %v6306, %v6322
    %v6324 = vrot.slane %v5251, 5
    %v6325 = vsel %vm6259, %v6308, %v6324
    %v6326 = vrot.slane %v5252, 5
    %v6327 = vsel %vm6259, %v6310, %v6326
    %v6328 = vrot.slane %v5253, 5
    %v6329 = vsel %vm6259, %v6312, %v6328
    %v6330 = vrot.slane %v5254, 5
    %v6331 = vsel %vm6259, %v6314, %v6330
    %v6332 = vrot.slane %v5255, 5
    %v6333 = vsel %vm6259, %v6316, %v6332
    %v6334 = vrot.slane %v5256, 5
    %v6335 = vsel %vm6259, %v6318, %v6334
    %v6336 = vrot.slane %v5257, 5
    %v6337 = vsel %vm6259, %v6320, %v6336
    %v6338 = vrot.slane %v5258, 5
    %v6339 = vsel %vm6259, %v6322, %v6338
    %v6340 = vrot.slane %v5259, 5
    %v6341 = vsel %vm6259, %v6324, %v6340
    %v6342 = vrot.slane %v5260, 5
    %v6343 = vsel %vm6259, %v6326, %v6342
    %v6344 = vrot.slane %v5261, 5
    %v6345 = vsel %vm6259, %v6328, %v6344
    %v6346 = vrot.slane %v5262, 5
    %v6347 = vsel %vm6259, %v6330, %v6346
    %v6348 = vrot.slane %v6235, 5
    %v6349 = vsel %vm6259, %v6332, %v6348
    %v6350 = vrot.slane %v6236, 5
    %v6351 = vsel %vm6259, %v6334, %v6350
    %v6352 = vrot.slane %v6237, 5
    %v6353 = vsel %vm6259, %v6336, %v6352
    %v6354 = vrot.slane %v6238, 5
    %v6355 = vsel %vm6259, %v6338, %v6354
    %v6356 = vrot.slane %v6239, 5
    %v6357 = vsel %vm6259, %v6340, %v6356
    %v6358 = vrot.slane %v6240, 5
    %v6359 = vsel %vm6259, %v6342, %v6358
    %v6360 = vrot.slane %v6241, 5
    %v6361 = vsel %vm6259, %v6344, %v6360
    %v6362 = vrot.slane %v6242, 5
    %v6363 = vsel %vm6259, %v6346, %v6362
    %v6412 = vmax.f32 %v6179, %v6262
    %v6413 = vmax.f32 %v6180, %v6265
    %v6414 = vmax.f32 %v6181, %v6268
    %v6415 = vmax.f32 %v6182, %v6271
    %v6416 = vmax.f32 %v6183, %v6274
    %v6417 = vmax.f32 %v6184, %v6277
    %v6418 = vmax.f32 %v6185, %v6280
    %v6419 = vmax.f32 %v6186, %v6283
    %v6420 = vmax.f32 %v6187, %v6285
    %v6421 = vmax.f32 %v6188, %v6287
    %v6422 = vmax.f32 %v6189, %v6289
    %v6423 = vmax.f32 %v6190, %v6291
    %v6424 = vmax.f32 %v6191, %v6293
    %v6425 = vmax.f32 %v6192, %v6295
    %v6426 = vmax.f32 %v6193, %v6297
    %v6427 = vmax.f32 %v6194, %v6299
    %v6428 = vmax.f32 %v6195, %v6301
    %v6429 = vmax.f32 %v6196, %v6303
    %v6430 = vmax.f32 %v6197, %v6305
    %v6431 = vmax.f32 %v6198, %v6307
    %v6432 = vmax.f32 %v6199, %v6309
    %v6433 = vmax.f32 %v6200, %v6311
    %v6434 = vmax.f32 %v6201, %v6313
    %v6435 = vmax.f32 %v6202, %v6315
    %v6436 = vmax.f32 %v6203, %v6317
    %v6437 = vmax.f32 %v6204, %v6319
    %v6438 = vmax.f32 %v6205, %v6321
    %v6439 = vmax.f32 %v6206, %v6323
    %v6440 = vmax.f32 %v6207, %v6325
    %v6441 = vmax.f32 %v6208, %v6327
    %v6442 = vmax.f32 %v6209, %v6329
    %v6443 = vmax.f32 %v6210, %v6331
    %v6444 = vmax.f32 %v6211, %v6333
    %v6445 = vmax.f32 %v6212, %v6335
    %v6446 = vmax.f32 %v6213, %v6337
    %v6447 = vmax.f32 %v6214, %v6339
    %v6448 = vmax.f32 %v6215, %v6341
    %v6449 = vmax.f32 %v6216, %v6343
    %v6450 = vmax.f32 %v6217, %v6345
    %v6451 = vmax.f32 %v6218, %v6347
    %v6452 = vmax.f32 %v6219, %v6349
    %v6453 = vmax.f32 %v6220, %v6351
    %v6454 = vmax.f32 %v6221, %v6353
    %v6455 = vmax.f32 %v6222, %v6355
    %v6456 = vmax.f32 %v6223, %v6357
    %v6457 = vmax.f32 %v6224, %v6359
    %v6458 = vmax.f32 %v6225, %v6361
    %v6459 = vmax.f32 %v6226, %v6363
    %v6460 = vld [vmem:[#allocation4] sm:$0xc0]
    %v6461 = vld [vmem:[#allocation4 + $0x8] sm:$0xc0]
    %v6462 = vld [vmem:[#allocation4 + $0x10] sm:$0xc0]
    %v6463 = vld [vmem:[#allocation4 + $0x18] sm:$0xc0]
    %v6464 = vld [vmem:[#allocation4 + $0x20] sm:$0xc0]
    %v6465 = vld [vmem:[#allocation4 + $0x28] sm:$0xc0]
    %v6466 = vld [vmem:[#allocation4 + $0x30] sm:$0xc0]
    %v6467 = vld [vmem:[#allocation4 + $0x38] sm:$0xc0]
    %v6468 = vld [vmem:[#allocation4 + $0x180] sm:$0x3f]
    %v6469 = vld [vmem:[#allocation4 + $0x188] sm:$0x3f]
    %v6470 = vld [vmem:[#allocation4 + $0x190] sm:$0x3f]
    %v6471 = vld [vmem:[#allocation4 + $0x198] sm:$0x3f]
    %v6472 = vld [vmem:[#allocation4 + $0x1a0] sm:$0x3f]
    %v6473 = vld [vmem:[#allocation4 + $0x1a8] sm:$0x3f]
    %v6474 = vld [vmem:[#allocation4 + $0x1b0] sm:$0x3f]
    %v6475 = vld [vmem:[#allocation4 + $0x1b8] sm:$0x3f]
    %vm6492 = vcmask 1041408
    %v6493 = vrot.slane %v6460, 6
    %v6494 = vrot.slane %v5223, 6
    %v6495 = vsel %vm6492, %v6493, %v6494
    %v6496 = vrot.slane %v6461, 6
    %v6497 = vrot.slane %v5224, 6
    %v6498 = vsel %vm6492, %v6496, %v6497
    %v6499 = vrot.slane %v6462, 6
    %v6500 = vrot.slane %v5225, 6
    %v6501 = vsel %vm6492, %v6499, %v6500
    %v6502 = vrot.slane %v6463, 6
    %v6503 = vrot.slane %v5226, 6
    %v6504 = vsel %vm6492, %v6502, %v6503
    %v6505 = vrot.slane %v6464, 6
    %v6506 = vrot.slane %v5227, 6
    %v6507 = vsel %vm6492, %v6505, %v6506
    %v6508 = vrot.slane %v6465, 6
    %v6509 = vrot.slane %v5228, 6
    %v6510 = vsel %vm6492, %v6508, %v6509
    %v6511 = vrot.slane %v6466, 6
    %v6512 = vrot.slane %v5229, 6
    %v6513 = vsel %vm6492, %v6511, %v6512
    %v6514 = vrot.slane %v6467, 6
    %v6515 = vrot.slane %v5230, 6
    %v6516 = vsel %vm6492, %v6514, %v6515
    %v6517 = vrot.slane %v5231, 6
    %v6518 = vsel %vm6492, %v6494, %v6517
    %v6519 = vrot.slane %v5232, 6
    %v6520 = vsel %vm6492, %v6497, %v6519
    %v6521 = vrot.slane %v5233, 6
    %v6522 = vsel %vm6492, %v6500, %v6521
    %v6523 = vrot.slane %v5234, 6
    %v6524 = vsel %vm6492, %v6503, %v6523
    %v6525 = vrot.slane %v5235, 6
    %v6526 = vsel %vm6492, %v6506, %v6525
    %v6527 = vrot.slane %v5236, 6
    %v6528 = vsel %vm6492, %v6509, %v6527
    %v6529 = vrot.slane %v5237, 6
    %v6530 = vsel %vm6492, %v6512, %v6529
    %v6531 = vrot.slane %v5238, 6
    %v6532 = vsel %vm6492, %v6515, %v6531
    %v6533 = vrot.slane %v5239, 6
    %v6534 = vsel %vm6492, %v6517, %v6533
    %v6535 = vrot.slane %v5240, 6
    %v6536 = vsel %vm6492, %v6519, %v6535
    %v6537 = vrot.slane %v5241, 6
    %v6538 = vsel %vm6492, %v6521, %v6537
    %v6539 = vrot.slane %v5242, 6
    %v6540 = vsel %vm6492, %v6523, %v6539
    %v6541 = vrot.slane %v5243, 6
    %v6542 = vsel %vm6492, %v6525, %v6541
    %v6543 = vrot.slane %v5244, 6
    %v6544 = vsel %vm6492, %v6527, %v6543
    %v6545 = vrot.slane %v5245, 6
    %v6546 = vsel %vm6492, %v6529, %v6545
    %v6547 = vrot.slane %v5246, 6
    %v6548 = vsel %vm6492, %v6531, %v6547
    %v6549 = vrot.slane %v5247, 6
    %v6550 = vsel %vm6492, %v6533, %v6549
    %v6551 = vrot.slane %v5248, 6
    %v6552 = vsel %vm6492, %v6535, %v6551
    %v6553 = vrot.slane %v5249, 6
    %v6554 = vsel %vm6492, %v6537, %v6553
    %v6555 = vrot.slane %v5250, 6
    %v6556 = vsel %vm6492, %v6539, %v6555
    %v6557 = vrot.slane %v5251, 6
    %v6558 = vsel %vm6492, %v6541, %v6557
    %v6559 = vrot.slane %v5252, 6
    %v6560 = vsel %vm6492, %v6543, %v6559
    %v6561 = vrot.slane %v5253, 6
    %v6562 = vsel %vm6492, %v6545, %v6561
    %v6563 = vrot.slane %v5254, 6
    %v6564 = vsel %vm6492, %v6547, %v6563
    %v6565 = vrot.slane %v5255, 6
    %v6566 = vsel %vm6492, %v6549, %v6565
    %v6567 = vrot.slane %v5256, 6
    %v6568 = vsel %vm6492, %v6551, %v6567
    %v6569 = vrot.slane %v5257, 6
    %v6570 = vsel %vm6492, %v6553, %v6569
    %v6571 = vrot.slane %v5258, 6
    %v6572 = vsel %vm6492, %v6555, %v6571
    %v6573 = vrot.slane %v5259, 6
    %v6574 = vsel %vm6492, %v6557, %v6573
    %v6575 = vrot.slane %v5260, 6
    %v6576 = vsel %vm6492, %v6559, %v6575
    %v6577 = vrot.slane %v5261, 6
    %v6578 = vsel %vm6492, %v6561, %v6577
    %v6579 = vrot.slane %v5262, 6
    %v6580 = vsel %vm6492, %v6563, %v6579
    %v6581 = vrot.slane %v6468, 6
    %v6582 = vsel %vm6492, %v6565, %v6581
    %v6583 = vrot.slane %v6469, 6
    %v6584 = vsel %vm6492, %v6567, %v6583
    %v6585 = vrot.slane %v6470, 6
    %v6586 = vsel %vm6492, %v6569, %v6585
    %v6587 = vrot.slane %v6471, 6
    %v6588 = vsel %vm6492, %v6571, %v6587
    %v6589 = vrot.slane %v6472, 6
    %v6590 = vsel %vm6492, %v6573, %v6589
    %v6591 = vrot.slane %v6473, 6
    %v6592 = vsel %vm6492, %v6575, %v6591
    %v6593 = vrot.slane %v6474, 6
    %v6594 = vsel %vm6492, %v6577, %v6593
    %v6595 = vrot.slane %v6475, 6
    %v6596 = vsel %vm6492, %v6579, %v6595
    %v6645 = vmax.f32 %v6412, %v6495
    %v6646 = vmax.f32 %v6413, %v6498
    %v6647 = vmax.f32 %v6414, %v6501
    %v6648 = vmax.f32 %v6415, %v6504
    %v6649 = vmax.f32 %v6416, %v6507
    %v6650 = vmax.f32 %v6417, %v6510
    %v6651 = vmax.f32 %v6418, %v6513
    %v6652 = vmax.f32 %v6419, %v6516
    %v6653 = vmax.f32 %v6420, %v6518
    %v6654 = vmax.f32 %v6421, %v6520
    %v6655 = vmax.f32 %v6422, %v6522
    %v6656 = vmax.f32 %v6423, %v6524
    %v6657 = vmax.f32 %v6424, %v6526
    %v6658 = vmax.f32 %v6425, %v6528
    %v6659 = vmax.f32 %v6426, %v6530
    %v6660 = vmax.f32 %v6427, %v6532
    %v6661 = vmax.f32 %v6428, %v6534
    %v6662 = vmax.f32 %v6429, %v6536
    %v6663 = vmax.f32 %v6430, %v6538
    %v6664 = vmax.f32 %v6431, %v6540
    %v6665 = vmax.f32 %v6432, %v6542
    %v6666 = vmax.f32 %v6433, %v6544
    %v6667 = vmax.f32 %v6434, %v6546
    %v6668 = vmax.f32 %v6435, %v6548
    %v6669 = vmax.f32 %v6436, %v6550
    %v6670 = vmax.f32 %v6437, %v6552
    %v6671 = vmax.f32 %v6438, %v6554
    %v6672 = vmax.f32 %v6439, %v6556
    %v6673 = vmax.f32 %v6440, %v6558
    %v6674 = vmax.f32 %v6441, %v6560
    %v6675 = vmax.f32 %v6442, %v6562
    %v6676 = vmax.f32 %v6443, %v6564
    %v6677 = vmax.f32 %v6444, %v6566
    %v6678 = vmax.f32 %v6445, %v6568
    %v6679 = vmax.f32 %v6446, %v6570
    %v6680 = vmax.f32 %v6447, %v6572
    %v6681 = vmax.f32 %v6448, %v6574
    %v6682 = vmax.f32 %v6449, %v6576
    %v6683 = vmax.f32 %v6450, %v6578
    %v6684 = vmax.f32 %v6451, %v6580
    %v6685 = vmax.f32 %v6452, %v6582
    %v6686 = vmax.f32 %v6453, %v6584
    %v6687 = vmax.f32 %v6454, %v6586
    %v6688 = vmax.f32 %v6455, %v6588
    %v6689 = vmax.f32 %v6456, %v6590
    %v6690 = vmax.f32 %v6457, %v6592
    %v6691 = vmax.f32 %v6458, %v6594
    %v6692 = vmax.f32 %v6459, %v6596
    %6693 = vst [vmem:[#allocation5] sm:$0xff] %v6645
    %6694 = vst [vmem:[#allocation5 + $0x8] sm:$0xff] %v6646
    %6695 = vst [vmem:[#allocation5 + $0x10] sm:$0xff] %v6647
    %6696 = vst [vmem:[#allocation5 + $0x18] sm:$0xff] %v6648
    %6697 = vst [vmem:[#allocation5 + $0x20] sm:$0xff] %v6649
    %6698 = vst [vmem:[#allocation5 + $0x28] sm:$0xff] %v6650
    %6699 = vst [vmem:[#allocation5 + $0x30] sm:$0xff] %v6651
    %6700 = vst [vmem:[#allocation5 + $0x38] sm:$0xff] %v6652
    %6701 = vst [vmem:[#allocation5 + $0x40] sm:$0xff] %v6653
    %6702 = vst [vmem:[#allocation5 + $0x48] sm:$0xff] %v6654
    %6703 = vst [vmem:[#allocation5 + $0x50] sm:$0xff] %v6655
    %6704 = vst [vmem:[#allocation5 + $0x58] sm:$0xff] %v6656
    %6705 = vst [vmem:[#allocation5 + $0x60] sm:$0xff] %v6657
    %6706 = vst [vmem:[#allocation5 + $0x68] sm:$0xff] %v6658
    %6707 = vst [vmem:[#allocation5 + $0x70] sm:$0xff] %v6659
    %6708 = vst [vmem:[#allocation5 + $0x78] sm:$0xff] %v6660
    %6709 = vst [vmem:[#allocation5 + $0x80] sm:$0xff] %v6661
    %6710 = vst [vmem:[#allocation5 + $0x88] sm:$0xff] %v6662
    %6711 = vst [vmem:[#allocation5 + $0x90] sm:$0xff] %v6663
    %6712 = vst [vmem:[#allocation5 + $0x98] sm:$0xff] %v6664
    %6713 = vst [vmem:[#allocation5 + $0xa0] sm:$0xff] %v6665
    %6714 = vst [vmem:[#allocation5 + $0xa8] sm:$0xff] %v6666
    %6715 = vst [vmem:[#allocation5 + $0xb0] sm:$0xff] %v6667
    %6716 = vst [vmem:[#allocation5 + $0xb8] sm:$0xff] %v6668
    %6717 = vst [vmem:[#allocation5 + $0xc0] sm:$0xff] %v6669
    %6718 = vst [vmem:[#allocation5 + $0xc8] sm:$0xff] %v6670
    %6719 = vst [vmem:[#allocation5 + $0xd0] sm:$0xff] %v6671
    %6720 = vst [vmem:[#allocation5 + $0xd8] sm:$0xff] %v6672
    %6721 = vst [vmem:[#allocation5 + $0xe0] sm:$0xff] %v6673
    %6722 = vst [vmem:[#allocation5 + $0xe8] sm:$0xff] %v6674
    %6723 = vst [vmem:[#allocation5 + $0xf0] sm:$0xff] %v6675
    %6724 = vst [vmem:[#allocation5 + $0xf8] sm:$0xff] %v6676
    %6725 = vst [vmem:[#allocation5 + $0x100] sm:$0xff] %v6677
    %6726 = vst [vmem:[#allocation5 + $0x108] sm:$0xff] %v6678
    %6727 = vst [vmem:[#allocation5 + $0x110] sm:$0xff] %v6679
    %6728 = vst [vmem:[#allocation5 + $0x118] sm:$0xff] %v6680
    %6729 = vst [vmem:[#allocation5 + $0x120] sm:$0xff] %v6681
    %6730 = vst [vmem:[#allocation5 + $0x128] sm:$0xff] %v6682
    %6731 = vst [vmem:[#allocation5 + $0x130] sm:$0xff] %v6683
    %6732 = vst [vmem:[#allocation5 + $0x138] sm:$0xff] %v6684
    %6733 = vst [vmem:[#allocation5 + $0x140] sm:$0xff] %v6685
    %6734 = vst [vmem:[#allocation5 + $0x148] sm:$0xff] %v6686
    %6735 = vst [vmem:[#allocation5 + $0x150] sm:$0xff] %v6687
    %6736 = vst [vmem:[#allocation5 + $0x158] sm:$0xff] %v6688
    %6737 = vst [vmem:[#allocation5 + $0x160] sm:$0xff] %v6689
    %6738 = vst [vmem:[#allocation5 + $0x168] sm:$0xff] %v6690
    %6739 = vst [vmem:[#allocation5 + $0x170] sm:$0xff] %v6691
    %6740 = vst [vmem:[#allocation5 + $0x178] sm:$0xff] %v6692
    %v6741 = vld [vmem:[#allocation5] sm:$0xff]
    %v6742 = vld [vmem:[#allocation5 + $0x8] sm:$0xff]
    %v6743 = vld [vmem:[#allocation5 + $0x10] sm:$0xff]
    %v6744 = vld [vmem:[#allocation5 + $0x18] sm:$0xff]
    %v6745 = vld [vmem:[#allocation5 + $0x20] sm:$0xff]
    %v6746 = vld [vmem:[#allocation5 + $0x28] sm:$0xff]
    %v6747 = vld [vmem:[#allocation5 + $0x40] sm:$0xff]
    %v6748 = vld [vmem:[#allocation5 + $0x48] sm:$0xff]
    %v6749 = vld [vmem:[#allocation5 + $0x50] sm:$0xff]
    %v6750 = vld [vmem:[#allocation5 + $0x58] sm:$0xff]
    %v6751 = vld [vmem:[#allocation5 + $0x60] sm:$0xff]
    %v6752 = vld [vmem:[#allocation5 + $0x68] sm:$0xff]
    %v6753 = vld [vmem:[#allocation5 + $0x80] sm:$0xff]
    %v6754 = vld [vmem:[#allocation5 + $0x88] sm:$0xff]
    %v6755 = vld [vmem:[#allocation5 + $0x90] sm:$0xff]
    %v6756 = vld [vmem:[#allocation5 + $0x98] sm:$0xff]
    %v6757 = vld [vmem:[#allocation5 + $0xa0] sm:$0xff]
    %v6758 = vld [vmem:[#allocation5 + $0xa8] sm:$0xff]
    %v6759 = vld [vmem:[#allocation5 + $0xc0] sm:$0xff]
    %v6760 = vld [vmem:[#allocation5 + $0xc8] sm:$0xff]
    %v6761 = vld [vmem:[#allocation5 + $0xd0] sm:$0xff]
    %v6762 = vld [vmem:[#allocation5 + $0xd8] sm:$0xff]
    %v6763 = vld [vmem:[#allocation5 + $0xe0] sm:$0xff]
    %v6764 = vld [vmem:[#allocation5 + $0xe8] sm:$0xff]
    %v6765 = vld [vmem:[#allocation5 + $0x100] sm:$0xff]
    %v6766 = vld [vmem:[#allocation5 + $0x108] sm:$0xff]
    %v6767 = vld [vmem:[#allocation5 + $0x110] sm:$0xff]
    %v6768 = vld [vmem:[#allocation5 + $0x118] sm:$0xff]
    %v6769 = vld [vmem:[#allocation5 + $0x120] sm:$0xff]
    %v6770 = vld [vmem:[#allocation5 + $0x128] sm:$0xff]
    %v6771 = vld [vmem:[#allocation5 + $0x140] sm:$0xff]
    %v6772 = vld [vmem:[#allocation5 + $0x148] sm:$0xff]
    %v6773 = vld [vmem:[#allocation5 + $0x150] sm:$0xff]
    %v6774 = vld [vmem:[#allocation5 + $0x158] sm:$0xff]
    %v6775 = vld [vmem:[#allocation5 + $0x160] sm:$0xff]
    %v6776 = vld [vmem:[#allocation5 + $0x168] sm:$0xff]
    %6813 = vrot.lane.b32.xlu0 %v6741, 80
    %v6814 = vpop.permute.xlu0 %6813
    %6815 = vrot.lane.b32.xlu0 %v6742, 80
    %v6816 = vpop.permute.xlu0 %6815
    %6817 = vrot.lane.b32.xlu0 %v6743, 80
    %v6818 = vpop.permute.xlu0 %6817
    %6819 = vrot.lane.b32.xlu0 %v6744, 80
    %v6820 = vpop.permute.xlu0 %6819
    %6821 = vrot.lane.b32.xlu0 %v6745, 80
    %v6822 = vpop.permute.xlu0 %6821
    %6823 = vrot.lane.b32.xlu0 %v6746, 80
    %v6824 = vpop.permute.xlu0 %6823
    %6825 = vrot.lane.b32.xlu0 %v6747, 80
    %v6826 = vpop.permute.xlu0 %6825
    %6827 = vrot.lane.b32.xlu0 %v6748, 80
    %v6828 = vpop.permute.xlu0 %6827
    %6829 = vrot.lane.b32.xlu0 %v6749, 80
    %v6830 = vpop.permute.xlu0 %6829
    %6831 = vrot.lane.b32.xlu0 %v6750, 80
    %v6832 = vpop.permute.xlu0 %6831
    %6833 = vrot.lane.b32.xlu0 %v6751, 80
    %v6834 = vpop.permute.xlu0 %6833
    %6835 = vrot.lane.b32.xlu0 %v6752, 80
    %v6836 = vpop.permute.xlu0 %6835
    %6837 = vrot.lane.b32.xlu0 %v6753, 80
    %v6838 = vpop.permute.xlu0 %6837
    %6839 = vrot.lane.b32.xlu0 %v6754, 80
    %v6840 = vpop.permute.xlu0 %6839
    %6841 = vrot.lane.b32.xlu0 %v6755, 80
    %v6842 = vpop.permute.xlu0 %6841
    %6843 = vrot.lane.b32.xlu0 %v6756, 80
    %v6844 = vpop.permute.xlu0 %6843
    %6845 = vrot.lane.b32.xlu0 %v6757, 80
    %v6846 = vpop.permute.xlu0 %6845
    %6847 = vrot.lane.b32.xlu0 %v6758, 80
    %v6848 = vpop.permute.xlu0 %6847
    %6849 = vrot.lane.b32.xlu0 %v6759, 80
    %v6850 = vpop.permute.xlu0 %6849
    %6851 = vrot.lane.b32.xlu0 %v6760, 80
    %v6852 = vpop.permute.xlu0 %6851
    %6853 = vrot.lane.b32.xlu0 %v6761, 80
    %v6854 = vpop.permute.xlu0 %6853
    %6855 = vrot.lane.b32.xlu0 %v6762, 80
    %v6856 = vpop.permute.xlu0 %6855
    %6857 = vrot.lane.b32.xlu0 %v6763, 80
    %v6858 = vpop.permute.xlu0 %6857
    %6859 = vrot.lane.b32.xlu0 %v6764, 80
    %v6860 = vpop.permute.xlu0 %6859
    %6861 = vrot.lane.b32.xlu0 %v6765, 80
    %v6862 = vpop.permute.xlu0 %6861
    %6863 = vrot.lane.b32.xlu0 %v6766, 80
    %v6864 = vpop.permute.xlu0 %6863
    %6865 = vrot.lane.b32.xlu0 %v6767, 80
    %v6866 = vpop.permute.xlu0 %6865
    %6867 = vrot.lane.b32.xlu0 %v6768, 80
    %v6868 = vpop.permute.xlu0 %6867
    %6869 = vrot.lane.b32.xlu0 %v6769, 80
    %v6870 = vpop.permute.xlu0 %6869
    %6871 = vrot.lane.b32.xlu0 %v6770, 80
    %v6872 = vpop.permute.xlu0 %6871
    %6873 = vrot.lane.b32.xlu0 %v6771, 80
    %v6874 = vpop.permute.xlu0 %6873
    %6875 = vrot.lane.b32.xlu0 %v6772, 80
    %v6876 = vpop.permute.xlu0 %6875
    %6877 = vrot.lane.b32.xlu0 %v6773, 80
    %v6878 = vpop.permute.xlu0 %6877
    %6879 = vrot.lane.b32.xlu0 %v6774, 80
    %v6880 = vpop.permute.xlu0 %6879
    %6881 = vrot.lane.b32.xlu0 %v6775, 80
    %v6882 = vpop.permute.xlu0 %6881
    %6883 = vrot.lane.b32.xlu0 %v6776, 80
    %v6884 = vpop.permute.xlu0 %6883
    %vm6885 = vcmask 654336
    %v6886 = vsel %vm6885, %v6814, %v6816
    %v6887 = vsel %vm6885, %v6816, %v6818
    %v6888 = vsel %vm6885, %v6818, %v6820
    %v6889 = vsel %vm6885, %v6820, %v6822
    %v6890 = vsel %vm6885, %v6822, %v6824
    %v6891 = vsel %vm6885, %v6826, %v6828
    %v6892 = vsel %vm6885, %v6828, %v6830
    %v6893 = vsel %vm6885, %v6830, %v6832
    %v6894 = vsel %vm6885, %v6832, %v6834
    %v6895 = vsel %vm6885, %v6834, %v6836
    %v6896 = vsel %vm6885, %v6838, %v6840
    %v6897 = vsel %vm6885, %v6840, %v6842
    %v6898 = vsel %vm6885, %v6842, %v6844
    %v6899 = vsel %vm6885, %v6844, %v6846
    %v6900 = vsel %vm6885, %v6846, %v6848
    %v6901 = vsel %vm6885, %v6850, %v6852
    %v6902 = vsel %vm6885, %v6852, %v6854
    %v6903 = vsel %vm6885, %v6854, %v6856
    %v6904 = vsel %vm6885, %v6856, %v6858
    %v6905 = vsel %vm6885, %v6858, %v6860
    %v6906 = vsel %vm6885, %v6862, %v6864
    %v6907 = vsel %vm6885, %v6864, %v6866
    %v6908 = vsel %vm6885, %v6866, %v6868
    %v6909 = vsel %vm6885, %v6868, %v6870
    %v6910 = vsel %vm6885, %v6870, %v6872
    %v6911 = vsel %vm6885, %v6874, %v6876
    %v6912 = vsel %vm6885, %v6876, %v6878
    %v6913 = vsel %vm6885, %v6878, %v6880
    %v6914 = vsel %vm6885, %v6880, %v6882
    %v6915 = vsel %vm6885, %v6882, %v6884
    %v6952 = vmax.f32 %v6741, %v6886
    %v6953 = vmax.f32 %v6742, %v6887
    %v6954 = vmax.f32 %v6743, %v6888
    %v6955 = vmax.f32 %v6744, %v6889
    %v6956 = vmax.f32 %v6745, %v6890
    %v6957 = vmax.f32 %v6746, %v6824
    %v6958 = vmax.f32 %v6747, %v6891
    %v6959 = vmax.f32 %v6748, %v6892
    %v6960 = vmax.f32 %v6749, %v6893
    %v6961 = vmax.f32 %v6750, %v6894
    %v6962 = vmax.f32 %v6751, %v6895
    %v6963 = vmax.f32 %v6752, %v6836
    %v6964 = vmax.f32 %v6753, %v6896
    %v6965 = vmax.f32 %v6754, %v6897
    %v6966 = vmax.f32 %v6755, %v6898
    %v6967 = vmax.f32 %v6756, %v6899
    %v6968 = vmax.f32 %v6757, %v6900
    %v6969 = vmax.f32 %v6758, %v6848
    %v6970 = vmax.f32 %v6759, %v6901
    %v6971 = vmax.f32 %v6760, %v6902
    %v6972 = vmax.f32 %v6761, %v6903
    %v6973 = vmax.f32 %v6762, %v6904
    %v6974 = vmax.f32 %v6763, %v6905
    %v6975 = vmax.f32 %v6764, %v6860
    %v6976 = vmax.f32 %v6765, %v6906
    %v6977 = vmax.f32 %v6766, %v6907
    %v6978 = vmax.f32 %v6767, %v6908
    %v6979 = vmax.f32 %v6768, %v6909
    %v6980 = vmax.f32 %v6769, %v6910
    %v6981 = vmax.f32 %v6770, %v6872
    %v6982 = vmax.f32 %v6771, %v6911
    %v6983 = vmax.f32 %v6772, %v6912
    %v6984 = vmax.f32 %v6773, %v6913
    %v6985 = vmax.f32 %v6774, %v6914
    %v6986 = vmax.f32 %v6775, %v6915
    %v6987 = vmax.f32 %v6776, %v6884
    %6988 = vrot.lane.b32.xlu0 %v6741, 32
    %v6989 = vpop.permute.xlu0 %6988
    %6990 = vrot.lane.b32.xlu0 %v6742, 32
    %v6991 = vpop.permute.xlu0 %6990
    %6992 = vrot.lane.b32.xlu0 %v6743, 32
    %v6993 = vpop.permute.xlu0 %6992
    %6994 = vrot.lane.b32.xlu0 %v6744, 32
    %v6995 = vpop.permute.xlu0 %6994
    %6996 = vrot.lane.b32.xlu0 %v6745, 32
    %v6997 = vpop.permute.xlu0 %6996
    %6998 = vrot.lane.b32.xlu0 %v6746, 32
    %v6999 = vpop.permute.xlu0 %6998
    %7000 = vrot.lane.b32.xlu0 %v6747, 32
    %v7001 = vpop.permute.xlu0 %7000
    %7002 = vrot.lane.b32.xlu0 %v6748, 32
    %v7003 = vpop.permute.xlu0 %7002
    %7004 = vrot.lane.b32.xlu0 %v6749, 32
    %v7005 = vpop.permute.xlu0 %7004
    %7006 = vrot.lane.b32.xlu0 %v6750, 32
    %v7007 = vpop.permute.xlu0 %7006
    %7008 = vrot.lane.b32.xlu0 %v6751, 32
    %v7009 = vpop.permute.xlu0 %7008
    %7010 = vrot.lane.b32.xlu0 %v6752, 32
    %v7011 = vpop.permute.xlu0 %7010
    %7012 = vrot.lane.b32.xlu0 %v6753, 32
    %v7013 = vpop.permute.xlu0 %7012
    %7014 = vrot.lane.b32.xlu0 %v6754, 32
    %v7015 = vpop.permute.xlu0 %7014
    %7016 = vrot.lane.b32.xlu0 %v6755, 32
    %v7017 = vpop.permute.xlu0 %7016
    %7018 = vrot.lane.b32.xlu0 %v6756, 32
    %v7019 = vpop.permute.xlu0 %7018
    %7020 = vrot.lane.b32.xlu0 %v6757, 32
    %v7021 = vpop.permute.xlu0 %7020
    %7022 = vrot.lane.b32.xlu0 %v6758, 32
    %v7023 = vpop.permute.xlu0 %7022
    %7024 = vrot.lane.b32.xlu0 %v6759, 32
    %v7025 = vpop.permute.xlu0 %7024
    %7026 = vrot.lane.b32.xlu0 %v6760, 32
    %v7027 = vpop.permute.xlu0 %7026
    %7028 = vrot.lane.b32.xlu0 %v6761, 32
    %v7029 = vpop.permute.xlu0 %7028
    %7030 = vrot.lane.b32.xlu0 %v6762, 32
    %v7031 = vpop.permute.xlu0 %7030
    %7032 = vrot.lane.b32.xlu0 %v6763, 32
    %v7033 = vpop.permute.xlu0 %7032
    %7034 = vrot.lane.b32.xlu0 %v6764, 32
    %v7035 = vpop.permute.xlu0 %7034
    %7036 = vrot.lane.b32.xlu0 %v6765, 32
    %v7037 = vpop.permute.xlu0 %7036
    %7038 = vrot.lane.b32.xlu0 %v6766, 32
    %v7039 = vpop.permute.xlu0 %7038
    %7040 = vrot.lane.b32.xlu0 %v6767, 32
    %v7041 = vpop.permute.xlu0 %7040
    %7042 = vrot.lane.b32.xlu0 %v6768, 32
    %v7043 = vpop.permute.xlu0 %7042
    %7044 = vrot.lane.b32.xlu0 %v6769, 32
    %v7045 = vpop.permute.xlu0 %7044
    %7046 = vrot.lane.b32.xlu0 %v6770, 32
    %v7047 = vpop.permute.xlu0 %7046
    %7048 = vrot.lane.b32.xlu0 %v6771, 32
    %v7049 = vpop.permute.xlu0 %7048
    %7050 = vrot.lane.b32.xlu0 %v6772, 32
    %v7051 = vpop.permute.xlu0 %7050
    %7052 = vrot.lane.b32.xlu0 %v6773, 32
    %v7053 = vpop.permute.xlu0 %7052
    %7054 = vrot.lane.b32.xlu0 %v6774, 32
    %v7055 = vpop.permute.xlu0 %7054
    %7056 = vrot.lane.b32.xlu0 %v6775, 32
    %v7057 = vpop.permute.xlu0 %7056
    %7058 = vrot.lane.b32.xlu0 %v6776, 32
    %v7059 = vpop.permute.xlu0 %7058
    %vm7060 = vcmask 261120
    %v7061 = vsel %vm7060, %v6989, %v6991
    %v7062 = vsel %vm7060, %v6991, %v6993
    %v7063 = vsel %vm7060, %v6993, %v6995
    %v7064 = vsel %vm7060, %v6995, %v6997
    %v7065 = vsel %vm7060, %v6997, %v6999
    %v7066 = vsel %vm7060, %v7001, %v7003
    %v7067 = vsel %vm7060, %v7003, %v7005
    %v7068 = vsel %vm7060, %v7005, %v7007
    %v7069 = vsel %vm7060, %v7007, %v7009
    %v7070 = vsel %vm7060, %v7009, %v7011
    %v7071 = vsel %vm7060, %v7013, %v7015
    %v7072 = vsel %vm7060, %v7015, %v7017
    %v7073 = vsel %vm7060, %v7017, %v7019
    %v7074 = vsel %vm7060, %v7019, %v7021
    %v7075 = vsel %vm7060, %v7021, %v7023
    %v7076 = vsel %vm7060, %v7025, %v7027
    %v7077 = vsel %vm7060, %v7027, %v7029
    %v7078 = vsel %vm7060, %v7029, %v7031
    %v7079 = vsel %vm7060, %v7031, %v7033
    %v7080 = vsel %vm7060, %v7033, %v7035
    %v7081 = vsel %vm7060, %v7037, %v7039
    %v7082 = vsel %vm7060, %v7039, %v7041
    %v7083 = vsel %vm7060, %v7041, %v7043
    %v7084 = vsel %vm7060, %v7043, %v7045
    %v7085 = vsel %vm7060, %v7045, %v7047
    %v7086 = vsel %vm7060, %v7049, %v7051
    %v7087 = vsel %vm7060, %v7051, %v7053
    %v7088 = vsel %vm7060, %v7053, %v7055
    %v7089 = vsel %vm7060, %v7055, %v7057
    %v7090 = vsel %vm7060, %v7057, %v7059
    %v7127 = vmax.f32 %v6952, %v7061
    %v7128 = vmax.f32 %v6953, %v7062
    %v7129 = vmax.f32 %v6954, %v7063
    %v7130 = vmax.f32 %v6955, %v7064
    %v7131 = vmax.f32 %v6956, %v7065
    %v7132 = vmax.f32 %v6957, %v6999
    %v7133 = vmax.f32 %v6958, %v7066
    %v7134 = vmax.f32 %v6959, %v7067
    %v7135 = vmax.f32 %v6960, %v7068
    %v7136 = vmax.f32 %v6961, %v7069
    %v7137 = vmax.f32 %v6962, %v7070
    %v7138 = vmax.f32 %v6963, %v7011
    %v7139 = vmax.f32 %v6964, %v7071
    %v7140 = vmax.f32 %v6965, %v7072
    %v7141 = vmax.f32 %v6966, %v7073
    %v7142 = vmax.f32 %v6967, %v7074
    %v7143 = vmax.f32 %v6968, %v7075
    %v7144 = vmax.f32 %v6969, %v7023
    %v7145 = vmax.f32 %v6970, %v7076
    %v7146 = vmax.f32 %v6971, %v7077
    %v7147 = vmax.f32 %v6972, %v7078
    %v7148 = vmax.f32 %v6973, %v7079
    %v7149 = vmax.f32 %v6974, %v7080
    %v7150 = vmax.f32 %v6975, %v7035
    %v7151 = vmax.f32 %v6976, %v7081
    %v7152 = vmax.f32 %v6977, %v7082
    %v7153 = vmax.f32 %v6978, %v7083
    %v7154 = vmax.f32 %v6979, %v7084
    %v7155 = vmax.f32 %v6980, %v7085
    %v7156 = vmax.f32 %v6981, %v7047
    %v7157 = vmax.f32 %v6982, %v7086
    %v7158 = vmax.f32 %v6983, %v7087
    %v7159 = vmax.f32 %v6984, %v7088
    %v7160 = vmax.f32 %v6985, %v7089
    %v7161 = vmax.f32 %v6986, %v7090
    %v7162 = vmax.f32 %v6987, %v7059
    %v7163 = vld [vmem:[#allocation5 + $0x30] sm:$0xff]
    %v7164 = vld [vmem:[#allocation5 + $0x70] sm:$0xff]
    %v7165 = vld [vmem:[#allocation5 + $0xb0] sm:$0xff]
    %v7166 = vld [vmem:[#allocation5 + $0xf0] sm:$0xff]
    %v7167 = vld [vmem:[#allocation5 + $0x130] sm:$0xff]
    %v7168 = vld [vmem:[#allocation5 + $0x170] sm:$0xff]
    %7175 = vrot.lane.b32.xlu0 %v6742, 112
    %v7176 = vpop.permute.xlu0 %7175
    %7177 = vrot.lane.b32.xlu0 %v6743, 112
    %v7178 = vpop.permute.xlu0 %7177
    %7179 = vrot.lane.b32.xlu0 %v6744, 112
    %v7180 = vpop.permute.xlu0 %7179
    %7181 = vrot.lane.b32.xlu0 %v6745, 112
    %v7182 = vpop.permute.xlu0 %7181
    %7183 = vrot.lane.b32.xlu0 %v6746, 112
    %v7184 = vpop.permute.xlu0 %7183
    %7185 = vrot.lane.b32.xlu0 %v7163, 112
    %v7186 = vpop.permute.xlu0 %7185
    %7187 = vrot.lane.b32.xlu0 %v6748, 112
    %v7188 = vpop.permute.xlu0 %7187
    %7189 = vrot.lane.b32.xlu0 %v6749, 112
    %v7190 = vpop.permute.xlu0 %7189
    %7191 = vrot.lane.b32.xlu0 %v6750, 112
    %v7192 = vpop.permute.xlu0 %7191
    %7193 = vrot.lane.b32.xlu0 %v6751, 112
    %v7194 = vpop.permute.xlu0 %7193
    %7195 = vrot.lane.b32.xlu0 %v6752, 112
    %v7196 = vpop.permute.xlu0 %7195
    %7197 = vrot.lane.b32.xlu0 %v7164, 112
    %v7198 = vpop.permute.xlu0 %7197
    %7199 = vrot.lane.b32.xlu0 %v6754, 112
    %v7200 = vpop.permute.xlu0 %7199
    %7201 = vrot.lane.b32.xlu0 %v6755, 112
    %v7202 = vpop.permute.xlu0 %7201
    %7203 = vrot.lane.b32.xlu0 %v6756, 112
    %v7204 = vpop.permute.xlu0 %7203
    %7205 = vrot.lane.b32.xlu0 %v6757, 112
    %v7206 = vpop.permute.xlu0 %7205
    %7207 = vrot.lane.b32.xlu0 %v6758, 112
    %v7208 = vpop.permute.xlu0 %7207
    %7209 = vrot.lane.b32.xlu0 %v7165, 112
    %v7210 = vpop.permute.xlu0 %7209
    %7211 = vrot.lane.b32.xlu0 %v6760, 112
    %v7212 = vpop.permute.xlu0 %7211
    %7213 = vrot.lane.b32.xlu0 %v6761, 112
    %v7214 = vpop.permute.xlu0 %7213
    %7215 = vrot.lane.b32.xlu0 %v6762, 112
    %v7216 = vpop.permute.xlu0 %7215
    %7217 = vrot.lane.b32.xlu0 %v6763, 112
    %v7218 = vpop.permute.xlu0 %7217
    %7219 = vrot.lane.b32.xlu0 %v6764, 112
    %v7220 = vpop.permute.xlu0 %7219
    %7221 = vrot.lane.b32.xlu0 %v7166, 112
    %v7222 = vpop.permute.xlu0 %7221
    %7223 = vrot.lane.b32.xlu0 %v6766, 112
    %v7224 = vpop.permute.xlu0 %7223
    %7225 = vrot.lane.b32.xlu0 %v6767, 112
    %v7226 = vpop.permute.xlu0 %7225
    %7227 = vrot.lane.b32.xlu0 %v6768, 112
    %v7228 = vpop.permute.xlu0 %7227
    %7229 = vrot.lane.b32.xlu0 %v6769, 112
    %v7230 = vpop.permute.xlu0 %7229
    %7231 = vrot.lane.b32.xlu0 %v6770, 112
    %v7232 = vpop.permute.xlu0 %7231
    %7233 = vrot.lane.b32.xlu0 %v7167, 112
    %v7234 = vpop.permute.xlu0 %7233
    %7235 = vrot.lane.b32.xlu0 %v6772, 112
    %v7236 = vpop.permute.xlu0 %7235
    %7237 = vrot.lane.b32.xlu0 %v6773, 112
    %v7238 = vpop.permute.xlu0 %7237
    %7239 = vrot.lane.b32.xlu0 %v6774, 112
    %v7240 = vpop.permute.xlu0 %7239
    %7241 = vrot.lane.b32.xlu0 %v6775, 112
    %v7242 = vpop.permute.xlu0 %7241
    %7243 = vrot.lane.b32.xlu0 %v6776, 112
    %v7244 = vpop.permute.xlu0 %7243
    %7245 = vrot.lane.b32.xlu0 %v7168, 112
    %v7246 = vpop.permute.xlu0 %7245
    %vm7247 = vcmask 916480
    %v7248 = vsel %vm7247, %v7176, %v7178
    %v7249 = vsel %vm7247, %v7178, %v7180
    %v7250 = vsel %vm7247, %v7180, %v7182
    %v7251 = vsel %vm7247, %v7182, %v7184
    %v7252 = vsel %vm7247, %v7184, %v7186
    %v7253 = vsel %vm7247, %v7188, %v7190
    %v7254 = vsel %vm7247, %v7190, %v7192
    %v7255 = vsel %vm7247, %v7192, %v7194
    %v7256 = vsel %vm7247, %v7194, %v7196
    %v7257 = vsel %vm7247, %v7196, %v7198
    %v7258 = vsel %vm7247, %v7200, %v7202
    %v7259 = vsel %vm7247, %v7202, %v7204
    %v7260 = vsel %vm7247, %v7204, %v7206
    %v7261 = vsel %vm7247, %v7206, %v7208
    %v7262 = vsel %vm7247, %v7208, %v7210
    %v7263 = vsel %vm7247, %v7212, %v7214
    %v7264 = vsel %vm7247, %v7214, %v7216
    %v7265 = vsel %vm7247, %v7216, %v7218
    %v7266 = vsel %vm7247, %v7218, %v7220
    %v7267 = vsel %vm7247, %v7220, %v7222
    %v7268 = vsel %vm7247, %v7224, %v7226
    %v7269 = vsel %vm7247, %v7226, %v7228
    %v7270 = vsel %vm7247, %v7228, %v7230
    %v7271 = vsel %vm7247, %v7230, %v7232
    %v7272 = vsel %vm7247, %v7232, %v7234
    %v7273 = vsel %vm7247, %v7236, %v7238
    %v7274 = vsel %vm7247, %v7238, %v7240
    %v7275 = vsel %vm7247, %v7240, %v7242
    %v7276 = vsel %vm7247, %v7242, %v7244
    %v7277 = vsel %vm7247, %v7244, %v7246
    %v7314 = vmax.f32 %v7127, %v7248
    %v7315 = vmax.f32 %v7128, %v7249
    %v7316 = vmax.f32 %v7129, %v7250
    %v7317 = vmax.f32 %v7130, %v7251
    %v7318 = vmax.f32 %v7131, %v7252
    %v7319 = vmax.f32 %v7132, %v7186
    %v7320 = vmax.f32 %v7133, %v7253
    %v7321 = vmax.f32 %v7134, %v7254
    %v7322 = vmax.f32 %v7135, %v7255
    %v7323 = vmax.f32 %v7136, %v7256
    %v7324 = vmax.f32 %v7137, %v7257
    %v7325 = vmax.f32 %v7138, %v7198
    %v7326 = vmax.f32 %v7139, %v7258
    %v7327 = vmax.f32 %v7140, %v7259
    %v7328 = vmax.f32 %v7141, %v7260
    %v7329 = vmax.f32 %v7142, %v7261
    %v7330 = vmax.f32 %v7143, %v7262
    %v7331 = vmax.f32 %v7144, %v7210
    %v7332 = vmax.f32 %v7145, %v7263
    %v7333 = vmax.f32 %v7146, %v7264
    %v7334 = vmax.f32 %v7147, %v7265
    %v7335 = vmax.f32 %v7148, %v7266
    %v7336 = vmax.f32 %v7149, %v7267
    %v7337 = vmax.f32 %v7150, %v7222
    %v7338 = vmax.f32 %v7151, %v7268
    %v7339 = vmax.f32 %v7152, %v7269
    %v7340 = vmax.f32 %v7153, %v7270
    %v7341 = vmax.f32 %v7154, %v7271
    %v7342 = vmax.f32 %v7155, %v7272
    %v7343 = vmax.f32 %v7156, %v7234
    %v7344 = vmax.f32 %v7157, %v7273
    %v7345 = vmax.f32 %v7158, %v7274
    %v7346 = vmax.f32 %v7159, %v7275
    %v7347 = vmax.f32 %v7160, %v7276
    %v7348 = vmax.f32 %v7161, %v7277
    %v7349 = vmax.f32 %v7162, %v7246
    %7350 = vrot.lane.b32.xlu0 %v6742, 64
    %v7351 = vpop.permute.xlu0 %7350
    %7352 = vrot.lane.b32.xlu0 %v6743, 64
    %v7353 = vpop.permute.xlu0 %7352
    %7354 = vrot.lane.b32.xlu0 %v6744, 64
    %v7355 = vpop.permute.xlu0 %7354
    %7356 = vrot.lane.b32.xlu0 %v6745, 64
    %v7357 = vpop.permute.xlu0 %7356
    %7358 = vrot.lane.b32.xlu0 %v6746, 64
    %v7359 = vpop.permute.xlu0 %7358
    %7360 = vrot.lane.b32.xlu0 %v7163, 64
    %v7361 = vpop.permute.xlu0 %7360
    %7362 = vrot.lane.b32.xlu0 %v6748, 64
    %v7363 = vpop.permute.xlu0 %7362
    %7364 = vrot.lane.b32.xlu0 %v6749, 64
    %v7365 = vpop.permute.xlu0 %7364
    %7366 = vrot.lane.b32.xlu0 %v6750, 64
    %v7367 = vpop.permute.xlu0 %7366
    %7368 = vrot.lane.b32.xlu0 %v6751, 64
    %v7369 = vpop.permute.xlu0 %7368
    %7370 = vrot.lane.b32.xlu0 %v6752, 64
    %v7371 = vpop.permute.xlu0 %7370
    %7372 = vrot.lane.b32.xlu0 %v7164, 64
    %v7373 = vpop.permute.xlu0 %7372
    %7374 = vrot.lane.b32.xlu0 %v6754, 64
    %v7375 = vpop.permute.xlu0 %7374
    %7376 = vrot.lane.b32.xlu0 %v6755, 64
    %v7377 = vpop.permute.xlu0 %7376
    %7378 = vrot.lane.b32.xlu0 %v6756, 64
    %v7379 = vpop.permute.xlu0 %7378
    %7380 = vrot.lane.b32.xlu0 %v6757, 64
    %v7381 = vpop.permute.xlu0 %7380
    %7382 = vrot.lane.b32.xlu0 %v6758, 64
    %v7383 = vpop.permute.xlu0 %7382
    %7384 = vrot.lane.b32.xlu0 %v7165, 64
    %v7385 = vpop.permute.xlu0 %7384
    %7386 = vrot.lane.b32.xlu0 %v6760, 64
    %v7387 = vpop.permute.xlu0 %7386
    %7388 = vrot.lane.b32.xlu0 %v6761, 64
    %v7389 = vpop.permute.xlu0 %7388
    %7390 = vrot.lane.b32.xlu0 %v6762, 64
    %v7391 = vpop.permute.xlu0 %7390
    %7392 = vrot.lane.b32.xlu0 %v6763, 64
    %v7393 = vpop.permute.xlu0 %7392
    %7394 = vrot.lane.b32.xlu0 %v6764, 64
    %v7395 = vpop.permute.xlu0 %7394
    %7396 = vrot.lane.b32.xlu0 %v7166, 64
    %v7397 = vpop.permute.xlu0 %7396
    %7398 = vrot.lane.b32.xlu0 %v6766, 64
    %v7399 = vpop.permute.xlu0 %7398
    %7400 = vrot.lane.b32.xlu0 %v6767, 64
    %v7401 = vpop.permute.xlu0 %7400
    %7402 = vrot.lane.b32.xlu0 %v6768, 64
    %v7403 = vpop.permute.xlu0 %7402
    %7404 = vrot.lane.b32.xlu0 %v6769, 64
    %v7405 = vpop.permute.xlu0 %7404
    %7406 = vrot.lane.b32.xlu0 %v6770, 64
    %v7407 = vpop.permute.xlu0 %7406
    %7408 = vrot.lane.b32.xlu0 %v7167, 64
    %v7409 = vpop.permute.xlu0 %7408
    %7410 = vrot.lane.b32.xlu0 %v6772, 64
    %v7411 = vpop.permute.xlu0 %7410
    %7412 = vrot.lane.b32.xlu0 %v6773, 64
    %v7413 = vpop.permute.xlu0 %7412
    %7414 = vrot.lane.b32.xlu0 %v6774, 64
    %v7415 = vpop.permute.xlu0 %7414
    %7416 = vrot.lane.b32.xlu0 %v6775, 64
    %v7417 = vpop.permute.xlu0 %7416
    %7418 = vrot.lane.b32.xlu0 %v6776, 64
    %v7419 = vpop.permute.xlu0 %7418
    %7420 = vrot.lane.b32.xlu0 %v7168, 64
    %v7421 = vpop.permute.xlu0 %7420
    %vm7422 = vcmask 523264
    %v7423 = vsel %vm7422, %v7351, %v7353
    %v7424 = vsel %vm7422, %v7353, %v7355
    %v7425 = vsel %vm7422, %v7355, %v7357
    %v7426 = vsel %vm7422, %v7357, %v7359
    %v7427 = vsel %vm7422, %v7359, %v7361
    %v7428 = vsel %vm7422, %v7363, %v7365
    %v7429 = vsel %vm7422, %v7365, %v7367
    %v7430 = vsel %vm7422, %v7367, %v7369
    %v7431 = vsel %vm7422, %v7369, %v7371
    %v7432 = vsel %vm7422, %v7371, %v7373
    %v7433 = vsel %vm7422, %v7375, %v7377
    %v7434 = vsel %vm7422, %v7377, %v7379
    %v7435 = vsel %vm7422, %v7379, %v7381
    %v7436 = vsel %vm7422, %v7381, %v7383
    %v7437 = vsel %vm7422, %v7383, %v7385
    %v7438 = vsel %vm7422, %v7387, %v7389
    %v7439 = vsel %vm7422, %v7389, %v7391
    %v7440 = vsel %vm7422, %v7391, %v7393
    %v7441 = vsel %vm7422, %v7393, %v7395
    %v7442 = vsel %vm7422, %v7395, %v7397
    %v7443 = vsel %vm7422, %v7399, %v7401
    %v7444 = vsel %vm7422, %v7401, %v7403
    %v7445 = vsel %vm7422, %v7403, %v7405
    %v7446 = vsel %vm7422, %v7405, %v7407
    %v7447 = vsel %vm7422, %v7407, %v7409
    %v7448 = vsel %vm7422, %v7411, %v7413
    %v7449 = vsel %vm7422, %v7413, %v7415
    %v7450 = vsel %vm7422, %v7415, %v7417
    %v7451 = vsel %vm7422, %v7417, %v7419
    %v7452 = vsel %vm7422, %v7419, %v7421
    %v7489 = vmax.f32 %v7314, %v7423
    %v7490 = vmax.f32 %v7315, %v7424
    %v7491 = vmax.f32 %v7316, %v7425
    %v7492 = vmax.f32 %v7317, %v7426
    %v7493 = vmax.f32 %v7318, %v7427
    %v7494 = vmax.f32 %v7319, %v7361
    %v7495 = vmax.f32 %v7320, %v7428
    %v7496 = vmax.f32 %v7321, %v7429
    %v7497 = vmax.f32 %v7322, %v7430
    %v7498 = vmax.f32 %v7323, %v7431
    %v7499 = vmax.f32 %v7324, %v7432
    %v7500 = vmax.f32 %v7325, %v7373
    %v7501 = vmax.f32 %v7326, %v7433
    %v7502 = vmax.f32 %v7327, %v7434
    %v7503 = vmax.f32 %v7328, %v7435
    %v7504 = vmax.f32 %v7329, %v7436
    %v7505 = vmax.f32 %v7330, %v7437
    %v7506 = vmax.f32 %v7331, %v7385
    %v7507 = vmax.f32 %v7332, %v7438
    %v7508 = vmax.f32 %v7333, %v7439
    %v7509 = vmax.f32 %v7334, %v7440
    %v7510 = vmax.f32 %v7335, %v7441
    %v7511 = vmax.f32 %v7336, %v7442
    %v7512 = vmax.f32 %v7337, %v7397
    %v7513 = vmax.f32 %v7338, %v7443
    %v7514 = vmax.f32 %v7339, %v7444
    %v7515 = vmax.f32 %v7340, %v7445
    %v7516 = vmax.f32 %v7341, %v7446
    %v7517 = vmax.f32 %v7342, %v7447
    %v7518 = vmax.f32 %v7343, %v7409
    %v7519 = vmax.f32 %v7344, %v7448
    %v7520 = vmax.f32 %v7345, %v7449
    %v7521 = vmax.f32 %v7346, %v7450
    %v7522 = vmax.f32 %v7347, %v7451
    %v7523 = vmax.f32 %v7348, %v7452
    %v7524 = vmax.f32 %v7349, %v7421
    %v7525 = vld [vmem:[#allocation5 + $0x8] sm:$0xff]
    %v7526 = vld [vmem:[#allocation5 + $0x10] sm:$0xff]
    %v7527 = vld [vmem:[#allocation5 + $0x18] sm:$0xff]
    %v7528 = vld [vmem:[#allocation5 + $0x20] sm:$0xff]
    %v7529 = vld [vmem:[#allocation5 + $0x28] sm:$0xff]
    %v7530 = vld [vmem:[#allocation5 + $0x30] sm:$0xff]
    %v7531 = vld [vmem:[#allocation5 + $0x38] sm:$0xff]
    %v7532 = vld [vmem:[#allocation5 + $0x48] sm:$0xff]
    %v7533 = vld [vmem:[#allocation5 + $0x50] sm:$0xff]
    %v7534 = vld [vmem:[#allocation5 + $0x58] sm:$0xff]
    %v7535 = vld [vmem:[#allocation5 + $0x60] sm:$0xff]
    %v7536 = vld [vmem:[#allocation5 + $0x68] sm:$0xff]
    %v7537 = vld [vmem:[#allocation5 + $0x70] sm:$0xff]
    %v7538 = vld [vmem:[#allocation5 + $0x78] sm:$0xff]
    %v7539 = vld [vmem:[#allocation5 + $0x88] sm:$0xff]
    %v7540 = vld [vmem:[#allocation5 + $0x90] sm:$0xff]
    %v7541 = vld [vmem:[#allocation5 + $0x98] sm:$0xff]
    %v7542 = vld [vmem:[#allocation5 + $0xa0] sm:$0xff]
    %v7543 = vld [vmem:[#allocation5 + $0xa8] sm:$0xff]
    %v7544 = vld [vmem:[#allocation5 + $0xb0] sm:$0xff]
    %v7545 = vld [vmem:[#allocation5 + $0xb8] sm:$0xff]
    %v7546 = vld [vmem:[#allocation5 + $0xc8] sm:$0xff]
    %v7547 = vld [vmem:[#allocation5 + $0xd0] sm:$0xff]
    %v7548 = vld [vmem:[#allocation5 + $0xd8] sm:$0xff]
    %v7549 = vld [vmem:[#allocation5 + $0xe0] sm:$0xff]
    %v7550 = vld [vmem:[#allocation5 + $0xe8] sm:$0xff]
    %v7551 = vld [vmem:[#allocation5 + $0xf0] sm:$0xff]
    %v7552 = vld [vmem:[#allocation5 + $0xf8] sm:$0xff]
    %v7553 = vld [vmem:[#allocation5 + $0x108] sm:$0xff]
    %v7554 = vld [vmem:[#allocation5 + $0x110] sm:$0xff]
    %v7555 = vld [vmem:[#allocation5 + $0x118] sm:$0xff]
    %v7556 = vld [vmem:[#allocation5 + $0x120] sm:$0xff]
    %v7557 = vld [vmem:[#allocation5 + $0x128] sm:$0xff]
    %v7558 = vld [vmem:[#allocation5 + $0x130] sm:$0xff]
    %v7559 = vld [vmem:[#allocation5 + $0x138] sm:$0xff]
    %v7560 = vld [vmem:[#allocation5 + $0x148] sm:$0xff]
    %v7561 = vld [vmem:[#allocation5 + $0x150] sm:$0xff]
    %v7562 = vld [vmem:[#allocation5 + $0x158] sm:$0xff]
    %v7563 = vld [vmem:[#allocation5 + $0x160] sm:$0xff]
    %v7564 = vld [vmem:[#allocation5 + $0x168] sm:$0xff]
    %v7565 = vld [vmem:[#allocation5 + $0x170] sm:$0xff]
    %v7566 = vld [vmem:[#allocation5 + $0x178] sm:$0xff]
    %7609 = vrot.lane.b32.xlu0 %v7525, 16
    %v7610 = vpop.permute.xlu0 %7609
    %7611 = vrot.lane.b32.xlu0 %v7526, 16
    %v7612 = vpop.permute.xlu0 %7611
    %7613 = vrot.lane.b32.xlu0 %v7527, 16
    %v7614 = vpop.permute.xlu0 %7613
    %7615 = vrot.lane.b32.xlu0 %v7528, 16
    %v7616 = vpop.permute.xlu0 %7615
    %7617 = vrot.lane.b32.xlu0 %v7529, 16
    %v7618 = vpop.permute.xlu0 %7617
    %7619 = vrot.lane.b32.xlu0 %v7530, 16
    %v7620 = vpop.permute.xlu0 %7619
    %7621 = vrot.lane.b32.xlu0 %v7531, 16
    %v7622 = vpop.permute.xlu0 %7621
    %7623 = vrot.lane.b32.xlu0 %v7532, 16
    %v7624 = vpop.permute.xlu0 %7623
    %7625 = vrot.lane.b32.xlu0 %v7533, 16
    %v7626 = vpop.permute.xlu0 %7625
    %7627 = vrot.lane.b32.xlu0 %v7534, 16
    %v7628 = vpop.permute.xlu0 %7627
    %7629 = vrot.lane.b32.xlu0 %v7535, 16
    %v7630 = vpop.permute.xlu0 %7629
    %7631 = vrot.lane.b32.xlu0 %v7536, 16
    %v7632 = vpop.permute.xlu0 %7631
    %7633 = vrot.lane.b32.xlu0 %v7537, 16
    %v7634 = vpop.permute.xlu0 %7633
    %7635 = vrot.lane.b32.xlu0 %v7538, 16
    %v7636 = vpop.permute.xlu0 %7635
    %7637 = vrot.lane.b32.xlu0 %v7539, 16
    %v7638 = vpop.permute.xlu0 %7637
    %7639 = vrot.lane.b32.xlu0 %v7540, 16
    %v7640 = vpop.permute.xlu0 %7639
    %7641 = vrot.lane.b32.xlu0 %v7541, 16
    %v7642 = vpop.permute.xlu0 %7641
    %7643 = vrot.lane.b32.xlu0 %v7542, 16
    %v7644 = vpop.permute.xlu0 %7643
    %7645 = vrot.lane.b32.xlu0 %v7543, 16
    %v7646 = vpop.permute.xlu0 %7645
    %7647 = vrot.lane.b32.xlu0 %v7544, 16
    %v7648 = vpop.permute.xlu0 %7647
    %7649 = vrot.lane.b32.xlu0 %v7545, 16
    %v7650 = vpop.permute.xlu0 %7649
    %7651 = vrot.lane.b32.xlu0 %v7546, 16
    %v7652 = vpop.permute.xlu0 %7651
    %7653 = vrot.lane.b32.xlu0 %v7547, 16
    %v7654 = vpop.permute.xlu0 %7653
    %7655 = vrot.lane.b32.xlu0 %v7548, 16
    %v7656 = vpop.permute.xlu0 %7655
    %7657 = vrot.lane.b32.xlu0 %v7549, 16
    %v7658 = vpop.permute.xlu0 %7657
    %7659 = vrot.lane.b32.xlu0 %v7550, 16
    %v7660 = vpop.permute.xlu0 %7659
    %7661 = vrot.lane.b32.xlu0 %v7551, 16
    %v7662 = vpop.permute.xlu0 %7661
    %7663 = vrot.lane.b32.xlu0 %v7552, 16
    %v7664 = vpop.permute.xlu0 %7663
    %7665 = vrot.lane.b32.xlu0 %v7553, 16
    %v7666 = vpop.permute.xlu0 %7665
    %7667 = vrot.lane.b32.xlu0 %v7554, 16
    %v7668 = vpop.permute.xlu0 %7667
    %7669 = vrot.lane.b32.xlu0 %v7555, 16
    %v7670 = vpop.permute.xlu0 %7669
    %7671 = vrot.lane.b32.xlu0 %v7556, 16
    %v7672 = vpop.permute.xlu0 %7671
    %7673 = vrot.lane.b32.xlu0 %v7557, 16
    %v7674 = vpop.permute.xlu0 %7673
    %7675 = vrot.lane.b32.xlu0 %v7558, 16
    %v7676 = vpop.permute.xlu0 %7675
    %7677 = vrot.lane.b32.xlu0 %v7559, 16
    %v7678 = vpop.permute.xlu0 %7677
    %7679 = vrot.lane.b32.xlu0 %v7560, 16
    %v7680 = vpop.permute.xlu0 %7679
    %7681 = vrot.lane.b32.xlu0 %v7561, 16
    %v7682 = vpop.permute.xlu0 %7681
    %7683 = vrot.lane.b32.xlu0 %v7562, 16
    %v7684 = vpop.permute.xlu0 %7683
    %7685 = vrot.lane.b32.xlu0 %v7563, 16
    %v7686 = vpop.permute.xlu0 %7685
    %7687 = vrot.lane.b32.xlu0 %v7564, 16
    %v7688 = vpop.permute.xlu0 %7687
    %7689 = vrot.lane.b32.xlu0 %v7565, 16
    %v7690 = vpop.permute.xlu0 %7689
    %7691 = vrot.lane.b32.xlu0 %v7566, 16
    %v7692 = vpop.permute.xlu0 %7691
    %vm7693 = vcmask 130048
    %v7694 = vsel %vm7693, %v7610, %v7612
    %v7695 = vsel %vm7693, %v7612, %v7614
    %v7696 = vsel %vm7693, %v7614, %v7616
    %v7697 = vsel %vm7693, %v7616, %v7618
    %v7698 = vsel %vm7693, %v7618, %v7620
    %v7699 = vsel %vm7693, %v7620, %v7622
    %v7700 = vsel %vm7693, %v7624, %v7626
    %v7701 = vsel %vm7693, %v7626, %v7628
    %v7702 = vsel %vm7693, %v7628, %v7630
    %v7703 = vsel %vm7693, %v7630, %v7632
    %v7704 = vsel %vm7693, %v7632, %v7634
    %v7705 = vsel %vm7693, %v7634, %v7636
    %v7706 = vsel %vm7693, %v7638, %v7640
    %v7707 = vsel %vm7693, %v7640, %v7642
    %v7708 = vsel %vm7693, %v7642, %v7644
    %v7709 = vsel %vm7693, %v7644, %v7646
    %v7710 = vsel %vm7693, %v7646, %v7648
    %v7711 = vsel %vm7693, %v7648, %v7650
    %v7712 = vsel %vm7693, %v7652, %v7654
    %v7713 = vsel %vm7693, %v7654, %v7656
    %v7714 = vsel %vm7693, %v7656, %v7658
    %v7715 = vsel %vm7693, %v7658, %v7660
    %v7716 = vsel %vm7693, %v7660, %v7662
    %v7717 = vsel %vm7693, %v7662, %v7664
    %v7718 = vsel %vm7693, %v7666, %v7668
    %v7719 = vsel %vm7693, %v7668, %v7670
    %v7720 = vsel %vm7693, %v7670, %v7672
    %v7721 = vsel %vm7693, %v7672, %v7674
    %v7722 = vsel %vm7693, %v7674, %v7676
    %v7723 = vsel %vm7693, %v7676, %v7678
    %v7724 = vsel %vm7693, %v7680, %v7682
    %v7725 = vsel %vm7693, %v7682, %v7684
    %v7726 = vsel %vm7693, %v7684, %v7686
    %v7727 = vsel %vm7693, %v7686, %v7688
    %v7728 = vsel %vm7693, %v7688, %v7690
    %v7729 = vsel %vm7693, %v7690, %v7692
    %v7766 = vmax.f32 %v7489, %v7694
    %v7767 = vmax.f32 %v7490, %v7695
    %v7768 = vmax.f32 %v7491, %v7696
    %v7769 = vmax.f32 %v7492, %v7697
    %v7770 = vmax.f32 %v7493, %v7698
    %v7771 = vmax.f32 %v7494, %v7699
    %v7772 = vmax.f32 %v7495, %v7700
    %v7773 = vmax.f32 %v7496, %v7701
    %v7774 = vmax.f32 %v7497, %v7702
    %v7775 = vmax.f32 %v7498, %v7703
    %v7776 = vmax.f32 %v7499, %v7704
    %v7777 = vmax.f32 %v7500, %v7705
    %v7778 = vmax.f32 %v7501, %v7706
    %v7779 = vmax.f32 %v7502, %v7707
    %v7780 = vmax.f32 %v7503, %v7708
    %v7781 = vmax.f32 %v7504, %v7709
    %v7782 = vmax.f32 %v7505, %v7710
    %v7783 = vmax.f32 %v7506, %v7711
    %v7784 = vmax.f32 %v7507, %v7712
    %v7785 = vmax.f32 %v7508, %v7713
    %v7786 = vmax.f32 %v7509, %v7714
    %v7787 = vmax.f32 %v7510, %v7715
    %v7788 = vmax.f32 %v7511, %v7716
    %v7789 = vmax.f32 %v7512, %v7717
    %v7790 = vmax.f32 %v7513, %v7718
    %v7791 = vmax.f32 %v7514, %v7719
    %v7792 = vmax.f32 %v7515, %v7720
    %v7793 = vmax.f32 %v7516, %v7721
    %v7794 = vmax.f32 %v7517, %v7722
    %v7795 = vmax.f32 %v7518, %v7723
    %v7796 = vmax.f32 %v7519, %v7724
    %v7797 = vmax.f32 %v7520, %v7725
    %v7798 = vmax.f32 %v7521, %v7726
    %v7799 = vmax.f32 %v7522, %v7727
    %v7800 = vmax.f32 %v7523, %v7728
    %v7801 = vmax.f32 %v7524, %v7729
    %7802 = vrot.lane.b32.xlu0 %v7526, 96
    %v7803 = vpop.permute.xlu0 %7802
    %7804 = vrot.lane.b32.xlu0 %v7527, 96
    %v7805 = vpop.permute.xlu0 %7804
    %7806 = vrot.lane.b32.xlu0 %v7528, 96
    %v7807 = vpop.permute.xlu0 %7806
    %7808 = vrot.lane.b32.xlu0 %v7529, 96
    %v7809 = vpop.permute.xlu0 %7808
    %7810 = vrot.lane.b32.xlu0 %v7530, 96
    %v7811 = vpop.permute.xlu0 %7810
    %7812 = vrot.lane.b32.xlu0 %v7531, 96
    %v7813 = vpop.permute.xlu0 %7812
    %7814 = vrot.lane.b32.xlu0 %v7533, 96
    %v7815 = vpop.permute.xlu0 %7814
    %7816 = vrot.lane.b32.xlu0 %v7534, 96
    %v7817 = vpop.permute.xlu0 %7816
    %7818 = vrot.lane.b32.xlu0 %v7535, 96
    %v7819 = vpop.permute.xlu0 %7818
    %7820 = vrot.lane.b32.xlu0 %v7536, 96
    %v7821 = vpop.permute.xlu0 %7820
    %7822 = vrot.lane.b32.xlu0 %v7537, 96
    %v7823 = vpop.permute.xlu0 %7822
    %7824 = vrot.lane.b32.xlu0 %v7538, 96
    %v7825 = vpop.permute.xlu0 %7824
    %7826 = vrot.lane.b32.xlu0 %v7540, 96
    %v7827 = vpop.permute.xlu0 %7826
    %7828 = vrot.lane.b32.xlu0 %v7541, 96
    %v7829 = vpop.permute.xlu0 %7828
    %7830 = vrot.lane.b32.xlu0 %v7542, 96
    %v7831 = vpop.permute.xlu0 %7830
    %7832 = vrot.lane.b32.xlu0 %v7543, 96
    %v7833 = vpop.permute.xlu0 %7832
    %7834 = vrot.lane.b32.xlu0 %v7544, 96
    %v7835 = vpop.permute.xlu0 %7834
    %7836 = vrot.lane.b32.xlu0 %v7545, 96
    %v7837 = vpop.permute.xlu0 %7836
    %7838 = vrot.lane.b32.xlu0 %v7547, 96
    %v7839 = vpop.permute.xlu0 %7838
    %7840 = vrot.lane.b32.xlu0 %v7548, 96
    %v7841 = vpop.permute.xlu0 %7840
    %7842 = vrot.lane.b32.xlu0 %v7549, 96
    %v7843 = vpop.permute.xlu0 %7842
    %7844 = vrot.lane.b32.xlu0 %v7550, 96
    %v7845 = vpop.permute.xlu0 %7844
    %7846 = vrot.lane.b32.xlu0 %v7551, 96
    %v7847 = vpop.permute.xlu0 %7846
    %7848 = vrot.lane.b32.xlu0 %v7552, 96
    %v7849 = vpop.permute.xlu0 %7848
    %7850 = vrot.lane.b32.xlu0 %v7554, 96
    %v7851 = vpop.permute.xlu0 %7850
    %7852 = vrot.lane.b32.xlu0 %v7555, 96
    %v7853 = vpop.permute.xlu0 %7852
    %7854 = vrot.lane.b32.xlu0 %v7556, 96
    %v7855 = vpop.permute.xlu0 %7854
    %7856 = vrot.lane.b32.xlu0 %v7557, 96
    %v7857 = vpop.permute.xlu0 %7856
    %7858 = vrot.lane.b32.xlu0 %v7558, 96
    %v7859 = vpop.permute.xlu0 %7858
    %7860 = vrot.lane.b32.xlu0 %v7559, 96
    %v7861 = vpop.permute.xlu0 %7860
    %7862 = vrot.lane.b32.xlu0 %v7561, 96
    %v7863 = vpop.permute.xlu0 %7862
    %7864 = vrot.lane.b32.xlu0 %v7562, 96
    %v7865 = vpop.permute.xlu0 %7864
    %7866 = vrot.lane.b32.xlu0 %v7563, 96
    %v7867 = vpop.permute.xlu0 %7866
    %7868 = vrot.lane.b32.xlu0 %v7564, 96
    %v7869 = vpop.permute.xlu0 %7868
    %7870 = vrot.lane.b32.xlu0 %v7565, 96
    %v7871 = vpop.permute.xlu0 %7870
    %7872 = vrot.lane.b32.xlu0 %v7566, 96
    %v7873 = vpop.permute.xlu0 %7872
    %vm7874 = vcmask 785408
    %v7875 = vsel %vm7874, %v7803, %v7805
    %v7876 = vsel %vm7874, %v7805, %v7807
    %v7877 = vsel %vm7874, %v7807, %v7809
    %v7878 = vsel %vm7874, %v7809, %v7811
    %v7879 = vsel %vm7874, %v7811, %v7813
    %v7880 = vsel %vm7874, %v7815, %v7817
    %v7881 = vsel %vm7874, %v7817, %v7819
    %v7882 = vsel %vm7874, %v7819, %v7821
    %v7883 = vsel %vm7874, %v7821, %v7823
    %v7884 = vsel %vm7874, %v7823, %v7825
    %v7885 = vsel %vm7874, %v7827, %v7829
    %v7886 = vsel %vm7874, %v7829, %v7831
    %v7887 = vsel %vm7874, %v7831, %v7833
    %v7888 = vsel %vm7874, %v7833, %v7835
    %v7889 = vsel %vm7874, %v7835, %v7837
    %v7890 = vsel %vm7874, %v7839, %v7841
    %v7891 = vsel %vm7874, %v7841, %v7843
    %v7892 = vsel %vm7874, %v7843, %v7845
    %v7893 = vsel %vm7874, %v7845, %v7847
    %v7894 = vsel %vm7874, %v7847, %v7849
    %v7895 = vsel %vm7874, %v7851, %v7853
    %v7896 = vsel %vm7874, %v7853, %v7855
    %v7897 = vsel %vm7874, %v7855, %v7857
    %v7898 = vsel %vm7874, %v7857, %v7859
    %v7899 = vsel %vm7874, %v7859, %v7861
    %v7900 = vsel %vm7874, %v7863, %v7865
    %v7901 = vsel %vm7874, %v7865, %v7867
    %v7902 = vsel %vm7874, %v7867, %v7869
    %v7903 = vsel %vm7874, %v7869, %v7871
    %v7904 = vsel %vm7874, %v7871, %v7873
    %v7941 = vmax.f32 %v7766, %v7875
    %v7942 = vmax.f32 %v7767, %v7876
    %v7943 = vmax.f32 %v7768, %v7877
    %v7944 = vmax.f32 %v7769, %v7878
    %v7945 = vmax.f32 %v7770, %v7879
    %v7946 = vmax.f32 %v7771, %v7813
    %v7947 = vmax.f32 %v7772, %v7880
    %v7948 = vmax.f32 %v7773, %v7881
    %v7949 = vmax.f32 %v7774, %v7882
    %v7950 = vmax.f32 %v7775, %v7883
    %v7951 = vmax.f32 %v7776, %v7884
    %v7952 = vmax.f32 %v7777, %v7825
    %v7953 = vmax.f32 %v7778, %v7885
    %v7954 = vmax.f32 %v7779, %v7886
    %v7955 = vmax.f32 %v7780, %v7887
    %v7956 = vmax.f32 %v7781, %v7888
    %v7957 = vmax.f32 %v7782, %v7889
    %v7958 = vmax.f32 %v7783, %v7837
    %v7959 = vmax.f32 %v7784, %v7890
    %v7960 = vmax.f32 %v7785, %v7891
    %v7961 = vmax.f32 %v7786, %v7892
    %v7962 = vmax.f32 %v7787, %v7893
    %v7963 = vmax.f32 %v7788, %v7894
    %v7964 = vmax.f32 %v7789, %v7849
    %v7965 = vmax.f32 %v7790, %v7895
    %v7966 = vmax.f32 %v7791, %v7896
    %v7967 = vmax.f32 %v7792, %v7897
    %v7968 = vmax.f32 %v7793, %v7898
    %v7969 = vmax.f32 %v7794, %v7899
    %v7970 = vmax.f32 %v7795, %v7861
    %v7971 = vmax.f32 %v7796, %v7900
    %v7972 = vmax.f32 %v7797, %v7901
    %v7973 = vmax.f32 %v7798, %v7902
    %v7974 = vmax.f32 %v7799, %v7903
    %v7975 = vmax.f32 %v7800, %v7904
    %v7976 = vmax.f32 %v7801, %v7873
    %7977 = vst [vmem:[#allocation6] sm:$0xff] %v7941
    %7978 = vst [vmem:[#allocation6 + $0x8] sm:$0xff] %v7942
    %7979 = vst [vmem:[#allocation6 + $0x10] sm:$0xff] %v7943
    %7980 = vst [vmem:[#allocation6 + $0x18] sm:$0xff] %v7944
    %7981 = vst [vmem:[#allocation6 + $0x20] sm:$0xff] %v7945
    %7982 = vst.msk [vmem:[#allocation6 + $0x28] sm:$0xff] %vm7060, %v7946
    %7983 = vst [vmem:[#allocation6 + $0x30] sm:$0xff] %v7947
    %7984 = vst [vmem:[#allocation6 + $0x38] sm:$0xff] %v7948
    %7985 = vst [vmem:[#allocation6 + $0x40] sm:$0xff] %v7949
    %7986 = vst [vmem:[#allocation6 + $0x48] sm:$0xff] %v7950
    %7987 = vst [vmem:[#allocation6 + $0x50] sm:$0xff] %v7951
    %7988 = vst.msk [vmem:[#allocation6 + $0x58] sm:$0xff] %vm7060, %v7952
    %7989 = vst [vmem:[#allocation6 + $0x60] sm:$0xff] %v7953
    %7990 = vst [vmem:[#allocation6 + $0x68] sm:$0xff] %v7954
    %7991 = vst [vmem:[#allocation6 + $0x70] sm:$0xff] %v7955
    %7992 = vst [vmem:[#allocation6 + $0x78] sm:$0xff] %v7956
    %7993 = vst [vmem:[#allocation6 + $0x80] sm:$0xff] %v7957
    %7994 = vst.msk [vmem:[#allocation6 + $0x88] sm:$0xff] %vm7060, %v7958
    %7995 = vst [vmem:[#allocation6 + $0x90] sm:$0xff] %v7959
    %7996 = vst [vmem:[#allocation6 + $0x98] sm:$0xff] %v7960
    %7997 = vst [vmem:[#allocation6 + $0xa0] sm:$0xff] %v7961
    %7998 = vst [vmem:[#allocation6 + $0xa8] sm:$0xff] %v7962
    %7999 = vst [vmem:[#allocation6 + $0xb0] sm:$0xff] %v7963
    %8000 = vst.msk [vmem:[#allocation6 + $0xb8] sm:$0xff] %vm7060, %v7964
    %8001 = vst [vmem:[#allocation6 + $0xc0] sm:$0xff] %v7965
    %8002 = vst [vmem:[#allocation6 + $0xc8] sm:$0xff] %v7966
    %8003 = vst [vmem:[#allocation6 + $0xd0] sm:$0xff] %v7967
    %8004 = vst [vmem:[#allocation6 + $0xd8] sm:$0xff] %v7968
    %8005 = vst [vmem:[#allocation6 + $0xe0] sm:$0xff] %v7969
    %8006 = vst.msk [vmem:[#allocation6 + $0xe8] sm:$0xff] %vm7060, %v7970
    %8007 = vst [vmem:[#allocation6 + $0xf0] sm:$0xff] %v7971
    %8008 = vst [vmem:[#allocation6 + $0xf8] sm:$0xff] %v7972
    %8009 = vst [vmem:[#allocation6 + $0x100] sm:$0xff] %v7973
    %8010 = vst [vmem:[#allocation6 + $0x108] sm:$0xff] %v7974
    %8011 = vst [vmem:[#allocation6 + $0x110] sm:$0xff] %v7975
    %8012 = vst.msk [vmem:[#allocation6 + $0x118] sm:$0xff] %vm7060, %v7976
    %vm8013 = vcmask 1047808
    %8014 = vst.msk [vmem:[#allocation6 + $0x28] sm:$0xff] %vm8013, 0.0
    %8015 = vst.msk [vmem:[#allocation6 + $0x58] sm:$0xff] %vm8013, 0.0
    %8016 = vst.msk [vmem:[#allocation6 + $0x88] sm:$0xff] %vm8013, 0.0
    %8017 = vst.msk [vmem:[#allocation6 + $0xb8] sm:$0xff] %vm8013, 0.0
    %8018 = vst.msk [vmem:[#allocation6 + $0xe8] sm:$0xff] %vm8013, 0.0
    %8019 = vst.msk [vmem:[#allocation6 + $0x118] sm:$0xff] %vm8013, 0.0
    %8020 = vst [vmem:[#allocation6 + $0x120] sm:$0xff] 0.0
    %8021 = vst [vmem:[#allocation6 + $0x128] sm:$0xff] 0.0
    %8022 = vst [vmem:[#allocation6 + $0x130] sm:$0xff] 0.0
    %8023 = vst [vmem:[#allocation6 + $0x138] sm:$0xff] 0.0
    %8024 = vst [vmem:[#allocation6 + $0x140] sm:$0xff] 0.0
    %8025 = vst [vmem:[#allocation6 + $0x148] sm:$0xff] 0.0
    %v8026 = vld [vmem:[#allocation6] sm:$0xff]
    %v8027 = vld [vmem:[#allocation6 + $0x8] sm:$0xff]
    %v8028 = vld [vmem:[#allocation6 + $0x10] sm:$0xff]
    %v8029 = vld [vmem:[#allocation6 + $0x18] sm:$0xff]
    %v8030 = vld [vmem:[#allocation6 + $0x20] sm:$0xff]
    %v8031 = vld [vmem:[#allocation6 + $0x28] sm:$0xff]
    %v8032 = vld [vmem:[#allocation6 + $0x30] sm:$0xff]
    %v8033 = vld [vmem:[#allocation6 + $0x38] sm:$0xff]
    %v8034 = vld [vmem:[#allocation6 + $0x40] sm:$0xff]
    %v8035 = vld [vmem:[#allocation6 + $0x48] sm:$0xff]
    %v8036 = vld [vmem:[#allocation6 + $0x50] sm:$0xff]
    %v8037 = vld [vmem:[#allocation6 + $0x58] sm:$0xff]
    %v8038 = vld [vmem:[#allocation6 + $0x60] sm:$0xff]
    %v8039 = vld [vmem:[#allocation6 + $0x68] sm:$0xff]
    %v8040 = vld [vmem:[#allocation6 + $0x70] sm:$0xff]
    %v8041 = vld [vmem:[#allocation6 + $0x78] sm:$0xff]
    %v8042 = vld [vmem:[#allocation6 + $0x80] sm:$0xff]
    %v8043 = vld [vmem:[#allocation6 + $0x88] sm:$0xff]
    %v8044 = vld [vmem:[#allocation6 + $0x90] sm:$0xff]
    %v8045 = vld [vmem:[#allocation6 + $0x98] sm:$0xff]
    %v8046 = vld [vmem:[#allocation6 + $0xa0] sm:$0xff]
    %v8047 = vld [vmem:[#allocation6 + $0xa8] sm:$0xff]
    %v8048 = vld [vmem:[#allocation6 + $0xb0] sm:$0xff]
    %v8049 = vld [vmem:[#allocation6 + $0xb8] sm:$0xff]
    %v8050 = vld [vmem:[#allocation6 + $0xc0] sm:$0xff]
    %v8051 = vld [vmem:[#allocation6 + $0xc8] sm:$0xff]
    %v8052 = vld [vmem:[#allocation6 + $0xd0] sm:$0xff]
    %v8053 = vld [vmem:[#allocation6 + $0xd8] sm:$0xff]
    %v8054 = vld [vmem:[#allocation6 + $0xe0] sm:$0xff]
    %v8055 = vld [vmem:[#allocation6 + $0xe8] sm:$0xff]
    %v8056 = vld [vmem:[#allocation6 + $0xf0] sm:$0xff]
    %v8057 = vld [vmem:[#allocation6 + $0xf8] sm:$0xff]
    %v8058 = vld [vmem:[#allocation6 + $0x100] sm:$0xff]
    %v8059 = vld [vmem:[#allocation6 + $0x108] sm:$0xff]
    %v8060 = vld [vmem:[#allocation6 + $0x110] sm:$0xff]
    %v8061 = vld [vmem:[#allocation6 + $0x118] sm:$0xff]
    %v8062 = vpack.c.bf16 %v8032, %v8026
    %v8063 = vpack.c.bf16 %v8033, %v8027
    %v8064 = vpack.c.bf16 %v8034, %v8028
    %v8065 = vpack.c.bf16 %v8035, %v8029
    %v8066 = vpack.c.bf16 %v8036, %v8030
    %v8067 = vpack.c.bf16 %v8037, %v8031
    %v8068 = vpack.c.bf16 %v8044, %v8038
    %v8069 = vpack.c.bf16 %v8045, %v8039
    %v8070 = vpack.c.bf16 %v8046, %v8040
    %v8071 = vpack.c.bf16 %v8047, %v8041
    %v8072 = vpack.c.bf16 %v8048, %v8042
    %v8073 = vpack.c.bf16 %v8049, %v8043
    %v8074 = vpack.c.bf16 %v8056, %v8050
    %v8075 = vpack.c.bf16 %v8057, %v8051
    %v8076 = vpack.c.bf16 %v8058, %v8052
    %v8077 = vpack.c.bf16 %v8059, %v8053
    %v8078 = vpack.c.bf16 %v8060, %v8054
    %v8079 = vpack.c.bf16 %v8061, %v8055
    %v8098 = vunpack.c.l.b16 %v8062
    %v8099 = vunpack.c.l.b16 %v8063
    %v8100 = vunpack.c.l.b16 %v8064
    %v8101 = vunpack.c.l.b16 %v8065
    %v8102 = vunpack.c.l.b16 %v8066
    %v8103 = vunpack.c.l.b16 %v8067
    %v8104 = vunpack.c.h.b16 %v8062
    %v8105 = vunpack.c.h.b16 %v8063
    %v8106 = vunpack.c.h.b16 %v8064
    %v8107 = vunpack.c.h.b16 %v8065
    %v8108 = vunpack.c.h.b16 %v8066
    %v8109 = vunpack.c.h.b16 %v8067
    %v8110 = vunpack.c.l.b16 %v8068
    %v8111 = vunpack.c.l.b16 %v8069
    %v8112 = vunpack.c.l.b16 %v8070
    %v8113 = vunpack.c.l.b16 %v8071
    %v8114 = vunpack.c.l.b16 %v8072
    %v8115 = vunpack.c.l.b16 %v8073
    %v8116 = vunpack.c.h.b16 %v8068
    %v8117 = vunpack.c.h.b16 %v8069
    %v8118 = vunpack.c.h.b16 %v8070
    %v8119 = vunpack.c.h.b16 %v8071
    %v8120 = vunpack.c.h.b16 %v8072
    %v8121 = vunpack.c.h.b16 %v8073
    %v8122 = vunpack.c.l.b16 %v8074
    %v8123 = vunpack.c.l.b16 %v8075
    %v8124 = vunpack.c.l.b16 %v8076
    %v8125 = vunpack.c.l.b16 %v8077
    %v8126 = vunpack.c.l.b16 %v8078
    %v8127 = vunpack.c.l.b16 %v8079
    %v8128 = vunpack.c.h.b16 %v8074
    %v8129 = vunpack.c.h.b16 %v8075
    %v8130 = vunpack.c.h.b16 %v8076
    %v8131 = vunpack.c.h.b16 %v8077
    %v8132 = vunpack.c.h.b16 %v8078
    %v8133 = vunpack.c.h.b16 %v8079
    %v8134 = vpack.c.b16 %v8099, %v8098
    %v8135 = vpack.c.b16 %v8101, %v8100
    %v8136 = vpack.c.b16 %v8103, %v8102
    %v8137 = vpack.c.b16 %v8105, %v8104
    %v8138 = vpack.c.b16 %v8107, %v8106
    %v8139 = vpack.c.b16 %v8109, %v8108
    %v8140 = vpack.c.b16 %v8111, %v8110
    %v8141 = vpack.c.b16 %v8113, %v8112
    %v8142 = vpack.c.b16 %v8115, %v8114
    %v8143 = vpack.c.b16 %v8117, %v8116
    %v8144 = vpack.c.b16 %v8119, %v8118
    %v8145 = vpack.c.b16 %v8121, %v8120
    %v8146 = vpack.c.b16 %v8123, %v8122
    %v8147 = vpack.c.b16 %v8125, %v8124
    %v8148 = vpack.c.b16 %v8127, %v8126
    %v8149 = vpack.c.b16 %v8129, %v8128
    %v8150 = vpack.c.b16 %v8131, %v8130
    %v8151 = vpack.c.b16 %v8133, %v8132
    %8170 = vst [vmem:[#allocation7] sm:$0xff] %v8134
    %8171 = vst [vmem:[#allocation7 + $0x8] sm:$0xff] %v8135
    %8172 = vst [vmem:[#allocation7 + $0x10] sm:$0xff] %v8136
    %8173 = vst [vmem:[#allocation7 + $0x90] sm:$0xff] %v8137
    %8174 = vst [vmem:[#allocation7 + $0x98] sm:$0xff] %v8138
    %8175 = vst [vmem:[#allocation7 + $0xa0] sm:$0xff] %v8139
    %8176 = vst [vmem:[#allocation7 + $0x120] sm:$0xff] %v8140
    %8177 = vst [vmem:[#allocation7 + $0x128] sm:$0xff] %v8141
    %8178 = vst [vmem:[#allocation7 + $0x130] sm:$0xff] %v8142
    %8179 = vst [vmem:[#allocation7 + $0x1b0] sm:$0xff] %v8143
    %8180 = vst [vmem:[#allocation7 + $0x1b8] sm:$0xff] %v8144
    %8181 = vst [vmem:[#allocation7 + $0x1c0] sm:$0xff] %v8145
    %8182 = vst [vmem:[#allocation7 + $0x240] sm:$0xff] %v8146
    %8183 = vst [vmem:[#allocation7 + $0x248] sm:$0xff] %v8147
    %8184 = vst [vmem:[#allocation7 + $0x250] sm:$0xff] %v8148
    %8185 = vst [vmem:[#allocation7 + $0x2d0] sm:$0xff] %v8149
    %8186 = vst [vmem:[#allocation7 + $0x2d8] sm:$0xff] %v8150
    %8187 = vst [vmem:[#allocation7 + $0x2e0] sm:$0xff] %v8151
    %v8188 = vld [vmem:[#allocation6] sm:$0xfe]
    %v8189 = vld [vmem:[#allocation6 + $0x8] sm:$0xfe]
    %v8190 = vld [vmem:[#allocation6 + $0x10] sm:$0xfe]
    %v8191 = vld [vmem:[#allocation6 + $0x18] sm:$0xfe]
    %v8192 = vld [vmem:[#allocation6 + $0x20] sm:$0xfe]
    %v8193 = vld [vmem:[#allocation6 + $0x28] sm:$0xfe]
    %v8194 = vld [vmem:[#allocation6 + $0x30] sm:$0xff]
    %v8195 = vld [vmem:[#allocation6 + $0x38] sm:$0xff]
    %v8196 = vld [vmem:[#allocation6 + $0x40] sm:$0xff]
    %v8197 = vld [vmem:[#allocation6 + $0x48] sm:$0xff]
    %v8198 = vld [vmem:[#allocation6 + $0x50] sm:$0xff]
    %v8199 = vld [vmem:[#allocation6 + $0x58] sm:$0xff]
    %v8200 = vld [vmem:[#allocation6 + $0x60] sm:$0xff]
    %v8201 = vld [vmem:[#allocation6 + $0x68] sm:$0xff]
    %v8202 = vld [vmem:[#allocation6 + $0x70] sm:$0xff]
    %v8203 = vld [vmem:[#allocation6 + $0x78] sm:$0xff]
    %v8204 = vld [vmem:[#allocation6 + $0x80] sm:$0xff]
    %v8205 = vld [vmem:[#allocation6 + $0x88] sm:$0xff]
    %v8206 = vld [vmem:[#allocation6 + $0x90] sm:$0xff]
    %v8207 = vld [vmem:[#allocation6 + $0x98] sm:$0xff]
    %v8208 = vld [vmem:[#allocation6 + $0xa0] sm:$0xff]
    %v8209 = vld [vmem:[#allocation6 + $0xa8] sm:$0xff]
    %v8210 = vld [vmem:[#allocation6 + $0xb0] sm:$0xff]
    %v8211 = vld [vmem:[#allocation6 + $0xb8] sm:$0xff]
    %v8212 = vld [vmem:[#allocation6 + $0xc0] sm:$0xff]
    %v8213 = vld [vmem:[#allocation6 + $0xc8] sm:$0xff]
    %v8214 = vld [vmem:[#allocation6 + $0xd0] sm:$0xff]
    %v8215 = vld [vmem:[#allocation6 + $0xd8] sm:$0xff]
    %v8216 = vld [vmem:[#allocation6 + $0xe0] sm:$0xff]
    %v8217 = vld [vmem:[#allocation6 + $0xe8] sm:$0xff]
    %v8218 = vld [vmem:[#allocation6 + $0xf0] sm:$0xff]
    %v8219 = vld [vmem:[#allocation6 + $0xf8] sm:$0xff]
    %v8220 = vld [vmem:[#allocation6 + $0x100] sm:$0xff]
    %v8221 = vld [vmem:[#allocation6 + $0x108] sm:$0xff]
    %v8222 = vld [vmem:[#allocation6 + $0x110] sm:$0xff]
    %v8223 = vld [vmem:[#allocation6 + $0x118] sm:$0xff]
    %v8224 = vld [vmem:[#allocation6 + $0x120] sm:$0x1]
    %v8225 = vld [vmem:[#allocation6 + $0x128] sm:$0x1]
    %v8226 = vld [vmem:[#allocation6 + $0x130] sm:$0x1]
    %v8227 = vld [vmem:[#allocation6 + $0x138] sm:$0x1]
    %v8228 = vld [vmem:[#allocation6 + $0x140] sm:$0x1]
    %v8229 = vld [vmem:[#allocation6 + $0x148] sm:$0x1]
    %v8230 = vpack.c.bf16 %v8194, %v8188
    %v8231 = vpack.c.bf16 %v8195, %v8189
    %v8232 = vpack.c.bf16 %v8196, %v8190
    %v8233 = vpack.c.bf16 %v8197, %v8191
    %v8234 = vpack.c.bf16 %v8198, %v8192
    %v8235 = vpack.c.bf16 %v8199, %v8193
    %v8236 = vpack.c.bf16 %v8206, %v8200
    %v8237 = vpack.c.bf16 %v8207, %v8201
    %v8238 = vpack.c.bf16 %v8208, %v8202
    %v8239 = vpack.c.bf16 %v8209, %v8203
    %v8240 = vpack.c.bf16 %v8210, %v8204
    %v8241 = vpack.c.bf16 %v8211, %v8205
    %v8242 = vpack.c.bf16 %v8218, %v8212
    %v8243 = vpack.c.bf16 %v8219, %v8213
    %v8244 = vpack.c.bf16 %v8220, %v8214
    %v8245 = vpack.c.bf16 %v8221, %v8215
    %v8246 = vpack.c.bf16 %v8222, %v8216
    %v8247 = vpack.c.bf16 %v8223, %v8217
    %v8248 = vpack.c.bf16 %v8224, %v8224
    %v8249 = vpack.c.bf16 %v8225, %v8225
    %v8250 = vpack.c.bf16 %v8226, %v8226
    %v8251 = vpack.c.bf16 %v8227, %v8227
    %v8252 = vpack.c.bf16 %v8228, %v8228
    %v8253 = vpack.c.bf16 %v8229, %v8229
    %v8278 = vunpack.c.l.b16 %v8230
    %v8279 = vunpack.c.l.b16 %v8231
    %v8280 = vunpack.c.l.b16 %v8232
    %v8281 = vunpack.c.l.b16 %v8233
    %v8282 = vunpack.c.l.b16 %v8234
    %v8283 = vunpack.c.l.b16 %v8235
    %v8284 = vunpack.c.h.b16 %v8230
    %v8285 = vunpack.c.h.b16 %v8231
    %v8286 = vunpack.c.h.b16 %v8232
    %v8287 = vunpack.c.h.b16 %v8233
    %v8288 = vunpack.c.h.b16 %v8234
    %v8289 = vunpack.c.h.b16 %v8235
    %v8290 = vunpack.c.l.b16 %v8236
    %v8291 = vunpack.c.l.b16 %v8237
    %v8292 = vunpack.c.l.b16 %v8238
    %v8293 = vunpack.c.l.b16 %v8239
    %v8294 = vunpack.c.l.b16 %v8240
    %v8295 = vunpack.c.l.b16 %v8241
    %v8296 = vunpack.c.h.b16 %v8236
    %v8297 = vunpack.c.h.b16 %v8237
    %v8298 = vunpack.c.h.b16 %v8238
    %v8299 = vunpack.c.h.b16 %v8239
    %v8300 = vunpack.c.h.b16 %v8240
    %v8301 = vunpack.c.h.b16 %v8241
    %v8302 = vunpack.c.l.b16 %v8242
    %v8303 = vunpack.c.l.b16 %v8243
    %v8304 = vunpack.c.l.b16 %v8244
    %v8305 = vunpack.c.l.b16 %v8245
    %v8306 = vunpack.c.l.b16 %v8246
    %v8307 = vunpack.c.l.b16 %v8247
    %v8308 = vunpack.c.h.b16 %v8242
    %v8309 = vunpack.c.h.b16 %v8243
    %v8310 = vunpack.c.h.b16 %v8244
    %v8311 = vunpack.c.h.b16 %v8245
    %v8312 = vunpack.c.h.b16 %v8246
    %v8313 = vunpack.c.h.b16 %v8247
    %v8314 = vunpack.c.l.b16 %v8248
    %v8315 = vunpack.c.l.b16 %v8249
    %v8316 = vunpack.c.l.b16 %v8250
    %v8317 = vunpack.c.l.b16 %v8251
    %v8318 = vunpack.c.l.b16 %v8252
    %v8319 = vunpack.c.l.b16 %v8253
    %v8320 = vpack.c.b16 %v8279, %v8278
    %v8321 = vpack.c.b16 %v8281, %v8280
    %v8322 = vpack.c.b16 %v8283, %v8282
    %v8323 = vpack.c.b16 %v8285, %v8284
    %v8324 = vpack.c.b16 %v8287, %v8286
    %v8325 = vpack.c.b16 %v8289, %v8288
    %v8326 = vpack.c.b16 %v8291, %v8290
    %v8327 = vpack.c.b16 %v8293, %v8292
    %v8328 = vpack.c.b16 %v8295, %v8294
    %v8329 = vpack.c.b16 %v8297, %v8296
    %v8330 = vpack.c.b16 %v8299, %v8298
    %v8331 = vpack.c.b16 %v8301, %v8300
    %v8332 = vpack.c.b16 %v8303, %v8302
    %v8333 = vpack.c.b16 %v8305, %v8304
    %v8334 = vpack.c.b16 %v8307, %v8306
    %v8335 = vpack.c.b16 %v8309, %v8308
    %v8336 = vpack.c.b16 %v8311, %v8310
    %v8337 = vpack.c.b16 %v8313, %v8312
    %v8338 = vpack.c.b16 %v8315, %v8314
    %v8339 = vpack.c.b16 %v8317, %v8316
    %v8340 = vpack.c.b16 %v8319, %v8318
    %vm8341 = vsmask.f32 3328
    %vm8342 = vsmask.f32 7440
    %vm8343 = vmor %vm8341, %vm8342
    %v8345 = vshrl.u32 %v8320, 16
    %v8347 = vrot.slane %v8345, 4
    %v8348 = vshll.u32 %v8320, 16
    %v8350 = vrot.slane %v8348, 5
    %v8351 = vor.u32 %v8347, %v8350
    %v8352 = vrot.slane %v8351, 4
    %v8354 = vshll.u32 %v8323, 16
    %v8356 = vrot.slane %v8354, 5
    %v8357 = vsel %vm8343, %v8352, %v8356
    %v8359 = vshrl.u32 %v8321, 16
    %v8361 = vrot.slane %v8359, 4
    %v8362 = vshll.u32 %v8321, 16
    %v8364 = vrot.slane %v8362, 5
    %v8365 = vor.u32 %v8361, %v8364
    %v8366 = vrot.slane %v8365, 4
    %v8368 = vshll.u32 %v8324, 16
    %v8370 = vrot.slane %v8368, 5
    %v8371 = vsel %vm8343, %v8366, %v8370
    %v8373 = vshrl.u32 %v8322, 16
    %v8375 = vrot.slane %v8373, 4
    %v8376 = vshll.u32 %v8322, 16
    %v8378 = vrot.slane %v8376, 5
    %v8379 = vor.u32 %v8375, %v8378
    %v8380 = vrot.slane %v8379, 4
    %v8382 = vshll.u32 %v8325, 16
    %v8384 = vrot.slane %v8382, 5
    %v8385 = vsel %vm8343, %v8380, %v8384
    %v8386 = vshrl.u32 %v8323, 16
    %v8388 = vrot.slane %v8386, 4
    %v8389 = vor.u32 %v8388, %v8356
    %v8390 = vrot.slane %v8389, 4
    %v8392 = vshll.u32 %v8326, 16
    %v8394 = vrot.slane %v8392, 5
    %v8395 = vsel %vm8343, %v8390, %v8394
    %v8396 = vshrl.u32 %v8324, 16
    %v8398 = vrot.slane %v8396, 4
    %v8399 = vor.u32 %v8398, %v8370
    %v8400 = vrot.slane %v8399, 4
    %v8402 = vshll.u32 %v8327, 16
    %v8404 = vrot.slane %v8402, 5
    %v8405 = vsel %vm8343, %v8400, %v8404
    %v8406 = vshrl.u32 %v8325, 16
    %v8408 = vrot.slane %v8406, 4
    %v8409 = vor.u32 %v8408, %v8384
    %v8410 = vrot.slane %v8409, 4
    %v8412 = vshll.u32 %v8328, 16
    %v8414 = vrot.slane %v8412, 5
    %v8415 = vsel %vm8343, %v8410, %v8414
    %v8416 = vshrl.u32 %v8326, 16
    %v8418 = vrot.slane %v8416, 4
    %v8419 = vor.u32 %v8418, %v8394
    %v8420 = vrot.slane %v8419, 4
    %v8422 = vshll.u32 %v8329, 16
    %v8424 = vrot.slane %v8422, 5
    %v8425 = vsel %vm8343, %v8420, %v8424
    %v8426 = vshrl.u32 %v8327, 16
    %v8428 = vrot.slane %v8426, 4
    %v8429 = vor.u32 %v8428, %v8404
    %v8430 = vrot.slane %v8429, 4
    %v8432 = vshll.u32 %v8330, 16
    %v8434 = vrot.slane %v8432, 5
    %v8435 = vsel %vm8343, %v8430, %v8434
    %v8436 = vshrl.u32 %v8328, 16
    %v8438 = vrot.slane %v8436, 4
    %v8439 = vor.u32 %v8438, %v8414
    %v8440 = vrot.slane %v8439, 4
    %v8442 = vshll.u32 %v8331, 16
    %v8444 = vrot.slane %v8442, 5
    %v8445 = vsel %vm8343, %v8440, %v8444
    %v8446 = vshrl.u32 %v8329, 16
    %v8448 = vrot.slane %v8446, 4
    %v8449 = vor.u32 %v8448, %v8424
    %v8450 = vrot.slane %v8449, 4
    %v8452 = vshll.u32 %v8332, 16
    %v8454 = vrot.slane %v8452, 5
    %v8455 = vsel %vm8343, %v8450, %v8454
    %v8456 = vshrl.u32 %v8330, 16
    %v8458 = vrot.slane %v8456, 4
    %v8459 = vor.u32 %v8458, %v8434
    %v8460 = vrot.slane %v8459, 4
    %v8462 = vshll.u32 %v8333, 16
    %v8464 = vrot.slane %v8462, 5
    %v8465 = vsel %vm8343, %v8460, %v8464
    %v8466 = vshrl.u32 %v8331, 16
    %v8468 = vrot.slane %v8466, 4
    %v8469 = vor.u32 %v8468, %v8444
    %v8470 = vrot.slane %v8469, 4
    %v8472 = vshll.u32 %v8334, 16
    %v8474 = vrot.slane %v8472, 5
    %v8475 = vsel %vm8343, %v8470, %v8474
    %v8476 = vshrl.u32 %v8332, 16
    %v8478 = vrot.slane %v8476, 4
    %v8479 = vor.u32 %v8478, %v8454
    %v8480 = vrot.slane %v8479, 4
    %v8482 = vshll.u32 %v8335, 16
    %v8484 = vrot.slane %v8482, 5
    %v8485 = vsel %vm8343, %v8480, %v8484
    %v8486 = vshrl.u32 %v8333, 16
    %v8488 = vrot.slane %v8486, 4
    %v8489 = vor.u32 %v8488, %v8464
    %v8490 = vrot.slane %v8489, 4
    %v8492 = vshll.u32 %v8336, 16
    %v8494 = vrot.slane %v8492, 5
    %v8495 = vsel %vm8343, %v8490, %v8494
    %v8496 = vshrl.u32 %v8334, 16
    %v8498 = vrot.slane %v8496, 4
    %v8499 = vor.u32 %v8498, %v8474
    %v8500 = vrot.slane %v8499, 4
    %v8502 = vshll.u32 %v8337, 16
    %v8504 = vrot.slane %v8502, 5
    %v8505 = vsel %vm8343, %v8500, %v8504
    %v8506 = vshrl.u32 %v8335, 16
    %v8508 = vrot.slane %v8506, 4
    %v8509 = vor.u32 %v8508, %v8484
    %v8510 = vrot.slane %v8509, 4
    %v8512 = vshll.u32 %v8338, 16
    %v8514 = vrot.slane %v8512, 5
    %v8515 = vsel %vm8343, %v8510, %v8514
    %v8516 = vshrl.u32 %v8336, 16
    %v8518 = vrot.slane %v8516, 4
    %v8519 = vor.u32 %v8518, %v8494
    %v8520 = vrot.slane %v8519, 4
    %v8522 = vshll.u32 %v8339, 16
    %v8524 = vrot.slane %v8522, 5
    %v8525 = vsel %vm8343, %v8520, %v8524
    %v8526 = vshrl.u32 %v8337, 16
    %v8528 = vrot.slane %v8526, 4
    %v8529 = vor.u32 %v8528, %v8504
    %v8530 = vrot.slane %v8529, 4
    %v8532 = vshll.u32 %v8340, 16
    %v8534 = vrot.slane %v8532, 5
    %v8535 = vsel %vm8343, %v8530, %v8534
    %8554 = vst [vmem:[#allocation7 + $0x18] sm:$0xff] %v8357
    %8555 = vst [vmem:[#allocation7 + $0x20] sm:$0xff] %v8371
    %8556 = vst [vmem:[#allocation7 + $0x28] sm:$0xff] %v8385
    %8557 = vst [vmem:[#allocation7 + $0xa8] sm:$0xff] %v8395
    %8558 = vst [vmem:[#allocation7 + $0xb0] sm:$0xff] %v8405
    %8559 = vst [vmem:[#allocation7 + $0xb8] sm:$0xff] %v8415
    %8560 = vst [vmem:[#allocation7 + $0x138] sm:$0xff] %v8425
    %8561 = vst [vmem:[#allocation7 + $0x140] sm:$0xff] %v8435
    %8562 = vst [vmem:[#allocation7 + $0x148] sm:$0xff] %v8445
    %8563 = vst [vmem:[#allocation7 + $0x1c8] sm:$0xff] %v8455
    %8564 = vst [vmem:[#allocation7 + $0x1d0] sm:$0xff] %v8465
    %8565 = vst [vmem:[#allocation7 + $0x1d8] sm:$0xff] %v8475
    %8566 = vst [vmem:[#allocation7 + $0x258] sm:$0xff] %v8485
    %8567 = vst [vmem:[#allocation7 + $0x260] sm:$0xff] %v8495
    %8568 = vst [vmem:[#allocation7 + $0x268] sm:$0xff] %v8505
    %8569 = vst [vmem:[#allocation7 + $0x2e8] sm:$0xff] %v8515
    %8570 = vst [vmem:[#allocation7 + $0x2f0] sm:$0xff] %v8525
    %8571 = vst [vmem:[#allocation7 + $0x2f8] sm:$0xff] %v8535
    %v8572 = vld [vmem:[#allocation6] sm:$0xfc]
    %v8573 = vld [vmem:[#allocation6 + $0x8] sm:$0xfc]
    %v8574 = vld [vmem:[#allocation6 + $0x10] sm:$0xfc]
    %v8575 = vld [vmem:[#allocation6 + $0x18] sm:$0xfc]
    %v8576 = vld [vmem:[#allocation6 + $0x20] sm:$0xfc]
    %v8577 = vld [vmem:[#allocation6 + $0x28] sm:$0xfc]
    %v8578 = vld [vmem:[#allocation6 + $0x30] sm:$0xff]
    %v8579 = vld [vmem:[#allocation6 + $0x38] sm:$0xff]
    %v8580 = vld [vmem:[#allocation6 + $0x40] sm:$0xff]
    %v8581 = vld [vmem:[#allocation6 + $0x48] sm:$0xff]
    %v8582 = vld [vmem:[#allocation6 + $0x50] sm:$0xff]
    %v8583 = vld [vmem:[#allocation6 + $0x58] sm:$0xff]
    %v8584 = vld [vmem:[#allocation6 + $0x60] sm:$0xff]
    %v8585 = vld [vmem:[#allocation6 + $0x68] sm:$0xff]
    %v8586 = vld [vmem:[#allocation6 + $0x70] sm:$0xff]
    %v8587 = vld [vmem:[#allocation6 + $0x78] sm:$0xff]
    %v8588 = vld [vmem:[#allocation6 + $0x80] sm:$0xff]
    %v8589 = vld [vmem:[#allocation6 + $0x88] sm:$0xff]
    %v8590 = vld [vmem:[#allocation6 + $0x90] sm:$0xff]
    %v8591 = vld [vmem:[#allocation6 + $0x98] sm:$0xff]
    %v8592 = vld [vmem:[#allocation6 + $0xa0] sm:$0xff]
    %v8593 = vld [vmem:[#allocation6 + $0xa8] sm:$0xff]
    %v8594 = vld [vmem:[#allocation6 + $0xb0] sm:$0xff]
    %v8595 = vld [vmem:[#allocation6 + $0xb8] sm:$0xff]
    %v8596 = vld [vmem:[#allocation6 + $0xc0] sm:$0xff]
    %v8597 = vld [vmem:[#allocation6 + $0xc8] sm:$0xff]
    %v8598 = vld [vmem:[#allocation6 + $0xd0] sm:$0xff]
    %v8599 = vld [vmem:[#allocation6 + $0xd8] sm:$0xff]
    %v8600 = vld [vmem:[#allocation6 + $0xe0] sm:$0xff]
    %v8601 = vld [vmem:[#allocation6 + $0xe8] sm:$0xff]
    %v8602 = vld [vmem:[#allocation6 + $0xf0] sm:$0xff]
    %v8603 = vld [vmem:[#allocation6 + $0xf8] sm:$0xff]
    %v8604 = vld [vmem:[#allocation6 + $0x100] sm:$0xff]
    %v8605 = vld [vmem:[#allocation6 + $0x108] sm:$0xff]
    %v8606 = vld [vmem:[#allocation6 + $0x110] sm:$0xff]
    %v8607 = vld [vmem:[#allocation6 + $0x118] sm:$0xff]
    %v8608 = vld [vmem:[#allocation6 + $0x120] sm:$0x3]
    %v8609 = vld [vmem:[#allocation6 + $0x128] sm:$0x3]
    %v8610 = vld [vmem:[#allocation6 + $0x130] sm:$0x3]
    %v8611 = vld [vmem:[#allocation6 + $0x138] sm:$0x3]
    %v8612 = vld [vmem:[#allocation6 + $0x140] sm:$0x3]
    %v8613 = vld [vmem:[#allocation6 + $0x148] sm:$0x3]
    %v8614 = vpack.c.bf16 %v8578, %v8572
    %v8615 = vpack.c.bf16 %v8579, %v8573
    %v8616 = vpack.c.bf16 %v8580, %v8574
    %v8617 = vpack.c.bf16 %v8581, %v8575
    %v8618 = vpack.c.bf16 %v8582, %v8576
    %v8619 = vpack.c.bf16 %v8583, %v8577
    %v8620 = vpack.c.bf16 %v8590, %v8584
    %v8621 = vpack.c.bf16 %v8591, %v8585
    %v8622 = vpack.c.bf16 %v8592, %v8586
    %v8623 = vpack.c.bf16 %v8593, %v8587
    %v8624 = vpack.c.bf16 %v8594, %v8588
    %v8625 = vpack.c.bf16 %v8595, %v8589
    %v8626 = vpack.c.bf16 %v8602, %v8596
    %v8627 = vpack.c.bf16 %v8603, %v8597
    %v8628 = vpack.c.bf16 %v8604, %v8598
    %v8629 = vpack.c.bf16 %v8605, %v8599
    %v8630 = vpack.c.bf16 %v8606, %v8600
    %v8631 = vpack.c.bf16 %v8607, %v8601
    %v8632 = vpack.c.bf16 %v8608, %v8608
    %v8633 = vpack.c.bf16 %v8609, %v8609
    %v8634 = vpack.c.bf16 %v8610, %v8610
    %v8635 = vpack.c.bf16 %v8611, %v8611
    %v8636 = vpack.c.bf16 %v8612, %v8612
    %v8637 = vpack.c.bf16 %v8613, %v8613
    %v8662 = vunpack.c.l.b16 %v8614
    %v8663 = vunpack.c.l.b16 %v8615
    %v8664 = vunpack.c.l.b16 %v8616
    %v8665 = vunpack.c.l.b16 %v8617
    %v8666 = vunpack.c.l.b16 %v8618
    %v8667 = vunpack.c.l.b16 %v8619
    %v8668 = vunpack.c.h.b16 %v8614
    %v8669 = vunpack.c.h.b16 %v8615
    %v8670 = vunpack.c.h.b16 %v8616
    %v8671 = vunpack.c.h.b16 %v8617
    %v8672 = vunpack.c.h.b16 %v8618
    %v8673 = vunpack.c.h.b16 %v8619
    %v8674 = vunpack.c.l.b16 %v8620
    %v8675 = vunpack.c.l.b16 %v8621
    %v8676 = vunpack.c.l.b16 %v8622
    %v8677 = vunpack.c.l.b16 %v8623
    %v8678 = vunpack.c.l.b16 %v8624
    %v8679 = vunpack.c.l.b16 %v8625
    %v8680 = vunpack.c.h.b16 %v8620
    %v8681 = vunpack.c.h.b16 %v8621
    %v8682 = vunpack.c.h.b16 %v8622
    %v8683 = vunpack.c.h.b16 %v8623
    %v8684 = vunpack.c.h.b16 %v8624
    %v8685 = vunpack.c.h.b16 %v8625
    %v8686 = vunpack.c.l.b16 %v8626
    %v8687 = vunpack.c.l.b16 %v8627
    %v8688 = vunpack.c.l.b16 %v8628
    %v8689 = vunpack.c.l.b16 %v8629
    %v8690 = vunpack.c.l.b16 %v8630
    %v8691 = vunpack.c.l.b16 %v8631
    %v8692 = vunpack.c.h.b16 %v8626
    %v8693 = vunpack.c.h.b16 %v8627
    %v8694 = vunpack.c.h.b16 %v8628
    %v8695 = vunpack.c.h.b16 %v8629
    %v8696 = vunpack.c.h.b16 %v8630
    %v8697 = vunpack.c.h.b16 %v8631
    %v8698 = vunpack.c.l.b16 %v8632
    %v8699 = vunpack.c.l.b16 %v8633
    %v8700 = vunpack.c.l.b16 %v8634
    %v8701 = vunpack.c.l.b16 %v8635
    %v8702 = vunpack.c.l.b16 %v8636
    %v8703 = vunpack.c.l.b16 %v8637
    %v8704 = vpack.c.b16 %v8663, %v8662
    %v8705 = vpack.c.b16 %v8665, %v8664
    %v8706 = vpack.c.b16 %v8667, %v8666
    %v8707 = vpack.c.b16 %v8669, %v8668
    %v8708 = vpack.c.b16 %v8671, %v8670
    %v8709 = vpack.c.b16 %v8673, %v8672
    %v8710 = vpack.c.b16 %v8675, %v8674
    %v8711 = vpack.c.b16 %v8677, %v8676
    %v8712 = vpack.c.b16 %v8679, %v8678
    %v8713 = vpack.c.b16 %v8681, %v8680
    %v8714 = vpack.c.b16 %v8683, %v8682
    %v8715 = vpack.c.b16 %v8685, %v8684
    %v8716 = vpack.c.b16 %v8687, %v8686
    %v8717 = vpack.c.b16 %v8689, %v8688
    %v8718 = vpack.c.b16 %v8691, %v8690
    %v8719 = vpack.c.b16 %v8693, %v8692
    %v8720 = vpack.c.b16 %v8695, %v8694
    %v8721 = vpack.c.b16 %v8697, %v8696
    %v8722 = vpack.c.b16 %v8699, %v8698
    %v8723 = vpack.c.b16 %v8701, %v8700
    %v8724 = vpack.c.b16 %v8703, %v8702
    %vm8725 = vcmask 1042432
    %vm8726 = vcmask 1046532
    %vm8727 = vmor %vm8725, %vm8726
    %v8728 = vrot.slane %v8704, 5
    %v8729 = vrot.slane %v8728, 4
    %v8730 = vrot.slane %v8707, 5
    %v8731 = vsel %vm8727, %v8729, %v8730
    %v8732 = vrot.slane %v8705, 5
    %v8733 = vrot.slane %v8732, 4
    %v8734 = vrot.slane %v8708, 5
    %v8735 = vsel %vm8727, %v8733, %v8734
    %v8736 = vrot.slane %v8706, 5
    %v8737 = vrot.slane %v8736, 4
    %v8738 = vrot.slane %v8709, 5
    %v8739 = vsel %vm8727, %v8737, %v8738
    %v8740 = vrot.slane %v8730, 4
    %v8741 = vrot.slane %v8710, 5
    %v8742 = vsel %vm8727, %v8740, %v8741
    %v8743 = vrot.slane %v8734, 4
    %v8744 = vrot.slane %v8711, 5
    %v8745 = vsel %vm8727, %v8743, %v8744
    %v8746 = vrot.slane %v8738, 4
    %v8747 = vrot.slane %v8712, 5
    %v8748 = vsel %vm8727, %v8746, %v8747
    %v8749 = vrot.slane %v8741, 4
    %v8750 = vrot.slane %v8713, 5
    %v8751 = vsel %vm8727, %v8749, %v8750
    %v8752 = vrot.slane %v8744, 4
    %v8753 = vrot.slane %v8714, 5
    %v8754 = vsel %vm8727, %v8752, %v8753
    %v8755 = vrot.slane %v8747, 4
    %v8756 = vrot.slane %v8715, 5
    %v8757 = vsel %vm8727, %v8755, %v8756
    %v8758 = vrot.slane %v8750, 4
    %v8759 = vrot.slane %v8716, 5
    %v8760 = vsel %vm8727, %v8758, %v8759
    %v8761 = vrot.slane %v8753, 4
    %v8762 = vrot.slane %v8717, 5
    %v8763 = vsel %vm8727, %v8761, %v8762
    %v8764 = vrot.slane %v8756, 4
    %v8765 = vrot.slane %v8718, 5
    %v8766 = vsel %vm8727, %v8764, %v8765
    %v8767 = vrot.slane %v8759, 4
    %v8768 = vrot.slane %v8719, 5
    %v8769 = vsel %vm8727, %v8767, %v8768
    %v8770 = vrot.slane %v8762, 4
    %v8771 = vrot.slane %v8720, 5
    %v8772 = vsel %vm8727, %v8770, %v8771
    %v8773 = vrot.slane %v8765, 4
    %v8774 = vrot.slane %v8721, 5
    %v8775 = vsel %vm8727, %v8773, %v8774
    %v8776 = vrot.slane %v8768, 4
    %v8777 = vrot.slane %v8722, 5
    %v8778 = vsel %vm8727, %v8776, %v8777
    %v8779 = vrot.slane %v8771, 4
    %v8780 = vrot.slane %v8723, 5
    %v8781 = vsel %vm8727, %v8779, %v8780
    %v8782 = vrot.slane %v8774, 4
    %v8783 = vrot.slane %v8724, 5
    %v8784 = vsel %vm8727, %v8782, %v8783
    %8803 = vst [vmem:[#allocation7 + $0x30] sm:$0xff] %v8731
    %8804 = vst [vmem:[#allocation7 + $0x38] sm:$0xff] %v8735
    %8805 = vst [vmem:[#allocation7 + $0x40] sm:$0xff] %v8739
    %8806 = vst [vmem:[#allocation7 + $0xc0] sm:$0xff] %v8742
    %8807 = vst [vmem:[#allocation7 + $0xc8] sm:$0xff] %v8745
    %8808 = vst [vmem:[#allocation7 + $0xd0] sm:$0xff] %v8748
    %8809 = vst [vmem:[#allocation7 + $0x150] sm:$0xff] %v8751
    %8810 = vst [vmem:[#allocation7 + $0x158] sm:$0xff] %v8754
    %8811 = vst [vmem:[#allocation7 + $0x160] sm:$0xff] %v8757
    %8812 = vst [vmem:[#allocation7 + $0x1e0] sm:$0xff] %v8760
    %8813 = vst [vmem:[#allocation7 + $0x1e8] sm:$0xff] %v8763
    %8814 = vst [vmem:[#allocation7 + $0x1f0] sm:$0xff] %v8766
    %8815 = vst [vmem:[#allocation7 + $0x270] sm:$0xff] %v8769
    %8816 = vst [vmem:[#allocation7 + $0x278] sm:$0xff] %v8772
    %8817 = vst [vmem:[#allocation7 + $0x280] sm:$0xff] %v8775
    %8818 = vst [vmem:[#allocation7 + $0x300] sm:$0xff] %v8778
    %8819 = vst [vmem:[#allocation7 + $0x308] sm:$0xff] %v8781
    %8820 = vst [vmem:[#allocation7 + $0x310] sm:$0xff] %v8784
    %v8821 = vld [vmem:[#allocation6] sm:$0xf8]
    %v8822 = vld [vmem:[#allocation6 + $0x8] sm:$0xf8]
    %v8823 = vld [vmem:[#allocation6 + $0x10] sm:$0xf8]
    %v8824 = vld [vmem:[#allocation6 + $0x18] sm:$0xf8]
    %v8825 = vld [vmem:[#allocation6 + $0x20] sm:$0xf8]
    %v8826 = vld [vmem:[#allocation6 + $0x28] sm:$0xf8]
    %v8827 = vld [vmem:[#allocation6 + $0x30] sm:$0xff]
    %v8828 = vld [vmem:[#allocation6 + $0x38] sm:$0xff]
    %v8829 = vld [vmem:[#allocation6 + $0x40] sm:$0xff]
    %v8830 = vld [vmem:[#allocation6 + $0x48] sm:$0xff]
    %v8831 = vld [vmem:[#allocation6 + $0x50] sm:$0xff]
    %v8832 = vld [vmem:[#allocation6 + $0x58] sm:$0xff]
    %v8833 = vld [vmem:[#allocation6 + $0x60] sm:$0xff]
    %v8834 = vld [vmem:[#allocation6 + $0x68] sm:$0xff]
    %v8835 = vld [vmem:[#allocation6 + $0x70] sm:$0xff]
    %v8836 = vld [vmem:[#allocation6 + $0x78] sm:$0xff]
    %v8837 = vld [vmem:[#allocation6 + $0x80] sm:$0xff]
    %v8838 = vld [vmem:[#allocation6 + $0x88] sm:$0xff]
    %v8839 = vld [vmem:[#allocation6 + $0x90] sm:$0xff]
    %v8840 = vld [vmem:[#allocation6 + $0x98] sm:$0xff]
    %v8841 = vld [vmem:[#allocation6 + $0xa0] sm:$0xff]
    %v8842 = vld [vmem:[#allocation6 + $0xa8] sm:$0xff]
    %v8843 = vld [vmem:[#allocation6 + $0xb0] sm:$0xff]
    %v8844 = vld [vmem:[#allocation6 + $0xb8] sm:$0xff]
    %v8845 = vld [vmem:[#allocation6 + $0xc0] sm:$0xff]
    %v8846 = vld [vmem:[#allocation6 + $0xc8] sm:$0xff]
    %v8847 = vld [vmem:[#allocation6 + $0xd0] sm:$0xff]
    %v8848 = vld [vmem:[#allocation6 + $0xd8] sm:$0xff]
    %v8849 = vld [vmem:[#allocation6 + $0xe0] sm:$0xff]
    %v8850 = vld [vmem:[#allocation6 + $0xe8] sm:$0xff]
    %v8851 = vld [vmem:[#allocation6 + $0xf0] sm:$0xff]
    %v8852 = vld [vmem:[#allocation6 + $0xf8] sm:$0xff]
    %v8853 = vld [vmem:[#allocation6 + $0x100] sm:$0xff]
    %v8854 = vld [vmem:[#allocation6 + $0x108] sm:$0xff]
    %v8855 = vld [vmem:[#allocation6 + $0x110] sm:$0xff]
    %v8856 = vld [vmem:[#allocation6 + $0x118] sm:$0xff]
    %v8857 = vld [vmem:[#allocation6 + $0x120] sm:$0x7]
    %v8858 = vld [vmem:[#allocation6 + $0x128] sm:$0x7]
    %v8859 = vld [vmem:[#allocation6 + $0x130] sm:$0x7]
    %v8860 = vld [vmem:[#allocation6 + $0x138] sm:$0x7]
    %v8861 = vld [vmem:[#allocation6 + $0x140] sm:$0x7]
    %v8862 = vld [vmem:[#allocation6 + $0x148] sm:$0x7]
    %v8863 = vpack.c.bf16 %v8827, %v8821
    %v8864 = vpack.c.bf16 %v8828, %v8822
    %v8865 = vpack.c.bf16 %v8829, %v8823
    %v8866 = vpack.c.bf16 %v8830, %v8824
    %v8867 = vpack.c.bf16 %v8831, %v8825
    %v8868 = vpack.c.bf16 %v8832, %v8826
    %v8869 = vpack.c.bf16 %v8839, %v8833
    %v8870 = vpack.c.bf16 %v8840, %v8834
    %v8871 = vpack.c.bf16 %v8841, %v8835
    %v8872 = vpack.c.bf16 %v8842, %v8836
    %v8873 = vpack.c.bf16 %v8843, %v8837
    %v8874 = vpack.c.bf16 %v8844, %v8838
    %v8875 = vpack.c.bf16 %v8851, %v8845
    %v8876 = vpack.c.bf16 %v8852, %v8846
    %v8877 = vpack.c.bf16 %v8853, %v8847
    %v8878 = vpack.c.bf16 %v8854, %v8848
    %v8879 = vpack.c.bf16 %v8855, %v8849
    %v8880 = vpack.c.bf16 %v8856, %v8850
    %v8881 = vpack.c.bf16 %v8857, %v8857
    %v8882 = vpack.c.bf16 %v8858, %v8858
    %v8883 = vpack.c.bf16 %v8859, %v8859
    %v8884 = vpack.c.bf16 %v8860, %v8860
    %v8885 = vpack.c.bf16 %v8861, %v8861
    %v8886 = vpack.c.bf16 %v8862, %v8862
    %v8911 = vunpack.c.l.b16 %v8863
    %v8912 = vunpack.c.l.b16 %v8864
    %v8913 = vunpack.c.l.b16 %v8865
    %v8914 = vunpack.c.l.b16 %v8866
    %v8915 = vunpack.c.l.b16 %v8867
    %v8916 = vunpack.c.l.b16 %v8868
    %v8917 = vunpack.c.h.b16 %v8863
    %v8918 = vunpack.c.h.b16 %v8864
    %v8919 = vunpack.c.h.b16 %v8865
    %v8920 = vunpack.c.h.b16 %v8866
    %v8921 = vunpack.c.h.b16 %v8867
    %v8922 = vunpack.c.h.b16 %v8868
    %v8923 = vunpack.c.l.b16 %v8869
    %v8924 = vunpack.c.l.b16 %v8870
    %v8925 = vunpack.c.l.b16 %v8871
    %v8926 = vunpack.c.l.b16 %v8872
    %v8927 = vunpack.c.l.b16 %v8873
    %v8928 = vunpack.c.l.b16 %v8874
    %v8929 = vunpack.c.h.b16 %v8869
    %v8930 = vunpack.c.h.b16 %v8870
    %v8931 = vunpack.c.h.b16 %v8871
    %v8932 = vunpack.c.h.b16 %v8872
    %v8933 = vunpack.c.h.b16 %v8873
    %v8934 = vunpack.c.h.b16 %v8874
    %v8935 = vunpack.c.l.b16 %v8875
    %v8936 = vunpack.c.l.b16 %v8876
    %v8937 = vunpack.c.l.b16 %v8877
    %v8938 = vunpack.c.l.b16 %v8878
    %v8939 = vunpack.c.l.b16 %v8879
    %v8940 = vunpack.c.l.b16 %v8880
    %v8941 = vunpack.c.h.b16 %v8875
    %v8942 = vunpack.c.h.b16 %v8876
    %v8943 = vunpack.c.h.b16 %v8877
    %v8944 = vunpack.c.h.b16 %v8878
    %v8945 = vunpack.c.h.b16 %v8879
    %v8946 = vunpack.c.h.b16 %v8880
    %v8947 = vunpack.c.l.b16 %v8881
    %v8948 = vunpack.c.l.b16 %v8882
    %v8949 = vunpack.c.l.b16 %v8883
    %v8950 = vunpack.c.l.b16 %v8884
    %v8951 = vunpack.c.l.b16 %v8885
    %v8952 = vunpack.c.l.b16 %v8886
    %v8953 = vpack.c.b16 %v8912, %v8911
    %v8954 = vpack.c.b16 %v8914, %v8913
    %v8955 = vpack.c.b16 %v8916, %v8915
    %v8956 = vpack.c.b16 %v8918, %v8917
    %v8957 = vpack.c.b16 %v8920, %v8919
    %v8958 = vpack.c.b16 %v8922, %v8921
    %v8959 = vpack.c.b16 %v8924, %v8923
    %v8960 = vpack.c.b16 %v8926, %v8925
    %v8961 = vpack.c.b16 %v8928, %v8927
    %v8962 = vpack.c.b16 %v8930, %v8929
    %v8963 = vpack.c.b16 %v8932, %v8931
    %v8964 = vpack.c.b16 %v8934, %v8933
    %v8965 = vpack.c.b16 %v8936, %v8935
    %v8966 = vpack.c.b16 %v8938, %v8937
    %v8967 = vpack.c.b16 %v8940, %v8939
    %v8968 = vpack.c.b16 %v8942, %v8941
    %v8969 = vpack.c.b16 %v8944, %v8943
    %v8970 = vpack.c.b16 %v8946, %v8945
    %v8971 = vpack.c.b16 %v8948, %v8947
    %v8972 = vpack.c.b16 %v8950, %v8949
    %v8973 = vpack.c.b16 %v8952, %v8951
    %vm8974 = vsmask.f32 2304
    %vm8975 = vsmask.f32 6416
    %vm8976 = vmor %vm8974, %vm8975
    %v8978 = vshrl.u32 %v8953, 16
    %v8980 = vrot.slane %v8978, 5
    %v8981 = vshll.u32 %v8953, 16
    %v8983 = vrot.slane %v8981, 6
    %v8984 = vor.u32 %v8980, %v8983
    %v8985 = vrot.slane %v8984, 4
    %v8987 = vshrl.u32 %v8956, 16
    %v8989 = vrot.slane %v8987, 5
    %v8990 = vshll.u32 %v8956, 16
    %v8992 = vrot.slane %v8990, 6
    %v8993 = vor.u32 %v8989, %v8992
    %v8994 = vsel %vm8976, %v8985, %v8993
    %v8996 = vshrl.u32 %v8954, 16
    %v8998 = vrot.slane %v8996, 5
    %v8999 = vshll.u32 %v8954, 16
    %v9001 = vrot.slane %v8999, 6
    %v9002 = vor.u32 %v8998, %v9001
    %v9003 = vrot.slane %v9002, 4
    %v9005 = vshrl.u32 %v8957, 16
    %v9007 = vrot.slane %v9005, 5
    %v9008 = vshll.u32 %v8957, 16
    %v9010 = vrot.slane %v9008, 6
    %v9011 = vor.u32 %v9007, %v9010
    %v9012 = vsel %vm8976, %v9003, %v9011
    %v9014 = vshrl.u32 %v8955, 16
    %v9016 = vrot.slane %v9014, 5
    %v9017 = vshll.u32 %v8955, 16
    %v9019 = vrot.slane %v9017, 6
    %v9020 = vor.u32 %v9016, %v9019
    %v9021 = vrot.slane %v9020, 4
    %v9023 = vshrl.u32 %v8958, 16
    %v9025 = vrot.slane %v9023, 5
    %v9026 = vshll.u32 %v8958, 16
    %v9028 = vrot.slane %v9026, 6
    %v9029 = vor.u32 %v9025, %v9028
    %v9030 = vsel %vm8976, %v9021, %v9029
    %v9031 = vrot.slane %v8993, 4
    %v9033 = vshrl.u32 %v8959, 16
    %v9035 = vrot.slane %v9033, 5
    %v9036 = vshll.u32 %v8959, 16
    %v9038 = vrot.slane %v9036, 6
    %v9039 = vor.u32 %v9035, %v9038
    %v9040 = vsel %vm8976, %v9031, %v9039
    %v9041 = vrot.slane %v9011, 4
    %v9043 = vshrl.u32 %v8960, 16
    %v9045 = vrot.slane %v9043, 5
    %v9046 = vshll.u32 %v8960, 16
    %v9048 = vrot.slane %v9046, 6
    %v9049 = vor.u32 %v9045, %v9048
    %v9050 = vsel %vm8976, %v9041, %v9049
    %v9051 = vrot.slane %v9029, 4
    %v9053 = vshrl.u32 %v8961, 16
    %v9055 = vrot.slane %v9053, 5
    %v9056 = vshll.u32 %v8961, 16
    %v9058 = vrot.slane %v9056, 6
    %v9059 = vor.u32 %v9055, %v9058
    %v9060 = vsel %vm8976, %v9051, %v9059
    %v9061 = vrot.slane %v9039, 4
    %v9063 = vshrl.u32 %v8962, 16
    %v9065 = vrot.slane %v9063, 5
    %v9066 = vshll.u32 %v8962, 16
    %v9068 = vrot.slane %v9066, 6
    %v9069 = vor.u32 %v9065, %v9068
    %v9070 = vsel %vm8976, %v9061, %v9069
    %v9071 = vrot.slane %v9049, 4
    %v9073 = vshrl.u32 %v8963, 16
    %v9075 = vrot.slane %v9073, 5
    %v9076 = vshll.u32 %v8963, 16
    %v9078 = vrot.slane %v9076, 6
    %v9079 = vor.u32 %v9075, %v9078
    %v9080 = vsel %vm8976, %v9071, %v9079
    %v9081 = vrot.slane %v9059, 4
    %v9083 = vshrl.u32 %v8964, 16
    %v9085 = vrot.slane %v9083, 5
    %v9086 = vshll.u32 %v8964, 16
    %v9088 = vrot.slane %v9086, 6
    %v9089 = vor.u32 %v9085, %v9088
    %v9090 = vsel %vm8976, %v9081, %v9089
    %v9091 = vrot.slane %v9069, 4
    %v9093 = vshrl.u32 %v8965, 16
    %v9095 = vrot.slane %v9093, 5
    %v9096 = vshll.u32 %v8965, 16
    %v9098 = vrot.slane %v9096, 6
    %v9099 = vor.u32 %v9095, %v9098
    %v9100 = vsel %vm8976, %v9091, %v9099
    %v9101 = vrot.slane %v9079, 4
    %v9103 = vshrl.u32 %v8966, 16
    %v9105 = vrot.slane %v9103, 5
    %v9106 = vshll.u32 %v8966, 16
    %v9108 = vrot.slane %v9106, 6
    %v9109 = vor.u32 %v9105, %v9108
    %v9110 = vsel %vm8976, %v9101, %v9109
    %v9111 = vrot.slane %v9089, 4
    %v9113 = vshrl.u32 %v8967, 16
    %v9115 = vrot.slane %v9113, 5
    %v9116 = vshll.u32 %v8967, 16
    %v9118 = vrot.slane %v9116, 6
    %v9119 = vor.u32 %v9115, %v9118
    %v9120 = vsel %vm8976, %v9111, %v9119
    %v9121 = vrot.slane %v9099, 4
    %v9123 = vshrl.u32 %v8968, 16
    %v9125 = vrot.slane %v9123, 5
    %v9126 = vshll.u32 %v8968, 16
    %v9128 = vrot.slane %v9126, 6
    %v9129 = vor.u32 %v9125, %v9128
    %v9130 = vsel %vm8976, %v9121, %v9129
    %v9131 = vrot.slane %v9109, 4
    %v9133 = vshrl.u32 %v8969, 16
    %v9135 = vrot.slane %v9133, 5
    %v9136 = vshll.u32 %v8969, 16
    %v9138 = vrot.slane %v9136, 6
    %v9139 = vor.u32 %v9135, %v9138
    %v9140 = vsel %vm8976, %v9131, %v9139
    %v9141 = vrot.slane %v9119, 4
    %v9143 = vshrl.u32 %v8970, 16
    %v9145 = vrot.slane %v9143, 5
    %v9146 = vshll.u32 %v8970, 16
    %v9148 = vrot.slane %v9146, 6
    %v9149 = vor.u32 %v9145, %v9148
    %v9150 = vsel %vm8976, %v9141, %v9149
    %v9151 = vrot.slane %v9129, 4
    %v9153 = vshrl.u32 %v8971, 16
    %v9155 = vrot.slane %v9153, 5
    %v9156 = vshll.u32 %v8971, 16
    %v9158 = vrot.slane %v9156, 6
    %v9159 = vor.u32 %v9155, %v9158
    %v9160 = vsel %vm8976, %v9151, %v9159
    %v9161 = vrot.slane %v9139, 4
    %v9163 = vshrl.u32 %v8972, 16
    %v9165 = vrot.slane %v9163, 5
    %v9166 = vshll.u32 %v8972, 16
    %v9168 = vrot.slane %v9166, 6
    %v9169 = vor.u32 %v9165, %v9168
    %v9170 = vsel %vm8976, %v9161, %v9169
    %v9171 = vrot.slane %v9149, 4
    %v9173 = vshrl.u32 %v8973, 16
    %v9175 = vrot.slane %v9173, 5
    %v9176 = vshll.u32 %v8973, 16
    %v9178 = vrot.slane %v9176, 6
    %v9179 = vor.u32 %v9175, %v9178
    %v9180 = vsel %vm8976, %v9171, %v9179
    %9199 = vst [vmem:[#allocation7 + $0x48] sm:$0xff] %v8994
    %9200 = vst [vmem:[#allocation7 + $0x50] sm:$0xff] %v9012
    %9201 = vst [vmem:[#allocation7 + $0x58] sm:$0xff] %v9030
    %9202 = vst [vmem:[#allocation7 + $0xd8] sm:$0xff] %v9040
    %9203 = vst [vmem:[#allocation7 + $0xe0] sm:$0xff] %v9050
    %9204 = vst [vmem:[#allocation7 + $0xe8] sm:$0xff] %v9060
    %9205 = vst [vmem:[#allocation7 + $0x168] sm:$0xff] %v9070
    %9206 = vst [vmem:[#allocation7 + $0x170] sm:$0xff] %v9080
    %9207 = vst [vmem:[#allocation7 + $0x178] sm:$0xff] %v9090
    %9208 = vst [vmem:[#allocation7 + $0x1f8] sm:$0xff] %v9100
    %9209 = vst [vmem:[#allocation7 + $0x200] sm:$0xff] %v9110
    %9210 = vst [vmem:[#allocation7 + $0x208] sm:$0xff] %v9120
    %9211 = vst [vmem:[#allocation7 + $0x288] sm:$0xff] %v9130
    %9212 = vst [vmem:[#allocation7 + $0x290] sm:$0xff] %v9140
    %9213 = vst [vmem:[#allocation7 + $0x298] sm:$0xff] %v9150
    %9214 = vst [vmem:[#allocation7 + $0x318] sm:$0xff] %v9160
    %9215 = vst [vmem:[#allocation7 + $0x320] sm:$0xff] %v9170
    %9216 = vst [vmem:[#allocation7 + $0x328] sm:$0xff] %v9180
    %v9217 = vld [vmem:[#allocation6] sm:$0xf0]
    %v9218 = vld [vmem:[#allocation6 + $0x8] sm:$0xf0]
    %v9219 = vld [vmem:[#allocation6 + $0x10] sm:$0xf0]
    %v9220 = vld [vmem:[#allocation6 + $0x18] sm:$0xf0]
    %v9221 = vld [vmem:[#allocation6 + $0x20] sm:$0xf0]
    %v9222 = vld [vmem:[#allocation6 + $0x28] sm:$0xf0]
    %v9223 = vld [vmem:[#allocation6 + $0x30] sm:$0xff]
    %v9224 = vld [vmem:[#allocation6 + $0x38] sm:$0xff]
    %v9225 = vld [vmem:[#allocation6 + $0x40] sm:$0xff]
    %v9226 = vld [vmem:[#allocation6 + $0x48] sm:$0xff]
    %v9227 = vld [vmem:[#allocation6 + $0x50] sm:$0xff]
    %v9228 = vld [vmem:[#allocation6 + $0x58] sm:$0xff]
    %v9229 = vld [vmem:[#allocation6 + $0x60] sm:$0xff]
    %v9230 = vld [vmem:[#allocation6 + $0x68] sm:$0xff]
    %v9231 = vld [vmem:[#allocation6 + $0x70] sm:$0xff]
    %v9232 = vld [vmem:[#allocation6 + $0x78] sm:$0xff]
    %v9233 = vld [vmem:[#allocation6 + $0x80] sm:$0xff]
    %v9234 = vld [vmem:[#allocation6 + $0x88] sm:$0xff]
    %v9235 = vld [vmem:[#allocation6 + $0x90] sm:$0xff]
    %v9236 = vld [vmem:[#allocation6 + $0x98] sm:$0xff]
    %v9237 = vld [vmem:[#allocation6 + $0xa0] sm:$0xff]
    %v9238 = vld [vmem:[#allocation6 + $0xa8] sm:$0xff]
    %v9239 = vld [vmem:[#allocation6 + $0xb0] sm:$0xff]
    %v9240 = vld [vmem:[#allocation6 + $0xb8] sm:$0xff]
    %v9241 = vld [vmem:[#allocation6 + $0xc0] sm:$0xff]
    %v9242 = vld [vmem:[#allocation6 + $0xc8] sm:$0xff]
    %v9243 = vld [vmem:[#allocation6 + $0xd0] sm:$0xff]
    %v9244 = vld [vmem:[#allocation6 + $0xd8] sm:$0xff]
    %v9245 = vld [vmem:[#allocation6 + $0xe0] sm:$0xff]
    %v9246 = vld [vmem:[#allocation6 + $0xe8] sm:$0xff]
    %v9247 = vld [vmem:[#allocation6 + $0xf0] sm:$0xff]
    %v9248 = vld [vmem:[#allocation6 + $0xf8] sm:$0xff]
    %v9249 = vld [vmem:[#allocation6 + $0x100] sm:$0xff]
    %v9250 = vld [vmem:[#allocation6 + $0x108] sm:$0xff]
    %v9251 = vld [vmem:[#allocation6 + $0x110] sm:$0xff]
    %v9252 = vld [vmem:[#allocation6 + $0x118] sm:$0xff]
    %v9253 = vld [vmem:[#allocation6 + $0x120] sm:$0xf]
    %v9254 = vld [vmem:[#allocation6 + $0x128] sm:$0xf]
    %v9255 = vld [vmem:[#allocation6 + $0x130] sm:$0xf]
    %v9256 = vld [vmem:[#allocation6 + $0x138] sm:$0xf]
    %v9257 = vld [vmem:[#allocation6 + $0x140] sm:$0xf]
    %v9258 = vld [vmem:[#allocation6 + $0x148] sm:$0xf]
    %v9259 = vpack.c.bf16 %v9223, %v9217
    %v9260 = vpack.c.bf16 %v9224, %v9218
    %v9261 = vpack.c.bf16 %v9225, %v9219
    %v9262 = vpack.c.bf16 %v9226, %v9220
    %v9263 = vpack.c.bf16 %v9227, %v9221
    %v9264 = vpack.c.bf16 %v9228, %v9222
    %v9265 = vpack.c.bf16 %v9235, %v9229
    %v9266 = vpack.c.bf16 %v9236, %v9230
    %v9267 = vpack.c.bf16 %v9237, %v9231
    %v9268 = vpack.c.bf16 %v9238, %v9232
    %v9269 = vpack.c.bf16 %v9239, %v9233
    %v9270 = vpack.c.bf16 %v9240, %v9234
    %v9271 = vpack.c.bf16 %v9247, %v9241
    %v9272 = vpack.c.bf16 %v9248, %v9242
    %v9273 = vpack.c.bf16 %v9249, %v9243
    %v9274 = vpack.c.bf16 %v9250, %v9244
    %v9275 = vpack.c.bf16 %v9251, %v9245
    %v9276 = vpack.c.bf16 %v9252, %v9246
    %v9277 = vpack.c.bf16 %v9253, %v9253
    %v9278 = vpack.c.bf16 %v9254, %v9254
    %v9279 = vpack.c.bf16 %v9255, %v9255
    %v9280 = vpack.c.bf16 %v9256, %v9256
    %v9281 = vpack.c.bf16 %v9257, %v9257
    %v9282 = vpack.c.bf16 %v9258, %v9258
    %v9307 = vunpack.c.l.b16 %v9259
    %v9308 = vunpack.c.l.b16 %v9260
    %v9309 = vunpack.c.l.b16 %v9261
    %v9310 = vunpack.c.l.b16 %v9262
    %v9311 = vunpack.c.l.b16 %v9263
    %v9312 = vunpack.c.l.b16 %v9264
    %v9313 = vunpack.c.h.b16 %v9259
    %v9314 = vunpack.c.h.b16 %v9260
    %v9315 = vunpack.c.h.b16 %v9261
    %v9316 = vunpack.c.h.b16 %v9262
    %v9317 = vunpack.c.h.b16 %v9263
    %v9318 = vunpack.c.h.b16 %v9264
    %v9319 = vunpack.c.l.b16 %v9265
    %v9320 = vunpack.c.l.b16 %v9266
    %v9321 = vunpack.c.l.b16 %v9267
    %v9322 = vunpack.c.l.b16 %v9268
    %v9323 = vunpack.c.l.b16 %v9269
    %v9324 = vunpack.c.l.b16 %v9270
    %v9325 = vunpack.c.h.b16 %v9265
    %v9326 = vunpack.c.h.b16 %v9266
    %v9327 = vunpack.c.h.b16 %v9267
    %v9328 = vunpack.c.h.b16 %v9268
    %v9329 = vunpack.c.h.b16 %v9269
    %v9330 = vunpack.c.h.b16 %v9270
    %v9331 = vunpack.c.l.b16 %v9271
    %v9332 = vunpack.c.l.b16 %v9272
    %v9333 = vunpack.c.l.b16 %v9273
    %v9334 = vunpack.c.l.b16 %v9274
    %v9335 = vunpack.c.l.b16 %v9275
    %v9336 = vunpack.c.l.b16 %v9276
    %v9337 = vunpack.c.h.b16 %v9271
    %v9338 = vunpack.c.h.b16 %v9272
    %v9339 = vunpack.c.h.b16 %v9273
    %v9340 = vunpack.c.h.b16 %v9274
    %v9341 = vunpack.c.h.b16 %v9275
    %v9342 = vunpack.c.h.b16 %v9276
    %v9343 = vunpack.c.l.b16 %v9277
    %v9344 = vunpack.c.l.b16 %v9278
    %v9345 = vunpack.c.l.b16 %v9279
    %v9346 = vunpack.c.l.b16 %v9280
    %v9347 = vunpack.c.l.b16 %v9281
    %v9348 = vunpack.c.l.b16 %v9282
    %v9349 = vpack.c.b16 %v9308, %v9307
    %v9350 = vpack.c.b16 %v9310, %v9309
    %v9351 = vpack.c.b16 %v9312, %v9311
    %v9352 = vpack.c.b16 %v9314, %v9313
    %v9353 = vpack.c.b16 %v9316, %v9315
    %v9354 = vpack.c.b16 %v9318, %v9317
    %v9355 = vpack.c.b16 %v9320, %v9319
    %v9356 = vpack.c.b16 %v9322, %v9321
    %v9357 = vpack.c.b16 %v9324, %v9323
    %v9358 = vpack.c.b16 %v9326, %v9325
    %v9359 = vpack.c.b16 %v9328, %v9327
    %v9360 = vpack.c.b16 %v9330, %v9329
    %v9361 = vpack.c.b16 %v9332, %v9331
    %v9362 = vpack.c.b16 %v9334, %v9333
    %v9363 = vpack.c.b16 %v9336, %v9335
    %v9364 = vpack.c.b16 %v9338, %v9337
    %v9365 = vpack.c.b16 %v9340, %v9339
    %v9366 = vpack.c.b16 %v9342, %v9341
    %v9367 = vpack.c.b16 %v9344, %v9343
    %v9368 = vpack.c.b16 %v9346, %v9345
    %v9369 = vpack.c.b16 %v9348, %v9347
    %vm9370 = vcmask 1041408
    %vm9371 = vcmask 1045508
    %vm9372 = vmor %vm9370, %vm9371
    %v9373 = vrot.slane %v9349, 6
    %v9374 = vrot.slane %v9373, 4
    %v9375 = vrot.slane %v9352, 6
    %v9376 = vsel %vm9372, %v9374, %v9375
    %v9377 = vrot.slane %v9350, 6
    %v9378 = vrot.slane %v9377, 4
    %v9379 = vrot.slane %v9353, 6
    %v9380 = vsel %vm9372, %v9378, %v9379
    %v9381 = vrot.slane %v9351, 6
    %v9382 = vrot.slane %v9381, 4
    %v9383 = vrot.slane %v9354, 6
    %v9384 = vsel %vm9372, %v9382, %v9383
    %v9385 = vrot.slane %v9375, 4
    %v9386 = vrot.slane %v9355, 6
    %v9387 = vsel %vm9372, %v9385, %v9386
    %v9388 = vrot.slane %v9379, 4
    %v9389 = vrot.slane %v9356, 6
    %v9390 = vsel %vm9372, %v9388, %v9389
    %v9391 = vrot.slane %v9383, 4
    %v9392 = vrot.slane %v9357, 6
    %v9393 = vsel %vm9372, %v9391, %v9392
    %v9394 = vrot.slane %v9386, 4
    %v9395 = vrot.slane %v9358, 6
    %v9396 = vsel %vm9372, %v9394, %v9395
    %v9397 = vrot.slane %v9389, 4
    %v9398 = vrot.slane %v9359, 6
    %v9399 = vsel %vm9372, %v9397, %v9398
    %v9400 = vrot.slane %v9392, 4
    %v9401 = vrot.slane %v9360, 6
    %v9402 = vsel %vm9372, %v9400, %v9401
    %v9403 = vrot.slane %v9395, 4
    %v9404 = vrot.slane %v9361, 6
    %v9405 = vsel %vm9372, %v9403, %v9404
    %v9406 = vrot.slane %v9398, 4
    %v9407 = vrot.slane %v9362, 6
    %v9408 = vsel %vm9372, %v9406, %v9407
    %v9409 = vrot.slane %v9401, 4
    %v9410 = vrot.slane %v9363, 6
    %v9411 = vsel %vm9372, %v9409, %v9410
    %v9412 = vrot.slane %v9404, 4
    %v9413 = vrot.slane %v9364, 6
    %v9414 = vsel %vm9372, %v9412, %v9413
    %v9415 = vrot.slane %v9407, 4
    %v9416 = vrot.slane %v9365, 6
    %v9417 = vsel %vm9372, %v9415, %v9416
    %v9418 = vrot.slane %v9410, 4
    %v9419 = vrot.slane %v9366, 6
    %v9420 = vsel %vm9372, %v9418, %v9419
    %v9421 = vrot.slane %v9413, 4
    %v9422 = vrot.slane %v9367, 6
    %v9423 = vsel %vm9372, %v9421, %v9422
    %v9424 = vrot.slane %v9416, 4
    %v9425 = vrot.slane %v9368, 6
    %v9426 = vsel %vm9372, %v9424, %v9425
    %v9427 = vrot.slane %v9419, 4
    %v9428 = vrot.slane %v9369, 6
    %v9429 = vsel %vm9372, %v9427, %v9428
    %9448 = vst [vmem:[#allocation7 + $0x60] sm:$0xff] %v9376
    %9449 = vst [vmem:[#allocation7 + $0x68] sm:$0xff] %v9380
    %9450 = vst [vmem:[#allocation7 + $0x70] sm:$0xff] %v9384
    %9451 = vst [vmem:[#allocation7 + $0xf0] sm:$0xff] %v9387
    %9452 = vst [vmem:[#allocation7 + $0xf8] sm:$0xff] %v9390
    %9453 = vst [vmem:[#allocation7 + $0x100] sm:$0xff] %v9393
    %9454 = vst [vmem:[#allocation7 + $0x180] sm:$0xff] %v9396
    %9455 = vst [vmem:[#allocation7 + $0x188] sm:$0xff] %v9399
    %9456 = vst [vmem:[#allocation7 + $0x190] sm:$0xff] %v9402
    %9457 = vst [vmem:[#allocation7 + $0x210] sm:$0xff] %v9405
    %9458 = vst [vmem:[#allocation7 + $0x218] sm:$0xff] %v9408
    %9459 = vst [vmem:[#allocation7 + $0x220] sm:$0xff] %v9411
    %9460 = vst [vmem:[#allocation7 + $0x2a0] sm:$0xff] %v9414
    %9461 = vst [vmem:[#allocation7 + $0x2a8] sm:$0xff] %v9417
    %9462 = vst [vmem:[#allocation7 + $0x2b0] sm:$0xff] %v9420
    %9463 = vst [vmem:[#allocation7 + $0x330] sm:$0xff] %v9423
    %9464 = vst [vmem:[#allocation7 + $0x338] sm:$0xff] %v9426
    %9465 = vst [vmem:[#allocation7 + $0x340] sm:$0xff] %v9429
    %v9466 = vld [vmem:[#allocation6] sm:$0xe0]
    %v9467 = vld [vmem:[#allocation6 + $0x8] sm:$0xe0]
    %v9468 = vld [vmem:[#allocation6 + $0x10] sm:$0xe0]
    %v9469 = vld [vmem:[#allocation6 + $0x18] sm:$0xe0]
    %v9470 = vld [vmem:[#allocation6 + $0x20] sm:$0xe0]
    %v9471 = vld [vmem:[#allocation6 + $0x28] sm:$0xe0]
    %v9472 = vld [vmem:[#allocation6 + $0x30] sm:$0xff]
    %v9473 = vld [vmem:[#allocation6 + $0x38] sm:$0xff]
    %v9474 = vld [vmem:[#allocation6 + $0x40] sm:$0xff]
    %v9475 = vld [vmem:[#allocation6 + $0x48] sm:$0xff]
    %v9476 = vld [vmem:[#allocation6 + $0x50] sm:$0xff]
    %v9477 = vld [vmem:[#allocation6 + $0x58] sm:$0xff]
    %v9478 = vld [vmem:[#allocation6 + $0x60] sm:$0xff]
    %v9479 = vld [vmem:[#allocation6 + $0x68] sm:$0xff]
    %v9480 = vld [vmem:[#allocation6 + $0x70] sm:$0xff]
    %v9481 = vld [vmem:[#allocation6 + $0x78] sm:$0xff]
    %v9482 = vld [vmem:[#allocation6 + $0x80] sm:$0xff]
    %v9483 = vld [vmem:[#allocation6 + $0x88] sm:$0xff]
    %v9484 = vld [vmem:[#allocation6 + $0x90] sm:$0xff]
    %v9485 = vld [vmem:[#allocation6 + $0x98] sm:$0xff]
    %v9486 = vld [vmem:[#allocation6 + $0xa0] sm:$0xff]
    %v9487 = vld [vmem:[#allocation6 + $0xa8] sm:$0xff]
    %v9488 = vld [vmem:[#allocation6 + $0xb0] sm:$0xff]
    %v9489 = vld [vmem:[#allocation6 + $0xb8] sm:$0xff]
    %v9490 = vld [vmem:[#allocation6 + $0xc0] sm:$0xff]
    %v9491 = vld [vmem:[#allocation6 + $0xc8] sm:$0xff]
    %v9492 = vld [vmem:[#allocation6 + $0xd0] sm:$0xff]
    %v9493 = vld [vmem:[#allocation6 + $0xd8] sm:$0xff]
    %v9494 = vld [vmem:[#allocation6 + $0xe0] sm:$0xff]
    %v9495 = vld [vmem:[#allocation6 + $0xe8] sm:$0xff]
    %v9496 = vld [vmem:[#allocation6 + $0xf0] sm:$0xff]
    %v9497 = vld [vmem:[#allocation6 + $0xf8] sm:$0xff]
    %v9498 = vld [vmem:[#allocation6 + $0x100] sm:$0xff]
    %v9499 = vld [vmem:[#allocation6 + $0x108] sm:$0xff]
    %v9500 = vld [vmem:[#allocation6 + $0x110] sm:$0xff]
    %v9501 = vld [vmem:[#allocation6 + $0x118] sm:$0xff]
    %v9502 = vld [vmem:[#allocation6 + $0x120] sm:$0x1f]
    %v9503 = vld [vmem:[#allocation6 + $0x128] sm:$0x1f]
    %v9504 = vld [vmem:[#allocation6 + $0x130] sm:$0x1f]
    %v9505 = vld [vmem:[#allocation6 + $0x138] sm:$0x1f]
    %v9506 = vld [vmem:[#allocation6 + $0x140] sm:$0x1f]
    %v9507 = vld [vmem:[#allocation6 + $0x148] sm:$0x1f]
    %v9508 = vpack.c.bf16 %v9472, %v9466
    %v9509 = vpack.c.bf16 %v9473, %v9467
    %v9510 = vpack.c.bf16 %v9474, %v9468
    %v9511 = vpack.c.bf16 %v9475, %v9469
    %v9512 = vpack.c.bf16 %v9476, %v9470
    %v9513 = vpack.c.bf16 %v9477, %v9471
    %v9514 = vpack.c.bf16 %v9484, %v9478
    %v9515 = vpack.c.bf16 %v9485, %v9479
    %v9516 = vpack.c.bf16 %v9486, %v9480
    %v9517 = vpack.c.bf16 %v9487, %v9481
    %v9518 = vpack.c.bf16 %v9488, %v9482
    %v9519 = vpack.c.bf16 %v9489, %v9483
    %v9520 = vpack.c.bf16 %v9496, %v9490
    %v9521 = vpack.c.bf16 %v9497, %v9491
    %v9522 = vpack.c.bf16 %v9498, %v9492
    %v9523 = vpack.c.bf16 %v9499, %v9493
    %v9524 = vpack.c.bf16 %v9500, %v9494
    %v9525 = vpack.c.bf16 %v9501, %v9495
    %v9526 = vpack.c.bf16 %v9502, %v9502
    %v9527 = vpack.c.bf16 %v9503, %v9503
    %v9528 = vpack.c.bf16 %v9504, %v9504
    %v9529 = vpack.c.bf16 %v9505, %v9505
    %v9530 = vpack.c.bf16 %v9506, %v9506
    %v9531 = vpack.c.bf16 %v9507, %v9507
    %v9556 = vunpack.c.l.b16 %v9508
    %v9557 = vunpack.c.l.b16 %v9509
    %v9558 = vunpack.c.l.b16 %v9510
    %v9559 = vunpack.c.l.b16 %v9511
    %v9560 = vunpack.c.l.b16 %v9512
    %v9561 = vunpack.c.l.b16 %v9513
    %v9562 = vunpack.c.h.b16 %v9508
    %v9563 = vunpack.c.h.b16 %v9509
    %v9564 = vunpack.c.h.b16 %v9510
    %v9565 = vunpack.c.h.b16 %v9511
    %v9566 = vunpack.c.h.b16 %v9512
    %v9567 = vunpack.c.h.b16 %v9513
    %v9568 = vunpack.c.l.b16 %v9514
    %v9569 = vunpack.c.l.b16 %v9515
    %v9570 = vunpack.c.l.b16 %v9516
    %v9571 = vunpack.c.l.b16 %v9517
    %v9572 = vunpack.c.l.b16 %v9518
    %v9573 = vunpack.c.l.b16 %v9519
    %v9574 = vunpack.c.h.b16 %v9514
    %v9575 = vunpack.c.h.b16 %v9515
    %v9576 = vunpack.c.h.b16 %v9516
    %v9577 = vunpack.c.h.b16 %v9517
    %v9578 = vunpack.c.h.b16 %v9518
    %v9579 = vunpack.c.h.b16 %v9519
    %v9580 = vunpack.c.l.b16 %v9520
    %v9581 = vunpack.c.l.b16 %v9521
    %v9582 = vunpack.c.l.b16 %v9522
    %v9583 = vunpack.c.l.b16 %v9523
    %v9584 = vunpack.c.l.b16 %v9524
    %v9585 = vunpack.c.l.b16 %v9525
    %v9586 = vunpack.c.h.b16 %v9520
    %v9587 = vunpack.c.h.b16 %v9521
    %v9588 = vunpack.c.h.b16 %v9522
    %v9589 = vunpack.c.h.b16 %v9523
    %v9590 = vunpack.c.h.b16 %v9524
    %v9591 = vunpack.c.h.b16 %v9525
    %v9592 = vunpack.c.l.b16 %v9526
    %v9593 = vunpack.c.l.b16 %v9527
    %v9594 = vunpack.c.l.b16 %v9528
    %v9595 = vunpack.c.l.b16 %v9529
    %v9596 = vunpack.c.l.b16 %v9530
    %v9597 = vunpack.c.l.b16 %v9531
    %v9598 = vpack.c.b16 %v9557, %v9556
    %v9599 = vpack.c.b16 %v9559, %v9558
    %v9600 = vpack.c.b16 %v9561, %v9560
    %v9601 = vpack.c.b16 %v9563, %v9562
    %v9602 = vpack.c.b16 %v9565, %v9564
    %v9603 = vpack.c.b16 %v9567, %v9566
    %v9604 = vpack.c.b16 %v9569, %v9568
    %v9605 = vpack.c.b16 %v9571, %v9570
    %v9606 = vpack.c.b16 %v9573, %v9572
    %v9607 = vpack.c.b16 %v9575, %v9574
    %v9608 = vpack.c.b16 %v9577, %v9576
    %v9609 = vpack.c.b16 %v9579, %v9578
    %v9610 = vpack.c.b16 %v9581, %v9580
    %v9611 = vpack.c.b16 %v9583, %v9582
    %v9612 = vpack.c.b16 %v9585, %v9584
    %v9613 = vpack.c.b16 %v9587, %v9586
    %v9614 = vpack.c.b16 %v9589, %v9588
    %v9615 = vpack.c.b16 %v9591, %v9590
    %v9616 = vpack.c.b16 %v9593, %v9592
    %v9617 = vpack.c.b16 %v9595, %v9594
    %v9618 = vpack.c.b16 %v9597, %v9596
    %vm9619 = vsmask.f32 1280
    %vm9620 = vsmask.f32 5392
    %vm9621 = vmor %vm9619, %vm9620
    %v9623 = vshrl.u32 %v9598, 16
    %v9625 = vrot.slane %v9623, 6
    %v9626 = vshll.u32 %v9598, 16
    %v9628 = vrot.slane %v9626, 7
    %v9629 = vor.u32 %v9625, %v9628
    %v9630 = vrot.slane %v9629, 4
    %v9632 = vshrl.u32 %v9601, 16
    %v9634 = vrot.slane %v9632, 6
    %v9635 = vshll.u32 %v9601, 16
    %v9637 = vrot.slane %v9635, 7
    %v9638 = vor.u32 %v9634, %v9637
    %v9639 = vsel %vm9621, %v9630, %v9638
    %v9641 = vshrl.u32 %v9599, 16
    %v9643 = vrot.slane %v9641, 6
    %v9644 = vshll.u32 %v9599, 16
    %v9646 = vrot.slane %v9644, 7
    %v9647 = vor.u32 %v9643, %v9646
    %v9648 = vrot.slane %v9647, 4
    %v9650 = vshrl.u32 %v9602, 16
    %v9652 = vrot.slane %v9650, 6
    %v9653 = vshll.u32 %v9602, 16
    %v9655 = vrot.slane %v9653, 7
    %v9656 = vor.u32 %v9652, %v9655
    %v9657 = vsel %vm9621, %v9648, %v9656
    %v9659 = vshrl.u32 %v9600, 16
    %v9661 = vrot.slane %v9659, 6
    %v9662 = vshll.u32 %v9600, 16
    %v9664 = vrot.slane %v9662, 7
    %v9665 = vor.u32 %v9661, %v9664
    %v9666 = vrot.slane %v9665, 4
    %v9668 = vshrl.u32 %v9603, 16
    %v9670 = vrot.slane %v9668, 6
    %v9671 = vshll.u32 %v9603, 16
    %v9673 = vrot.slane %v9671, 7
    %v9674 = vor.u32 %v9670, %v9673
    %v9675 = vsel %vm9621, %v9666, %v9674
    %v9676 = vrot.slane %v9638, 4
    %v9678 = vshrl.u32 %v9604, 16
    %v9680 = vrot.slane %v9678, 6
    %v9681 = vshll.u32 %v9604, 16
    %v9683 = vrot.slane %v9681, 7
    %v9684 = vor.u32 %v9680, %v9683
    %v9685 = vsel %vm9621, %v9676, %v9684
    %v9686 = vrot.slane %v9656, 4
    %v9688 = vshrl.u32 %v9605, 16
    %v9690 = vrot.slane %v9688, 6
    %v9691 = vshll.u32 %v9605, 16
    %v9693 = vrot.slane %v9691, 7
    %v9694 = vor.u32 %v9690, %v9693
    %v9695 = vsel %vm9621, %v9686, %v9694
    %v9696 = vrot.slane %v9674, 4
    %v9698 = vshrl.u32 %v9606, 16
    %v9700 = vrot.slane %v9698, 6
    %v9701 = vshll.u32 %v9606, 16
    %v9703 = vrot.slane %v9701, 7
    %v9704 = vor.u32 %v9700, %v9703
    %v9705 = vsel %vm9621, %v9696, %v9704
    %v9706 = vrot.slane %v9684, 4
    %v9708 = vshrl.u32 %v9607, 16
    %v9710 = vrot.slane %v9708, 6
    %v9711 = vshll.u32 %v9607, 16
    %v9713 = vrot.slane %v9711, 7
    %v9714 = vor.u32 %v9710, %v9713
    %v9715 = vsel %vm9621, %v9706, %v9714
    %v9716 = vrot.slane %v9694, 4
    %v9718 = vshrl.u32 %v9608, 16
    %v9720 = vrot.slane %v9718, 6
    %v9721 = vshll.u32 %v9608, 16
    %v9723 = vrot.slane %v9721, 7
    %v9724 = vor.u32 %v9720, %v9723
    %v9725 = vsel %vm9621, %v9716, %v9724
    %v9726 = vrot.slane %v9704, 4
    %v9728 = vshrl.u32 %v9609, 16
    %v9730 = vrot.slane %v9728, 6
    %v9731 = vshll.u32 %v9609, 16
    %v9733 = vrot.slane %v9731, 7
    %v9734 = vor.u32 %v9730, %v9733
    %v9735 = vsel %vm9621, %v9726, %v9734
    %v9736 = vrot.slane %v9714, 4
    %v9738 = vshrl.u32 %v9610, 16
    %v9740 = vrot.slane %v9738, 6
    %v9741 = vshll.u32 %v9610, 16
    %v9743 = vrot.slane %v9741, 7
    %v9744 = vor.u32 %v9740, %v9743
    %v9745 = vsel %vm9621, %v9736, %v9744
    %v9746 = vrot.slane %v9724, 4
    %v9748 = vshrl.u32 %v9611, 16
    %v9750 = vrot.slane %v9748, 6
    %v9751 = vshll.u32 %v9611, 16
    %v9753 = vrot.slane %v9751, 7
    %v9754 = vor.u32 %v9750, %v9753
    %v9755 = vsel %vm9621, %v9746, %v9754
    %v9756 = vrot.slane %v9734, 4
    %v9758 = vshrl.u32 %v9612, 16
    %v9760 = vrot.slane %v9758, 6
    %v9761 = vshll.u32 %v9612, 16
    %v9763 = vrot.slane %v9761, 7
    %v9764 = vor.u32 %v9760, %v9763
    %v9765 = vsel %vm9621, %v9756, %v9764
    %v9766 = vrot.slane %v9744, 4
    %v9768 = vshrl.u32 %v9613, 16
    %v9770 = vrot.slane %v9768, 6
    %v9771 = vshll.u32 %v9613, 16
    %v9773 = vrot.slane %v9771, 7
    %v9774 = vor.u32 %v9770, %v9773
    %v9775 = vsel %vm9621, %v9766, %v9774
    %v9776 = vrot.slane %v9754, 4
    %v9778 = vshrl.u32 %v9614, 16
    %v9780 = vrot.slane %v9778, 6
    %v9781 = vshll.u32 %v9614, 16
    %v9783 = vrot.slane %v9781, 7
    %v9784 = vor.u32 %v9780, %v9783
    %v9785 = vsel %vm9621, %v9776, %v9784
    %v9786 = vrot.slane %v9764, 4
    %v9788 = vshrl.u32 %v9615, 16
    %v9790 = vrot.slane %v9788, 6
    %v9791 = vshll.u32 %v9615, 16
    %v9793 = vrot.slane %v9791, 7
    %v9794 = vor.u32 %v9790, %v9793
    %v9795 = vsel %vm9621, %v9786, %v9794
    %v9796 = vrot.slane %v9774, 4
    %v9798 = vshrl.u32 %v9616, 16
    %v9800 = vrot.slane %v9798, 6
    %v9801 = vshll.u32 %v9616, 16
    %v9803 = vrot.slane %v9801, 7
    %v9804 = vor.u32 %v9800, %v9803
    %v9805 = vsel %vm9621, %v9796, %v9804
    %v9806 = vrot.slane %v9784, 4
    %v9808 = vshrl.u32 %v9617, 16
    %v9810 = vrot.slane %v9808, 6
    %v9811 = vshll.u32 %v9617, 16
    %v9813 = vrot.slane %v9811, 7
    %v9814 = vor.u32 %v9810, %v9813
    %v9815 = vsel %vm9621, %v9806, %v9814
    %v9816 = vrot.slane %v9794, 4
    %v9818 = vshrl.u32 %v9618, 16
    %v9820 = vrot.slane %v9818, 6
    %v9821 = vshll.u32 %v9618, 16
    %v9823 = vrot.slane %v9821, 7
    %v9824 = vor.u32 %v9820, %v9823
    %v9825 = vsel %vm9621, %v9816, %v9824
    %9844 = vst [vmem:[#allocation7 + $0x78] sm:$0xff] %v9639
    %9845 = vst [vmem:[#allocation7 + $0x80] sm:$0xff] %v9657
    %9846 = vst [vmem:[#allocation7 + $0x88] sm:$0xff] %v9675
    %9847 = vst [vmem:[#allocation7 + $0x108] sm:$0xff] %v9685
    %9848 = vst [vmem:[#allocation7 + $0x110] sm:$0xff] %v9695
    %9849 = vst [vmem:[#allocation7 + $0x118] sm:$0xff] %v9705
    %9850 = vst [vmem:[#allocation7 + $0x198] sm:$0xff] %v9715
    %9851 = vst [vmem:[#allocation7 + $0x1a0] sm:$0xff] %v9725
    %9852 = vst [vmem:[#allocation7 + $0x1a8] sm:$0xff] %v9735
    %9853 = vst [vmem:[#allocation7 + $0x228] sm:$0xff] %v9745
    %9854 = vst [vmem:[#allocation7 + $0x230] sm:$0xff] %v9755
    %9855 = vst [vmem:[#allocation7 + $0x238] sm:$0xff] %v9765
    %9856 = vst [vmem:[#allocation7 + $0x2b8] sm:$0xff] %v9775
    %9857 = vst [vmem:[#allocation7 + $0x2c0] sm:$0xff] %v9785
    %9858 = vst [vmem:[#allocation7 + $0x2c8] sm:$0xff] %v9795
    %9859 = vst [vmem:[#allocation7 + $0x348] sm:$0xff] %v9805
    %9860 = vst [vmem:[#allocation7 + $0x350] sm:$0xff] %v9815
    %9861 = vst [vmem:[#allocation7 + $0x358] sm:$0xff] %v9825
    %v9862 = vld [vmem:[#allocation7] sm:$0xff]
    %v9863 = vld [vmem:[#allocation7 + $0x8] sm:$0xff]
    %v9864 = vld [vmem:[#allocation7 + $0x10] sm:$0xff]
    %v9865 = vld [vmem:[#allocation7 + $0x18] sm:$0xff]
    %v9866 = vld [vmem:[#allocation7 + $0x20] sm:$0xff]
    %v9867 = vld [vmem:[#allocation7 + $0x28] sm:$0xff]
    %v9868 = vld [vmem:[#allocation7 + $0x30] sm:$0xff]
    %v9869 = vld [vmem:[#allocation7 + $0x38] sm:$0xff]
    %v9870 = vld [vmem:[#allocation7 + $0x40] sm:$0xff]
    %v9871 = vld [vmem:[#allocation7 + $0x48] sm:$0xff]
    %v9872 = vld [vmem:[#allocation7 + $0x50] sm:$0xff]
    %v9873 = vld [vmem:[#allocation7 + $0x58] sm:$0xff]
    %v9874 = vld [vmem:[#allocation7 + $0x60] sm:$0xff]
    %v9875 = vld [vmem:[#allocation7 + $0x68] sm:$0xff]
    %v9876 = vld [vmem:[#allocation7 + $0x70] sm:$0xff]
    %v9877 = vld [vmem:[#allocation7 + $0x78] sm:$0xff]
    %v9878 = vld [vmem:[#allocation7 + $0x80] sm:$0xff]
    %v9879 = vld [vmem:[#allocation7 + $0x88] sm:$0xff]
    %v9880 = vld [vmem:[#allocation7 + $0x90] sm:$0xff]
    %v9881 = vld [vmem:[#allocation7 + $0x98] sm:$0xff]
    %v9882 = vld [vmem:[#allocation7 + $0xa0] sm:$0xff]
    %v9883 = vld [vmem:[#allocation7 + $0xa8] sm:$0xff]
    %v9884 = vld [vmem:[#allocation7 + $0xb0] sm:$0xff]
    %v9885 = vld [vmem:[#allocation7 + $0xb8] sm:$0xff]
    %v9886 = vld [vmem:[#allocation7 + $0xc0] sm:$0xff]
    %v9887 = vld [vmem:[#allocation7 + $0xc8] sm:$0xff]
    %v9888 = vld [vmem:[#allocation7 + $0xd0] sm:$0xff]
    %v9889 = vld [vmem:[#allocation7 + $0xd8] sm:$0xff]
    %v9890 = vld [vmem:[#allocation7 + $0xe0] sm:$0xff]
    %v9891 = vld [vmem:[#allocation7 + $0xe8] sm:$0xff]
    %v9892 = vld [vmem:[#allocation7 + $0xf0] sm:$0xff]
    %v9893 = vld [vmem:[#allocation7 + $0xf8] sm:$0xff]
    %v9894 = vld [vmem:[#allocation7 + $0x100] sm:$0xff]
    %v9895 = vld [vmem:[#allocation7 + $0x108] sm:$0xff]
    %v9896 = vld [vmem:[#allocation7 + $0x110] sm:$0xff]
    %v9897 = vld [vmem:[#allocation7 + $0x118] sm:$0xff]
    %v9898 = vld [vmem:[#allocation7 + $0x120] sm:$0xff]
    %v9899 = vld [vmem:[#allocation7 + $0x128] sm:$0xff]
    %v9900 = vld [vmem:[#allocation7 + $0x130] sm:$0xff]
    %v9901 = vld [vmem:[#allocation7 + $0x138] sm:$0xff]
    %v9902 = vld [vmem:[#allocation7 + $0x140] sm:$0xff]
    %v9903 = vld [vmem:[#allocation7 + $0x148] sm:$0xff]
    %v9904 = vld [vmem:[#allocation7 + $0x150] sm:$0xff]
    %v9905 = vld [vmem:[#allocation7 + $0x158] sm:$0xff]
    %v9906 = vld [vmem:[#allocation7 + $0x160] sm:$0xff]
    %v9907 = vld [vmem:[#allocation7 + $0x168] sm:$0xff]
    %v9908 = vld [vmem:[#allocation7 + $0x170] sm:$0xff]
    %v9909 = vld [vmem:[#allocation7 + $0x178] sm:$0xff]
    %v9910 = vld [vmem:[#allocation7 + $0x180] sm:$0xff]
    %v9911 = vld [vmem:[#allocation7 + $0x188] sm:$0xff]
    %v9912 = vld [vmem:[#allocation7 + $0x190] sm:$0xff]
    %v9913 = vld [vmem:[#allocation7 + $0x198] sm:$0xff]
    %v9914 = vld [vmem:[#allocation7 + $0x1a0] sm:$0xff]
    %v9915 = vld [vmem:[#allocation7 + $0x1a8] sm:$0xff]
    %v9916 = vld [vmem:[#allocation7 + $0x1b0] sm:$0xff]
    %v9917 = vld [vmem:[#allocation7 + $0x1b8] sm:$0xff]
    %v9918 = vld [vmem:[#allocation7 + $0x1c0] sm:$0xff]
    %v9919 = vld [vmem:[#allocation7 + $0x1c8] sm:$0xff]
    %v9920 = vld [vmem:[#allocation7 + $0x1d0] sm:$0xff]
    %v9921 = vld [vmem:[#allocation7 + $0x1d8] sm:$0xff]
    %v9922 = vld [vmem:[#allocation7 + $0x1e0] sm:$0xff]
    %v9923 = vld [vmem:[#allocation7 + $0x1e8] sm:$0xff]
    %v9924 = vld [vmem:[#allocation7 + $0x1f0] sm:$0xff]
    %v9925 = vld [vmem:[#allocation7 + $0x1f8] sm:$0xff]
    %v9926 = vld [vmem:[#allocation7 + $0x200] sm:$0xff]
    %v9927 = vld [vmem:[#allocation7 + $0x208] sm:$0xff]
    %v9928 = vld [vmem:[#allocation7 + $0x210] sm:$0xff]
    %v9929 = vld [vmem:[#allocation7 + $0x218] sm:$0xff]
    %v9930 = vld [vmem:[#allocation7 + $0x220] sm:$0xff]
    %v9931 = vld [vmem:[#allocation7 + $0x228] sm:$0xff]
    %v9932 = vld [vmem:[#allocation7 + $0x230] sm:$0xff]
    %v9933 = vld [vmem:[#allocation7 + $0x238] sm:$0xff]
    %v9934 = vld [vmem:[#allocation7 + $0x240] sm:$0xff]
    %v9935 = vld [vmem:[#allocation7 + $0x248] sm:$0xff]
    %v9936 = vld [vmem:[#allocation7 + $0x250] sm:$0xff]
    %v9937 = vld [vmem:[#allocation7 + $0x258] sm:$0xff]
    %v9938 = vld [vmem:[#allocation7 + $0x260] sm:$0xff]
    %v9939 = vld [vmem:[#allocation7 + $0x268] sm:$0xff]
    %v9940 = vld [vmem:[#allocation7 + $0x270] sm:$0xff]
    %v9941 = vld [vmem:[#allocation7 + $0x278] sm:$0xff]
    %v9942 = vld [vmem:[#allocation7 + $0x280] sm:$0xff]
    %v9943 = vld [vmem:[#allocation7 + $0x288] sm:$0xff]
    %v9944 = vld [vmem:[#allocation7 + $0x290] sm:$0xff]
    %v9945 = vld [vmem:[#allocation7 + $0x298] sm:$0xff]
    %v9946 = vld [vmem:[#allocation7 + $0x2a0] sm:$0xff]
    %v9947 = vld [vmem:[#allocation7 + $0x2a8] sm:$0xff]
    %v9948 = vld [vmem:[#allocation7 + $0x2b0] sm:$0xff]
    %v9949 = vld [vmem:[#allocation7 + $0x2b8] sm:$0xff]
    %v9950 = vld [vmem:[#allocation7 + $0x2c0] sm:$0xff]
    %v9951 = vld [vmem:[#allocation7 + $0x2c8] sm:$0xff]
    %v9952 = vld [vmem:[#allocation7 + $0x2d0] sm:$0xff]
    %v9953 = vld [vmem:[#allocation7 + $0x2d8] sm:$0xff]
    %v9954 = vld [vmem:[#allocation7 + $0x2e0] sm:$0xff]
    %v9955 = vld [vmem:[#allocation7 + $0x2e8] sm:$0xff]
    %v9956 = vld [vmem:[#allocation7 + $0x2f0] sm:$0xff]
    %v9957 = vld [vmem:[#allocation7 + $0x2f8] sm:$0xff]
    %v9958 = vld [vmem:[#allocation7 + $0x300] sm:$0xff]
    %v9959 = vld [vmem:[#allocation7 + $0x308] sm:$0xff]
    %v9960 = vld [vmem:[#allocation7 + $0x310] sm:$0xff]
    %v9961 = vld [vmem:[#allocation7 + $0x318] sm:$0xff]
    %v9962 = vld [vmem:[#allocation7 + $0x320] sm:$0xff]
    %v9963 = vld [vmem:[#allocation7 + $0x328] sm:$0xff]
    %v9964 = vld [vmem:[#allocation7 + $0x330] sm:$0xff]
    %v9965 = vld [vmem:[#allocation7 + $0x338] sm:$0xff]
    %v9966 = vld [vmem:[#allocation7 + $0x340] sm:$0xff]
    %v9967 = vld [vmem:[#allocation7 + $0x348] sm:$0xff]
    %v9968 = vld [vmem:[#allocation7 + $0x350] sm:$0xff]
    %v9969 = vld [vmem:[#allocation7 + $0x358] sm:$0xff]
    %v9970 = vld [vmem:[%s4] sm:$0xf]
    %v9971 = vld [vmem:[%s4 + $0x4] sm:$0xf]
    %v9972 = vld [vmem:[%s4 + $0x8] sm:$0xf]
    %v9973 = vld [vmem:[%s4 + $0xc] sm:$0xf]
    %v9974 = vld [vmem:[%s4 + $0x10] sm:$0xf]
    %v9975 = vld [vmem:[%s4 + $0x14] sm:$0xf]
    %v9976 = vld [vmem:[%s4 + $0x18] sm:$0xf]
    %v9977 = vld [vmem:[%s4 + $0x1c] sm:$0xf]
    %v9978 = vld [vmem:[%s4 + $0x20] sm:$0xf]
    %v9979 = vld [vmem:[%s4 + $0x24] sm:$0xf]
    %v9980 = vld [vmem:[%s4 + $0x28] sm:$0xf]
    %v9981 = vld [vmem:[%s4 + $0x2c] sm:$0xf]
    %v9982 = vld [vmem:[%s4 + $0x30] sm:$0xf]
    %v9983 = vld [vmem:[%s4 + $0x34] sm:$0xf]
    %v9984 = vld [vmem:[%s4 + $0x38] sm:$0xf]
    %v9985 = vld [vmem:[%s4 + $0x3c] sm:$0xf]
    %v9986 = vld [vmem:[%s4 + $0x40] sm:$0xf]
    %v9987 = vld [vmem:[%s4 + $0x44] sm:$0xf]
    %v9988 = vld [vmem:[%s4 + $0x48] sm:$0xf]
    %v9989 = vld [vmem:[%s4 + $0x4c] sm:$0xf]
    %v9990 = vld [vmem:[%s4 + $0x50] sm:$0xf]
    %v9991 = vld [vmem:[%s4 + $0x54] sm:$0xf]
    %v9992 = vld [vmem:[%s4 + $0x58] sm:$0xf]
    %v9993 = vld [vmem:[%s4 + $0x5c] sm:$0xf]
    %v9994 = vld [vmem:[%s4 + $0x60] sm:$0xf]
    %v9995 = vld [vmem:[%s4 + $0x64] sm:$0xf]
    %v9996 = vld [vmem:[%s4 + $0x68] sm:$0xf]
    %v9997 = vld [vmem:[%s4 + $0x6c] sm:$0xf]
    %v9998 = vld [vmem:[%s4 + $0x70] sm:$0xf]
    %v9999 = vld [vmem:[%s4 + $0x74] sm:$0xf]
    %v10000 = vld [vmem:[%s4 + $0x78] sm:$0xf]
    %v10001 = vld [vmem:[%s4 + $0x7c] sm:$0xf]
    %v10002 = vld [vmem:[%s4 + $0x80] sm:$0xf]
    %v10003 = vld [vmem:[%s4 + $0x84] sm:$0xf]
    %v10004 = vld [vmem:[%s4 + $0x88] sm:$0xf]
    %v10005 = vld [vmem:[%s4 + $0x8c] sm:$0xf]
    %v10006 = vld [vmem:[%s4 + $0x90] sm:$0xf]
    %v10007 = vld [vmem:[%s4 + $0x94] sm:$0xf]
    %v10008 = vld [vmem:[%s4 + $0x98] sm:$0xf]
    %v10009 = vld [vmem:[%s4 + $0x9c] sm:$0xf]
    %v10010 = vld [vmem:[%s4 + $0xa0] sm:$0xf]
    %v10011 = vld [vmem:[%s4 + $0xa4] sm:$0xf]
    %v10012 = vld [vmem:[%s4 + $0xa8] sm:$0xf]
    %v10013 = vld [vmem:[%s4 + $0xac] sm:$0xf]
    %v10014 = vld [vmem:[%s4 + $0xb0] sm:$0xf]
    %v10015 = vld [vmem:[%s4 + $0xb4] sm:$0xf]
    %v10016 = vld [vmem:[%s4 + $0xb8] sm:$0xf]
    %v10017 = vld [vmem:[%s4 + $0xbc] sm:$0xf]
    %v10018 = vld [vmem:[%s4 + $0xc0] sm:$0xf]
    %v10019 = vld [vmem:[%s4 + $0xc4] sm:$0xf]
    %v10020 = vld [vmem:[%s4 + $0xc8] sm:$0xf]
    %v10021 = vld [vmem:[%s4 + $0xcc] sm:$0xf]
    %v10022 = vld [vmem:[%s4 + $0xd0] sm:$0xf]
    %v10023 = vld [vmem:[%s4 + $0xd4] sm:$0xf]
    %v10024 = vld [vmem:[%s4 + $0xd8] sm:$0xf]
    %v10025 = vld [vmem:[%s4 + $0xdc] sm:$0xf]
    %v10026 = vld [vmem:[%s4 + $0xe0] sm:$0xf]
    %v10027 = vld [vmem:[%s4 + $0xe4] sm:$0xf]
    %v10028 = vld [vmem:[%s4 + $0xe8] sm:$0xf]
    %v10029 = vld [vmem:[%s4 + $0xec] sm:$0xf]
    %v10030 = vld [vmem:[%s4 + $0xf0] sm:$0xf]
    %v10031 = vld [vmem:[%s4 + $0xf4] sm:$0xf]
    %v10032 = vld [vmem:[%s4 + $0xf8] sm:$0xf]
    %v10033 = vld [vmem:[%s4 + $0xfc] sm:$0xf]
    %v10034 = vld [vmem:[%s4 + $0x100] sm:$0xf]
    %v10035 = vld [vmem:[%s4 + $0x104] sm:$0xf]
    %v10036 = vld [vmem:[%s4 + $0x108] sm:$0xf]
    %v10037 = vld [vmem:[%s4 + $0x10c] sm:$0xf]
    %v10038 = vld [vmem:[%s4 + $0x110] sm:$0xf]
    %v10039 = vld [vmem:[%s4 + $0x114] sm:$0xf]
    %v10040 = vld [vmem:[%s4 + $0x118] sm:$0xf]
    %v10041 = vld [vmem:[%s4 + $0x11c] sm:$0xf]
    %v10042 = vld [vmem:[%s4 + $0x120] sm:$0xf]
    %v10043 = vld [vmem:[%s4 + $0x124] sm:$0xf]
    %v10044 = vld [vmem:[%s4 + $0x128] sm:$0xf]
    %v10045 = vld [vmem:[%s4 + $0x12c] sm:$0xf]
    %v10046 = vld [vmem:[%s4 + $0x130] sm:$0xf]
    %v10047 = vld [vmem:[%s4 + $0x134] sm:$0xf]
    %v10048 = vld [vmem:[%s4 + $0x138] sm:$0xf]
    %v10049 = vld [vmem:[%s4 + $0x13c] sm:$0xf]
    %v10050 = vld [vmem:[%s4 + $0x140] sm:$0xf]
    %v10051 = vld [vmem:[%s4 + $0x144] sm:$0xf]
    %v10052 = vld [vmem:[%s4 + $0x148] sm:$0xf]
    %v10053 = vld [vmem:[%s4 + $0x14c] sm:$0xf]
    %v10054 = vld [vmem:[%s4 + $0x150] sm:$0xf]
    %v10055 = vld [vmem:[%s4 + $0x154] sm:$0xf]
    %v10056 = vld [vmem:[%s4 + $0x158] sm:$0xf]
    %v10057 = vld [vmem:[%s4 + $0x15c] sm:$0xf]
    %v10058 = vld [vmem:[%s4 + $0x160] sm:$0xf]
    %v10059 = vld [vmem:[%s4 + $0x164] sm:$0xf]
    %v10060 = vld [vmem:[%s4 + $0x168] sm:$0xf]
    %v10061 = vld [vmem:[%s4 + $0x16c] sm:$0xf]
    %v10062 = vld [vmem:[%s4 + $0x170] sm:$0xf]
    %v10063 = vld [vmem:[%s4 + $0x174] sm:$0xf]
    %v10064 = vld [vmem:[%s4 + $0x178] sm:$0xf]
    %v10065 = vld [vmem:[%s4 + $0x17c] sm:$0xf]
    %v10066 = vld [vmem:[%s4 + $0x180] sm:$0xf]
    %v10067 = vld [vmem:[%s4 + $0x184] sm:$0xf]
    %v10068 = vld [vmem:[%s4 + $0x188] sm:$0xf]
    %v10069 = vld [vmem:[%s4 + $0x18c] sm:$0xf]
    %v10070 = vld [vmem:[%s4 + $0x190] sm:$0xf]
    %v10071 = vld [vmem:[%s4 + $0x194] sm:$0xf]
    %v10072 = vld [vmem:[%s4 + $0x198] sm:$0xf]
    %v10073 = vld [vmem:[%s4 + $0x19c] sm:$0xf]
    %v10074 = vld [vmem:[%s4 + $0x1a0] sm:$0xf]
    %v10075 = vld [vmem:[%s4 + $0x1a4] sm:$0xf]
    %v10076 = vld [vmem:[%s4 + $0x1a8] sm:$0xf]
    %v10077 = vld [vmem:[%s4 + $0x1ac] sm:$0xf]
    %v10078 = vld [vmem:[%s4 + $0x1b0] sm:$0xf]
    %v10079 = vld [vmem:[%s4 + $0x1b4] sm:$0xf]
    %v10080 = vld [vmem:[%s4 + $0x1b8] sm:$0xf]
    %v10081 = vld [vmem:[%s4 + $0x1bc] sm:$0xf]
    %v10082 = vld [vmem:[%s4 + $0x1c0] sm:$0xf]
    %v10083 = vld [vmem:[%s4 + $0x1c4] sm:$0xf]
    %v10084 = vld [vmem:[%s4 + $0x1c8] sm:$0xf]
    %v10085 = vld [vmem:[%s4 + $0x1cc] sm:$0xf]
    %v10086 = vld [vmem:[%s4 + $0x1d0] sm:$0xf]
    %v10087 = vld [vmem:[%s4 + $0x1d4] sm:$0xf]
    %v10088 = vld [vmem:[%s4 + $0x1d8] sm:$0xf]
    %v10089 = vld [vmem:[%s4 + $0x1dc] sm:$0xf]
    %v10090 = vld [vmem:[%s4 + $0x1e0] sm:$0xf]
    %v10091 = vld [vmem:[%s4 + $0x1e4] sm:$0xf]
    %v10092 = vld [vmem:[%s4 + $0x1e8] sm:$0xf]
    %v10093 = vld [vmem:[%s4 + $0x1ec] sm:$0xf]
    %v10094 = vld [vmem:[%s4 + $0x1f0] sm:$0xf]
    %v10095 = vld [vmem:[%s4 + $0x1f4] sm:$0xf]
    %v10096 = vld [vmem:[%s4 + $0x1f8] sm:$0xf]
    %v10097 = vld [vmem:[%s4 + $0x1fc] sm:$0xf]
    %v10098 = vld [vmem:[%s4 + $0x200] sm:$0xf]
    %v10099 = vld [vmem:[%s4 + $0x204] sm:$0xf]
    %v10100 = vld [vmem:[%s4 + $0x208] sm:$0xf]
    %v10101 = vld [vmem:[%s4 + $0x20c] sm:$0xf]
    %v10102 = vld [vmem:[%s4 + $0x210] sm:$0xf]
    %v10103 = vld [vmem:[%s4 + $0x214] sm:$0xf]
    %v10104 = vld [vmem:[%s4 + $0x218] sm:$0xf]
    %v10105 = vld [vmem:[%s4 + $0x21c] sm:$0xf]
    %v10106 = vld [vmem:[%s4 + $0x220] sm:$0xf]
    %v10107 = vld [vmem:[%s4 + $0x224] sm:$0xf]
    %v10108 = vld [vmem:[%s4 + $0x228] sm:$0xf]
    %v10109 = vld [vmem:[%s4 + $0x22c] sm:$0xf]
    %v10110 = vld [vmem:[%s4 + $0x230] sm:$0xf]
    %v10111 = vld [vmem:[%s4 + $0x234] sm:$0xf]
    %v10112 = vld [vmem:[%s4 + $0x238] sm:$0xf]
    %v10113 = vld [vmem:[%s4 + $0x23c] sm:$0xf]
    %v10114 = vld [vmem:[%s4 + $0x240] sm:$0xf]
    %v10115 = vld [vmem:[%s4 + $0x244] sm:$0xf]
    %v10116 = vld [vmem:[%s4 + $0x248] sm:$0xf]
    %v10117 = vld [vmem:[%s4 + $0x24c] sm:$0xf]
    %v10118 = vld [vmem:[%s4 + $0x250] sm:$0xf]
    %v10119 = vld [vmem:[%s4 + $0x254] sm:$0xf]
    %v10120 = vld [vmem:[%s4 + $0x258] sm:$0xf]
    %v10121 = vld [vmem:[%s4 + $0x25c] sm:$0xf]
    %v10122 = vld [vmem:[%s4 + $0x260] sm:$0xf]
    %v10123 = vld [vmem:[%s4 + $0x264] sm:$0xf]
    %v10124 = vld [vmem:[%s4 + $0x268] sm:$0xf]
    %v10125 = vld [vmem:[%s4 + $0x26c] sm:$0xf]
    %v10126 = vld [vmem:[%s4 + $0x270] sm:$0xf]
    %v10127 = vld [vmem:[%s4 + $0x274] sm:$0xf]
    %v10128 = vld [vmem:[%s4 + $0x278] sm:$0xf]
    %v10129 = vld [vmem:[%s4 + $0x27c] sm:$0xf]
    %v10130 = vld [vmem:[%s4 + $0x280] sm:$0xf]
    %v10131 = vld [vmem:[%s4 + $0x284] sm:$0xf]
    %v10132 = vld [vmem:[%s4 + $0x288] sm:$0xf]
    %v10133 = vld [vmem:[%s4 + $0x28c] sm:$0xf]
    %v10134 = vld [vmem:[%s4 + $0x290] sm:$0xf]
    %v10135 = vld [vmem:[%s4 + $0x294] sm:$0xf]
    %v10136 = vld [vmem:[%s4 + $0x298] sm:$0xf]
    %v10137 = vld [vmem:[%s4 + $0x29c] sm:$0xf]
    %v10138 = vld [vmem:[%s4 + $0x2a0] sm:$0xf]
    %v10139 = vld [vmem:[%s4 + $0x2a4] sm:$0xf]
    %v10140 = vld [vmem:[%s4 + $0x2a8] sm:$0xf]
    %v10141 = vld [vmem:[%s4 + $0x2ac] sm:$0xf]
    %v10142 = vld [vmem:[%s4 + $0x2b0] sm:$0xf]
    %v10143 = vld [vmem:[%s4 + $0x2b4] sm:$0xf]
    %v10144 = vld [vmem:[%s4 + $0x2b8] sm:$0xf]
    %v10145 = vld [vmem:[%s4 + $0x2bc] sm:$0xf]
    %v10146 = vld [vmem:[%s4 + $0x2c0] sm:$0xf]
    %v10147 = vld [vmem:[%s4 + $0x2c4] sm:$0xf]
    %v10148 = vld [vmem:[%s4 + $0x2c8] sm:$0xf]
    %v10149 = vld [vmem:[%s4 + $0x2cc] sm:$0xf]
    %v10150 = vld [vmem:[%s4 + $0x2d0] sm:$0xf]
    %v10151 = vld [vmem:[%s4 + $0x2d4] sm:$0xf]
    %v10152 = vld [vmem:[%s4 + $0x2d8] sm:$0xf]
    %v10153 = vld [vmem:[%s4 + $0x2dc] sm:$0xf]
    %v10154 = vld [vmem:[%s4 + $0x2e0] sm:$0xf]
    %v10155 = vld [vmem:[%s4 + $0x2e4] sm:$0xf]
    %v10156 = vld [vmem:[%s4 + $0x2e8] sm:$0xf]
    %v10157 = vld [vmem:[%s4 + $0x2ec] sm:$0xf]
    %v10158 = vld [vmem:[%s4 + $0x2f0] sm:$0xf]
    %v10159 = vld [vmem:[%s4 + $0x2f4] sm:$0xf]
    %v10160 = vld [vmem:[%s4 + $0x2f8] sm:$0xf]
    %v10161 = vld [vmem:[%s4 + $0x2fc] sm:$0xf]
    %v10162 = vld [vmem:[%s4 + $0x300] sm:$0xf]
    %v10163 = vld [vmem:[%s4 + $0x304] sm:$0xf]
    %v10164 = vld [vmem:[%s4 + $0x308] sm:$0xf]
    %v10165 = vld [vmem:[%s4 + $0x30c] sm:$0xf]
    %v10166 = vld [vmem:[%s4 + $0x310] sm:$0xf]
    %v10167 = vld [vmem:[%s4 + $0x314] sm:$0xf]
    %v10168 = vld [vmem:[%s4 + $0x318] sm:$0xf]
    %v10169 = vld [vmem:[%s4 + $0x31c] sm:$0xf]
    %v10170 = vld [vmem:[%s4 + $0x320] sm:$0xf]
    %v10171 = vld [vmem:[%s4 + $0x324] sm:$0xf]
    %v10172 = vld [vmem:[%s4 + $0x328] sm:$0xf]
    %v10173 = vld [vmem:[%s4 + $0x32c] sm:$0xf]
    %v10174 = vld [vmem:[%s4 + $0x330] sm:$0xf]
    %v10175 = vld [vmem:[%s4 + $0x334] sm:$0xf]
    %v10176 = vld [vmem:[%s4 + $0x338] sm:$0xf]
    %v10177 = vld [vmem:[%s4 + $0x33c] sm:$0xf]
    %v10178 = vld [vmem:[%s4 + $0x340] sm:$0xf]
    %v10179 = vld [vmem:[%s4 + $0x344] sm:$0xf]
    %v10180 = vld [vmem:[%s4 + $0x348] sm:$0xf]
    %v10181 = vld [vmem:[%s4 + $0x34c] sm:$0xf]
    %v10182 = vld [vmem:[%s4 + $0x350] sm:$0xf]
    %v10183 = vld [vmem:[%s4 + $0x354] sm:$0xf]
    %v10184 = vld [vmem:[%s4 + $0x358] sm:$0xf]
    %v10185 = vld [vmem:[%s4 + $0x35c] sm:$0xf]
    %v10186 = vld [vmem:[%s4 + $0x360] sm:$0xf]
    %v10187 = vld [vmem:[%s4 + $0x364] sm:$0xf]
    %v10188 = vld [vmem:[%s4 + $0x368] sm:$0xf]
    %v10189 = vld [vmem:[%s4 + $0x36c] sm:$0xf]
    %v10190 = vld [vmem:[%s4 + $0x370] sm:$0xf]
    %v10191 = vld [vmem:[%s4 + $0x374] sm:$0xf]
    %v10192 = vld [vmem:[%s4 + $0x378] sm:$0xf]
    %v10193 = vld [vmem:[%s4 + $0x37c] sm:$0xf]
    %v10194 = vld [vmem:[%s4 + $0x380] sm:$0xf]
    %v10195 = vld [vmem:[%s4 + $0x384] sm:$0xf]
    %v10196 = vld [vmem:[%s4 + $0x388] sm:$0xf]
    %v10197 = vld [vmem:[%s4 + $0x38c] sm:$0xf]
    %v10198 = vld [vmem:[%s4 + $0x390] sm:$0xf]
    %v10199 = vld [vmem:[%s4 + $0x394] sm:$0xf]
    %v10200 = vld [vmem:[%s4 + $0x398] sm:$0xf]
    %v10201 = vld [vmem:[%s4 + $0x39c] sm:$0xf]
    %v10202 = vld [vmem:[%s4 + $0x3a0] sm:$0xf]
    %v10203 = vld [vmem:[%s4 + $0x3a4] sm:$0xf]
    %v10204 = vld [vmem:[%s4 + $0x3a8] sm:$0xf]
    %v10205 = vld [vmem:[%s4 + $0x3ac] sm:$0xf]
    %v10206 = vld [vmem:[%s4 + $0x3b0] sm:$0xf]
    %v10207 = vld [vmem:[%s4 + $0x3b4] sm:$0xf]
    %v10208 = vld [vmem:[%s4 + $0x3b8] sm:$0xf]
    %v10209 = vld [vmem:[%s4 + $0x3bc] sm:$0xf]
    %v10210 = vld [vmem:[%s4 + $0x3c0] sm:$0xf]
    %v10211 = vld [vmem:[%s4 + $0x3c4] sm:$0xf]
    %v10212 = vld [vmem:[%s4 + $0x3c8] sm:$0xf]
    %v10213 = vld [vmem:[%s4 + $0x3cc] sm:$0xf]
    %v10214 = vld [vmem:[%s4 + $0x3d0] sm:$0xf]
    %v10215 = vld [vmem:[%s4 + $0x3d4] sm:$0xf]
    %v10216 = vld [vmem:[%s4 + $0x3d8] sm:$0xf]
    %v10217 = vld [vmem:[%s4 + $0x3dc] sm:$0xf]
    %v10218 = vld [vmem:[%s4 + $0x3e0] sm:$0xf]
    %v10219 = vld [vmem:[%s4 + $0x3e4] sm:$0xf]
    %v10220 = vld [vmem:[%s4 + $0x3e8] sm:$0xf]
    %v10221 = vld [vmem:[%s4 + $0x3ec] sm:$0xf]
    %v10222 = vld [vmem:[%s4 + $0x3f0] sm:$0xf]
    %v10223 = vld [vmem:[%s4 + $0x3f4] sm:$0xf]
    %v10224 = vld [vmem:[%s4 + $0x3f8] sm:$0xf]
    %v10225 = vld [vmem:[%s4 + $0x3fc] sm:$0xf]
    %v10226 = vld [vmem:[%s4 + $0x400] sm:$0xf]
    %v10227 = vld [vmem:[%s4 + $0x404] sm:$0xf]
    %v10228 = vld [vmem:[%s4 + $0x408] sm:$0xf]
    %v10229 = vld [vmem:[%s4 + $0x40c] sm:$0xf]
    %v10230 = vld [vmem:[%s4 + $0x410] sm:$0xf]
    %v10231 = vld [vmem:[%s4 + $0x414] sm:$0xf]
    %v10232 = vld [vmem:[%s4 + $0x418] sm:$0xf]
    %v10233 = vld [vmem:[%s4 + $0x41c] sm:$0xf]
    %v10234 = vld [vmem:[%s4 + $0x420] sm:$0xf]
    %v10235 = vld [vmem:[%s4 + $0x424] sm:$0xf]
    %v10236 = vld [vmem:[%s4 + $0x428] sm:$0xf]
    %v10237 = vld [vmem:[%s4 + $0x42c] sm:$0xf]
    %v10238 = vld [vmem:[%s4 + $0x430] sm:$0xf]
    %v10239 = vld [vmem:[%s4 + $0x434] sm:$0xf]
    %v10240 = vld [vmem:[%s4 + $0x438] sm:$0xf]
    %v10241 = vld [vmem:[%s4 + $0x43c] sm:$0xf]
    %v10242 = vld [vmem:[%s4 + $0x440] sm:$0xf]
    %v10243 = vld [vmem:[%s4 + $0x444] sm:$0xf]
    %v10244 = vld [vmem:[%s4 + $0x448] sm:$0xf]
    %v10245 = vld [vmem:[%s4 + $0x44c] sm:$0xf]
    %v10246 = vld [vmem:[%s4 + $0x450] sm:$0xf]
    %v10247 = vld [vmem:[%s4 + $0x454] sm:$0xf]
    %v10248 = vld [vmem:[%s4 + $0x458] sm:$0xf]
    %v10249 = vld [vmem:[%s4 + $0x45c] sm:$0xf]
    %v10250 = vld [vmem:[%s4 + $0x460] sm:$0xf]
    %v10251 = vld [vmem:[%s4 + $0x464] sm:$0xf]
    %v10252 = vld [vmem:[%s4 + $0x468] sm:$0xf]
    %v10253 = vld [vmem:[%s4 + $0x46c] sm:$0xf]
    %v10254 = vld [vmem:[%s4 + $0x470] sm:$0xf]
    %v10255 = vld [vmem:[%s4 + $0x474] sm:$0xf]
    %v10256 = vld [vmem:[%s4 + $0x478] sm:$0xf]
    %v10257 = vld [vmem:[%s4 + $0x47c] sm:$0xf]
    %v10258 = vld [vmem:[%s4 + $0x480] sm:$0xf]
    %v10259 = vld [vmem:[%s4 + $0x484] sm:$0xf]
    %v10260 = vld [vmem:[%s4 + $0x488] sm:$0xf]
    %v10261 = vld [vmem:[%s4 + $0x48c] sm:$0xf]
    %v10262 = vld [vmem:[%s4 + $0x490] sm:$0xf]
    %v10263 = vld [vmem:[%s4 + $0x494] sm:$0xf]
    %v10264 = vld [vmem:[%s4 + $0x498] sm:$0xf]
    %v10265 = vld [vmem:[%s4 + $0x49c] sm:$0xf]
    %v10266 = vld [vmem:[%s4 + $0x4a0] sm:$0xf]
    %v10267 = vld [vmem:[%s4 + $0x4a4] sm:$0xf]
    %v10268 = vld [vmem:[%s4 + $0x4a8] sm:$0xf]
    %v10269 = vld [vmem:[%s4 + $0x4ac] sm:$0xf]
    %v10270 = vld [vmem:[%s4 + $0x4b0] sm:$0xf]
    %v10271 = vld [vmem:[%s4 + $0x4b4] sm:$0xf]
    %v10272 = vld [vmem:[%s4 + $0x4b8] sm:$0xf]
    %v10273 = vld [vmem:[%s4 + $0x4bc] sm:$0xf]
    %v10274 = vld [vmem:[%s4 + $0x4c0] sm:$0xf]
    %v10275 = vld [vmem:[%s4 + $0x4c4] sm:$0xf]
    %v10276 = vld [vmem:[%s4 + $0x4c8] sm:$0xf]
    %v10277 = vld [vmem:[%s4 + $0x4cc] sm:$0xf]
    %v10278 = vld [vmem:[%s4 + $0x4d0] sm:$0xf]
    %v10279 = vld [vmem:[%s4 + $0x4d4] sm:$0xf]
    %v10280 = vld [vmem:[%s4 + $0x4d8] sm:$0xf]
    %v10281 = vld [vmem:[%s4 + $0x4dc] sm:$0xf]
    %v10282 = vld [vmem:[%s4 + $0x4e0] sm:$0xf]
    %v10283 = vld [vmem:[%s4 + $0x4e4] sm:$0xf]
    %v10284 = vld [vmem:[%s4 + $0x4e8] sm:$0xf]
    %v10285 = vld [vmem:[%s4 + $0x4ec] sm:$0xf]
    %v10286 = vld [vmem:[%s4 + $0x4f0] sm:$0xf]
    %v10287 = vld [vmem:[%s4 + $0x4f4] sm:$0xf]
    %v10288 = vld [vmem:[%s4 + $0x4f8] sm:$0xf]
    %v10289 = vld [vmem:[%s4 + $0x4fc] sm:$0xf]
    %v10290 = vld [vmem:[%s4 + $0x500] sm:$0xf]
    %v10291 = vld [vmem:[%s4 + $0x504] sm:$0xf]
    %v10292 = vld [vmem:[%s4 + $0x508] sm:$0xf]
    %v10293 = vld [vmem:[%s4 + $0x50c] sm:$0xf]
    %v10294 = vld [vmem:[%s4 + $0x510] sm:$0xf]
    %v10295 = vld [vmem:[%s4 + $0x514] sm:$0xf]
    %v10296 = vld [vmem:[%s4 + $0x518] sm:$0xf]
    %v10297 = vld [vmem:[%s4 + $0x51c] sm:$0xf]
    %v10298 = vld [vmem:[%s4 + $0x520] sm:$0xf]
    %v10299 = vld [vmem:[%s4 + $0x524] sm:$0xf]
    %v10300 = vld [vmem:[%s4 + $0x528] sm:$0xf]
    %v10301 = vld [vmem:[%s4 + $0x52c] sm:$0xf]
    %v10302 = vld [vmem:[%s4 + $0x530] sm:$0xf]
    %v10303 = vld [vmem:[%s4 + $0x534] sm:$0xf]
    %v10304 = vld [vmem:[%s4 + $0x538] sm:$0xf]
    %v10305 = vld [vmem:[%s4 + $0x53c] sm:$0xf]
    %v10306 = vld [vmem:[%s4 + $0x540] sm:$0xf]
    %v10307 = vld [vmem:[%s4 + $0x544] sm:$0xf]
    %v10308 = vld [vmem:[%s4 + $0x548] sm:$0xf]
    %v10309 = vld [vmem:[%s4 + $0x54c] sm:$0xf]
    %v10310 = vld [vmem:[%s4 + $0x550] sm:$0xf]
    %v10311 = vld [vmem:[%s4 + $0x554] sm:$0xf]
    %v10312 = vld [vmem:[%s4 + $0x558] sm:$0xf]
    %v10313 = vld [vmem:[%s4 + $0x55c] sm:$0xf]
    %v10314 = vld [vmem:[%s4 + $0x560] sm:$0xf]
    %v10315 = vld [vmem:[%s4 + $0x564] sm:$0xf]
    %v10316 = vld [vmem:[%s4 + $0x568] sm:$0xf]
    %v10317 = vld [vmem:[%s4 + $0x56c] sm:$0xf]
    %v10318 = vld [vmem:[%s4 + $0x570] sm:$0xf]
    %v10319 = vld [vmem:[%s4 + $0x574] sm:$0xf]
    %v10320 = vld [vmem:[%s4 + $0x578] sm:$0xf]
    %v10321 = vld [vmem:[%s4 + $0x57c] sm:$0xf]
    %v10322 = vld [vmem:[%s4 + $0x580] sm:$0xf]
    %v10323 = vld [vmem:[%s4 + $0x584] sm:$0xf]
    %v10324 = vld [vmem:[%s4 + $0x588] sm:$0xf]
    %v10325 = vld [vmem:[%s4 + $0x58c] sm:$0xf]
    %v10326 = vld [vmem:[%s4 + $0x590] sm:$0xf]
    %v10327 = vld [vmem:[%s4 + $0x594] sm:$0xf]
    %v10328 = vld [vmem:[%s4 + $0x598] sm:$0xf]
    %v10329 = vld [vmem:[%s4 + $0x59c] sm:$0xf]
    %v10330 = vld [vmem:[%s4 + $0x5a0] sm:$0xf]
    %v10331 = vld [vmem:[%s4 + $0x5a4] sm:$0xf]
    %v10332 = vld [vmem:[%s4 + $0x5a8] sm:$0xf]
    %v10333 = vld [vmem:[%s4 + $0x5ac] sm:$0xf]
    %v10334 = vld [vmem:[%s4 + $0x5b0] sm:$0xf]
    %v10335 = vld [vmem:[%s4 + $0x5b4] sm:$0xf]
    %v10336 = vld [vmem:[%s4 + $0x5b8] sm:$0xf]
    %v10337 = vld [vmem:[%s4 + $0x5bc] sm:$0xf]
    %v10338 = vld [vmem:[%s4 + $0x5c0] sm:$0xf]
    %v10339 = vld [vmem:[%s4 + $0x5c4] sm:$0xf]
    %v10340 = vld [vmem:[%s4 + $0x5c8] sm:$0xf]
    %v10341 = vld [vmem:[%s4 + $0x5cc] sm:$0xf]
    %v10342 = vld [vmem:[%s4 + $0x5d0] sm:$0xf]
    %v10343 = vld [vmem:[%s4 + $0x5d4] sm:$0xf]
    %v10344 = vld [vmem:[%s4 + $0x5d8] sm:$0xf]
    %v10345 = vld [vmem:[%s4 + $0x5dc] sm:$0xf]
    %v10346 = vld [vmem:[%s4 + $0x5e0] sm:$0xf]
    %v10347 = vld [vmem:[%s4 + $0x5e4] sm:$0xf]
    %v10348 = vld [vmem:[%s4 + $0x5e8] sm:$0xf]
    %v10349 = vld [vmem:[%s4 + $0x5ec] sm:$0xf]
    %v10350 = vld [vmem:[%s4 + $0x5f0] sm:$0xf]
    %v10351 = vld [vmem:[%s4 + $0x5f4] sm:$0xf]
    %v10352 = vld [vmem:[%s4 + $0x5f8] sm:$0xf]
    %v10353 = vld [vmem:[%s4 + $0x5fc] sm:$0xf]
    %v10354 = vld [vmem:[%s4 + $0x600] sm:$0xf]
    %v10355 = vld [vmem:[%s4 + $0x604] sm:$0xf]
    %v10356 = vld [vmem:[%s4 + $0x608] sm:$0xf]
    %v10357 = vld [vmem:[%s4 + $0x60c] sm:$0xf]
    %v10358 = vld [vmem:[%s4 + $0x610] sm:$0xf]
    %v10359 = vld [vmem:[%s4 + $0x614] sm:$0xf]
    %v10360 = vld [vmem:[%s4 + $0x618] sm:$0xf]
    %v10361 = vld [vmem:[%s4 + $0x61c] sm:$0xf]
    %v10362 = vld [vmem:[%s4 + $0x620] sm:$0xf]
    %v10363 = vld [vmem:[%s4 + $0x624] sm:$0xf]
    %v10364 = vld [vmem:[%s4 + $0x628] sm:$0xf]
    %v10365 = vld [vmem:[%s4 + $0x62c] sm:$0xf]
    %v10366 = vld [vmem:[%s4 + $0x630] sm:$0xf]
    %v10367 = vld [vmem:[%s4 + $0x634] sm:$0xf]
    %v10368 = vld [vmem:[%s4 + $0x638] sm:$0xf]
    %v10369 = vld [vmem:[%s4 + $0x63c] sm:$0xf]
    %v10370 = vld [vmem:[%s4 + $0x640] sm:$0xf]
    %v10371 = vld [vmem:[%s4 + $0x644] sm:$0xf]
    %v10372 = vld [vmem:[%s4 + $0x648] sm:$0xf]
    %v10373 = vld [vmem:[%s4 + $0x64c] sm:$0xf]
    %v10374 = vld [vmem:[%s4 + $0x650] sm:$0xf]
    %v10375 = vld [vmem:[%s4 + $0x654] sm:$0xf]
    %v10376 = vld [vmem:[%s4 + $0x658] sm:$0xf]
    %v10377 = vld [vmem:[%s4 + $0x65c] sm:$0xf]
    %v10378 = vld [vmem:[%s4 + $0x660] sm:$0xf]
    %v10379 = vld [vmem:[%s4 + $0x664] sm:$0xf]
    %v10380 = vld [vmem:[%s4 + $0x668] sm:$0xf]
    %v10381 = vld [vmem:[%s4 + $0x66c] sm:$0xf]
    %v10382 = vld [vmem:[%s4 + $0x670] sm:$0xf]
    %v10383 = vld [vmem:[%s4 + $0x674] sm:$0xf]
    %v10384 = vld [vmem:[%s4 + $0x678] sm:$0xf]
    %v10385 = vld [vmem:[%s4 + $0x67c] sm:$0xf]
    %v10386 = vld [vmem:[%s4 + $0x680] sm:$0xf]
    %v10387 = vld [vmem:[%s4 + $0x684] sm:$0xf]
    %v10388 = vld [vmem:[%s4 + $0x688] sm:$0xf]
    %v10389 = vld [vmem:[%s4 + $0x68c] sm:$0xf]
    %v10390 = vld [vmem:[%s4 + $0x690] sm:$0xf]
    %v10391 = vld [vmem:[%s4 + $0x694] sm:$0xf]
    %v10392 = vld [vmem:[%s4 + $0x698] sm:$0xf]
    %v10393 = vld [vmem:[%s4 + $0x69c] sm:$0xf]
    %v10394 = vld [vmem:[%s4 + $0x6a0] sm:$0xf]
    %v10395 = vld [vmem:[%s4 + $0x6a4] sm:$0xf]
    %v10396 = vld [vmem:[%s4 + $0x6a8] sm:$0xf]
    %v10397 = vld [vmem:[%s4 + $0x6ac] sm:$0xf]
    %v10398 = vld [vmem:[%s4 + $0x6b0] sm:$0xf]
    %v10399 = vld [vmem:[%s4 + $0x6b4] sm:$0xf]
    %v10400 = vld [vmem:[%s4 + $0x6b8] sm:$0xf]
    %v10401 = vld [vmem:[%s4 + $0x6bc] sm:$0xf]
    %v10402 = vld [vmem:[%s4 + $0x6c0] sm:$0xf]
    %v10403 = vld [vmem:[%s4 + $0x6c4] sm:$0xf]
    %v10404 = vld [vmem:[%s4 + $0x6c8] sm:$0xf]
    %v10405 = vld [vmem:[%s4 + $0x6cc] sm:$0xf]
    %v10406 = vld [vmem:[%s4 + $0x6d0] sm:$0xf]
    %v10407 = vld [vmem:[%s4 + $0x6d4] sm:$0xf]
    %v10408 = vld [vmem:[%s4 + $0x6d8] sm:$0xf]
    %v10409 = vld [vmem:[%s4 + $0x6dc] sm:$0xf]
    %v10410 = vld [vmem:[%s4 + $0x6e0] sm:$0xf]
    %v10411 = vld [vmem:[%s4 + $0x6e4] sm:$0xf]
    %v10412 = vld [vmem:[%s4 + $0x6e8] sm:$0xf]
    %v10413 = vld [vmem:[%s4 + $0x6ec] sm:$0xf]
    %v10414 = vld [vmem:[%s4 + $0x6f0] sm:$0xf]
    %v10415 = vld [vmem:[%s4 + $0x6f4] sm:$0xf]
    %v10416 = vld [vmem:[%s4 + $0x6f8] sm:$0xf]
    %v10417 = vld [vmem:[%s4 + $0x6fc] sm:$0xf]
    %v10418 = vld [vmem:[%s4 + $0x700] sm:$0xf]
    %v10419 = vld [vmem:[%s4 + $0x704] sm:$0xf]
    %v10420 = vld [vmem:[%s4 + $0x708] sm:$0xf]
    %v10421 = vld [vmem:[%s4 + $0x70c] sm:$0xf]
    %v10422 = vld [vmem:[%s4 + $0x710] sm:$0xf]
    %v10423 = vld [vmem:[%s4 + $0x714] sm:$0xf]
    %v10424 = vld [vmem:[%s4 + $0x718] sm:$0xf]
    %v10425 = vld [vmem:[%s4 + $0x71c] sm:$0xf]
    %v10426 = vld [vmem:[%s4 + $0x720] sm:$0xf]
    %v10427 = vld [vmem:[%s4 + $0x724] sm:$0xf]
    %v10428 = vld [vmem:[%s4 + $0x728] sm:$0xf]
    %v10429 = vld [vmem:[%s4 + $0x72c] sm:$0xf]
    %v10430 = vld [vmem:[%s4 + $0x730] sm:$0xf]
    %v10431 = vld [vmem:[%s4 + $0x734] sm:$0xf]
    %v10432 = vld [vmem:[%s4 + $0x738] sm:$0xf]
    %v10433 = vld [vmem:[%s4 + $0x73c] sm:$0xf]
    %v10434 = vld [vmem:[%s4 + $0x740] sm:$0xf]
    %v10435 = vld [vmem:[%s4 + $0x744] sm:$0xf]
    %v10436 = vld [vmem:[%s4 + $0x748] sm:$0xf]
    %v10437 = vld [vmem:[%s4 + $0x74c] sm:$0xf]
    %v10438 = vld [vmem:[%s4 + $0x750] sm:$0xf]
    %v10439 = vld [vmem:[%s4 + $0x754] sm:$0xf]
    %v10440 = vld [vmem:[%s4 + $0x758] sm:$0xf]
    %v10441 = vld [vmem:[%s4 + $0x75c] sm:$0xf]
    %v10442 = vld [vmem:[%s4 + $0x760] sm:$0xf]
    %v10443 = vld [vmem:[%s4 + $0x764] sm:$0xf]
    %v10444 = vld [vmem:[%s4 + $0x768] sm:$0xf]
    %v10445 = vld [vmem:[%s4 + $0x76c] sm:$0xf]
    %v10446 = vld [vmem:[%s4 + $0x770] sm:$0xf]
    %v10447 = vld [vmem:[%s4 + $0x774] sm:$0xf]
    %v10448 = vld [vmem:[%s4 + $0x778] sm:$0xf]
    %v10449 = vld [vmem:[%s4 + $0x77c] sm:$0xf]
    %v10450 = vld [vmem:[%s4 + $0x780] sm:$0xf]
    %v10451 = vld [vmem:[%s4 + $0x784] sm:$0xf]
    %v10452 = vld [vmem:[%s4 + $0x788] sm:$0xf]
    %v10453 = vld [vmem:[%s4 + $0x78c] sm:$0xf]
    %v10454 = vld [vmem:[%s4 + $0x790] sm:$0xf]
    %v10455 = vld [vmem:[%s4 + $0x794] sm:$0xf]
    %v10456 = vld [vmem:[%s4 + $0x798] sm:$0xf]
    %v10457 = vld [vmem:[%s4 + $0x79c] sm:$0xf]
    %v10458 = vld [vmem:[%s4 + $0x7a0] sm:$0xf]
    %v10459 = vld [vmem:[%s4 + $0x7a4] sm:$0xf]
    %v10460 = vld [vmem:[%s4 + $0x7a8] sm:$0xf]
    %v10461 = vld [vmem:[%s4 + $0x7ac] sm:$0xf]
    %v10462 = vld [vmem:[%s4 + $0x7b0] sm:$0xf]
    %v10463 = vld [vmem:[%s4 + $0x7b4] sm:$0xf]
    %v10464 = vld [vmem:[%s4 + $0x7b8] sm:$0xf]
    %v10465 = vld [vmem:[%s4 + $0x7bc] sm:$0xf]
    %v10466 = vld [vmem:[%s4 + $0x7c0] sm:$0xf]
    %v10467 = vld [vmem:[%s4 + $0x7c4] sm:$0xf]
    %v10468 = vld [vmem:[%s4 + $0x7c8] sm:$0xf]
    %v10469 = vld [vmem:[%s4 + $0x7cc] sm:$0xf]
    %v10470 = vld [vmem:[%s4 + $0x7d0] sm:$0xf]
    %v10471 = vld [vmem:[%s4 + $0x7d4] sm:$0xf]
    %v10472 = vld [vmem:[%s4 + $0x7d8] sm:$0xf]
    %v10473 = vld [vmem:[%s4 + $0x7dc] sm:$0xf]
    %v10474 = vld [vmem:[%s4 + $0x7e0] sm:$0xf]
    %v10475 = vld [vmem:[%s4 + $0x7e4] sm:$0xf]
    %v10476 = vld [vmem:[%s4 + $0x7e8] sm:$0xf]
    %v10477 = vld [vmem:[%s4 + $0x7ec] sm:$0xf]
    %v10478 = vld [vmem:[%s4 + $0x7f0] sm:$0xf]
    %v10479 = vld [vmem:[%s4 + $0x7f4] sm:$0xf]
    %v10480 = vld [vmem:[%s4 + $0x7f8] sm:$0xf]
    %v10481 = vld [vmem:[%s4 + $0x7fc] sm:$0xf]
    %v10482 = vld [vmem:[%s4 + $0x800] sm:$0xf]
    %v10483 = vld [vmem:[%s4 + $0x804] sm:$0xf]
    %v10484 = vld [vmem:[%s4 + $0x808] sm:$0xf]
    %v10485 = vld [vmem:[%s4 + $0x80c] sm:$0xf]
    %v10486 = vld [vmem:[%s4 + $0x810] sm:$0xf]
    %v10487 = vld [vmem:[%s4 + $0x814] sm:$0xf]
    %v10488 = vld [vmem:[%s4 + $0x818] sm:$0xf]
    %v10489 = vld [vmem:[%s4 + $0x81c] sm:$0xf]
    %v10490 = vld [vmem:[%s4 + $0x820] sm:$0xf]
    %v10491 = vld [vmem:[%s4 + $0x824] sm:$0xf]
    %v10492 = vld [vmem:[%s4 + $0x828] sm:$0xf]
    %v10493 = vld [vmem:[%s4 + $0x82c] sm:$0xf]
    %v10494 = vld [vmem:[%s4 + $0x830] sm:$0xf]
    %v10495 = vld [vmem:[%s4 + $0x834] sm:$0xf]
    %v10496 = vld [vmem:[%s4 + $0x838] sm:$0xf]
    %v10497 = vld [vmem:[%s4 + $0x83c] sm:$0xf]
    %v10498 = vld [vmem:[%s4 + $0x840] sm:$0xf]
    %v10499 = vld [vmem:[%s4 + $0x844] sm:$0xf]
    %v10500 = vld [vmem:[%s4 + $0x848] sm:$0xf]
    %v10501 = vld [vmem:[%s4 + $0x84c] sm:$0xf]
    %v10502 = vld [vmem:[%s4 + $0x850] sm:$0xf]
    %v10503 = vld [vmem:[%s4 + $0x854] sm:$0xf]
    %v10504 = vld [vmem:[%s4 + $0x858] sm:$0xf]
    %v10505 = vld [vmem:[%s4 + $0x85c] sm:$0xf]
    %v10506 = vld [vmem:[%s4 + $0x860] sm:$0xf]
    %v10507 = vld [vmem:[%s4 + $0x864] sm:$0xf]
    %v10508 = vld [vmem:[%s4 + $0x868] sm:$0xf]
    %v10509 = vld [vmem:[%s4 + $0x86c] sm:$0xf]
    %v10510 = vld [vmem:[%s4 + $0x870] sm:$0xf]
    %v10511 = vld [vmem:[%s4 + $0x874] sm:$0xf]
    %v10512 = vld [vmem:[%s4 + $0x878] sm:$0xf]
    %v10513 = vld [vmem:[%s4 + $0x87c] sm:$0xf]
    %v10514 = vld [vmem:[%s4 + $0x880] sm:$0xf]
    %v10515 = vld [vmem:[%s4 + $0x884] sm:$0xf]
    %v10516 = vld [vmem:[%s4 + $0x888] sm:$0xf]
    %v10517 = vld [vmem:[%s4 + $0x88c] sm:$0xf]
    %v10518 = vld [vmem:[%s4 + $0x890] sm:$0xf]
    %v10519 = vld [vmem:[%s4 + $0x894] sm:$0xf]
    %v10520 = vld [vmem:[%s4 + $0x898] sm:$0xf]
    %v10521 = vld [vmem:[%s4 + $0x89c] sm:$0xf]
    %v10522 = vld [vmem:[%s4 + $0x8a0] sm:$0xf]
    %v10523 = vld [vmem:[%s4 + $0x8a4] sm:$0xf]
    %v10524 = vld [vmem:[%s4 + $0x8a8] sm:$0xf]
    %v10525 = vld [vmem:[%s4 + $0x8ac] sm:$0xf]
    %v10526 = vld [vmem:[%s4 + $0x8b0] sm:$0xf]
    %v10527 = vld [vmem:[%s4 + $0x8b4] sm:$0xf]
    %v10528 = vld [vmem:[%s4 + $0x8b8] sm:$0xf]
    %v10529 = vld [vmem:[%s4 + $0x8bc] sm:$0xf]
    %v10530 = vld [vmem:[%s4 + $0x8c0] sm:$0xf]
    %v10531 = vld [vmem:[%s4 + $0x8c4] sm:$0xf]
    %v10532 = vld [vmem:[%s4 + $0x8c8] sm:$0xf]
    %v10533 = vld [vmem:[%s4 + $0x8cc] sm:$0xf]
    %v10534 = vld [vmem:[%s4 + $0x8d0] sm:$0xf]
    %v10535 = vld [vmem:[%s4 + $0x8d4] sm:$0xf]
    %v10536 = vld [vmem:[%s4 + $0x8d8] sm:$0xf]
    %v10537 = vld [vmem:[%s4 + $0x8dc] sm:$0xf]
    %v10538 = vld [vmem:[%s4 + $0x8e0] sm:$0xf]
    %v10539 = vld [vmem:[%s4 + $0x8e4] sm:$0xf]
    %v10540 = vld [vmem:[%s4 + $0x8e8] sm:$0xf]
    %v10541 = vld [vmem:[%s4 + $0x8ec] sm:$0xf]
    %v10542 = vld [vmem:[%s4 + $0x8f0] sm:$0xf]
    %v10543 = vld [vmem:[%s4 + $0x8f4] sm:$0xf]
    %v10544 = vld [vmem:[%s4 + $0x8f8] sm:$0xf]
    %v10545 = vld [vmem:[%s4 + $0x8fc] sm:$0xf]
    %v10546 = vld [vmem:[#allocation13] sm:$0x1]
    %v10548 = vlaneseq
    %v10549 = vshrl.u32 %v10548, 7
    %v10550 = vsub.s32 0, %v10549
    %v10551 = vrot.slane %v10546, %v10550
    %v10661 = vunpack.c.l.b16 %v9862
    %v10662 = vunpack.c.h.b16 %v9862
    %v10663 = vunpack.c.l.b16 %v9863
    %v10664 = vunpack.c.h.b16 %v9863
    %v10665 = vunpack.c.l.b16 %v9864
    %v10666 = vunpack.c.h.b16 %v9864
    %v10667 = vunpack.c.l.b16 %v9865
    %v10668 = vunpack.c.h.b16 %v9865
    %v10669 = vunpack.c.l.b16 %v9866
    %v10670 = vunpack.c.h.b16 %v9866
    %v10671 = vunpack.c.l.b16 %v9867
    %v10672 = vunpack.c.h.b16 %v9867
    %v10673 = vunpack.c.l.b16 %v9868
    %v10674 = vunpack.c.h.b16 %v9868
    %v10675 = vunpack.c.l.b16 %v9869
    %v10676 = vunpack.c.h.b16 %v9869
    %v10677 = vunpack.c.l.b16 %v9870
    %v10678 = vunpack.c.h.b16 %v9870
    %v10679 = vunpack.c.l.b16 %v9871
    %v10680 = vunpack.c.h.b16 %v9871
    %v10681 = vunpack.c.l.b16 %v9872
    %v10682 = vunpack.c.h.b16 %v9872
    %v10683 = vunpack.c.l.b16 %v9873
    %v10684 = vunpack.c.h.b16 %v9873
    %v10685 = vunpack.c.l.b16 %v9874
    %v10686 = vunpack.c.h.b16 %v9874
    %v10687 = vunpack.c.l.b16 %v9875
    %v10688 = vunpack.c.h.b16 %v9875
    %v10689 = vunpack.c.l.b16 %v9876
    %v10690 = vunpack.c.h.b16 %v9876
    %v10691 = vunpack.c.l.b16 %v9877
    %v10692 = vunpack.c.h.b16 %v9877
    %v10693 = vunpack.c.l.b16 %v9878
    %v10694 = vunpack.c.h.b16 %v9878
    %v10695 = vunpack.c.l.b16 %v9879
    %v10696 = vunpack.c.h.b16 %v9879
    %v10697 = vunpack.c.l.b16 %v9880
    %v10698 = vunpack.c.h.b16 %v9880
    %v10699 = vunpack.c.l.b16 %v9881
    %v10700 = vunpack.c.h.b16 %v9881
    %v10701 = vunpack.c.l.b16 %v9882
    %v10702 = vunpack.c.h.b16 %v9882
    %v10703 = vunpack.c.l.b16 %v9883
    %v10704 = vunpack.c.h.b16 %v9883
    %v10705 = vunpack.c.l.b16 %v9884
    %v10706 = vunpack.c.h.b16 %v9884
    %v10707 = vunpack.c.l.b16 %v9885
    %v10708 = vunpack.c.h.b16 %v9885
    %v10709 = vunpack.c.l.b16 %v9886
    %v10710 = vunpack.c.h.b16 %v9886
    %v10711 = vunpack.c.l.b16 %v9887
    %v10712 = vunpack.c.h.b16 %v9887
    %v10713 = vunpack.c.l.b16 %v9888
    %v10714 = vunpack.c.h.b16 %v9888
    %v10715 = vunpack.c.l.b16 %v9889
    %v10716 = vunpack.c.h.b16 %v9889
    %v10717 = vunpack.c.l.b16 %v9890
    %v10718 = vunpack.c.h.b16 %v9890
    %v10719 = vunpack.c.l.b16 %v9891
    %v10720 = vunpack.c.h.b16 %v9891
    %v10721 = vunpack.c.l.b16 %v9892
    %v10722 = vunpack.c.h.b16 %v9892
    %v10723 = vunpack.c.l.b16 %v9893
    %v10724 = vunpack.c.h.b16 %v9893
    %v10725 = vunpack.c.l.b16 %v9894
    %v10726 = vunpack.c.h.b16 %v9894
    %v10727 = vunpack.c.l.b16 %v9895
    %v10728 = vunpack.c.h.b16 %v9895
    %v10729 = vunpack.c.l.b16 %v9896
    %v10730 = vunpack.c.h.b16 %v9896
    %v10731 = vunpack.c.l.b16 %v9897
    %v10732 = vunpack.c.h.b16 %v9897
    %v10733 = vunpack.c.l.b16 %v9898
    %v10734 = vunpack.c.h.b16 %v9898
    %v10735 = vunpack.c.l.b16 %v9899
    %v10736 = vunpack.c.h.b16 %v9899
    %v10737 = vunpack.c.l.b16 %v9900
    %v10738 = vunpack.c.h.b16 %v9900
    %v10739 = vunpack.c.l.b16 %v9901
    %v10740 = vunpack.c.h.b16 %v9901
    %v10741 = vunpack.c.l.b16 %v9902
    %v10742 = vunpack.c.h.b16 %v9902
    %v10743 = vunpack.c.l.b16 %v9903
    %v10744 = vunpack.c.h.b16 %v9903
    %v10745 = vunpack.c.l.b16 %v9904
    %v10746 = vunpack.c.h.b16 %v9904
    %v10747 = vunpack.c.l.b16 %v9905
    %v10748 = vunpack.c.h.b16 %v9905
    %v10749 = vunpack.c.l.b16 %v9906
    %v10750 = vunpack.c.h.b16 %v9906
    %v10751 = vunpack.c.l.b16 %v9907
    %v10752 = vunpack.c.h.b16 %v9907
    %v10753 = vunpack.c.l.b16 %v9908
    %v10754 = vunpack.c.h.b16 %v9908
    %v10755 = vunpack.c.l.b16 %v9909
    %v10756 = vunpack.c.h.b16 %v9909
    %v10757 = vunpack.c.l.b16 %v9910
    %v10758 = vunpack.c.h.b16 %v9910
    %v10759 = vunpack.c.l.b16 %v9911
    %v10760 = vunpack.c.h.b16 %v9911
    %v10761 = vunpack.c.l.b16 %v9912
    %v10762 = vunpack.c.h.b16 %v9912
    %v10763 = vunpack.c.l.b16 %v9913
    %v10764 = vunpack.c.h.b16 %v9913
    %v10765 = vunpack.c.l.b16 %v9914
    %v10766 = vunpack.c.h.b16 %v9914
    %v10767 = vunpack.c.l.b16 %v9915
    %v10768 = vunpack.c.h.b16 %v9915
    %v10769 = vunpack.c.l.b16 %v9916
    %v10770 = vunpack.c.h.b16 %v9916
    %v10771 = vunpack.c.l.b16 %v9917
    %v10772 = vunpack.c.h.b16 %v9917
    %v10773 = vunpack.c.l.b16 %v9918
    %v10774 = vunpack.c.h.b16 %v9918
    %v10775 = vunpack.c.l.b16 %v9919
    %v10776 = vunpack.c.h.b16 %v9919
    %v10777 = vunpack.c.l.b16 %v9920
    %v10778 = vunpack.c.h.b16 %v9920
    %v10779 = vunpack.c.l.b16 %v9921
    %v10780 = vunpack.c.h.b16 %v9921
    %v10781 = vunpack.c.l.b16 %v9922
    %v10782 = vunpack.c.h.b16 %v9922
    %v10783 = vunpack.c.l.b16 %v9923
    %v10784 = vunpack.c.h.b16 %v9923
    %v10785 = vunpack.c.l.b16 %v9924
    %v10786 = vunpack.c.h.b16 %v9924
    %v10787 = vunpack.c.l.b16 %v9925
    %v10788 = vunpack.c.h.b16 %v9925
    %v10789 = vunpack.c.l.b16 %v9926
    %v10790 = vunpack.c.h.b16 %v9926
    %v10791 = vunpack.c.l.b16 %v9927
    %v10792 = vunpack.c.h.b16 %v9927
    %v10793 = vunpack.c.l.b16 %v9928
    %v10794 = vunpack.c.h.b16 %v9928
    %v10795 = vunpack.c.l.b16 %v9929
    %v10796 = vunpack.c.h.b16 %v9929
    %v10797 = vunpack.c.l.b16 %v9930
    %v10798 = vunpack.c.h.b16 %v9930
    %v10799 = vunpack.c.l.b16 %v9931
    %v10800 = vunpack.c.h.b16 %v9931
    %v10801 = vunpack.c.l.b16 %v9932
    %v10802 = vunpack.c.h.b16 %v9932
    %v10803 = vunpack.c.l.b16 %v9933
    %v10804 = vunpack.c.h.b16 %v9933
    %v10805 = vunpack.c.l.b16 %v9934
    %v10806 = vunpack.c.h.b16 %v9934
    %v10807 = vunpack.c.l.b16 %v9935
    %v10808 = vunpack.c.h.b16 %v9935
    %v10809 = vunpack.c.l.b16 %v9936
    %v10810 = vunpack.c.h.b16 %v9936
    %v10811 = vunpack.c.l.b16 %v9937
    %v10812 = vunpack.c.h.b16 %v9937
    %v10813 = vunpack.c.l.b16 %v9938
    %v10814 = vunpack.c.h.b16 %v9938
    %v10815 = vunpack.c.l.b16 %v9939
    %v10816 = vunpack.c.h.b16 %v9939
    %v10817 = vunpack.c.l.b16 %v9940
    %v10818 = vunpack.c.h.b16 %v9940
    %v10819 = vunpack.c.l.b16 %v9941
    %v10820 = vunpack.c.h.b16 %v9941
    %v10821 = vunpack.c.l.b16 %v9942
    %v10822 = vunpack.c.h.b16 %v9942
    %v10823 = vunpack.c.l.b16 %v9943
    %v10824 = vunpack.c.h.b16 %v9943
    %v10825 = vunpack.c.l.b16 %v9944
    %v10826 = vunpack.c.h.b16 %v9944
    %v10827 = vunpack.c.l.b16 %v9945
    %v10828 = vunpack.c.h.b16 %v9945
    %v10829 = vunpack.c.l.b16 %v9946
    %v10830 = vunpack.c.h.b16 %v9946
    %v10831 = vunpack.c.l.b16 %v9947
    %v10832 = vunpack.c.h.b16 %v9947
    %v10833 = vunpack.c.l.b16 %v9948
    %v10834 = vunpack.c.h.b16 %v9948
    %v10835 = vunpack.c.l.b16 %v9949
    %v10836 = vunpack.c.h.b16 %v9949
    %v10837 = vunpack.c.l.b16 %v9950
    %v10838 = vunpack.c.h.b16 %v9950
    %v10839 = vunpack.c.l.b16 %v9951
    %v10840 = vunpack.c.h.b16 %v9951
    %v10841 = vunpack.c.l.b16 %v9952
    %v10842 = vunpack.c.h.b16 %v9952
    %v10843 = vunpack.c.l.b16 %v9953
    %v10844 = vunpack.c.h.b16 %v9953
    %v10845 = vunpack.c.l.b16 %v9954
    %v10846 = vunpack.c.h.b16 %v9954
    %v10847 = vunpack.c.l.b16 %v9955
    %v10848 = vunpack.c.h.b16 %v9955
    %v10849 = vunpack.c.l.b16 %v9956
    %v10850 = vunpack.c.h.b16 %v9956
    %v10851 = vunpack.c.l.b16 %v9957
    %v10852 = vunpack.c.h.b16 %v9957
    %v10853 = vunpack.c.l.b16 %v9958
    %v10854 = vunpack.c.h.b16 %v9958
    %v10855 = vunpack.c.l.b16 %v9959
    %v10856 = vunpack.c.h.b16 %v9959
    %v10857 = vunpack.c.l.b16 %v9960
    %v10858 = vunpack.c.h.b16 %v9960
    %v10859 = vunpack.c.l.b16 %v9961
    %v10860 = vunpack.c.h.b16 %v9961
    %v10861 = vunpack.c.l.b16 %v9962
    %v10862 = vunpack.c.h.b16 %v9962
    %v10863 = vunpack.c.l.b16 %v9963
    %v10864 = vunpack.c.h.b16 %v9963
    %v10865 = vunpack.c.l.b16 %v9964
    %v10866 = vunpack.c.h.b16 %v9964
    %v10867 = vunpack.c.l.b16 %v9965
    %v10868 = vunpack.c.h.b16 %v9965
    %v10869 = vunpack.c.l.b16 %v9966
    %v10870 = vunpack.c.h.b16 %v9966
    %v10871 = vunpack.c.l.b16 %v9967
    %v10872 = vunpack.c.h.b16 %v9967
    %v10873 = vunpack.c.l.b16 %v9968
    %v10874 = vunpack.c.h.b16 %v9968
    %v10875 = vunpack.c.l.b16 %v9969
    %v10876 = vunpack.c.h.b16 %v9969
    %v10877 = vpack.c.b16 %v10697, %v10661
    %v10878 = vpack.c.b16 %v10698, %v10662
    %v10879 = vpack.c.b16 %v10699, %v10663
    %v10880 = vpack.c.b16 %v10700, %v10664
    %v10881 = vpack.c.b16 %v10701, %v10665
    %v10882 = vpack.c.b16 %v10702, %v10666
    %v10883 = vpack.c.b16 %v10703, %v10667
    %v10884 = vpack.c.b16 %v10704, %v10668
    %v10885 = vpack.c.b16 %v10705, %v10669
    %v10886 = vpack.c.b16 %v10706, %v10670
    %v10887 = vpack.c.b16 %v10707, %v10671
    %v10888 = vpack.c.b16 %v10708, %v10672
    %v10889 = vpack.c.b16 %v10709, %v10673
    %v10890 = vpack.c.b16 %v10710, %v10674
    %v10891 = vpack.c.b16 %v10711, %v10675
    %v10892 = vpack.c.b16 %v10712, %v10676
    %v10893 = vpack.c.b16 %v10713, %v10677
    %v10894 = vpack.c.b16 %v10714, %v10678
    %v10895 = vpack.c.b16 %v10715, %v10679
    %v10896 = vpack.c.b16 %v10716, %v10680
    %v10897 = vpack.c.b16 %v10717, %v10681
    %v10898 = vpack.c.b16 %v10718, %v10682
    %v10899 = vpack.c.b16 %v10719, %v10683
    %v10900 = vpack.c.b16 %v10720, %v10684
    %v10901 = vpack.c.b16 %v10721, %v10685
    %v10902 = vpack.c.b16 %v10722, %v10686
    %v10903 = vpack.c.b16 %v10723, %v10687
    %v10904 = vpack.c.b16 %v10724, %v10688
    %v10905 = vpack.c.b16 %v10725, %v10689
    %v10906 = vpack.c.b16 %v10726, %v10690
    %v10907 = vpack.c.b16 %v10727, %v10691
    %v10908 = vpack.c.b16 %v10728, %v10692
    %v10909 = vpack.c.b16 %v10729, %v10693
    %v10910 = vpack.c.b16 %v10730, %v10694
    %v10911 = vpack.c.b16 %v10731, %v10695
    %v10912 = vpack.c.b16 %v10732, %v10696
    %v10913 = vpack.c.b16 %v10769, %v10733
    %v10914 = vpack.c.b16 %v10770, %v10734
    %v10915 = vpack.c.b16 %v10771, %v10735
    %v10916 = vpack.c.b16 %v10772, %v10736
    %v10917 = vpack.c.b16 %v10773, %v10737
    %v10918 = vpack.c.b16 %v10774, %v10738
    %v10919 = vpack.c.b16 %v10775, %v10739
    %v10920 = vpack.c.b16 %v10776, %v10740
    %v10921 = vpack.c.b16 %v10777, %v10741
    %v10922 = vpack.c.b16 %v10778, %v10742
    %v10923 = vpack.c.b16 %v10779, %v10743
    %v10924 = vpack.c.b16 %v10780, %v10744
    %v10925 = vpack.c.b16 %v10781, %v10745
    %v10926 = vpack.c.b16 %v10782, %v10746
    %v10927 = vpack.c.b16 %v10783, %v10747
    %v10928 = vpack.c.b16 %v10784, %v10748
    %v10929 = vpack.c.b16 %v10785, %v10749
    %v10930 = vpack.c.b16 %v10786, %v10750
    %v10931 = vpack.c.b16 %v10787, %v10751
    %v10932 = vpack.c.b16 %v10788, %v10752
    %v10933 = vpack.c.b16 %v10789, %v10753
    %v10934 = vpack.c.b16 %v10790, %v10754
    %v10935 = vpack.c.b16 %v10791, %v10755
    %v10936 = vpack.c.b16 %v10792, %v10756
    %v10937 = vpack.c.b16 %v10793, %v10757
    %v10938 = vpack.c.b16 %v10794, %v10758
    %v10939 = vpack.c.b16 %v10795, %v10759
    %v10940 = vpack.c.b16 %v10796, %v10760
    %v10941 = vpack.c.b16 %v10797, %v10761
    %v10942 = vpack.c.b16 %v10798, %v10762
    %v10943 = vpack.c.b16 %v10799, %v10763
    %v10944 = vpack.c.b16 %v10800, %v10764
    %v10945 = vpack.c.b16 %v10801, %v10765
    %v10946 = vpack.c.b16 %v10802, %v10766
    %v10947 = vpack.c.b16 %v10803, %v10767
    %v10948 = vpack.c.b16 %v10804, %v10768
    %v10949 = vpack.c.b16 %v10841, %v10805
    %v10950 = vpack.c.b16 %v10842, %v10806
    %v10951 = vpack.c.b16 %v10843, %v10807
    %v10952 = vpack.c.b16 %v10844, %v10808
    %v10953 = vpack.c.b16 %v10845, %v10809
    %v10954 = vpack.c.b16 %v10846, %v10810
    %v10955 = vpack.c.b16 %v10847, %v10811
    %v10956 = vpack.c.b16 %v10848, %v10812
    %v10957 = vpack.c.b16 %v10849, %v10813
    %v10958 = vpack.c.b16 %v10850, %v10814
    %v10959 = vpack.c.b16 %v10851, %v10815
    %v10960 = vpack.c.b16 %v10852, %v10816
    %v10961 = vpack.c.b16 %v10853, %v10817
    %v10962 = vpack.c.b16 %v10854, %v10818
    %v10963 = vpack.c.b16 %v10855, %v10819
    %v10964 = vpack.c.b16 %v10856, %v10820
    %v10965 = vpack.c.b16 %v10857, %v10821
    %v10966 = vpack.c.b16 %v10858, %v10822
    %v10967 = vpack.c.b16 %v10859, %v10823
    %v10968 = vpack.c.b16 %v10860, %v10824
    %v10969 = vpack.c.b16 %v10861, %v10825
    %v10970 = vpack.c.b16 %v10862, %v10826
    %v10971 = vpack.c.b16 %v10863, %v10827
    %v10972 = vpack.c.b16 %v10864, %v10828
    %v10973 = vpack.c.b16 %v10865, %v10829
    %v10974 = vpack.c.b16 %v10866, %v10830
    %v10975 = vpack.c.b16 %v10867, %v10831
    %v10976 = vpack.c.b16 %v10868, %v10832
    %v10977 = vpack.c.b16 %v10869, %v10833
    %v10978 = vpack.c.b16 %v10870, %v10834
    %v10979 = vpack.c.b16 %v10871, %v10835
    %v10980 = vpack.c.b16 %v10872, %v10836
    %v10981 = vpack.c.b16 %v10873, %v10837
    %v10982 = vpack.c.b16 %v10874, %v10838
    %v10983 = vpack.c.b16 %v10875, %v10839
    %v10984 = vpack.c.b16 %v10876, %v10840
    %v11669 = vunpack.c.l.b16 %v9970
    %v11670 = vunpack.c.l.b16 %v9971
    %v11671 = vunpack.c.l.b16 %v9972
    %v11672 = vunpack.c.l.b16 %v9973
    %v11673 = vunpack.c.l.b16 %v9974
    %v11674 = vunpack.c.l.b16 %v9975
    %v11675 = vunpack.c.l.b16 %v9976
    %v11676 = vunpack.c.l.b16 %v9977
    %v11677 = vunpack.c.l.b16 %v9978
    %v11678 = vunpack.c.l.b16 %v9979
    %v11679 = vunpack.c.l.b16 %v9980
    %v11680 = vunpack.c.l.b16 %v9981
    %v11681 = vunpack.c.l.b16 %v9982
    %v11682 = vunpack.c.l.b16 %v9983
    %v11683 = vunpack.c.l.b16 %v9984
    %v11684 = vunpack.c.l.b16 %v9985
    %v11685 = vunpack.c.l.b16 %v9986
    %v11686 = vunpack.c.l.b16 %v9987
    %v11687 = vunpack.c.l.b16 %v9988
    %v11688 = vunpack.c.l.b16 %v9989
    %v11689 = vunpack.c.l.b16 %v9990
    %v11690 = vunpack.c.l.b16 %v9991
    %v11691 = vunpack.c.l.b16 %v9992
    %v11692 = vunpack.c.l.b16 %v9993
    %v11693 = vunpack.c.l.b16 %v9994
    %v11694 = vunpack.c.l.b16 %v9995
    %v11695 = vunpack.c.l.b16 %v9996
    %v11696 = vunpack.c.l.b16 %v9997
    %v11697 = vunpack.c.l.b16 %v9998
    %v11698 = vunpack.c.l.b16 %v9999
    %v11699 = vunpack.c.l.b16 %v10000
    %v11700 = vunpack.c.l.b16 %v10001
    %v11701 = vunpack.c.l.b16 %v10002
    %v11702 = vunpack.c.l.b16 %v10003
    %v11703 = vunpack.c.l.b16 %v10004
    %v11704 = vunpack.c.l.b16 %v10005
    %v11705 = vunpack.c.l.b16 %v10006
    %v11706 = vunpack.c.l.b16 %v10007
    %v11707 = vunpack.c.l.b16 %v10008
    %v11708 = vunpack.c.l.b16 %v10009
    %v11709 = vunpack.c.l.b16 %v10010
    %v11710 = vunpack.c.l.b16 %v10011
    %v11711 = vunpack.c.l.b16 %v10012
    %v11712 = vunpack.c.l.b16 %v10013
    %v11713 = vunpack.c.l.b16 %v10014
    %v11714 = vunpack.c.l.b16 %v10015
    %v11715 = vunpack.c.l.b16 %v10016
    %v11716 = vunpack.c.l.b16 %v10017
    %v11717 = vunpack.c.l.b16 %v10018
    %v11718 = vunpack.c.l.b16 %v10019
    %v11719 = vunpack.c.l.b16 %v10020
    %v11720 = vunpack.c.l.b16 %v10021
    %v11721 = vunpack.c.l.b16 %v10022
    %v11722 = vunpack.c.l.b16 %v10023
    %v11723 = vunpack.c.l.b16 %v10024
    %v11724 = vunpack.c.l.b16 %v10025
    %v11725 = vunpack.c.l.b16 %v10026
    %v11726 = vunpack.c.l.b16 %v10027
    %v11727 = vunpack.c.l.b16 %v10028
    %v11728 = vunpack.c.l.b16 %v10029
    %v11729 = vunpack.c.l.b16 %v10030
    %v11730 = vunpack.c.l.b16 %v10031
    %v11731 = vunpack.c.l.b16 %v10032
    %v11732 = vunpack.c.l.b16 %v10033
    %v11733 = vunpack.c.l.b16 %v10034
    %v11734 = vunpack.c.l.b16 %v10035
    %v11735 = vunpack.c.l.b16 %v10036
    %v11736 = vunpack.c.l.b16 %v10037
    %v11737 = vunpack.c.l.b16 %v10038
    %v11738 = vunpack.c.l.b16 %v10039
    %v11739 = vunpack.c.l.b16 %v10040
    %v11740 = vunpack.c.l.b16 %v10041
    %v11741 = vunpack.c.l.b16 %v10042
    %v11742 = vunpack.c.l.b16 %v10043
    %v11743 = vunpack.c.l.b16 %v10044
    %v11744 = vunpack.c.l.b16 %v10045
    %v11745 = vunpack.c.l.b16 %v10046
    %v11746 = vunpack.c.l.b16 %v10047
    %v11747 = vunpack.c.l.b16 %v10048
    %v11748 = vunpack.c.l.b16 %v10049
    %v11749 = vunpack.c.l.b16 %v10050
    %v11750 = vunpack.c.l.b16 %v10051
    %v11751 = vunpack.c.l.b16 %v10052
    %v11752 = vunpack.c.l.b16 %v10053
    %v11753 = vunpack.c.l.b16 %v10054
    %v11754 = vunpack.c.l.b16 %v10055
    %v11755 = vunpack.c.l.b16 %v10056
    %v11756 = vunpack.c.l.b16 %v10057
    %v11757 = vunpack.c.l.b16 %v10058
    %v11758 = vunpack.c.l.b16 %v10059
    %v11759 = vunpack.c.l.b16 %v10060
    %v11760 = vunpack.c.l.b16 %v10061
    %v11761 = vunpack.c.l.b16 %v10062
    %v11762 = vunpack.c.l.b16 %v10063
    %v11763 = vunpack.c.l.b16 %v10064
    %v11764 = vunpack.c.l.b16 %v10065
    %v11765 = vunpack.c.l.b16 %v10066
    %v11766 = vunpack.c.l.b16 %v10067
    %v11767 = vunpack.c.l.b16 %v10068
    %v11768 = vunpack.c.l.b16 %v10069
    %v11769 = vunpack.c.l.b16 %v10070
    %v11770 = vunpack.c.l.b16 %v10071
    %v11771 = vunpack.c.l.b16 %v10072
    %v11772 = vunpack.c.l.b16 %v10073
    %v11773 = vunpack.c.l.b16 %v10074
    %v11774 = vunpack.c.l.b16 %v10075
    %v11775 = vunpack.c.l.b16 %v10076
    %v11776 = vunpack.c.l.b16 %v10077
    %v11777 = vunpack.c.l.b16 %v10078
    %v11778 = vunpack.c.l.b16 %v10079
    %v11779 = vunpack.c.l.b16 %v10080
    %v11780 = vunpack.c.l.b16 %v10081
    %v11781 = vunpack.c.l.b16 %v10082
    %v11782 = vunpack.c.l.b16 %v10083
    %v11783 = vunpack.c.l.b16 %v10084
    %v11784 = vunpack.c.l.b16 %v10085
    %v11785 = vunpack.c.l.b16 %v10086
    %v11786 = vunpack.c.l.b16 %v10087
    %v11787 = vunpack.c.l.b16 %v10088
    %v11788 = vunpack.c.l.b16 %v10089
    %v11789 = vunpack.c.l.b16 %v10090
    %v11790 = vunpack.c.l.b16 %v10091
    %v11791 = vunpack.c.l.b16 %v10092
    %v11792 = vunpack.c.l.b16 %v10093
    %v11793 = vunpack.c.l.b16 %v10094
    %v11794 = vunpack.c.l.b16 %v10095
    %v11795 = vunpack.c.l.b16 %v10096
    %v11796 = vunpack.c.l.b16 %v10097
    %v11797 = vunpack.c.l.b16 %v10098
    %v11798 = vunpack.c.l.b16 %v10099
    %v11799 = vunpack.c.l.b16 %v10100
    %v11800 = vunpack.c.l.b16 %v10101
    %v11801 = vunpack.c.l.b16 %v10102
    %v11802 = vunpack.c.l.b16 %v10103
    %v11803 = vunpack.c.l.b16 %v10104
    %v11804 = vunpack.c.l.b16 %v10105
    %v11805 = vunpack.c.l.b16 %v10106
    %v11806 = vunpack.c.l.b16 %v10107
    %v11807 = vunpack.c.l.b16 %v10108
    %v11808 = vunpack.c.l.b16 %v10109
    %v11809 = vunpack.c.l.b16 %v10110
    %v11810 = vunpack.c.l.b16 %v10111
    %v11811 = vunpack.c.l.b16 %v10112
    %v11812 = vunpack.c.l.b16 %v10113
    %v11813 = vunpack.c.l.b16 %v10114
    %v11814 = vunpack.c.l.b16 %v10115
    %v11815 = vunpack.c.l.b16 %v10116
    %v11816 = vunpack.c.l.b16 %v10117
    %v11817 = vunpack.c.l.b16 %v10118
    %v11818 = vunpack.c.l.b16 %v10119
    %v11819 = vunpack.c.l.b16 %v10120
    %v11820 = vunpack.c.l.b16 %v10121
    %v11821 = vunpack.c.l.b16 %v10122
    %v11822 = vunpack.c.l.b16 %v10123
    %v11823 = vunpack.c.l.b16 %v10124
    %v11824 = vunpack.c.l.b16 %v10125
    %v11825 = vunpack.c.l.b16 %v10126
    %v11826 = vunpack.c.l.b16 %v10127
    %v11827 = vunpack.c.l.b16 %v10128
    %v11828 = vunpack.c.l.b16 %v10129
    %v11829 = vunpack.c.l.b16 %v10130
    %v11830 = vunpack.c.l.b16 %v10131
    %v11831 = vunpack.c.l.b16 %v10132
    %v11832 = vunpack.c.l.b16 %v10133
    %v11833 = vunpack.c.l.b16 %v10134
    %v11834 = vunpack.c.l.b16 %v10135
    %v11835 = vunpack.c.l.b16 %v10136
    %v11836 = vunpack.c.l.b16 %v10137
    %v11837 = vunpack.c.l.b16 %v10138
    %v11838 = vunpack.c.l.b16 %v10139
    %v11839 = vunpack.c.l.b16 %v10140
    %v11840 = vunpack.c.l.b16 %v10141
    %v11841 = vunpack.c.l.b16 %v10142
    %v11842 = vunpack.c.l.b16 %v10143
    %v11843 = vunpack.c.l.b16 %v10144
    %v11844 = vunpack.c.l.b16 %v10145
    %v11845 = vunpack.c.l.b16 %v10146
    %v11846 = vunpack.c.l.b16 %v10147
    %v11847 = vunpack.c.l.b16 %v10148
    %v11848 = vunpack.c.l.b16 %v10149
    %v11849 = vunpack.c.l.b16 %v10150
    %v11850 = vunpack.c.l.b16 %v10151
    %v11851 = vunpack.c.l.b16 %v10152
    %v11852 = vunpack.c.l.b16 %v10153
    %v11853 = vunpack.c.l.b16 %v10154
    %v11854 = vunpack.c.l.b16 %v10155
    %v11855 = vunpack.c.l.b16 %v10156
    %v11856 = vunpack.c.l.b16 %v10157
    %v11857 = vunpack.c.l.b16 %v10158
    %v11858 = vunpack.c.l.b16 %v10159
    %v11859 = vunpack.c.l.b16 %v10160
    %v11860 = vunpack.c.l.b16 %v10161
    %v11861 = vunpack.c.l.b16 %v10162
    %v11862 = vunpack.c.l.b16 %v10163
    %v11863 = vunpack.c.l.b16 %v10164
    %v11864 = vunpack.c.l.b16 %v10165
    %v11865 = vunpack.c.l.b16 %v10166
    %v11866 = vunpack.c.l.b16 %v10167
    %v11867 = vunpack.c.l.b16 %v10168
    %v11868 = vunpack.c.l.b16 %v10169
    %v11869 = vunpack.c.l.b16 %v10170
    %v11870 = vunpack.c.l.b16 %v10171
    %v11871 = vunpack.c.l.b16 %v10172
    %v11872 = vunpack.c.l.b16 %v10173
    %v11873 = vunpack.c.l.b16 %v10174
    %v11874 = vunpack.c.l.b16 %v10175
    %v11875 = vunpack.c.l.b16 %v10176
    %v11876 = vunpack.c.l.b16 %v10177
    %v11877 = vunpack.c.l.b16 %v10178
    %v11878 = vunpack.c.l.b16 %v10179
    %v11879 = vunpack.c.l.b16 %v10180
    %v11880 = vunpack.c.l.b16 %v10181
    %v11881 = vunpack.c.l.b16 %v10182
    %v11882 = vunpack.c.l.b16 %v10183
    %v11883 = vunpack.c.l.b16 %v10184
    %v11884 = vunpack.c.l.b16 %v10185
    %v11885 = vunpack.c.l.b16 %v10186
    %v11886 = vunpack.c.l.b16 %v10187
    %v11887 = vunpack.c.l.b16 %v10188
    %v11888 = vunpack.c.l.b16 %v10189
    %v11889 = vunpack.c.l.b16 %v10190
    %v11890 = vunpack.c.l.b16 %v10191
    %v11891 = vunpack.c.l.b16 %v10192
    %v11892 = vunpack.c.l.b16 %v10193
    %v11893 = vunpack.c.l.b16 %v10194
    %v11894 = vunpack.c.l.b16 %v10195
    %v11895 = vunpack.c.l.b16 %v10196
    %v11896 = vunpack.c.l.b16 %v10197
    %v11897 = vunpack.c.l.b16 %v10198
    %v11898 = vunpack.c.l.b16 %v10199
    %v11899 = vunpack.c.l.b16 %v10200
    %v11900 = vunpack.c.l.b16 %v10201
    %v11901 = vunpack.c.l.b16 %v10202
    %v11902 = vunpack.c.l.b16 %v10203
    %v11903 = vunpack.c.l.b16 %v10204
    %v11904 = vunpack.c.l.b16 %v10205
    %v11905 = vunpack.c.l.b16 %v10206
    %v11906 = vunpack.c.l.b16 %v10207
    %v11907 = vunpack.c.l.b16 %v10208
    %v11908 = vunpack.c.l.b16 %v10209
    %v11909 = vunpack.c.l.b16 %v10210
    %v11910 = vunpack.c.l.b16 %v10211
    %v11911 = vunpack.c.l.b16 %v10212
    %v11912 = vunpack.c.l.b16 %v10213
    %v11913 = vunpack.c.l.b16 %v10214
    %v11914 = vunpack.c.l.b16 %v10215
    %v11915 = vunpack.c.l.b16 %v10216
    %v11916 = vunpack.c.l.b16 %v10217
    %v11917 = vunpack.c.l.b16 %v10218
    %v11918 = vunpack.c.l.b16 %v10219
    %v11919 = vunpack.c.l.b16 %v10220
    %v11920 = vunpack.c.l.b16 %v10221
    %v11921 = vunpack.c.l.b16 %v10222
    %v11922 = vunpack.c.l.b16 %v10223
    %v11923 = vunpack.c.l.b16 %v10224
    %v11924 = vunpack.c.l.b16 %v10225
    %v11925 = vunpack.c.l.b16 %v10226
    %v11926 = vunpack.c.l.b16 %v10227
    %v11927 = vunpack.c.l.b16 %v10228
    %v11928 = vunpack.c.l.b16 %v10229
    %v11929 = vunpack.c.l.b16 %v10230
    %v11930 = vunpack.c.l.b16 %v10231
    %v11931 = vunpack.c.l.b16 %v10232
    %v11932 = vunpack.c.l.b16 %v10233
    %v11933 = vunpack.c.l.b16 %v10234
    %v11934 = vunpack.c.l.b16 %v10235
    %v11935 = vunpack.c.l.b16 %v10236
    %v11936 = vunpack.c.l.b16 %v10237
    %v11937 = vunpack.c.l.b16 %v10238
    %v11938 = vunpack.c.l.b16 %v10239
    %v11939 = vunpack.c.l.b16 %v10240
    %v11940 = vunpack.c.l.b16 %v10241
    %v11941 = vunpack.c.l.b16 %v10242
    %v11942 = vunpack.c.l.b16 %v10243
    %v11943 = vunpack.c.l.b16 %v10244
    %v11944 = vunpack.c.l.b16 %v10245
    %v11945 = vunpack.c.l.b16 %v10246
    %v11946 = vunpack.c.l.b16 %v10247
    %v11947 = vunpack.c.l.b16 %v10248
    %v11948 = vunpack.c.l.b16 %v10249
    %v11949 = vunpack.c.l.b16 %v10250
    %v11950 = vunpack.c.l.b16 %v10251
    %v11951 = vunpack.c.l.b16 %v10252
    %v11952 = vunpack.c.l.b16 %v10253
    %v11953 = vunpack.c.l.b16 %v10254
    %v11954 = vunpack.c.l.b16 %v10255
    %v11955 = vunpack.c.l.b16 %v10256
    %v11956 = vunpack.c.l.b16 %v10257
    %v11957 = vunpack.c.l.b16 %v10258
    %v11958 = vunpack.c.l.b16 %v10259
    %v11959 = vunpack.c.l.b16 %v10260
    %v11960 = vunpack.c.l.b16 %v10261
    %v11961 = vunpack.c.l.b16 %v10262
    %v11962 = vunpack.c.l.b16 %v10263
    %v11963 = vunpack.c.l.b16 %v10264
    %v11964 = vunpack.c.l.b16 %v10265
    %v11965 = vunpack.c.l.b16 %v10266
    %v11966 = vunpack.c.l.b16 %v10267
    %v11967 = vunpack.c.l.b16 %v10268
    %v11968 = vunpack.c.l.b16 %v10269
    %v11969 = vunpack.c.l.b16 %v10270
    %v11970 = vunpack.c.l.b16 %v10271
    %v11971 = vunpack.c.l.b16 %v10272
    %v11972 = vunpack.c.l.b16 %v10273
    %v11973 = vunpack.c.l.b16 %v10274
    %v11974 = vunpack.c.l.b16 %v10275
    %v11975 = vunpack.c.l.b16 %v10276
    %v11976 = vunpack.c.l.b16 %v10277
    %v11977 = vunpack.c.l.b16 %v10278
    %v11978 = vunpack.c.l.b16 %v10279
    %v11979 = vunpack.c.l.b16 %v10280
    %v11980 = vunpack.c.l.b16 %v10281
    %v11981 = vunpack.c.l.b16 %v10282
    %v11982 = vunpack.c.l.b16 %v10283
    %v11983 = vunpack.c.l.b16 %v10284
    %v11984 = vunpack.c.l.b16 %v10285
    %v11985 = vunpack.c.l.b16 %v10286
    %v11986 = vunpack.c.l.b16 %v10287
    %v11987 = vunpack.c.l.b16 %v10288
    %v11988 = vunpack.c.l.b16 %v10289
    %v11989 = vunpack.c.l.b16 %v10290
    %v11990 = vunpack.c.l.b16 %v10291
    %v11991 = vunpack.c.l.b16 %v10292
    %v11992 = vunpack.c.l.b16 %v10293
    %v11993 = vunpack.c.l.b16 %v10294
    %v11994 = vunpack.c.l.b16 %v10295
    %v11995 = vunpack.c.l.b16 %v10296
    %v11996 = vunpack.c.l.b16 %v10297
    %v11997 = vunpack.c.l.b16 %v10298
    %v11998 = vunpack.c.l.b16 %v10299
    %v11999 = vunpack.c.l.b16 %v10300
    %v12000 = vunpack.c.l.b16 %v10301
    %v12001 = vunpack.c.l.b16 %v10302
    %v12002 = vunpack.c.l.b16 %v10303
    %v12003 = vunpack.c.l.b16 %v10304
    %v12004 = vunpack.c.l.b16 %v10305
    %v12005 = vunpack.c.l.b16 %v10306
    %v12006 = vunpack.c.l.b16 %v10307
    %v12007 = vunpack.c.l.b16 %v10308
    %v12008 = vunpack.c.l.b16 %v10309
    %v12009 = vunpack.c.l.b16 %v10310
    %v12010 = vunpack.c.l.b16 %v10311
    %v12011 = vunpack.c.l.b16 %v10312
    %v12012 = vunpack.c.l.b16 %v10313
    %v12013 = vunpack.c.l.b16 %v10314
    %v12014 = vunpack.c.l.b16 %v10315
    %v12015 = vunpack.c.l.b16 %v10316
    %v12016 = vunpack.c.l.b16 %v10317
    %v12017 = vunpack.c.l.b16 %v10318
    %v12018 = vunpack.c.l.b16 %v10319
    %v12019 = vunpack.c.l.b16 %v10320
    %v12020 = vunpack.c.l.b16 %v10321
    %v12021 = vunpack.c.l.b16 %v10322
    %v12022 = vunpack.c.l.b16 %v10323
    %v12023 = vunpack.c.l.b16 %v10324
    %v12024 = vunpack.c.l.b16 %v10325
    %v12025 = vunpack.c.l.b16 %v10326
    %v12026 = vunpack.c.l.b16 %v10327
    %v12027 = vunpack.c.l.b16 %v10328
    %v12028 = vunpack.c.l.b16 %v10329
    %v12029 = vunpack.c.l.b16 %v10330
    %v12030 = vunpack.c.l.b16 %v10331
    %v12031 = vunpack.c.l.b16 %v10332
    %v12032 = vunpack.c.l.b16 %v10333
    %v12033 = vunpack.c.l.b16 %v10334
    %v12034 = vunpack.c.l.b16 %v10335
    %v12035 = vunpack.c.l.b16 %v10336
    %v12036 = vunpack.c.l.b16 %v10337
    %v12037 = vunpack.c.l.b16 %v10338
    %v12038 = vunpack.c.l.b16 %v10339
    %v12039 = vunpack.c.l.b16 %v10340
    %v12040 = vunpack.c.l.b16 %v10341
    %v12041 = vunpack.c.l.b16 %v10342
    %v12042 = vunpack.c.l.b16 %v10343
    %v12043 = vunpack.c.l.b16 %v10344
    %v12044 = vunpack.c.l.b16 %v10345
    %v12045 = vunpack.c.l.b16 %v10346
    %v12046 = vunpack.c.l.b16 %v10347
    %v12047 = vunpack.c.l.b16 %v10348
    %v12048 = vunpack.c.l.b16 %v10349
    %v12049 = vunpack.c.l.b16 %v10350
    %v12050 = vunpack.c.l.b16 %v10351
    %v12051 = vunpack.c.l.b16 %v10352
    %v12052 = vunpack.c.l.b16 %v10353
    %v12053 = vunpack.c.l.b16 %v10354
    %v12054 = vunpack.c.l.b16 %v10355
    %v12055 = vunpack.c.l.b16 %v10356
    %v12056 = vunpack.c.l.b16 %v10357
    %v12057 = vunpack.c.l.b16 %v10358
    %v12058 = vunpack.c.l.b16 %v10359
    %v12059 = vunpack.c.l.b16 %v10360
    %v12060 = vunpack.c.l.b16 %v10361
    %v12061 = vunpack.c.l.b16 %v10362
    %v12062 = vunpack.c.l.b16 %v10363
    %v12063 = vunpack.c.l.b16 %v10364
    %v12064 = vunpack.c.l.b16 %v10365
    %v12065 = vunpack.c.l.b16 %v10366
    %v12066 = vunpack.c.l.b16 %v10367
    %v12067 = vunpack.c.l.b16 %v10368
    %v12068 = vunpack.c.l.b16 %v10369
    %v12069 = vunpack.c.l.b16 %v10370
    %v12070 = vunpack.c.l.b16 %v10371
    %v12071 = vunpack.c.l.b16 %v10372
    %v12072 = vunpack.c.l.b16 %v10373
    %v12073 = vunpack.c.l.b16 %v10374
    %v12074 = vunpack.c.l.b16 %v10375
    %v12075 = vunpack.c.l.b16 %v10376
    %v12076 = vunpack.c.l.b16 %v10377
    %v12077 = vunpack.c.l.b16 %v10378
    %v12078 = vunpack.c.l.b16 %v10379
    %v12079 = vunpack.c.l.b16 %v10380
    %v12080 = vunpack.c.l.b16 %v10381
    %v12081 = vunpack.c.l.b16 %v10382
    %v12082 = vunpack.c.l.b16 %v10383
    %v12083 = vunpack.c.l.b16 %v10384
    %v12084 = vunpack.c.l.b16 %v10385
    %v12085 = vunpack.c.l.b16 %v10386
    %v12086 = vunpack.c.l.b16 %v10387
    %v12087 = vunpack.c.l.b16 %v10388
    %v12088 = vunpack.c.l.b16 %v10389
    %v12089 = vunpack.c.l.b16 %v10390
    %v12090 = vunpack.c.l.b16 %v10391
    %v12091 = vunpack.c.l.b16 %v10392
    %v12092 = vunpack.c.l.b16 %v10393
    %v12093 = vunpack.c.l.b16 %v10394
    %v12094 = vunpack.c.l.b16 %v10395
    %v12095 = vunpack.c.l.b16 %v10396
    %v12096 = vunpack.c.l.b16 %v10397
    %v12097 = vunpack.c.l.b16 %v10398
    %v12098 = vunpack.c.l.b16 %v10399
    %v12099 = vunpack.c.l.b16 %v10400
    %v12100 = vunpack.c.l.b16 %v10401
    %v12101 = vunpack.c.l.b16 %v10402
    %v12102 = vunpack.c.l.b16 %v10403
    %v12103 = vunpack.c.l.b16 %v10404
    %v12104 = vunpack.c.l.b16 %v10405
    %v12105 = vunpack.c.l.b16 %v10406
    %v12106 = vunpack.c.l.b16 %v10407
    %v12107 = vunpack.c.l.b16 %v10408
    %v12108 = vunpack.c.l.b16 %v10409
    %v12109 = vunpack.c.l.b16 %v10410
    %v12110 = vunpack.c.l.b16 %v10411
    %v12111 = vunpack.c.l.b16 %v10412
    %v12112 = vunpack.c.l.b16 %v10413
    %v12113 = vunpack.c.l.b16 %v10414
    %v12114 = vunpack.c.l.b16 %v10415
    %v12115 = vunpack.c.l.b16 %v10416
    %v12116 = vunpack.c.l.b16 %v10417
    %v12117 = vunpack.c.l.b16 %v10418
    %v12118 = vunpack.c.l.b16 %v10419
    %v12119 = vunpack.c.l.b16 %v10420
    %v12120 = vunpack.c.l.b16 %v10421
    %v12121 = vunpack.c.l.b16 %v10422
    %v12122 = vunpack.c.l.b16 %v10423
    %v12123 = vunpack.c.l.b16 %v10424
    %v12124 = vunpack.c.l.b16 %v10425
    %v12125 = vunpack.c.l.b16 %v10426
    %v12126 = vunpack.c.l.b16 %v10427
    %v12127 = vunpack.c.l.b16 %v10428
    %v12128 = vunpack.c.l.b16 %v10429
    %v12129 = vunpack.c.l.b16 %v10430
    %v12130 = vunpack.c.l.b16 %v10431
    %v12131 = vunpack.c.l.b16 %v10432
    %v12132 = vunpack.c.l.b16 %v10433
    %v12133 = vunpack.c.l.b16 %v10434
    %v12134 = vunpack.c.l.b16 %v10435
    %v12135 = vunpack.c.l.b16 %v10436
    %v12136 = vunpack.c.l.b16 %v10437
    %v12137 = vunpack.c.l.b16 %v10438
    %v12138 = vunpack.c.l.b16 %v10439
    %v12139 = vunpack.c.l.b16 %v10440
    %v12140 = vunpack.c.l.b16 %v10441
    %v12141 = vunpack.c.l.b16 %v10442
    %v12142 = vunpack.c.l.b16 %v10443
    %v12143 = vunpack.c.l.b16 %v10444
    %v12144 = vunpack.c.l.b16 %v10445
    %v12145 = vunpack.c.l.b16 %v10446
    %v12146 = vunpack.c.l.b16 %v10447
    %v12147 = vunpack.c.l.b16 %v10448
    %v12148 = vunpack.c.l.b16 %v10449
    %v12149 = vunpack.c.l.b16 %v10450
    %v12150 = vunpack.c.l.b16 %v10451
    %v12151 = vunpack.c.l.b16 %v10452
    %v12152 = vunpack.c.l.b16 %v10453
    %v12153 = vunpack.c.l.b16 %v10454
    %v12154 = vunpack.c.l.b16 %v10455
    %v12155 = vunpack.c.l.b16 %v10456
    %v12156 = vunpack.c.l.b16 %v10457
    %v12157 = vunpack.c.l.b16 %v10458
    %v12158 = vunpack.c.l.b16 %v10459
    %v12159 = vunpack.c.l.b16 %v10460
    %v12160 = vunpack.c.l.b16 %v10461
    %v12161 = vunpack.c.l.b16 %v10462
    %v12162 = vunpack.c.l.b16 %v10463
    %v12163 = vunpack.c.l.b16 %v10464
    %v12164 = vunpack.c.l.b16 %v10465
    %v12165 = vunpack.c.l.b16 %v10466
    %v12166 = vunpack.c.l.b16 %v10467
    %v12167 = vunpack.c.l.b16 %v10468
    %v12168 = vunpack.c.l.b16 %v10469
    %v12169 = vunpack.c.l.b16 %v10470
    %v12170 = vunpack.c.l.b16 %v10471
    %v12171 = vunpack.c.l.b16 %v10472
    %v12172 = vunpack.c.l.b16 %v10473
    %v12173 = vunpack.c.l.b16 %v10474
    %v12174 = vunpack.c.l.b16 %v10475
    %v12175 = vunpack.c.l.b16 %v10476
    %v12176 = vunpack.c.l.b16 %v10477
    %v12177 = vunpack.c.l.b16 %v10478
    %v12178 = vunpack.c.l.b16 %v10479
    %v12179 = vunpack.c.l.b16 %v10480
    %v12180 = vunpack.c.l.b16 %v10481
    %v12181 = vunpack.c.l.b16 %v10482
    %v12182 = vunpack.c.l.b16 %v10483
    %v12183 = vunpack.c.l.b16 %v10484
    %v12184 = vunpack.c.l.b16 %v10485
    %v12185 = vunpack.c.l.b16 %v10486
    %v12186 = vunpack.c.l.b16 %v10487
    %v12187 = vunpack.c.l.b16 %v10488
    %v12188 = vunpack.c.l.b16 %v10489
    %v12189 = vunpack.c.l.b16 %v10490
    %v12190 = vunpack.c.l.b16 %v10491
    %v12191 = vunpack.c.l.b16 %v10492
    %v12192 = vunpack.c.l.b16 %v10493
    %v12193 = vunpack.c.l.b16 %v10494
    %v12194 = vunpack.c.l.b16 %v10495
    %v12195 = vunpack.c.l.b16 %v10496
    %v12196 = vunpack.c.l.b16 %v10497
    %v12197 = vunpack.c.l.b16 %v10498
    %v12198 = vunpack.c.l.b16 %v10499
    %v12199 = vunpack.c.l.b16 %v10500
    %v12200 = vunpack.c.l.b16 %v10501
    %v12201 = vunpack.c.l.b16 %v10502
    %v12202 = vunpack.c.l.b16 %v10503
    %v12203 = vunpack.c.l.b16 %v10504
    %v12204 = vunpack.c.l.b16 %v10505
    %v12205 = vunpack.c.l.b16 %v10506
    %v12206 = vunpack.c.l.b16 %v10507
    %v12207 = vunpack.c.l.b16 %v10508
    %v12208 = vunpack.c.l.b16 %v10509
    %v12209 = vunpack.c.l.b16 %v10510
    %v12210 = vunpack.c.l.b16 %v10511
    %v12211 = vunpack.c.l.b16 %v10512
    %v12212 = vunpack.c.l.b16 %v10513
    %v12213 = vunpack.c.l.b16 %v10514
    %v12214 = vunpack.c.l.b16 %v10515
    %v12215 = vunpack.c.l.b16 %v10516
    %v12216 = vunpack.c.l.b16 %v10517
    %v12217 = vunpack.c.l.b16 %v10518
    %v12218 = vunpack.c.l.b16 %v10519
    %v12219 = vunpack.c.l.b16 %v10520
    %v12220 = vunpack.c.l.b16 %v10521
    %v12221 = vunpack.c.l.b16 %v10522
    %v12222 = vunpack.c.l.b16 %v10523
    %v12223 = vunpack.c.l.b16 %v10524
    %v12224 = vunpack.c.l.b16 %v10525
    %v12225 = vunpack.c.l.b16 %v10526
    %v12226 = vunpack.c.l.b16 %v10527
    %v12227 = vunpack.c.l.b16 %v10528
    %v12228 = vunpack.c.l.b16 %v10529
    %v12229 = vunpack.c.l.b16 %v10530
    %v12230 = vunpack.c.l.b16 %v10531
    %v12231 = vunpack.c.l.b16 %v10532
    %v12232 = vunpack.c.l.b16 %v10533
    %v12233 = vunpack.c.l.b16 %v10534
    %v12234 = vunpack.c.l.b16 %v10535
    %v12235 = vunpack.c.l.b16 %v10536
    %v12236 = vunpack.c.l.b16 %v10537
    %v12237 = vunpack.c.l.b16 %v10538
    %v12238 = vunpack.c.l.b16 %v10539
    %v12239 = vunpack.c.l.b16 %v10540
    %v12240 = vunpack.c.l.b16 %v10541
    %v12241 = vunpack.c.l.b16 %v10542
    %v12242 = vunpack.c.l.b16 %v10543
    %v12243 = vunpack.c.l.b16 %v10544
    %v12244 = vunpack.c.l.b16 %v10545
    %v12245 = vpack.c.b16 %v11670, %v11669
    %v12246 = vpack.c.b16 %v11672, %v11671
    %v12247 = vpack.c.b16 %v11674, %v11673
    %v12248 = vpack.c.b16 %v11676, %v11675
    %v12249 = vpack.c.b16 %v11678, %v11677
    %v12250 = vpack.c.b16 %v11680, %v11679
    %v12251 = vpack.c.b16 %v11682, %v11681
    %v12252 = vpack.c.b16 %v11684, %v11683
    %v12253 = vpack.c.b16 %v11686, %v11685
    %v12254 = vpack.c.b16 %v11688, %v11687
    %v12255 = vpack.c.b16 %v11690, %v11689
    %v12256 = vpack.c.b16 %v11692, %v11691
    %v12257 = vpack.c.b16 %v11694, %v11693
    %v12258 = vpack.c.b16 %v11696, %v11695
    %v12259 = vpack.c.b16 %v11698, %v11697
    %v12260 = vpack.c.b16 %v11700, %v11699
    %v12261 = vpack.c.b16 %v11702, %v11701
    %v12262 = vpack.c.b16 %v11704, %v11703
    %v12263 = vpack.c.b16 %v11706, %v11705
    %v12264 = vpack.c.b16 %v11708, %v11707
    %v12265 = vpack.c.b16 %v11710, %v11709
    %v12266 = vpack.c.b16 %v11712, %v11711
    %v12267 = vpack.c.b16 %v11714, %v11713
    %v12268 = vpack.c.b16 %v11716, %v11715
    %v12269 = vpack.c.b16 %v11718, %v11717
    %v12270 = vpack.c.b16 %v11720, %v11719
    %v12271 = vpack.c.b16 %v11722, %v11721
    %v12272 = vpack.c.b16 %v11724, %v11723
    %v12273 = vpack.c.b16 %v11726, %v11725
    %v12274 = vpack.c.b16 %v11728, %v11727
    %v12275 = vpack.c.b16 %v11730, %v11729
    %v12276 = vpack.c.b16 %v11732, %v11731
    %v12277 = vpack.c.b16 %v11734, %v11733
    %v12278 = vpack.c.b16 %v11736, %v11735
    %v12279 = vpack.c.b16 %v11738, %v11737
    %v12280 = vpack.c.b16 %v11740, %v11739
    %v12281 = vpack.c.b16 %v11742, %v11741
    %v12282 = vpack.c.b16 %v11744, %v11743
    %v12283 = vpack.c.b16 %v11746, %v11745
    %v12284 = vpack.c.b16 %v11748, %v11747
    %v12285 = vpack.c.b16 %v11750, %v11749
    %v12286 = vpack.c.b16 %v11752, %v11751
    %v12287 = vpack.c.b16 %v11754, %v11753
    %v12288 = vpack.c.b16 %v11756, %v11755
    %v12289 = vpack.c.b16 %v11758, %v11757
    %v12290 = vpack.c.b16 %v11760, %v11759
    %v12291 = vpack.c.b16 %v11762, %v11761
    %v12292 = vpack.c.b16 %v11764, %v11763
    %v12293 = vpack.c.b16 %v11766, %v11765
    %v12294 = vpack.c.b16 %v11768, %v11767
    %v12295 = vpack.c.b16 %v11770, %v11769
    %v12296 = vpack.c.b16 %v11772, %v11771
    %v12297 = vpack.c.b16 %v11774, %v11773
    %v12298 = vpack.c.b16 %v11776, %v11775
    %v12299 = vpack.c.b16 %v11778, %v11777
    %v12300 = vpack.c.b16 %v11780, %v11779
    %v12301 = vpack.c.b16 %v11782, %v11781
    %v12302 = vpack.c.b16 %v11784, %v11783
    %v12303 = vpack.c.b16 %v11786, %v11785
    %v12304 = vpack.c.b16 %v11788, %v11787
    %v12305 = vpack.c.b16 %v11790, %v11789
    %v12306 = vpack.c.b16 %v11792, %v11791
    %v12307 = vpack.c.b16 %v11794, %v11793
    %v12308 = vpack.c.b16 %v11796, %v11795
    %v12309 = vpack.c.b16 %v11798, %v11797
    %v12310 = vpack.c.b16 %v11800, %v11799
    %v12311 = vpack.c.b16 %v11802, %v11801
    %v12312 = vpack.c.b16 %v11804, %v11803
    %v12313 = vpack.c.b16 %v11806, %v11805
    %v12314 = vpack.c.b16 %v11808, %v11807
    %v12315 = vpack.c.b16 %v11810, %v11809
    %v12316 = vpack.c.b16 %v11812, %v11811
    %v12317 = vpack.c.b16 %v11814, %v11813
    %v12318 = vpack.c.b16 %v11816, %v11815
    %v12319 = vpack.c.b16 %v11818, %v11817
    %v12320 = vpack.c.b16 %v11820, %v11819
    %v12321 = vpack.c.b16 %v11822, %v11821
    %v12322 = vpack.c.b16 %v11824, %v11823
    %v12323 = vpack.c.b16 %v11826, %v11825
    %v12324 = vpack.c.b16 %v11828, %v11827
    %v12325 = vpack.c.b16 %v11830, %v11829
    %v12326 = vpack.c.b16 %v11832, %v11831
    %v12327 = vpack.c.b16 %v11834, %v11833
    %v12328 = vpack.c.b16 %v11836, %v11835
    %v12329 = vpack.c.b16 %v11838, %v11837
    %v12330 = vpack.c.b16 %v11840, %v11839
    %v12331 = vpack.c.b16 %v11842, %v11841
    %v12332 = vpack.c.b16 %v11844, %v11843
    %v12333 = vpack.c.b16 %v11846, %v11845
    %v12334 = vpack.c.b16 %v11848, %v11847
    %v12335 = vpack.c.b16 %v11850, %v11849
    %v12336 = vpack.c.b16 %v11852, %v11851
    %v12337 = vpack.c.b16 %v11854, %v11853
    %v12338 = vpack.c.b16 %v11856, %v11855
    %v12339 = vpack.c.b16 %v11858, %v11857
    %v12340 = vpack.c.b16 %v11860, %v11859
    %v12341 = vpack.c.b16 %v11862, %v11861
    %v12342 = vpack.c.b16 %v11864, %v11863
    %v12343 = vpack.c.b16 %v11866, %v11865
    %v12344 = vpack.c.b16 %v11868, %v11867
    %v12345 = vpack.c.b16 %v11870, %v11869
    %v12346 = vpack.c.b16 %v11872, %v11871
    %v12347 = vpack.c.b16 %v11874, %v11873
    %v12348 = vpack.c.b16 %v11876, %v11875
    %v12349 = vpack.c.b16 %v11878, %v11877
    %v12350 = vpack.c.b16 %v11880, %v11879
    %v12351 = vpack.c.b16 %v11882, %v11881
    %v12352 = vpack.c.b16 %v11884, %v11883
    %v12353 = vpack.c.b16 %v11886, %v11885
    %v12354 = vpack.c.b16 %v11888, %v11887
    %v12355 = vpack.c.b16 %v11890, %v11889
    %v12356 = vpack.c.b16 %v11892, %v11891
    %v12357 = vpack.c.b16 %v11894, %v11893
    %v12358 = vpack.c.b16 %v11896, %v11895
    %v12359 = vpack.c.b16 %v11898, %v11897
    %v12360 = vpack.c.b16 %v11900, %v11899
    %v12361 = vpack.c.b16 %v11902, %v11901
    %v12362 = vpack.c.b16 %v11904, %v11903
    %v12363 = vpack.c.b16 %v11906, %v11905
    %v12364 = vpack.c.b16 %v11908, %v11907
    %v12365 = vpack.c.b16 %v11910, %v11909
    %v12366 = vpack.c.b16 %v11912, %v11911
    %v12367 = vpack.c.b16 %v11914, %v11913
    %v12368 = vpack.c.b16 %v11916, %v11915
    %v12369 = vpack.c.b16 %v11918, %v11917
    %v12370 = vpack.c.b16 %v11920, %v11919
    %v12371 = vpack.c.b16 %v11922, %v11921
    %v12372 = vpack.c.b16 %v11924, %v11923
    %v12373 = vpack.c.b16 %v11926, %v11925
    %v12374 = vpack.c.b16 %v11928, %v11927
    %v12375 = vpack.c.b16 %v11930, %v11929
    %v12376 = vpack.c.b16 %v11932, %v11931
    %v12377 = vpack.c.b16 %v11934, %v11933
    %v12378 = vpack.c.b16 %v11936, %v11935
    %v12379 = vpack.c.b16 %v11938, %v11937
    %v12380 = vpack.c.b16 %v11940, %v11939
    %v12381 = vpack.c.b16 %v11942, %v11941
    %v12382 = vpack.c.b16 %v11944, %v11943
    %v12383 = vpack.c.b16 %v11946, %v11945
    %v12384 = vpack.c.b16 %v11948, %v11947
    %v12385 = vpack.c.b16 %v11950, %v11949
    %v12386 = vpack.c.b16 %v11952, %v11951
    %v12387 = vpack.c.b16 %v11954, %v11953
    %v12388 = vpack.c.b16 %v11956, %v11955
    %v12389 = vpack.c.b16 %v11958, %v11957
    %v12390 = vpack.c.b16 %v11960, %v11959
    %v12391 = vpack.c.b16 %v11962, %v11961
    %v12392 = vpack.c.b16 %v11964, %v11963
    %v12393 = vpack.c.b16 %v11966, %v11965
    %v12394 = vpack.c.b16 %v11968, %v11967
    %v12395 = vpack.c.b16 %v11970, %v11969
    %v12396 = vpack.c.b16 %v11972, %v11971
    %v12397 = vpack.c.b16 %v11974, %v11973
    %v12398 = vpack.c.b16 %v11976, %v11975
    %v12399 = vpack.c.b16 %v11978, %v11977
    %v12400 = vpack.c.b16 %v11980, %v11979
    %v12401 = vpack.c.b16 %v11982, %v11981
    %v12402 = vpack.c.b16 %v11984, %v11983
    %v12403 = vpack.c.b16 %v11986, %v11985
    %v12404 = vpack.c.b16 %v11988, %v11987
    %v12405 = vpack.c.b16 %v11990, %v11989
    %v12406 = vpack.c.b16 %v11992, %v11991
    %v12407 = vpack.c.b16 %v11994, %v11993
    %v12408 = vpack.c.b16 %v11996, %v11995
    %v12409 = vpack.c.b16 %v11998, %v11997
    %v12410 = vpack.c.b16 %v12000, %v11999
    %v12411 = vpack.c.b16 %v12002, %v12001
    %v12412 = vpack.c.b16 %v12004, %v12003
    %v12413 = vpack.c.b16 %v12006, %v12005
    %v12414 = vpack.c.b16 %v12008, %v12007
    %v12415 = vpack.c.b16 %v12010, %v12009
    %v12416 = vpack.c.b16 %v12012, %v12011
    %v12417 = vpack.c.b16 %v12014, %v12013
    %v12418 = vpack.c.b16 %v12016, %v12015
    %v12419 = vpack.c.b16 %v12018, %v12017
    %v12420 = vpack.c.b16 %v12020, %v12019
    %v12421 = vpack.c.b16 %v12022, %v12021
    %v12422 = vpack.c.b16 %v12024, %v12023
    %v12423 = vpack.c.b16 %v12026, %v12025
    %v12424 = vpack.c.b16 %v12028, %v12027
    %v12425 = vpack.c.b16 %v12030, %v12029
    %v12426 = vpack.c.b16 %v12032, %v12031
    %v12427 = vpack.c.b16 %v12034, %v12033
    %v12428 = vpack.c.b16 %v12036, %v12035
    %v12429 = vpack.c.b16 %v12038, %v12037
    %v12430 = vpack.c.b16 %v12040, %v12039
    %v12431 = vpack.c.b16 %v12042, %v12041
    %v12432 = vpack.c.b16 %v12044, %v12043
    %v12433 = vpack.c.b16 %v12046, %v12045
    %v12434 = vpack.c.b16 %v12048, %v12047
    %v12435 = vpack.c.b16 %v12050, %v12049
    %v12436 = vpack.c.b16 %v12052, %v12051
    %v12437 = vpack.c.b16 %v12054, %v12053
    %v12438 = vpack.c.b16 %v12056, %v12055
    %v12439 = vpack.c.b16 %v12058, %v12057
    %v12440 = vpack.c.b16 %v12060, %v12059
    %v12441 = vpack.c.b16 %v12062, %v12061
    %v12442 = vpack.c.b16 %v12064, %v12063
    %v12443 = vpack.c.b16 %v12066, %v12065
    %v12444 = vpack.c.b16 %v12068, %v12067
    %v12445 = vpack.c.b16 %v12070, %v12069
    %v12446 = vpack.c.b16 %v12072, %v12071
    %v12447 = vpack.c.b16 %v12074, %v12073
    %v12448 = vpack.c.b16 %v12076, %v12075
    %v12449 = vpack.c.b16 %v12078, %v12077
    %v12450 = vpack.c.b16 %v12080, %v12079
    %v12451 = vpack.c.b16 %v12082, %v12081
    %v12452 = vpack.c.b16 %v12084, %v12083
    %v12453 = vpack.c.b16 %v12086, %v12085
    %v12454 = vpack.c.b16 %v12088, %v12087
    %v12455 = vpack.c.b16 %v12090, %v12089
    %v12456 = vpack.c.b16 %v12092, %v12091
    %v12457 = vpack.c.b16 %v12094, %v12093
    %v12458 = vpack.c.b16 %v12096, %v12095
    %v12459 = vpack.c.b16 %v12098, %v12097
    %v12460 = vpack.c.b16 %v12100, %v12099
    %v12461 = vpack.c.b16 %v12102, %v12101
    %v12462 = vpack.c.b16 %v12104, %v12103
    %v12463 = vpack.c.b16 %v12106, %v12105
    %v12464 = vpack.c.b16 %v12108, %v12107
    %v12465 = vpack.c.b16 %v12110, %v12109
    %v12466 = vpack.c.b16 %v12112, %v12111
    %v12467 = vpack.c.b16 %v12114, %v12113
    %v12468 = vpack.c.b16 %v12116, %v12115
    %v12469 = vpack.c.b16 %v12118, %v12117
    %v12470 = vpack.c.b16 %v12120, %v12119
    %v12471 = vpack.c.b16 %v12122, %v12121
    %v12472 = vpack.c.b16 %v12124, %v12123
    %v12473 = vpack.c.b16 %v12126, %v12125
    %v12474 = vpack.c.b16 %v12128, %v12127
    %v12475 = vpack.c.b16 %v12130, %v12129
    %v12476 = vpack.c.b16 %v12132, %v12131
    %v12477 = vpack.c.b16 %v12134, %v12133
    %v12478 = vpack.c.b16 %v12136, %v12135
    %v12479 = vpack.c.b16 %v12138, %v12137
    %v12480 = vpack.c.b16 %v12140, %v12139
    %v12481 = vpack.c.b16 %v12142, %v12141
    %v12482 = vpack.c.b16 %v12144, %v12143
    %v12483 = vpack.c.b16 %v12146, %v12145
    %v12484 = vpack.c.b16 %v12148, %v12147
    %v12485 = vpack.c.b16 %v12150, %v12149
    %v12486 = vpack.c.b16 %v12152, %v12151
    %v12487 = vpack.c.b16 %v12154, %v12153
    %v12488 = vpack.c.b16 %v12156, %v12155
    %v12489 = vpack.c.b16 %v12158, %v12157
    %v12490 = vpack.c.b16 %v12160, %v12159
    %v12491 = vpack.c.b16 %v12162, %v12161
    %v12492 = vpack.c.b16 %v12164, %v12163
    %v12493 = vpack.c.b16 %v12166, %v12165
    %v12494 = vpack.c.b16 %v12168, %v12167
    %v12495 = vpack.c.b16 %v12170, %v12169
    %v12496 = vpack.c.b16 %v12172, %v12171
    %v12497 = vpack.c.b16 %v12174, %v12173
    %v12498 = vpack.c.b16 %v12176, %v12175
    %v12499 = vpack.c.b16 %v12178, %v12177
    %v12500 = vpack.c.b16 %v12180, %v12179
    %v12501 = vpack.c.b16 %v12182, %v12181
    %v12502 = vpack.c.b16 %v12184, %v12183
    %v12503 = vpack.c.b16 %v12186, %v12185
    %v12504 = vpack.c.b16 %v12188, %v12187
    %v12505 = vpack.c.b16 %v12190, %v12189
    %v12506 = vpack.c.b16 %v12192, %v12191
    %v12507 = vpack.c.b16 %v12194, %v12193
    %v12508 = vpack.c.b16 %v12196, %v12195
    %v12509 = vpack.c.b16 %v12198, %v12197
    %v12510 = vpack.c.b16 %v12200, %v12199
    %v12511 = vpack.c.b16 %v12202, %v12201
    %v12512 = vpack.c.b16 %v12204, %v12203
    %v12513 = vpack.c.b16 %v12206, %v12205
    %v12514 = vpack.c.b16 %v12208, %v12207
    %v12515 = vpack.c.b16 %v12210, %v12209
    %v12516 = vpack.c.b16 %v12212, %v12211
    %v12517 = vpack.c.b16 %v12214, %v12213
    %v12518 = vpack.c.b16 %v12216, %v12215
    %v12519 = vpack.c.b16 %v12218, %v12217
    %v12520 = vpack.c.b16 %v12220, %v12219
    %v12521 = vpack.c.b16 %v12222, %v12221
    %v12522 = vpack.c.b16 %v12224, %v12223
    %v12523 = vpack.c.b16 %v12226, %v12225
    %v12524 = vpack.c.b16 %v12228, %v12227
    %v12525 = vpack.c.b16 %v12230, %v12229
    %v12526 = vpack.c.b16 %v12232, %v12231
    %v12527 = vpack.c.b16 %v12234, %v12233
    %v12528 = vpack.c.b16 %v12236, %v12235
    %v12529 = vpack.c.b16 %v12238, %v12237
    %v12530 = vpack.c.b16 %v12240, %v12239
    %v12531 = vpack.c.b16 %v12242, %v12241
    %v12532 = vpack.c.b16 %v12244, %v12243
    %12821 = vmatprep.subr.bf16.mxu0 0
    %12822 = vmatpush1.bf16.msra.mxu0 %v12252
    %12823 = vmatprep.subr.bf16.mxu0 0
    %12824 = vmatpush1.bf16.msra.mxu0 %v12251
    %12825 = vmatprep.subr.bf16.mxu0 0
    %12826 = vmatpush1.bf16.msra.mxu0 %v12250
    %12827 = vmatprep.subr.bf16.mxu0 0
    %12828 = vmatpush1.bf16.msra.mxu0 %v12249
    %12829 = vmatprep.subr.bf16.mxu0 0
    %12830 = vmatpush1.bf16.msra.mxu0 %v12248
    %12831 = vmatprep.subr.bf16.mxu0 0
    %12832 = vmatpush1.bf16.msra.mxu0 %v12247
    %12833 = vmatprep.subr.bf16.mxu0 0
    %12834 = vmatpush1.bf16.msra.mxu0 %v12246
    %12835 = vmatprep.subr.bf16.mxu0 0
    %12836 = vmatpush1.bf16.msra.mxu0 %v12245
    %12837 = vmatprep.subr.bf16.mxu0 0
    %12838 = vmatpush2.bf16.msra.mxu0 %v12260
    %12839 = vmatprep.subr.bf16.mxu0 0
    %12840 = vmatpush2.bf16.msra.mxu0 %v12259
    %12841 = vmatprep.subr.bf16.mxu0 0
    %12842 = vmatpush2.bf16.msra.mxu0 %v12258
    %12843 = vmatprep.subr.bf16.mxu0 0
    %12844 = vmatpush2.bf16.msra.mxu0 %v12257
    %12845 = vmatprep.subr.bf16.mxu0 0
    %12846 = vmatpush2.bf16.msra.mxu0 %v12256
    %12847 = vmatprep.subr.bf16.mxu0 0
    %12848 = vmatpush2.bf16.msra.mxu0 %v12255
    %12849 = vmatprep.subr.bf16.mxu0 0
    %12850 = vmatpush2.bf16.msra.mxu0 %v12254
    %12851 = vmatprep.subr.bf16.mxu0 0
    %12852 = vmatpush2.bf16.msra.mxu0 %v12253
    %12853 = vmatprep.mubr.bf16.mxu0 %v10878
    %12854 = vmatmul.mubr.bf16.gmra.mxu0 %v10877
    %v12855 = vpop.f32.mrf.mxu0
    %v12856 = vadd.f32 %v10551, %v12855
    %v12857 = vpop.f32.mrf.mxu0
    %v12858 = vpop.f32.mrf.mxu0
    %v12859 = vadd.f32 %v10551, %v12858
    %v12860 = vpop.f32.mrf.mxu0
    %12861 = vmatprep.mubr.bf16.mxu0 %v10914
    %12862 = vmatmul.mubr.bf16.gmra.mxu0 %v10913
    %v12863 = vpop.f32.mrf.mxu0
    %v12864 = vadd.f32 %v10551, %v12863
    %v12865 = vpop.f32.mrf.mxu0
    %v12866 = vpop.f32.mrf.mxu0
    %v12867 = vadd.f32 %v10551, %v12866
    %v12868 = vpop.f32.mrf.mxu0
    %12869 = vmatprep.mubr.bf16.mxu0 %v10950
    %12870 = vmatmul.mubr.bf16.gmra.mxu0 %v10949
    %v12871 = vpop.f32.mrf.mxu0
    %v12872 = vadd.f32 %v10551, %v12871
    %v12873 = vpop.f32.mrf.mxu0
    %v12874 = vpop.f32.mrf.mxu0
    %v12875 = vadd.f32 %v10551, %v12874
    %v12876 = vpop.f32.mrf.mxu0
    %12877 = vdwg.mxu0
    %12878 = vmatprep.subr.bf16.mxu0 0
    %12879 = vmatpush1.bf16.msra.mxu0 %v12268
    %12880 = vmatprep.subr.bf16.mxu0 0
    %12881 = vmatpush1.bf16.msra.mxu0 %v12267
    %12882 = vmatprep.subr.bf16.mxu0 0
    %12883 = vmatpush1.bf16.msra.mxu0 %v12266
    %12884 = vmatprep.subr.bf16.mxu0 0
    %12885 = vmatpush1.bf16.msra.mxu0 %v12265
    %12886 = vmatprep.subr.bf16.mxu0 0
    %12887 = vmatpush1.bf16.msra.mxu0 %v12264
    %12888 = vmatprep.subr.bf16.mxu0 0
    %12889 = vmatpush1.bf16.msra.mxu0 %v12263
    %12890 = vmatprep.subr.bf16.mxu0 0
    %12891 = vmatpush1.bf16.msra.mxu0 %v12262
    %12892 = vmatprep.subr.bf16.mxu0 0
    %12893 = vmatpush1.bf16.msra.mxu0 %v12261
    %12894 = vmatprep.subr.bf16.mxu0 0
    %12895 = vmatpush2.bf16.msra.mxu0 %v12276
    %12896 = vmatprep.subr.bf16.mxu0 0
    %12897 = vmatpush2.bf16.msra.mxu0 %v12275
    %12898 = vmatprep.subr.bf16.mxu0 0
    %12899 = vmatpush2.bf16.msra.mxu0 %v12274
    %12900 = vmatprep.subr.bf16.mxu0 0
    %12901 = vmatpush2.bf16.msra.mxu0 %v12273
    %12902 = vmatprep.subr.bf16.mxu0 0
    %12903 = vmatpush2.bf16.msra.mxu0 %v12272
    %12904 = vmatprep.subr.bf16.mxu0 0
    %12905 = vmatpush2.bf16.msra.mxu0 %v12271
    %12906 = vmatprep.subr.bf16.mxu0 0
    %12907 = vmatpush2.bf16.msra.mxu0 %v12270
    %12908 = vmatprep.subr.bf16.mxu0 0
    %12909 = vmatpush2.bf16.msra.mxu0 %v12269
    %12910 = vmatprep.mubr.bf16.mxu0 %v10880
    %12911 = vmatmul.mubr.bf16.gmra.mxu0 %v10879
    %v12912 = vpop.f32.mrf.mxu0
    %v12913 = vadd.f32 %v12856, %v12912
    %v12914 = vpop.f32.mrf.mxu0
    %v12915 = vpop.f32.mrf.mxu0
    %v12916 = vadd.f32 %v12859, %v12915
    %v12917 = vpop.f32.mrf.mxu0
    %12918 = vmatprep.mubr.bf16.mxu0 %v10916
    %12919 = vmatmul.mubr.bf16.gmra.mxu0 %v10915
    %v12920 = vpop.f32.mrf.mxu0
    %v12921 = vadd.f32 %v12864, %v12920
    %v12922 = vpop.f32.mrf.mxu0
    %v12923 = vpop.f32.mrf.mxu0
    %v12924 = vadd.f32 %v12867, %v12923
    %v12925 = vpop.f32.mrf.mxu0
    %12926 = vmatprep.mubr.bf16.mxu0 %v10952
    %12927 = vmatmul.mubr.bf16.gmra.mxu0 %v10951
    %v12928 = vpop.f32.mrf.mxu0
    %v12929 = vadd.f32 %v12872, %v12928
    %v12930 = vpop.f32.mrf.mxu0
    %v12931 = vpop.f32.mrf.mxu0
    %v12932 = vadd.f32 %v12875, %v12931
    %v12933 = vpop.f32.mrf.mxu0
    %12934 = vdwg.mxu0
    %12935 = vmatprep.subr.bf16.mxu0 0
    %12936 = vmatpush1.bf16.msra.mxu0 %v12284
    %12937 = vmatprep.subr.bf16.mxu0 0
    %12938 = vmatpush1.bf16.msra.mxu0 %v12283
    %12939 = vmatprep.subr.bf16.mxu0 0
    %12940 = vmatpush1.bf16.msra.mxu0 %v12282
    %12941 = vmatprep.subr.bf16.mxu0 0
    %12942 = vmatpush1.bf16.msra.mxu0 %v12281
    %12943 = vmatprep.subr.bf16.mxu0 0
    %12944 = vmatpush1.bf16.msra.mxu0 %v12280
    %12945 = vmatprep.subr.bf16.mxu0 0
    %12946 = vmatpush1.bf16.msra.mxu0 %v12279
    %12947 = vmatprep.subr.bf16.mxu0 0
    %12948 = vmatpush1.bf16.msra.mxu0 %v12278
    %12949 = vmatprep.subr.bf16.mxu0 0
    %12950 = vmatpush1.bf16.msra.mxu0 %v12277
    %12951 = vmatprep.subr.bf16.mxu0 0
    %12952 = vmatpush2.bf16.msra.mxu0 %v12292
    %12953 = vmatprep.subr.bf16.mxu0 0
    %12954 = vmatpush2.bf16.msra.mxu0 %v12291
    %12955 = vmatprep.subr.bf16.mxu0 0
    %12956 = vmatpush2.bf16.msra.mxu0 %v12290
    %12957 = vmatprep.subr.bf16.mxu0 0
    %12958 = vmatpush2.bf16.msra.mxu0 %v12289
    %12959 = vmatprep.subr.bf16.mxu0 0
    %12960 = vmatpush2.bf16.msra.mxu0 %v12288
    %12961 = vmatprep.subr.bf16.mxu0 0
    %12962 = vmatpush2.bf16.msra.mxu0 %v12287
    %12963 = vmatprep.subr.bf16.mxu0 0
    %12964 = vmatpush2.bf16.msra.mxu0 %v12286
    %12965 = vmatprep.subr.bf16.mxu0 0
    %12966 = vmatpush2.bf16.msra.mxu0 %v12285
    %12967 = vmatprep.mubr.bf16.mxu0 %v10882
    %12968 = vmatmul.mubr.bf16.gmra.mxu0 %v10881
    %v12969 = vpop.f32.mrf.mxu0
    %v12970 = vadd.f32 %v12913, %v12969
    %v12971 = vpop.f32.mrf.mxu0
    %v12972 = vpop.f32.mrf.mxu0
    %v12973 = vadd.f32 %v12916, %v12972
    %v12974 = vpop.f32.mrf.mxu0
    %12975 = vmatprep.mubr.bf16.mxu0 %v10918
    %12976 = vmatmul.mubr.bf16.gmra.mxu0 %v10917
    %v12977 = vpop.f32.mrf.mxu0
    %v12978 = vadd.f32 %v12921, %v12977
    %v12979 = vpop.f32.mrf.mxu0
    %v12980 = vpop.f32.mrf.mxu0
    %v12981 = vadd.f32 %v12924, %v12980
    %v12982 = vpop.f32.mrf.mxu0
    %12983 = vmatprep.mubr.bf16.mxu0 %v10954
    %12984 = vmatmul.mubr.bf16.gmra.mxu0 %v10953
    %v12985 = vpop.f32.mrf.mxu0
    %v12986 = vadd.f32 %v12929, %v12985
    %v12987 = vpop.f32.mrf.mxu0
    %v12988 = vpop.f32.mrf.mxu0
    %v12989 = vadd.f32 %v12932, %v12988
    %v12990 = vpop.f32.mrf.mxu0
    %12991 = vdwg.mxu0
    %12992 = vmatprep.subr.bf16.mxu0 0
    %12993 = vmatpush1.bf16.msra.mxu0 %v12300
    %12994 = vmatprep.subr.bf16.mxu0 0
    %12995 = vmatpush1.bf16.msra.mxu0 %v12299
    %12996 = vmatprep.subr.bf16.mxu0 0
    %12997 = vmatpush1.bf16.msra.mxu0 %v12298
    %12998 = vmatprep.subr.bf16.mxu0 0
    %12999 = vmatpush1.bf16.msra.mxu0 %v12297
    %13000 = vmatprep.subr.bf16.mxu0 0
    %13001 = vmatpush1.bf16.msra.mxu0 %v12296
    %13002 = vmatprep.subr.bf16.mxu0 0
    %13003 = vmatpush1.bf16.msra.mxu0 %v12295
    %13004 = vmatprep.subr.bf16.mxu0 0
    %13005 = vmatpush1.bf16.msra.mxu0 %v12294
    %13006 = vmatprep.subr.bf16.mxu0 0
    %13007 = vmatpush1.bf16.msra.mxu0 %v12293
    %13008 = vmatprep.subr.bf16.mxu0 0
    %13009 = vmatpush2.bf16.msra.mxu0 %v12308
    %13010 = vmatprep.subr.bf16.mxu0 0
    %13011 = vmatpush2.bf16.msra.mxu0 %v12307
    %13012 = vmatprep.subr.bf16.mxu0 0
    %13013 = vmatpush2.bf16.msra.mxu0 %v12306
    %13014 = vmatprep.subr.bf16.mxu0 0
    %13015 = vmatpush2.bf16.msra.mxu0 %v12305
    %13016 = vmatprep.subr.bf16.mxu0 0
    %13017 = vmatpush2.bf16.msra.mxu0 %v12304
    %13018 = vmatprep.subr.bf16.mxu0 0
    %13019 = vmatpush2.bf16.msra.mxu0 %v12303
    %13020 = vmatprep.subr.bf16.mxu0 0
    %13021 = vmatpush2.bf16.msra.mxu0 %v12302
    %13022 = vmatprep.subr.bf16.mxu0 0
    %13023 = vmatpush2.bf16.msra.mxu0 %v12301
    %13024 = vmatprep.mubr.bf16.mxu0 %v10884
    %13025 = vmatmul.mubr.bf16.gmra.mxu0 %v10883
    %v13026 = vpop.f32.mrf.mxu0
    %v13027 = vadd.f32 %v12970, %v13026
    %v13028 = vpop.f32.mrf.mxu0
    %v13029 = vpop.f32.mrf.mxu0
    %v13030 = vadd.f32 %v12973, %v13029
    %v13031 = vpop.f32.mrf.mxu0
    %13032 = vmatprep.mubr.bf16.mxu0 %v10920
    %13033 = vmatmul.mubr.bf16.gmra.mxu0 %v10919
    %v13034 = vpop.f32.mrf.mxu0
    %v13035 = vadd.f32 %v12978, %v13034
    %v13036 = vpop.f32.mrf.mxu0
    %v13037 = vpop.f32.mrf.mxu0
    %v13038 = vadd.f32 %v12981, %v13037
    %v13039 = vpop.f32.mrf.mxu0
    %13040 = vmatprep.mubr.bf16.mxu0 %v10956
    %13041 = vmatmul.mubr.bf16.gmra.mxu0 %v10955
    %v13042 = vpop.f32.mrf.mxu0
    %v13043 = vadd.f32 %v12986, %v13042
    %v13044 = vpop.f32.mrf.mxu0
    %v13045 = vpop.f32.mrf.mxu0
    %v13046 = vadd.f32 %v12989, %v13045
    %v13047 = vpop.f32.mrf.mxu0
    %13048 = vdwg.mxu0
    %13049 = vmatprep.subr.bf16.mxu0 0
    %13050 = vmatpush1.bf16.msra.mxu0 %v12316
    %13051 = vmatprep.subr.bf16.mxu0 0
    %13052 = vmatpush1.bf16.msra.mxu0 %v12315
    %13053 = vmatprep.subr.bf16.mxu0 0
    %13054 = vmatpush1.bf16.msra.mxu0 %v12314
    %13055 = vmatprep.subr.bf16.mxu0 0
    %13056 = vmatpush1.bf16.msra.mxu0 %v12313
    %13057 = vmatprep.subr.bf16.mxu0 0
    %13058 = vmatpush1.bf16.msra.mxu0 %v12312
    %13059 = vmatprep.subr.bf16.mxu0 0
    %13060 = vmatpush1.bf16.msra.mxu0 %v12311
    %13061 = vmatprep.subr.bf16.mxu0 0
    %13062 = vmatpush1.bf16.msra.mxu0 %v12310
    %13063 = vmatprep.subr.bf16.mxu0 0
    %13064 = vmatpush1.bf16.msra.mxu0 %v12309
    %13065 = vmatprep.subr.bf16.mxu0 0
    %13066 = vmatpush2.bf16.msra.mxu0 %v12324
    %13067 = vmatprep.subr.bf16.mxu0 0
    %13068 = vmatpush2.bf16.msra.mxu0 %v12323
    %13069 = vmatprep.subr.bf16.mxu0 0
    %13070 = vmatpush2.bf16.msra.mxu0 %v12322
    %13071 = vmatprep.subr.bf16.mxu0 0
    %13072 = vmatpush2.bf16.msra.mxu0 %v12321
    %13073 = vmatprep.subr.bf16.mxu0 0
    %13074 = vmatpush2.bf16.msra.mxu0 %v12320
    %13075 = vmatprep.subr.bf16.mxu0 0
    %13076 = vmatpush2.bf16.msra.mxu0 %v12319
    %13077 = vmatprep.subr.bf16.mxu0 0
    %13078 = vmatpush2.bf16.msra.mxu0 %v12318
    %13079 = vmatprep.subr.bf16.mxu0 0
    %13080 = vmatpush2.bf16.msra.mxu0 %v12317
    %13081 = vmatprep.mubr.bf16.mxu0 %v10886
    %13082 = vmatmul.mubr.bf16.gmra.mxu0 %v10885
    %v13083 = vpop.f32.mrf.mxu0
    %v13084 = vadd.f32 %v13027, %v13083
    %v13085 = vpop.f32.mrf.mxu0
    %v13086 = vpop.f32.mrf.mxu0
    %v13087 = vadd.f32 %v13030, %v13086
    %v13088 = vpop.f32.mrf.mxu0
    %13089 = vmatprep.mubr.bf16.mxu0 %v10922
    %13090 = vmatmul.mubr.bf16.gmra.mxu0 %v10921
    %v13091 = vpop.f32.mrf.mxu0
    %v13092 = vadd.f32 %v13035, %v13091
    %v13093 = vpop.f32.mrf.mxu0
    %v13094 = vpop.f32.mrf.mxu0
    %v13095 = vadd.f32 %v13038, %v13094
    %v13096 = vpop.f32.mrf.mxu0
    %13097 = vmatprep.mubr.bf16.mxu0 %v10958
    %13098 = vmatmul.mubr.bf16.gmra.mxu0 %v10957
    %v13099 = vpop.f32.mrf.mxu0
    %v13100 = vadd.f32 %v13043, %v13099
    %v13101 = vpop.f32.mrf.mxu0
    %v13102 = vpop.f32.mrf.mxu0
    %v13103 = vadd.f32 %v13046, %v13102
    %v13104 = vpop.f32.mrf.mxu0
    %13105 = vdwg.mxu0
    %13106 = vmatprep.subr.bf16.mxu0 0
    %13107 = vmatpush1.bf16.msra.mxu0 %v12332
    %13108 = vmatprep.subr.bf16.mxu0 0
    %13109 = vmatpush1.bf16.msra.mxu0 %v12331
    %13110 = vmatprep.subr.bf16.mxu0 0
    %13111 = vmatpush1.bf16.msra.mxu0 %v12330
    %13112 = vmatprep.subr.bf16.mxu0 0
    %13113 = vmatpush1.bf16.msra.mxu0 %v12329
    %13114 = vmatprep.subr.bf16.mxu0 0
    %13115 = vmatpush1.bf16.msra.mxu0 %v12328
    %13116 = vmatprep.subr.bf16.mxu0 0
    %13117 = vmatpush1.bf16.msra.mxu0 %v12327
    %13118 = vmatprep.subr.bf16.mxu0 0
    %13119 = vmatpush1.bf16.msra.mxu0 %v12326
    %13120 = vmatprep.subr.bf16.mxu0 0
    %13121 = vmatpush1.bf16.msra.mxu0 %v12325
    %13122 = vmatprep.subr.bf16.mxu0 0
    %13123 = vmatpush2.bf16.msra.mxu0 %v12340
    %13124 = vmatprep.subr.bf16.mxu0 0
    %13125 = vmatpush2.bf16.msra.mxu0 %v12339
    %13126 = vmatprep.subr.bf16.mxu0 0
    %13127 = vmatpush2.bf16.msra.mxu0 %v12338
    %13128 = vmatprep.subr.bf16.mxu0 0
    %13129 = vmatpush2.bf16.msra.mxu0 %v12337
    %13130 = vmatprep.subr.bf16.mxu0 0
    %13131 = vmatpush2.bf16.msra.mxu0 %v12336
    %13132 = vmatprep.subr.bf16.mxu0 0
    %13133 = vmatpush2.bf16.msra.mxu0 %v12335
    %13134 = vmatprep.subr.bf16.mxu0 0
    %13135 = vmatpush2.bf16.msra.mxu0 %v12334
    %13136 = vmatprep.subr.bf16.mxu0 0
    %13137 = vmatpush2.bf16.msra.mxu0 %v12333
    %13138 = vmatprep.mubr.bf16.mxu0 %v10888
    %13139 = vmatmul.mubr.bf16.gmra.mxu0 %v10887
    %v13140 = vpop.f32.mrf.mxu0
    %v13141 = vadd.f32 %v13084, %v13140
    %v13142 = vpop.f32.mrf.mxu0
    %v13143 = vpop.f32.mrf.mxu0
    %v13144 = vadd.f32 %v13087, %v13143
    %v13145 = vpop.f32.mrf.mxu0
    %13146 = vmatprep.mubr.bf16.mxu0 %v10924
    %13147 = vmatmul.mubr.bf16.gmra.mxu0 %v10923
    %v13148 = vpop.f32.mrf.mxu0
    %v13149 = vadd.f32 %v13092, %v13148
    %v13150 = vpop.f32.mrf.mxu0
    %v13151 = vpop.f32.mrf.mxu0
    %v13152 = vadd.f32 %v13095, %v13151
    %v13153 = vpop.f32.mrf.mxu0
    %13154 = vmatprep.mubr.bf16.mxu0 %v10960
    %13155 = vmatmul.mubr.bf16.gmra.mxu0 %v10959
    %v13156 = vpop.f32.mrf.mxu0
    %v13157 = vadd.f32 %v13100, %v13156
    %v13158 = vpop.f32.mrf.mxu0
    %v13159 = vpop.f32.mrf.mxu0
    %v13160 = vadd.f32 %v13103, %v13159
    %v13161 = vpop.f32.mrf.mxu0
    %13162 = vdwg.mxu0
    %13163 = vmatprep.subr.bf16.mxu0 0
    %13164 = vmatpush1.bf16.msra.mxu0 %v12348
    %13165 = vmatprep.subr.bf16.mxu0 0
    %13166 = vmatpush1.bf16.msra.mxu0 %v12347
    %13167 = vmatprep.subr.bf16.mxu0 0
    %13168 = vmatpush1.bf16.msra.mxu0 %v12346
    %13169 = vmatprep.subr.bf16.mxu0 0
    %13170 = vmatpush1.bf16.msra.mxu0 %v12345
    %13171 = vmatprep.subr.bf16.mxu0 0
    %13172 = vmatpush1.bf16.msra.mxu0 %v12344
    %13173 = vmatprep.subr.bf16.mxu0 0
    %13174 = vmatpush1.bf16.msra.mxu0 %v12343
    %13175 = vmatprep.subr.bf16.mxu0 0
    %13176 = vmatpush1.bf16.msra.mxu0 %v12342
    %13177 = vmatprep.subr.bf16.mxu0 0
    %13178 = vmatpush1.bf16.msra.mxu0 %v12341
    %13179 = vmatprep.subr.bf16.mxu0 0
    %13180 = vmatpush2.bf16.msra.mxu0 %v12356
    %13181 = vmatprep.subr.bf16.mxu0 0
    %13182 = vmatpush2.bf16.msra.mxu0 %v12355
    %13183 = vmatprep.subr.bf16.mxu0 0
    %13184 = vmatpush2.bf16.msra.mxu0 %v12354
    %13185 = vmatprep.subr.bf16.mxu0 0
    %13186 = vmatpush2.bf16.msra.mxu0 %v12353
    %13187 = vmatprep.subr.bf16.mxu0 0
    %13188 = vmatpush2.bf16.msra.mxu0 %v12352
    %13189 = vmatprep.subr.bf16.mxu0 0
    %13190 = vmatpush2.bf16.msra.mxu0 %v12351
    %13191 = vmatprep.subr.bf16.mxu0 0
    %13192 = vmatpush2.bf16.msra.mxu0 %v12350
    %13193 = vmatprep.subr.bf16.mxu0 0
    %13194 = vmatpush2.bf16.msra.mxu0 %v12349
    %13195 = vmatprep.mubr.bf16.mxu0 %v10890
    %13196 = vmatmul.mubr.bf16.gmra.mxu0 %v10889
    %v13197 = vpop.f32.mrf.mxu0
    %v13198 = vadd.f32 %v13141, %v13197
    %v13199 = vpop.f32.mrf.mxu0
    %v13200 = vpop.f32.mrf.mxu0
    %v13201 = vadd.f32 %v13144, %v13200
    %v13202 = vpop.f32.mrf.mxu0
    %13203 = vmatprep.mubr.bf16.mxu0 %v10926
    %13204 = vmatmul.mubr.bf16.gmra.mxu0 %v10925
    %v13205 = vpop.f32.mrf.mxu0
    %v13206 = vadd.f32 %v13149, %v13205
    %v13207 = vpop.f32.mrf.mxu0
    %v13208 = vpop.f32.mrf.mxu0
    %v13209 = vadd.f32 %v13152, %v13208
    %v13210 = vpop.f32.mrf.mxu0
    %13211 = vmatprep.mubr.bf16.mxu0 %v10962
    %13212 = vmatmul.mubr.bf16.gmra.mxu0 %v10961
    %v13213 = vpop.f32.mrf.mxu0
    %v13214 = vadd.f32 %v13157, %v13213
    %v13215 = vpop.f32.mrf.mxu0
    %v13216 = vpop.f32.mrf.mxu0
    %v13217 = vadd.f32 %v13160, %v13216
    %v13218 = vpop.f32.mrf.mxu0
    %13219 = vdwg.mxu0
    %13220 = vmatprep.subr.bf16.mxu0 0
    %13221 = vmatpush1.bf16.msra.mxu0 %v12364
    %13222 = vmatprep.subr.bf16.mxu0 0
    %13223 = vmatpush1.bf16.msra.mxu0 %v12363
    %13224 = vmatprep.subr.bf16.mxu0 0
    %13225 = vmatpush1.bf16.msra.mxu0 %v12362
    %13226 = vmatprep.subr.bf16.mxu0 0
    %13227 = vmatpush1.bf16.msra.mxu0 %v12361
    %13228 = vmatprep.subr.bf16.mxu0 0
    %13229 = vmatpush1.bf16.msra.mxu0 %v12360
    %13230 = vmatprep.subr.bf16.mxu0 0
    %13231 = vmatpush1.bf16.msra.mxu0 %v12359
    %13232 = vmatprep.subr.bf16.mxu0 0
    %13233 = vmatpush1.bf16.msra.mxu0 %v12358
    %13234 = vmatprep.subr.bf16.mxu0 0
    %13235 = vmatpush1.bf16.msra.mxu0 %v12357
    %13236 = vmatprep.subr.bf16.mxu0 0
    %13237 = vmatpush2.bf16.msra.mxu0 %v12372
    %13238 = vmatprep.subr.bf16.mxu0 0
    %13239 = vmatpush2.bf16.msra.mxu0 %v12371
    %13240 = vmatprep.subr.bf16.mxu0 0
    %13241 = vmatpush2.bf16.msra.mxu0 %v12370
    %13242 = vmatprep.subr.bf16.mxu0 0
    %13243 = vmatpush2.bf16.msra.mxu0 %v12369
    %13244 = vmatprep.subr.bf16.mxu0 0
    %13245 = vmatpush2.bf16.msra.mxu0 %v12368
    %13246 = vmatprep.subr.bf16.mxu0 0
    %13247 = vmatpush2.bf16.msra.mxu0 %v12367
    %13248 = vmatprep.subr.bf16.mxu0 0
    %13249 = vmatpush2.bf16.msra.mxu0 %v12366
    %13250 = vmatprep.subr.bf16.mxu0 0
    %13251 = vmatpush2.bf16.msra.mxu0 %v12365
    %13252 = vmatprep.mubr.bf16.mxu0 %v10892
    %13253 = vmatmul.mubr.bf16.gmra.mxu0 %v10891
    %v13254 = vpop.f32.mrf.mxu0
    %v13255 = vadd.f32 %v13198, %v13254
    %v13256 = vpop.f32.mrf.mxu0
    %v13257 = vpop.f32.mrf.mxu0
    %v13258 = vadd.f32 %v13201, %v13257
    %v13259 = vpop.f32.mrf.mxu0
    %13260 = vmatprep.mubr.bf16.mxu0 %v10928
    %13261 = vmatmul.mubr.bf16.gmra.mxu0 %v10927
    %v13262 = vpop.f32.mrf.mxu0
    %v13263 = vadd.f32 %v13206, %v13262
    %v13264 = vpop.f32.mrf.mxu0
    %v13265 = vpop.f32.mrf.mxu0
    %v13266 = vadd.f32 %v13209, %v13265
    %v13267 = vpop.f32.mrf.mxu0
    %13268 = vmatprep.mubr.bf16.mxu0 %v10964
    %13269 = vmatmul.mubr.bf16.gmra.mxu0 %v10963
    %v13270 = vpop.f32.mrf.mxu0
    %v13271 = vadd.f32 %v13214, %v13270
    %v13272 = vpop.f32.mrf.mxu0
    %v13273 = vpop.f32.mrf.mxu0
    %v13274 = vadd.f32 %v13217, %v13273
    %v13275 = vpop.f32.mrf.mxu0
    %13276 = vdwg.mxu0
    %13277 = vmatprep.subr.bf16.mxu0 0
    %13278 = vmatpush1.bf16.msra.mxu0 %v12380
    %13279 = vmatprep.subr.bf16.mxu0 0
    %13280 = vmatpush1.bf16.msra.mxu0 %v12379
    %13281 = vmatprep.subr.bf16.mxu0 0
    %13282 = vmatpush1.bf16.msra.mxu0 %v12378
    %13283 = vmatprep.subr.bf16.mxu0 0
    %13284 = vmatpush1.bf16.msra.mxu0 %v12377
    %13285 = vmatprep.subr.bf16.mxu0 0
    %13286 = vmatpush1.bf16.msra.mxu0 %v12376
    %13287 = vmatprep.subr.bf16.mxu0 0
    %13288 = vmatpush1.bf16.msra.mxu0 %v12375
    %13289 = vmatprep.subr.bf16.mxu0 0
    %13290 = vmatpush1.bf16.msra.mxu0 %v12374
    %13291 = vmatprep.subr.bf16.mxu0 0
    %13292 = vmatpush1.bf16.msra.mxu0 %v12373
    %13293 = vmatprep.subr.bf16.mxu0 0
    %13294 = vmatpush2.bf16.msra.mxu0 %v12388
    %13295 = vmatprep.subr.bf16.mxu0 0
    %13296 = vmatpush2.bf16.msra.mxu0 %v12387
    %13297 = vmatprep.subr.bf16.mxu0 0
    %13298 = vmatpush2.bf16.msra.mxu0 %v12386
    %13299 = vmatprep.subr.bf16.mxu0 0
    %13300 = vmatpush2.bf16.msra.mxu0 %v12385
    %13301 = vmatprep.subr.bf16.mxu0 0
    %13302 = vmatpush2.bf16.msra.mxu0 %v12384
    %13303 = vmatprep.subr.bf16.mxu0 0
    %13304 = vmatpush2.bf16.msra.mxu0 %v12383
    %13305 = vmatprep.subr.bf16.mxu0 0
    %13306 = vmatpush2.bf16.msra.mxu0 %v12382
    %13307 = vmatprep.subr.bf16.mxu0 0
    %13308 = vmatpush2.bf16.msra.mxu0 %v12381
    %13309 = vmatprep.mubr.bf16.mxu0 %v10894
    %13310 = vmatmul.mubr.bf16.gmra.mxu0 %v10893
    %v13311 = vpop.f32.mrf.mxu0
    %v13312 = vadd.f32 %v13255, %v13311
    %v13313 = vpop.f32.mrf.mxu0
    %v13314 = vpop.f32.mrf.mxu0
    %v13315 = vadd.f32 %v13258, %v13314
    %v13316 = vpop.f32.mrf.mxu0
    %13317 = vmatprep.mubr.bf16.mxu0 %v10930
    %13318 = vmatmul.mubr.bf16.gmra.mxu0 %v10929
    %v13319 = vpop.f32.mrf.mxu0
    %v13320 = vadd.f32 %v13263, %v13319
    %v13321 = vpop.f32.mrf.mxu0
    %v13322 = vpop.f32.mrf.mxu0
    %v13323 = vadd.f32 %v13266, %v13322
    %v13324 = vpop.f32.mrf.mxu0
    %13325 = vmatprep.mubr.bf16.mxu0 %v10966
    %13326 = vmatmul.mubr.bf16.gmra.mxu0 %v10965
    %v13327 = vpop.f32.mrf.mxu0
    %v13328 = vadd.f32 %v13271, %v13327
    %v13329 = vpop.f32.mrf.mxu0
    %v13330 = vpop.f32.mrf.mxu0
    %v13331 = vadd.f32 %v13274, %v13330
    %v13332 = vpop.f32.mrf.mxu0
    %13333 = vdwg.mxu0
    %13334 = vmatprep.subr.bf16.mxu0 0
    %13335 = vmatpush1.bf16.msra.mxu0 %v12396
    %13336 = vmatprep.subr.bf16.mxu0 0
    %13337 = vmatpush1.bf16.msra.mxu0 %v12395
    %13338 = vmatprep.subr.bf16.mxu0 0
    %13339 = vmatpush1.bf16.msra.mxu0 %v12394
    %13340 = vmatprep.subr.bf16.mxu0 0
    %13341 = vmatpush1.bf16.msra.mxu0 %v12393
    %13342 = vmatprep.subr.bf16.mxu0 0
    %13343 = vmatpush1.bf16.msra.mxu0 %v12392
    %13344 = vmatprep.subr.bf16.mxu0 0
    %13345 = vmatpush1.bf16.msra.mxu0 %v12391
    %13346 = vmatprep.subr.bf16.mxu0 0
    %13347 = vmatpush1.bf16.msra.mxu0 %v12390
    %13348 = vmatprep.subr.bf16.mxu0 0
    %13349 = vmatpush1.bf16.msra.mxu0 %v12389
    %13350 = vmatprep.subr.bf16.mxu0 0
    %13351 = vmatpush2.bf16.msra.mxu0 %v12404
    %13352 = vmatprep.subr.bf16.mxu0 0
    %13353 = vmatpush2.bf16.msra.mxu0 %v12403
    %13354 = vmatprep.subr.bf16.mxu0 0
    %13355 = vmatpush2.bf16.msra.mxu0 %v12402
    %13356 = vmatprep.subr.bf16.mxu0 0
    %13357 = vmatpush2.bf16.msra.mxu0 %v12401
    %13358 = vmatprep.subr.bf16.mxu0 0
    %13359 = vmatpush2.bf16.msra.mxu0 %v12400
    %13360 = vmatprep.subr.bf16.mxu0 0
    %13361 = vmatpush2.bf16.msra.mxu0 %v12399
    %13362 = vmatprep.subr.bf16.mxu0 0
    %13363 = vmatpush2.bf16.msra.mxu0 %v12398
    %13364 = vmatprep.subr.bf16.mxu0 0
    %13365 = vmatpush2.bf16.msra.mxu0 %v12397
    %13366 = vmatprep.mubr.bf16.mxu0 %v10896
    %13367 = vmatmul.mubr.bf16.gmra.mxu0 %v10895
    %v13368 = vpop.f32.mrf.mxu0
    %v13369 = vadd.f32 %v13312, %v13368
    %v13370 = vpop.f32.mrf.mxu0
    %v13371 = vpop.f32.mrf.mxu0
    %v13372 = vadd.f32 %v13315, %v13371
    %v13373 = vpop.f32.mrf.mxu0
    %13374 = vmatprep.mubr.bf16.mxu0 %v10932
    %13375 = vmatmul.mubr.bf16.gmra.mxu0 %v10931
    %v13376 = vpop.f32.mrf.mxu0
    %v13377 = vadd.f32 %v13320, %v13376
    %v13378 = vpop.f32.mrf.mxu0
    %v13379 = vpop.f32.mrf.mxu0
    %v13380 = vadd.f32 %v13323, %v13379
    %v13381 = vpop.f32.mrf.mxu0
    %13382 = vmatprep.mubr.bf16.mxu0 %v10968
    %13383 = vmatmul.mubr.bf16.gmra.mxu0 %v10967
    %v13384 = vpop.f32.mrf.mxu0
    %v13385 = vadd.f32 %v13328, %v13384
    %v13386 = vpop.f32.mrf.mxu0
    %v13387 = vpop.f32.mrf.mxu0
    %v13388 = vadd.f32 %v13331, %v13387
    %v13389 = vpop.f32.mrf.mxu0
    %13390 = vdwg.mxu0
    %13391 = vmatprep.subr.bf16.mxu0 0
    %13392 = vmatpush1.bf16.msra.mxu0 %v12412
    %13393 = vmatprep.subr.bf16.mxu0 0
    %13394 = vmatpush1.bf16.msra.mxu0 %v12411
    %13395 = vmatprep.subr.bf16.mxu0 0
    %13396 = vmatpush1.bf16.msra.mxu0 %v12410
    %13397 = vmatprep.subr.bf16.mxu0 0
    %13398 = vmatpush1.bf16.msra.mxu0 %v12409
    %13399 = vmatprep.subr.bf16.mxu0 0
    %13400 = vmatpush1.bf16.msra.mxu0 %v12408
    %13401 = vmatprep.subr.bf16.mxu0 0
    %13402 = vmatpush1.bf16.msra.mxu0 %v12407
    %13403 = vmatprep.subr.bf16.mxu0 0
    %13404 = vmatpush1.bf16.msra.mxu0 %v12406
    %13405 = vmatprep.subr.bf16.mxu0 0
    %13406 = vmatpush1.bf16.msra.mxu0 %v12405
    %13407 = vmatprep.subr.bf16.mxu0 0
    %13408 = vmatpush2.bf16.msra.mxu0 %v12420
    %13409 = vmatprep.subr.bf16.mxu0 0
    %13410 = vmatpush2.bf16.msra.mxu0 %v12419
    %13411 = vmatprep.subr.bf16.mxu0 0
    %13412 = vmatpush2.bf16.msra.mxu0 %v12418
    %13413 = vmatprep.subr.bf16.mxu0 0
    %13414 = vmatpush2.bf16.msra.mxu0 %v12417
    %13415 = vmatprep.subr.bf16.mxu0 0
    %13416 = vmatpush2.bf16.msra.mxu0 %v12416
    %13417 = vmatprep.subr.bf16.mxu0 0
    %13418 = vmatpush2.bf16.msra.mxu0 %v12415
    %13419 = vmatprep.subr.bf16.mxu0 0
    %13420 = vmatpush2.bf16.msra.mxu0 %v12414
    %13421 = vmatprep.subr.bf16.mxu0 0
    %13422 = vmatpush2.bf16.msra.mxu0 %v12413
    %13423 = vmatprep.mubr.bf16.mxu0 %v10898
    %13424 = vmatmul.mubr.bf16.gmra.mxu0 %v10897
    %v13425 = vpop.f32.mrf.mxu0
    %v13426 = vadd.f32 %v13369, %v13425
    %v13427 = vpop.f32.mrf.mxu0
    %v13428 = vpop.f32.mrf.mxu0
    %v13429 = vadd.f32 %v13372, %v13428
    %v13430 = vpop.f32.mrf.mxu0
    %13431 = vmatprep.mubr.bf16.mxu0 %v10934
    %13432 = vmatmul.mubr.bf16.gmra.mxu0 %v10933
    %v13433 = vpop.f32.mrf.mxu0
    %v13434 = vadd.f32 %v13377, %v13433
    %v13435 = vpop.f32.mrf.mxu0
    %v13436 = vpop.f32.mrf.mxu0
    %v13437 = vadd.f32 %v13380, %v13436
    %v13438 = vpop.f32.mrf.mxu0
    %13439 = vmatprep.mubr.bf16.mxu0 %v10970
    %13440 = vmatmul.mubr.bf16.gmra.mxu0 %v10969
    %v13441 = vpop.f32.mrf.mxu0
    %v13442 = vadd.f32 %v13385, %v13441
    %v13443 = vpop.f32.mrf.mxu0
    %v13444 = vpop.f32.mrf.mxu0
    %v13445 = vadd.f32 %v13388, %v13444
    %v13446 = vpop.f32.mrf.mxu0
    %13447 = vdwg.mxu0
    %13448 = vmatprep.subr.bf16.mxu0 0
    %13449 = vmatpush1.bf16.msra.mxu0 %v12428
    %13450 = vmatprep.subr.bf16.mxu0 0
    %13451 = vmatpush1.bf16.msra.mxu0 %v12427
    %13452 = vmatprep.subr.bf16.mxu0 0
    %13453 = vmatpush1.bf16.msra.mxu0 %v12426
    %13454 = vmatprep.subr.bf16.mxu0 0
    %13455 = vmatpush1.bf16.msra.mxu0 %v12425
    %13456 = vmatprep.subr.bf16.mxu0 0
    %13457 = vmatpush1.bf16.msra.mxu0 %v12424
    %13458 = vmatprep.subr.bf16.mxu0 0
    %13459 = vmatpush1.bf16.msra.mxu0 %v12423
    %13460 = vmatprep.subr.bf16.mxu0 0
    %13461 = vmatpush1.bf16.msra.mxu0 %v12422
    %13462 = vmatprep.subr.bf16.mxu0 0
    %13463 = vmatpush1.bf16.msra.mxu0 %v12421
    %13464 = vmatprep.subr.bf16.mxu0 0
    %13465 = vmatpush2.bf16.msra.mxu0 %v12436
    %13466 = vmatprep.subr.bf16.mxu0 0
    %13467 = vmatpush2.bf16.msra.mxu0 %v12435
    %13468 = vmatprep.subr.bf16.mxu0 0
    %13469 = vmatpush2.bf16.msra.mxu0 %v12434
    %13470 = vmatprep.subr.bf16.mxu0 0
    %13471 = vmatpush2.bf16.msra.mxu0 %v12433
    %13472 = vmatprep.subr.bf16.mxu0 0
    %13473 = vmatpush2.bf16.msra.mxu0 %v12432
    %13474 = vmatprep.subr.bf16.mxu0 0
    %13475 = vmatpush2.bf16.msra.mxu0 %v12431
    %13476 = vmatprep.subr.bf16.mxu0 0
    %13477 = vmatpush2.bf16.msra.mxu0 %v12430
    %13478 = vmatprep.subr.bf16.mxu0 0
    %13479 = vmatpush2.bf16.msra.mxu0 %v12429
    %13480 = vmatprep.mubr.bf16.mxu0 %v10900
    %13481 = vmatmul.mubr.bf16.gmra.mxu0 %v10899
    %v13482 = vpop.f32.mrf.mxu0
    %v13483 = vadd.f32 %v13426, %v13482
    %v13484 = vpop.f32.mrf.mxu0
    %v13485 = vpop.f32.mrf.mxu0
    %v13486 = vadd.f32 %v13429, %v13485
    %v13487 = vpop.f32.mrf.mxu0
    %13488 = vmatprep.mubr.bf16.mxu0 %v10936
    %13489 = vmatmul.mubr.bf16.gmra.mxu0 %v10935
    %v13490 = vpop.f32.mrf.mxu0
    %v13491 = vadd.f32 %v13434, %v13490
    %v13492 = vpop.f32.mrf.mxu0
    %v13493 = vpop.f32.mrf.mxu0
    %v13494 = vadd.f32 %v13437, %v13493
    %v13495 = vpop.f32.mrf.mxu0
    %13496 = vmatprep.mubr.bf16.mxu0 %v10972
    %13497 = vmatmul.mubr.bf16.gmra.mxu0 %v10971
    %v13498 = vpop.f32.mrf.mxu0
    %v13499 = vadd.f32 %v13442, %v13498
    %v13500 = vpop.f32.mrf.mxu0
    %v13501 = vpop.f32.mrf.mxu0
    %v13502 = vadd.f32 %v13445, %v13501
    %v13503 = vpop.f32.mrf.mxu0
    %13504 = vdwg.mxu0
    %13505 = vmatprep.subr.bf16.mxu0 0
    %13506 = vmatpush1.bf16.msra.mxu0 %v12444
    %13507 = vmatprep.subr.bf16.mxu0 0
    %13508 = vmatpush1.bf16.msra.mxu0 %v12443
    %13509 = vmatprep.subr.bf16.mxu0 0
    %13510 = vmatpush1.bf16.msra.mxu0 %v12442
    %13511 = vmatprep.subr.bf16.mxu0 0
    %13512 = vmatpush1.bf16.msra.mxu0 %v12441
    %13513 = vmatprep.subr.bf16.mxu0 0
    %13514 = vmatpush1.bf16.msra.mxu0 %v12440
    %13515 = vmatprep.subr.bf16.mxu0 0
    %13516 = vmatpush1.bf16.msra.mxu0 %v12439
    %13517 = vmatprep.subr.bf16.mxu0 0
    %13518 = vmatpush1.bf16.msra.mxu0 %v12438
    %13519 = vmatprep.subr.bf16.mxu0 0
    %13520 = vmatpush1.bf16.msra.mxu0 %v12437
    %13521 = vmatprep.subr.bf16.mxu0 0
    %13522 = vmatpush2.bf16.msra.mxu0 %v12452
    %13523 = vmatprep.subr.bf16.mxu0 0
    %13524 = vmatpush2.bf16.msra.mxu0 %v12451
    %13525 = vmatprep.subr.bf16.mxu0 0
    %13526 = vmatpush2.bf16.msra.mxu0 %v12450
    %13527 = vmatprep.subr.bf16.mxu0 0
    %13528 = vmatpush2.bf16.msra.mxu0 %v12449
    %13529 = vmatprep.subr.bf16.mxu0 0
    %13530 = vmatpush2.bf16.msra.mxu0 %v12448
    %13531 = vmatprep.subr.bf16.mxu0 0
    %13532 = vmatpush2.bf16.msra.mxu0 %v12447
    %13533 = vmatprep.subr.bf16.mxu0 0
    %13534 = vmatpush2.bf16.msra.mxu0 %v12446
    %13535 = vmatprep.subr.bf16.mxu0 0
    %13536 = vmatpush2.bf16.msra.mxu0 %v12445
    %13537 = vmatprep.mubr.bf16.mxu0 %v10902
    %13538 = vmatmul.mubr.bf16.gmra.mxu0 %v10901
    %v13539 = vpop.f32.mrf.mxu0
    %v13540 = vadd.f32 %v13483, %v13539
    %v13541 = vpop.f32.mrf.mxu0
    %v13542 = vpop.f32.mrf.mxu0
    %v13543 = vadd.f32 %v13486, %v13542
    %v13544 = vpop.f32.mrf.mxu0
    %13545 = vmatprep.mubr.bf16.mxu0 %v10938
    %13546 = vmatmul.mubr.bf16.gmra.mxu0 %v10937
    %v13547 = vpop.f32.mrf.mxu0
    %v13548 = vadd.f32 %v13491, %v13547
    %v13549 = vpop.f32.mrf.mxu0
    %v13550 = vpop.f32.mrf.mxu0
    %v13551 = vadd.f32 %v13494, %v13550
    %v13552 = vpop.f32.mrf.mxu0
    %13553 = vmatprep.mubr.bf16.mxu0 %v10974
    %13554 = vmatmul.mubr.bf16.gmra.mxu0 %v10973
    %v13555 = vpop.f32.mrf.mxu0
    %v13556 = vadd.f32 %v13499, %v13555
    %v13557 = vpop.f32.mrf.mxu0
    %v13558 = vpop.f32.mrf.mxu0
    %v13559 = vadd.f32 %v13502, %v13558
    %v13560 = vpop.f32.mrf.mxu0
    %13561 = vdwg.mxu0
    %13562 = vmatprep.subr.bf16.mxu0 0
    %13563 = vmatpush1.bf16.msra.mxu0 %v12460
    %13564 = vmatprep.subr.bf16.mxu0 0
    %13565 = vmatpush1.bf16.msra.mxu0 %v12459
    %13566 = vmatprep.subr.bf16.mxu0 0
    %13567 = vmatpush1.bf16.msra.mxu0 %v12458
    %13568 = vmatprep.subr.bf16.mxu0 0
    %13569 = vmatpush1.bf16.msra.mxu0 %v12457
    %13570 = vmatprep.subr.bf16.mxu0 0
    %13571 = vmatpush1.bf16.msra.mxu0 %v12456
    %13572 = vmatprep.subr.bf16.mxu0 0
    %13573 = vmatpush1.bf16.msra.mxu0 %v12455
    %13574 = vmatprep.subr.bf16.mxu0 0
    %13575 = vmatpush1.bf16.msra.mxu0 %v12454
    %13576 = vmatprep.subr.bf16.mxu0 0
    %13577 = vmatpush1.bf16.msra.mxu0 %v12453
    %13578 = vmatprep.subr.bf16.mxu0 0
    %13579 = vmatpush2.bf16.msra.mxu0 %v12468
    %13580 = vmatprep.subr.bf16.mxu0 0
    %13581 = vmatpush2.bf16.msra.mxu0 %v12467
    %13582 = vmatprep.subr.bf16.mxu0 0
    %13583 = vmatpush2.bf16.msra.mxu0 %v12466
    %13584 = vmatprep.subr.bf16.mxu0 0
    %13585 = vmatpush2.bf16.msra.mxu0 %v12465
    %13586 = vmatprep.subr.bf16.mxu0 0
    %13587 = vmatpush2.bf16.msra.mxu0 %v12464
    %13588 = vmatprep.subr.bf16.mxu0 0
    %13589 = vmatpush2.bf16.msra.mxu0 %v12463
    %13590 = vmatprep.subr.bf16.mxu0 0
    %13591 = vmatpush2.bf16.msra.mxu0 %v12462
    %13592 = vmatprep.subr.bf16.mxu0 0
    %13593 = vmatpush2.bf16.msra.mxu0 %v12461
    %13594 = vmatprep.mubr.bf16.mxu0 %v10904
    %13595 = vmatmul.mubr.bf16.gmra.mxu0 %v10903
    %v13596 = vpop.f32.mrf.mxu0
    %v13597 = vadd.f32 %v13540, %v13596
    %v13598 = vpop.f32.mrf.mxu0
    %v13599 = vpop.f32.mrf.mxu0
    %v13600 = vadd.f32 %v13543, %v13599
    %v13601 = vpop.f32.mrf.mxu0
    %13602 = vmatprep.mubr.bf16.mxu0 %v10940
    %13603 = vmatmul.mubr.bf16.gmra.mxu0 %v10939
    %v13604 = vpop.f32.mrf.mxu0
    %v13605 = vadd.f32 %v13548, %v13604
    %v13606 = vpop.f32.mrf.mxu0
    %v13607 = vpop.f32.mrf.mxu0
    %v13608 = vadd.f32 %v13551, %v13607
    %v13609 = vpop.f32.mrf.mxu0
    %13610 = vmatprep.mubr.bf16.mxu0 %v10976
    %13611 = vmatmul.mubr.bf16.gmra.mxu0 %v10975
    %v13612 = vpop.f32.mrf.mxu0
    %v13613 = vadd.f32 %v13556, %v13612
    %v13614 = vpop.f32.mrf.mxu0
    %v13615 = vpop.f32.mrf.mxu0
    %v13616 = vadd.f32 %v13559, %v13615
    %v13617 = vpop.f32.mrf.mxu0
    %13618 = vdwg.mxu0
    %13619 = vmatprep.subr.bf16.mxu0 0
    %13620 = vmatpush1.bf16.msra.mxu0 %v12476
    %13621 = vmatprep.subr.bf16.mxu0 0
    %13622 = vmatpush1.bf16.msra.mxu0 %v12475
    %13623 = vmatprep.subr.bf16.mxu0 0
    %13624 = vmatpush1.bf16.msra.mxu0 %v12474
    %13625 = vmatprep.subr.bf16.mxu0 0
    %13626 = vmatpush1.bf16.msra.mxu0 %v12473
    %13627 = vmatprep.subr.bf16.mxu0 0
    %13628 = vmatpush1.bf16.msra.mxu0 %v12472
    %13629 = vmatprep.subr.bf16.mxu0 0
    %13630 = vmatpush1.bf16.msra.mxu0 %v12471
    %13631 = vmatprep.subr.bf16.mxu0 0
    %13632 = vmatpush1.bf16.msra.mxu0 %v12470
    %13633 = vmatprep.subr.bf16.mxu0 0
    %13634 = vmatpush1.bf16.msra.mxu0 %v12469
    %13635 = vmatprep.subr.bf16.mxu0 0
    %13636 = vmatpush2.bf16.msra.mxu0 %v12484
    %13637 = vmatprep.subr.bf16.mxu0 0
    %13638 = vmatpush2.bf16.msra.mxu0 %v12483
    %13639 = vmatprep.subr.bf16.mxu0 0
    %13640 = vmatpush2.bf16.msra.mxu0 %v12482
    %13641 = vmatprep.subr.bf16.mxu0 0
    %13642 = vmatpush2.bf16.msra.mxu0 %v12481
    %13643 = vmatprep.subr.bf16.mxu0 0
    %13644 = vmatpush2.bf16.msra.mxu0 %v12480
    %13645 = vmatprep.subr.bf16.mxu0 0
    %13646 = vmatpush2.bf16.msra.mxu0 %v12479
    %13647 = vmatprep.subr.bf16.mxu0 0
    %13648 = vmatpush2.bf16.msra.mxu0 %v12478
    %13649 = vmatprep.subr.bf16.mxu0 0
    %13650 = vmatpush2.bf16.msra.mxu0 %v12477
    %13651 = vmatprep.mubr.bf16.mxu0 %v10906
    %13652 = vmatmul.mubr.bf16.gmra.mxu0 %v10905
    %v13653 = vpop.f32.mrf.mxu0
    %v13654 = vadd.f32 %v13597, %v13653
    %v13655 = vpop.f32.mrf.mxu0
    %v13656 = vpop.f32.mrf.mxu0
    %v13657 = vadd.f32 %v13600, %v13656
    %v13658 = vpop.f32.mrf.mxu0
    %13659 = vmatprep.mubr.bf16.mxu0 %v10942
    %13660 = vmatmul.mubr.bf16.gmra.mxu0 %v10941
    %v13661 = vpop.f32.mrf.mxu0
    %v13662 = vadd.f32 %v13605, %v13661
    %v13663 = vpop.f32.mrf.mxu0
    %v13664 = vpop.f32.mrf.mxu0
    %v13665 = vadd.f32 %v13608, %v13664
    %v13666 = vpop.f32.mrf.mxu0
    %13667 = vmatprep.mubr.bf16.mxu0 %v10978
    %13668 = vmatmul.mubr.bf16.gmra.mxu0 %v10977
    %v13669 = vpop.f32.mrf.mxu0
    %v13670 = vadd.f32 %v13613, %v13669
    %v13671 = vpop.f32.mrf.mxu0
    %v13672 = vpop.f32.mrf.mxu0
    %v13673 = vadd.f32 %v13616, %v13672
    %v13674 = vpop.f32.mrf.mxu0
    %13675 = vdwg.mxu0
    %13676 = vmatprep.subr.bf16.mxu0 0
    %13677 = vmatpush1.bf16.msra.mxu0 %v12492
    %13678 = vmatprep.subr.bf16.mxu0 0
    %13679 = vmatpush1.bf16.msra.mxu0 %v12491
    %13680 = vmatprep.subr.bf16.mxu0 0
    %13681 = vmatpush1.bf16.msra.mxu0 %v12490
    %13682 = vmatprep.subr.bf16.mxu0 0
    %13683 = vmatpush1.bf16.msra.mxu0 %v12489
    %13684 = vmatprep.subr.bf16.mxu0 0
    %13685 = vmatpush1.bf16.msra.mxu0 %v12488
    %13686 = vmatprep.subr.bf16.mxu0 0
    %13687 = vmatpush1.bf16.msra.mxu0 %v12487
    %13688 = vmatprep.subr.bf16.mxu0 0
    %13689 = vmatpush1.bf16.msra.mxu0 %v12486
    %13690 = vmatprep.subr.bf16.mxu0 0
    %13691 = vmatpush1.bf16.msra.mxu0 %v12485
    %13692 = vmatprep.subr.bf16.mxu0 0
    %13693 = vmatpush2.bf16.msra.mxu0 %v12500
    %13694 = vmatprep.subr.bf16.mxu0 0
    %13695 = vmatpush2.bf16.msra.mxu0 %v12499
    %13696 = vmatprep.subr.bf16.mxu0 0
    %13697 = vmatpush2.bf16.msra.mxu0 %v12498
    %13698 = vmatprep.subr.bf16.mxu0 0
    %13699 = vmatpush2.bf16.msra.mxu0 %v12497
    %13700 = vmatprep.subr.bf16.mxu0 0
    %13701 = vmatpush2.bf16.msra.mxu0 %v12496
    %13702 = vmatprep.subr.bf16.mxu0 0
    %13703 = vmatpush2.bf16.msra.mxu0 %v12495
    %13704 = vmatprep.subr.bf16.mxu0 0
    %13705 = vmatpush2.bf16.msra.mxu0 %v12494
    %13706 = vmatprep.subr.bf16.mxu0 0
    %13707 = vmatpush2.bf16.msra.mxu0 %v12493
    %13708 = vmatprep.mubr.bf16.mxu0 %v10908
    %13709 = vmatmul.mubr.bf16.gmra.mxu0 %v10907
    %v13710 = vpop.f32.mrf.mxu0
    %v13711 = vadd.f32 %v13654, %v13710
    %v13712 = vpop.f32.mrf.mxu0
    %v13713 = vpop.f32.mrf.mxu0
    %v13714 = vadd.f32 %v13657, %v13713
    %v13715 = vpop.f32.mrf.mxu0
    %13716 = vmatprep.mubr.bf16.mxu0 %v10944
    %13717 = vmatmul.mubr.bf16.gmra.mxu0 %v10943
    %v13718 = vpop.f32.mrf.mxu0
    %v13719 = vadd.f32 %v13662, %v13718
    %v13720 = vpop.f32.mrf.mxu0
    %v13721 = vpop.f32.mrf.mxu0
    %v13722 = vadd.f32 %v13665, %v13721
    %v13723 = vpop.f32.mrf.mxu0
    %13724 = vmatprep.mubr.bf16.mxu0 %v10980
    %13725 = vmatmul.mubr.bf16.gmra.mxu0 %v10979
    %v13726 = vpop.f32.mrf.mxu0
    %v13727 = vadd.f32 %v13670, %v13726
    %v13728 = vpop.f32.mrf.mxu0
    %v13729 = vpop.f32.mrf.mxu0
    %v13730 = vadd.f32 %v13673, %v13729
    %v13731 = vpop.f32.mrf.mxu0
    %13732 = vdwg.mxu0
    %13733 = vmatprep.subr.bf16.mxu0 0
    %13734 = vmatpush1.bf16.msra.mxu0 %v12508
    %13735 = vmatprep.subr.bf16.mxu0 0
    %13736 = vmatpush1.bf16.msra.mxu0 %v12507
    %13737 = vmatprep.subr.bf16.mxu0 0
    %13738 = vmatpush1.bf16.msra.mxu0 %v12506
    %13739 = vmatprep.subr.bf16.mxu0 0
    %13740 = vmatpush1.bf16.msra.mxu0 %v12505
    %13741 = vmatprep.subr.bf16.mxu0 0
    %13742 = vmatpush1.bf16.msra.mxu0 %v12504
    %13743 = vmatprep.subr.bf16.mxu0 0
    %13744 = vmatpush1.bf16.msra.mxu0 %v12503
    %13745 = vmatprep.subr.bf16.mxu0 0
    %13746 = vmatpush1.bf16.msra.mxu0 %v12502
    %13747 = vmatprep.subr.bf16.mxu0 0
    %13748 = vmatpush1.bf16.msra.mxu0 %v12501
    %13749 = vmatprep.subr.bf16.mxu0 0
    %13750 = vmatpush2.bf16.msra.mxu0 %v12516
    %13751 = vmatprep.subr.bf16.mxu0 0
    %13752 = vmatpush2.bf16.msra.mxu0 %v12515
    %13753 = vmatprep.subr.bf16.mxu0 0
    %13754 = vmatpush2.bf16.msra.mxu0 %v12514
    %13755 = vmatprep.subr.bf16.mxu0 0
    %13756 = vmatpush2.bf16.msra.mxu0 %v12513
    %13757 = vmatprep.subr.bf16.mxu0 0
    %13758 = vmatpush2.bf16.msra.mxu0 %v12512
    %13759 = vmatprep.subr.bf16.mxu0 0
    %13760 = vmatpush2.bf16.msra.mxu0 %v12511
    %13761 = vmatprep.subr.bf16.mxu0 0
    %13762 = vmatpush2.bf16.msra.mxu0 %v12510
    %13763 = vmatprep.subr.bf16.mxu0 0
    %13764 = vmatpush2.bf16.msra.mxu0 %v12509
    %13765 = vmatprep.mubr.bf16.mxu0 %v10910
    %13766 = vmatmul.mubr.bf16.gmra.mxu0 %v10909
    %v13767 = vpop.f32.mrf.mxu0
    %v13768 = vadd.f32 %v13711, %v13767
    %v13769 = vpop.f32.mrf.mxu0
    %v13770 = vpop.f32.mrf.mxu0
    %v13771 = vadd.f32 %v13714, %v13770
    %v13772 = vpop.f32.mrf.mxu0
    %13773 = vmatprep.mubr.bf16.mxu0 %v10946
    %13774 = vmatmul.mubr.bf16.gmra.mxu0 %v10945
    %v13775 = vpop.f32.mrf.mxu0
    %v13776 = vadd.f32 %v13719, %v13775
    %v13777 = vpop.f32.mrf.mxu0
    %v13778 = vpop.f32.mrf.mxu0
    %v13779 = vadd.f32 %v13722, %v13778
    %v13780 = vpop.f32.mrf.mxu0
    %13781 = vmatprep.mubr.bf16.mxu0 %v10982
    %13782 = vmatmul.mubr.bf16.gmra.mxu0 %v10981
    %v13783 = vpop.f32.mrf.mxu0
    %v13784 = vadd.f32 %v13727, %v13783
    %v13785 = vpop.f32.mrf.mxu0
    %v13786 = vpop.f32.mrf.mxu0
    %v13787 = vadd.f32 %v13730, %v13786
    %v13788 = vpop.f32.mrf.mxu0
    %13789 = vdwg.mxu0
    %13790 = vmatprep.subr.bf16.mxu0 0
    %13791 = vmatpush1.bf16.msra.mxu0 %v12524
    %13792 = vmatprep.subr.bf16.mxu0 0
    %13793 = vmatpush1.bf16.msra.mxu0 %v12523
    %13794 = vmatprep.subr.bf16.mxu0 0
    %13795 = vmatpush1.bf16.msra.mxu0 %v12522
    %13796 = vmatprep.subr.bf16.mxu0 0
    %13797 = vmatpush1.bf16.msra.mxu0 %v12521
    %13798 = vmatprep.subr.bf16.mxu0 0
    %13799 = vmatpush1.bf16.msra.mxu0 %v12520
    %13800 = vmatprep.subr.bf16.mxu0 0
    %13801 = vmatpush1.bf16.msra.mxu0 %v12519
    %13802 = vmatprep.subr.bf16.mxu0 0
    %13803 = vmatpush1.bf16.msra.mxu0 %v12518
    %13804 = vmatprep.subr.bf16.mxu0 0
    %13805 = vmatpush1.bf16.msra.mxu0 %v12517
    %13806 = vmatprep.subr.bf16.mxu0 0
    %13807 = vmatpush2.bf16.msra.mxu0 %v12532
    %13808 = vmatprep.subr.bf16.mxu0 0
    %13809 = vmatpush2.bf16.msra.mxu0 %v12531
    %13810 = vmatprep.subr.bf16.mxu0 0
    %13811 = vmatpush2.bf16.msra.mxu0 %v12530
    %13812 = vmatprep.subr.bf16.mxu0 0
    %13813 = vmatpush2.bf16.msra.mxu0 %v12529
    %13814 = vmatprep.subr.bf16.mxu0 0
    %13815 = vmatpush2.bf16.msra.mxu0 %v12528
    %13816 = vmatprep.subr.bf16.mxu0 0
    %13817 = vmatpush2.bf16.msra.mxu0 %v12527
    %13818 = vmatprep.subr.bf16.mxu0 0
    %13819 = vmatpush2.bf16.msra.mxu0 %v12526
    %13820 = vmatprep.subr.bf16.mxu0 0
    %13821 = vmatpush2.bf16.msra.mxu0 %v12525
    %13822 = vmatprep.mubr.bf16.mxu0 %v10912
    %13823 = vmatmul.mubr.bf16.gmra.mxu0 %v10911
    %v13824 = vpop.f32.mrf.mxu0
    %v13825 = vadd.f32 %v13768, %v13824
    %v13826 = vpop.f32.mrf.mxu0
    %v13827 = vpop.f32.mrf.mxu0
    %v13828 = vadd.f32 %v13771, %v13827
    %v13829 = vpop.f32.mrf.mxu0
    %13830 = vmatprep.mubr.bf16.mxu0 %v10948
    %13831 = vmatmul.mubr.bf16.gmra.mxu0 %v10947
    %v13832 = vpop.f32.mrf.mxu0
    %v13833 = vadd.f32 %v13776, %v13832
    %v13834 = vpop.f32.mrf.mxu0
    %v13835 = vpop.f32.mrf.mxu0
    %v13836 = vadd.f32 %v13779, %v13835
    %v13837 = vpop.f32.mrf.mxu0
    %13838 = vmatprep.mubr.bf16.mxu0 %v10984
    %13839 = vmatmul.mubr.bf16.gmra.mxu0 %v10983
    %v13840 = vpop.f32.mrf.mxu0
    %v13841 = vadd.f32 %v13784, %v13840
    %v13842 = vpop.f32.mrf.mxu0
    %v13843 = vpop.f32.mrf.mxu0
    %v13844 = vadd.f32 %v13787, %v13843
    %v13845 = vpop.f32.mrf.mxu0
    %13846 = vdwg.mxu0
    %v13847 = vmax.f32 %v13825, 0.0
    %v13848 = vmax.f32 %v13828, 0.0
    %v13849 = vmax.f32 %v13833, 0.0
    %v13850 = vmax.f32 %v13836, 0.0
    %v13851 = vmax.f32 %v13841, 0.0
    %v13852 = vmax.f32 %v13844, 0.0
    %v13853 = vmin.f32 %v13847, 1.0
    %v13854 = vmin.f32 %v13848, 1.0
    %v13855 = vmin.f32 %v13849, 1.0
    %v13856 = vmin.f32 %v13850, 1.0
    %v13857 = vmin.f32 %v13851, 1.0
    %v13858 = vmin.f32 %v13852, 1.0
    %13859 = vst [vmem:[%s6] sm:$0xff] %v13853
    %13860 = vst [vmem:[%s6 + $0x8] sm:$0xff] %v13854
    %13861 = vst [vmem:[%s6 + $0x10] sm:$0xff] %v13855
    %13862 = vst [vmem:[%s6 + $0x18] sm:$0xff] %v13856
    %13863 = vst [vmem:[%s6 + $0x20] sm:$0xff] %v13857
    %13864 = vst [vmem:[%s6 + $0x28] sm:$0xff] %v13858
    // Predicated region
    $region42: #{dehazenet_forward.1} parent=1 // pred_check
      _
    $region43: #{dehazenet_forward.1} parent=1 // pred_check_branch
      %13866 = sbr.rel (0) target = $region45
    $region44: #{dehazenet_forward.1} parent=1 // pred_region
      _
    $region45: #{dehazenet_forward.1} parent=1 // pred_fallthru
      _
    // Predicated region
    $region46: #{dehazenet_forward.1} parent=1 // pred_check
      _
    $region47: #{dehazenet_forward.1} parent=1 // pred_check_branch
      %13868 = sbr.rel (0) target = $region49
    $region48: #{dehazenet_forward.1} parent=1 // pred_region
      _
    $region49: #{dehazenet_forward.1} parent=1 // pred_fallthru
      _
    %13869 = vsyncpa [#allocation9], 1
    %13870 = vsyncpa [#allocation11], 1
    %13871 = vsyncpa [#allocation14], 1

</llo_original>
